<compile_context>
chip_gen: v7x
topology: tpu7x:2x2x1
jax: 0.10.0
libtpu: 0.0.40
codegen_flags: <defaults>
</compile_context>

<pallas_src>
import functools
import math

import jax
import jax.numpy as jnp
from jax.experimental import pallas as pl
from jax.experimental.pallas import tpu as pltpu  # noqa: F401  (kept for TPU-specific tuning)

# ----- model / problem configuration (small, consistent with the module) -----
B = 2           # batch
S = 8           # decoder sequence length
S_ENC = 8       # encoder sequence length
D_MODEL = 32
NUM_HEADS = 4
D_KV = D_MODEL // NUM_HEADS      # 8
D_FF = 64
NUM_BUCKETS = 32
MAX_DISTANCE = 128
EPS = 1e-6


# ============================ in-kernel helpers ============================

def _t5_layernorm(x, w, eps):
    # variance = mean(x^2, -1); x * rsqrt(var + eps); weight * x  (rsqrt -> EUP)
    var = jnp.mean(x * x, axis=-1, keepdims=True)
    return w * (x * jax.lax.rsqrt(var + eps))


def _mha(xq_flat, xkv_flat, add_mask, pos_bias_ref,
         wq_ref, bq_ref, wk_ref, bk_ref, wv_ref, bv_ref, wo_ref, bo_ref,
         batch, sq, skv, num_heads, d_kv, d_model):
    """Multi-head attention with per-head pre-split weights.

    xq_flat : (B*Sq, D)      xkv_flat : (B*Skv, D)
    add_mask: (B, 1, Skv) additive mask
    pos_bias_ref: (H, Sq, Skv) relative-position bias or None
    wq/wk/wv refs: (H, D, d_kv); bq/bk/bv refs: (H, 1, d_kv)
    wo ref: (H, d_kv, D); bo ref: (1, D)
    """
    inv_scale = 1.0 / float(d_kv * d_kv)   # NOTE: module divides by d_kv**2 (not sqrt)
    # Hoist the mask broadcast out of the head loop (JAX does not CSE broadcast_in_dim).
    mask_b = jnp.broadcast_to(add_mask, (batch, sq, skv))

    attn = jnp.zeros((batch * sq, d_model), jnp.float32)
    for h in range(num_heads):                       # static unroll, H=4
        q = (jnp.dot(xq_flat, wq_ref[h], preferred_element_type=jnp.float32)
             + bq_ref[h]).reshape(batch, sq, d_kv)
        k = (jnp.dot(xkv_flat, wk_ref[h], preferred_element_type=jnp.float32)
             + bk_ref[h]).reshape(batch, skv, d_kv)
        v = (jnp.dot(xkv_flat, wv_ref[h], preferred_element_type=jnp.float32)
             + bv_ref[h]).reshape(batch, skv, d_kv)

        scores = jnp.einsum('bqd,bkd->bqk', q, k,
                            preferred_element_type=jnp.float32)       # (B, Sq, Skv)
        if pos_bias_ref is not None:
            scores = scores + pos_bias_ref[h][None]
        scores = (scores + mask_b) * inv_scale

        scores = scores - jnp.max(scores, axis=-1, keepdims=True)
        p = jnp.exp(scores)
        p = p * pl.reciprocal(jnp.sum(p, axis=-1, keepdims=True))      # exact reciprocal

        ctx = jnp.einsum('bqk,bkd->bqd', p, v,
                         preferred_element_type=jnp.float32)           # (B, Sq, d_kv)
        # Output projection accumulated per head (== concat-heads then project).
        attn = attn + jnp.dot(ctx.reshape(batch * sq, d_kv), wo_ref[h],
                              preferred_element_type=jnp.float32)
    return attn + bo_ref[...]


# ============================ fused Pallas kernel ============================

def t5_block_kernel(hid_ref, enc_ref, pos_bias_ref, self_mask_ref, enc_mask_ref,
                    sa_ln, sa_wq, sa_bq, sa_wk, sa_bk, sa_wv, sa_bv, sa_wo, sa_bo,
                    ca_ln, ca_wq, ca_bq, ca_wk, ca_bk, ca_wv, ca_bv, ca_wo, ca_bo,
                    ff_ln, ff_w1, ff_b1, ff_w2, ff_b2,
                    out_ref, *, batch, seq_q, seq_kv, num_heads, d_kv, d_model, eps):
    x = hid_ref[...]                        # (B*Sq, D), stays in VMEM/vregs throughout
    enc = enc_ref[...]                      # (B*Skv, D)

    # ---- SelfAttention sublayer (has_relative_attention_bias=True) ----
    xn = _t5_layernorm(x, sa_ln[...], eps)
    attn = _mha(xn, xn, self_mask_ref[...], pos_bias_ref,
                sa_wq, sa_bq, sa_wk, sa_bk, sa_wv, sa_bv, sa_wo, sa_bo,
                batch, seq_q, seq_q, num_heads, d_kv, d_model)
    x = x + attn

    # ---- CrossAttention sublayer (no relative bias) ----
    xn = _t5_layernorm(x, ca_ln[...], eps)
    attn = _mha(xn, enc, enc_mask_ref[...], None,
                ca_wq, ca_bq, ca_wk, ca_bk, ca_wv, ca_bv, ca_wo, ca_bo,
                batch, seq_q, seq_kv, num_heads, d_kv, d_model)
    x = x + attn

    # ---- FFn sublayer ----
    xn = _t5_layernorm(x, ff_ln[...], eps)
    h = jnp.maximum(
        jnp.dot(xn, ff_w1[...], preferred_element_type=jnp.float32) + ff_b1[...], 0.0)
    h = jnp.dot(h, ff_w2[...], preferred_element_type=jnp.float32) + ff_b2[...]
    out_ref[...] = x + h


# ============================ glue (plain JAX) ============================

def relative_position_bucket(qlen, num_buckets=NUM_BUCKETS, max_distance=MAX_DISTANCE):
    # bidirectional=True branch of Attention._relative_position_bucket
    ctx_pos = jnp.arange(qlen, dtype=jnp.int32)[:, None]
    mem_pos = jnp.arange(qlen, dtype=jnp.int32)[None, :]
    rel = mem_pos - ctx_pos
    nb = num_buckets // 2
    buckets = (rel > 0).astype(jnp.int32) * nb
    rel = jnp.abs(rel)
    max_exact = nb // 2
    is_small = rel < max_exact
    rel_safe = jnp.maximum(rel, 1)          # avoid log(0) in the discarded branch
    rel_large = max_exact + (
        jnp.log(rel_safe.astype(jnp.float32) / max_exact)
        / math.log(max_distance / max_exact) * (nb - max_exact)
    ).astype(jnp.int32)
    rel_large = jnp.minimum(rel_large, nb - 1)
    return buckets + jnp.where(is_small, rel, rel_large)


def _split_attn_params(p):
    """Pre-split (D,D) projection weights per head on the host (free XLA reshapes)."""
    def w_in(w):   # (D, D) -> (H, D, d_kv)
        return w.reshape(D_MODEL, NUM_HEADS, D_KV).transpose(1, 0, 2)

    def b_in(b):   # (1, D) -> (H, 1, d_kv)
        return b.reshape(1, NUM_HEADS, D_KV).transpose(1, 0, 2)

    return dict(
        ln=p['ln'],
        wq=w_in(p['wq']), bq=b_in(p['bq']),
        wk=w_in(p['wk']), bk=b_in(p['bk']),
        wv=w_in(p['wv']), bv=b_in(p['bv']),
        wo=p['wo'].reshape(NUM_HEADS, D_KV, D_MODEL),   # (H, d_kv, D)
        bo=p['bo'],
    )


def t5_block_forward(params, hidden, attention_masks, encoder_hidden, encoder_attention_mask):
    Bh, Sq, D = hidden.shape
    Skv = encoder_hidden.shape[1]

    # relative position bias: (H, Sq, Sq)
    buckets = relative_position_bucket(Sq)
    pos_bias = jnp.transpose(params['rel_bias'][buckets], (2, 0, 1))

    # module return value: attention_masks = position_bias + attention_masks -> (B, H, Sq, Sq)
    attention_masks_out = pos_bias[None] + attention_masks

    # kernel inputs: batch folded into sublanes; raw (un-broadcast) additive masks
    hid_flat = hidden.reshape(Bh * Sq, D)
    enc_flat = encoder_hidden.reshape(Bh * Skv, D)
    self_mask = attention_masks.reshape(Bh, 1, Sq).astype(jnp.float32)
    enc_mask = encoder_attention_mask.reshape(Bh, 1, Skv).astype(jnp.float32)

    sa = _split_attn_params(params['self_attn'])
    ca = _split_attn_params(params['cross_attn'])
    ff = params['ffn']

    kernel = functools.partial(
        t5_block_kernel, batch=Bh, seq_q=Sq, seq_kv=Skv,
        num_heads=NUM_HEADS, d_kv=D_KV, d_model=D, eps=EPS)

    out_flat = pl.pallas_call(
        kernel,
        out_shape=jax.ShapeDtypeStruct((Bh * Sq, D), jnp.float32),
        # grid-less single invocation: every operand lives whole-array in VMEM,
        # so `hidden` never round-trips HBM between the three sublayers.
    )(hid_flat, enc_flat, pos_bias, self_mask, enc_mask,
      sa['ln'], sa['wq'], sa['bq'], sa['wk'], sa['bk'],
      sa['wv'], sa['bv'], sa['wo'], sa['bo'],
      ca['ln'], ca['wq'], ca['bq'], ca['wk'], ca['bk'],
      ca['wv'], ca['bv'], ca['wo'], ca['bo'],
      ff['ln'], ff['w1'], ff['b1'], ff['w2'], ff['b2'])

    hidden_out = out_flat.reshape(Bh, Sq, D)
    return hidden_out, attention_masks_out, encoder_hidden, encoder_attention_mask


def init_params(key):
    ks = iter(jax.random.split(key, 32))

    def lin(fan_in, fan_out):
        w = jax.random.normal(next(ks), (fan_in, fan_out), jnp.float32) * 0.05
        b = jax.random.normal(next(ks), (1, fan_out), jnp.float32) * 0.05
        return w, b

    def attn_params():
        p = {'ln': jnp.ones((1, D_MODEL), jnp.float32)}
        for name in ('q', 'k', 'v', 'o'):
            w, b = lin(D_MODEL, D_MODEL)
            p['w' + name] = w
            p['b' + name] = b
        return p

    params = {
        'self_attn': attn_params(),
        'cross_attn': attn_params(),
        'rel_bias': jax.random.normal(
            next(ks), (NUM_BUCKETS, NUM_HEADS), jnp.float32) * 0.1,
        'ffn': {'ln': jnp.ones((1, D_MODEL), jnp.float32)},
    }
    w1, b1 = lin(D_MODEL, D_FF)
    w2, b2 = lin(D_FF, D_MODEL)
    params['ffn'].update(w1=w1, b1=b1, w2=w2, b2=b2)
    return params


# ============================ pure-JAX reference ============================

def reference_t5_block(params, hidden, attn_mask, enc_hidden, enc_mask):
    def t5_ln(x, w):
        var = jnp.mean(x * x, axis=-1, keepdims=True)
        return w * (x * jax.lax.rsqrt(var + EPS))

    def attention(q_in, kv_in, mask, p):
        Bh, Sq, D = q_in.shape
        Skv = kv_in.shape[1]
        q = q_in @ p['wq'] + p['bq']
        k = kv_in @ p['wk'] + p['bk']
        v = kv_in @ p['wv'] + p['bv']
        qh = q.reshape(Bh, Sq, NUM_HEADS, D_KV).transpose(0, 2, 1, 3)
        kh = k.reshape(Bh, Skv, NUM_HEADS, D_KV).transpose(0, 2, 1, 3)
        vh = v.reshape(Bh, Skv, NUM_HEADS, D_KV).transpose(0, 2, 1, 3)
        scores = jnp.einsum('bhqd,bhkd->bhqk', qh, kh) + mask
        w_ = jax.nn.softmax(scores / float(D_KV ** 2), axis=-1)
        ctx = jnp.einsum('bhqk,bhkd->bhqd', w_, vh).transpose(0, 2, 1, 3).reshape(Bh, Sq, D)
        return ctx @ p['wo'] + p['bo']

    buckets = relative_position_bucket(hidden.shape[1])
    pos_bias = jnp.transpose(params['rel_bias'][buckets], (2, 0, 1))[None]
    mask = pos_bias + attn_mask

    sa = params['self_attn']
    normed = t5_ln(hidden, sa['ln'])
    x = hidden + attention(normed, normed, mask, sa)

    ca = params['cross_attn']
    x = x + attention(t5_ln(x, ca['ln']), enc_hidden, enc_mask, ca)

    ff = params['ffn']
    h = t5_ln(x, ff['ln'])
    h = jnp.maximum(h @ ff['w1'] + ff['b1'], 0.0)
    h = h @ ff['w2'] + ff['b2']
    x = x + h
    return x, mask, enc_hidden, enc_mask


# ============================ main ============================

if __name__ == "__main__":
    key = jax.random.PRNGKey(0)
    k_par, k_h, k_e, k_m, k_me = jax.random.split(key, 5)

    params = init_params(k_par)
    hidden = jax.random.normal(k_h, (B, S, D_MODEL), jnp.float32)
    enc_hidden = jax.random.normal(k_e, (B, S_ENC, D_MODEL), jnp.float32)

    # additive masks: 0.0 keep, -1e9 masked (shape (B, 1, 1, S_kv), like HF/T5)
    self_keep = (jax.random.uniform(k_m, (B, 1, 1, S)) > 0.2).astype(jnp.float32)
    attn_mask = (1.0 - self_keep) * -1e9
    enc_keep = (jax.random.uniform(k_me, (B, 1, 1, S_ENC)) > 0.2).astype(jnp.float32)
    enc_mask = (1.0 - enc_keep) * -1e9

    forward = jax.jit(t5_block_forward)
    out, out_mask, out_enc, out_enc_mask = forward(
        params, hidden, attn_mask, enc_hidden, enc_mask)
    jax.block_until_ready(out)

    ref_out, ref_mask, _, _ = reference_t5_block(
        params, hidden, attn_mask, enc_hidden, enc_mask)
    assert out.shape == (B, S, D_MODEL)
    assert jnp.allclose(out, ref_out, atol=1e-4, rtol=1e-4), "hidden_states mismatch vs reference"
    assert jnp.allclose(out_mask, ref_mask, atol=1e-4, rtol=1e-4), \
        "attention_masks mismatch vs reference"

    print("KERNEL_OK")
</pallas_src>

<mosaic_0001>
module attributes {stable_mosaic.version = 11 : i64} {
  func.func @t5_block_kernel(%arg0: memref<16x32xf32, #tpu.memory_space<vmem>>, %arg1: memref<16x32xf32, #tpu.memory_space<vmem>>, %arg2: memref<4x8x8xf32, #tpu.memory_space<vmem>>, %arg3: memref<2x1x8xf32, #tpu.memory_space<vmem>>, %arg4: memref<2x1x8xf32, #tpu.memory_space<vmem>>, %arg5: memref<1x32xf32, #tpu.memory_space<vmem>>, %arg6: memref<4x32x8xf32, #tpu.memory_space<vmem>>, %arg7: memref<4x1x8xf32, #tpu.memory_space<vmem>>, %arg8: memref<4x32x8xf32, #tpu.memory_space<vmem>>, %arg9: memref<4x1x8xf32, #tpu.memory_space<vmem>>, %arg10: memref<4x32x8xf32, #tpu.memory_space<vmem>>, %arg11: memref<4x1x8xf32, #tpu.memory_space<vmem>>, %arg12: memref<4x8x32xf32, #tpu.memory_space<vmem>>, %arg13: memref<1x32xf32, #tpu.memory_space<vmem>>, %arg14: memref<1x32xf32, #tpu.memory_space<vmem>>, %arg15: memref<4x32x8xf32, #tpu.memory_space<vmem>>, %arg16: memref<4x1x8xf32, #tpu.memory_space<vmem>>, %arg17: memref<4x32x8xf32, #tpu.memory_space<vmem>>, %arg18: memref<4x1x8xf32, #tpu.memory_space<vmem>>, %arg19: memref<4x32x8xf32, #tpu.memory_space<vmem>>, %arg20: memref<4x1x8xf32, #tpu.memory_space<vmem>>, %arg21: memref<4x8x32xf32, #tpu.memory_space<vmem>>, %arg22: memref<1x32xf32, #tpu.memory_space<vmem>>, %arg23: memref<1x32xf32, #tpu.memory_space<vmem>>, %arg24: memref<32x64xf32, #tpu.memory_space<vmem>>, %arg25: memref<1x64xf32, #tpu.memory_space<vmem>>, %arg26: memref<64x32xf32, #tpu.memory_space<vmem>>, %arg27: memref<1x32xf32, #tpu.memory_space<vmem>>, %arg28: memref<16x32xf32, #tpu.memory_space<vmem>>) attributes {dimension_semantics = [], scalar_prefetch = 0 : i64, scratch_operands = 0 : i64, tpu.core_type = #tpu.core_type<tc>} {
    %c0 = arith.constant 0 : index
    %c0_0 = arith.constant 0 : index
    %0 = vector.load %arg0[%c0, %c0_0] : memref<16x32xf32, #tpu.memory_space<vmem>>, vector<16x32xf32>
    %c0_1 = arith.constant 0 : index
    %c0_2 = arith.constant 0 : index
    %1 = vector.load %arg1[%c0_1, %c0_2] : memref<16x32xf32, #tpu.memory_space<vmem>>, vector<16x32xf32>
    %c0_3 = arith.constant 0 : index
    %c0_4 = arith.constant 0 : index
    %2 = vector.load %arg5[%c0_3, %c0_4] : memref<1x32xf32, #tpu.memory_space<vmem>>, vector<1x32xf32>
    %3 = arith.mulf %0, %0 : vector<16x32xf32>
    %cst = arith.constant dense<0.000000e+00> : vector<16xf32>
    %4 = vector.multi_reduction <add>, %3, %cst [1] : vector<16x32xf32> to vector<16xf32>
    %5 = vector.shape_cast %4 : vector<16xf32> to vector<16x1xf32>
    %cst_5 = arith.constant 3.200000e+01 : f32
    %6 = vector.broadcast %cst_5 : f32 to vector<16x1xf32>
    %7 = arith.divf %5, %6 : vector<16x1xf32>
    %cst_6 = arith.constant 9.99999997E-7 : f32
    %8 = vector.broadcast %cst_6 : f32 to vector<16x1xf32>
    %9 = arith.addf %7, %8 : vector<16x1xf32>
    %10 = math.rsqrt %9 : vector<16x1xf32>
    %11 = vector.broadcast %10 : vector<16x1xf32> to vector<16x32xf32>
    %12 = arith.mulf %0, %11 : vector<16x32xf32>
    %13 = vector.broadcast %2 : vector<1x32xf32> to vector<16x32xf32>
    %14 = arith.mulf %13, %12 : vector<16x32xf32>
    %c0_7 = arith.constant 0 : index
    %c0_8 = arith.constant 0 : index
    %c0_9 = arith.constant 0 : index
    %15 = vector.load %arg3[%c0_7, %c0_8, %c0_9] : memref<2x1x8xf32, #tpu.memory_space<vmem>>, vector<2x1x8xf32>
    %16 = vector.shape_cast %15 : vector<2x1x8xf32> to vector<2x1x8xf32>
    %17 = vector.broadcast %16 : vector<2x1x8xf32> to vector<2x8x8xf32>
    %cst_10 = arith.constant 0.000000e+00 : f32
    %18 = vector.broadcast %cst_10 : f32 to vector<16x32xf32>
    %c0_11 = arith.constant 0 : index
    %c0_12 = arith.constant 0 : index
    %c0_13 = arith.constant 0 : index
    %19 = vector.load %arg6[%c0_11, %c0_12, %c0_13] : memref<4x32x8xf32, #tpu.memory_space<vmem>>, vector<1x32x8xf32>
    %20 = vector.shape_cast %19 : vector<1x32x8xf32> to vector<32x8xf32>
    %cst_14 = arith.constant dense<0.000000e+00> : vector<16x8xf32>
    %21 = tpu.matmul %14, %20, %cst_14 {dimension_numbers = #tpu.dot_dimension_numbers<[1], [0], [0], [1], [0, 0, 1, 1], [], []>} : vector<16x32xf32>, vector<32x8xf32>, vector<16x8xf32> -> vector<16x8xf32>
    %c0_15 = arith.constant 0 : index
    %c0_16 = arith.constant 0 : index
    %c0_17 = arith.constant 0 : index
    %22 = vector.load %arg7[%c0_15, %c0_16, %c0_17] : memref<4x1x8xf32, #tpu.memory_space<vmem>>, vector<1x1x8xf32>
    %23 = vector.shape_cast %22 : vector<1x1x8xf32> to vector<1x8xf32>
    %24 = vector.broadcast %23 : vector<1x8xf32> to vector<16x8xf32>
    %25 = arith.addf %21, %24 : vector<16x8xf32>
    %26 = vector.shape_cast %25 : vector<16x8xf32> to vector<2x8x8xf32>
    %c0_18 = arith.constant 0 : index
    %c0_19 = arith.constant 0 : index
    %c0_20 = arith.constant 0 : index
    %27 = vector.load %arg8[%c0_18, %c0_19, %c0_20] : memref<4x32x8xf32, #tpu.memory_space<vmem>>, vector<1x32x8xf32>
    %28 = vector.shape_cast %27 : vector<1x32x8xf32> to vector<32x8xf32>
    %cst_21 = arith.constant dense<0.000000e+00> : vector<16x8xf32>
    %29 = tpu.matmul %14, %28, %cst_21 {dimension_numbers = #tpu.dot_dimension_numbers<[1], [0], [0], [1], [0, 0, 1, 1], [], []>} : vector<16x32xf32>, vector<32x8xf32>, vector<16x8xf32> -> vector<16x8xf32>
    %c0_22 = arith.constant 0 : index
    %c0_23 = arith.constant 0 : index
    %c0_24 = arith.constant 0 : index
    %30 = vector.load %arg9[%c0_22, %c0_23, %c0_24] : memref<4x1x8xf32, #tpu.memory_space<vmem>>, vector<1x1x8xf32>
    %31 = vector.shape_cast %30 : vector<1x1x8xf32> to vector<1x8xf32>
    %32 = vector.broadcast %31 : vector<1x8xf32> to vector<16x8xf32>
    %33 = arith.addf %29, %32 : vector<16x8xf32>
    %34 = vector.shape_cast %33 : vector<16x8xf32> to vector<2x8x8xf32>
    %c0_25 = arith.constant 0 : index
    %c0_26 = arith.constant 0 : index
    %c0_27 = arith.constant 0 : index
    %35 = vector.load %arg10[%c0_25, %c0_26, %c0_27] : memref<4x32x8xf32, #tpu.memory_space<vmem>>, vector<1x32x8xf32>
    %36 = vector.shape_cast %35 : vector<1x32x8xf32> to vector<32x8xf32>
    %cst_28 = arith.constant dense<0.000000e+00> : vector<16x8xf32>
    %37 = tpu.matmul %14, %36, %cst_28 {dimension_numbers = #tpu.dot_dimension_numbers<[1], [0], [0], [1], [0, 0, 1, 1], [], []>} : vector<16x32xf32>, vector<32x8xf32>, vector<16x8xf32> -> vector<16x8xf32>
    %c0_29 = arith.constant 0 : index
    %c0_30 = arith.constant 0 : index
    %c0_31 = arith.constant 0 : index
    %38 = vector.load %arg11[%c0_29, %c0_30, %c0_31] : memref<4x1x8xf32, #tpu.memory_space<vmem>>, vector<1x1x8xf32>
    %39 = vector.shape_cast %38 : vector<1x1x8xf32> to vector<1x8xf32>
    %40 = vector.broadcast %39 : vector<1x8xf32> to vector<16x8xf32>
    %41 = arith.addf %37, %40 : vector<16x8xf32>
    %42 = vector.shape_cast %41 : vector<16x8xf32> to vector<2x8x8xf32>
    "tpu.trace_start"() <{level = 10 : i32, message = "bqd,bkd->bqk"}> : () -> ()
    %cst_32 = arith.constant dense<0.000000e+00> : vector<2x8x8xf32>
    %43 = tpu.matmul %26, %34, %cst_32 {dimension_numbers = #tpu.dot_dimension_numbers<[2], [2], [1], [1], [0, 0, 0, 1, 1, 1], [0], [0]>} : vector<2x8x8xf32>, vector<2x8x8xf32>, vector<2x8x8xf32> -> vector<2x8x8xf32>
    "tpu.trace_stop"() : () -> ()
    %c0_33 = arith.constant 0 : index
    %c0_34 = arith.constant 0 : index
    %c0_35 = arith.constant 0 : index
    %44 = vector.load %arg2[%c0_33, %c0_34, %c0_35] : memref<4x8x8xf32, #tpu.memory_space<vmem>>, vector<1x8x8xf32>
    %45 = vector.shape_cast %44 : vector<1x8x8xf32> to vector<8x8xf32>
    %46 = vector.shape_cast %45 : vector<8x8xf32> to vector<1x8x8xf32>
    %47 = vector.broadcast %46 : vector<1x8x8xf32> to vector<2x8x8xf32>
    %48 = arith.addf %43, %47 : vector<2x8x8xf32>
    %49 = arith.addf %48, %17 : vector<2x8x8xf32>
    %cst_36 = arith.constant 1.562500e-02 : f32
    %50 = vector.broadcast %cst_36 : f32 to vector<2x8x8xf32>
    %51 = arith.mulf %49, %50 : vector<2x8x8xf32>
    %cst_37 = arith.constant dense<0xFF800000> : vector<2x8xf32>
    %52 = vector.multi_reduction <maximumf>, %51, %cst_37 [2] : vector<2x8x8xf32> to vector<2x8xf32>
    %53 = vector.shape_cast %52 : vector<2x8xf32> to vector<2x8x1xf32>
    %54 = vector.broadcast %53 : vector<2x8x1xf32> to vector<2x8x8xf32>
    %55 = arith.subf %51, %54 : vector<2x8x8xf32>
    %56 = math.exp %55 : vector<2x8x8xf32>
    %cst_38 = arith.constant dense<0.000000e+00> : vector<2x8xf32>
    %57 = vector.multi_reduction <add>, %56, %cst_38 [2] : vector<2x8x8xf32> to vector<2x8xf32>
    %58 = vector.shape_cast %57 : vector<2x8xf32> to vector<2x8x1xf32>
    %59 = tpu.reciprocal %58 : vector<2x8x1xf32> -> vector<2x8x1xf32>
    %60 = vector.broadcast %59 : vector<2x8x1xf32> to vector<2x8x8xf32>
    %61 = arith.mulf %56, %60 : vector<2x8x8xf32>
    "tpu.trace_start"() <{level = 10 : i32, message = "bqk,bkd->bqd"}> : () -> ()
    %cst_39 = arith.constant dense<0.000000e+00> : vector<2x8x8xf32>
    %62 = tpu.matmul %61, %42, %cst_39 {dimension_numbers = #tpu.dot_dimension_numbers<[2], [1], [1], [2], [0, 0, 0, 1, 1, 2], [0], [0]>} : vector<2x8x8xf32>, vector<2x8x8xf32>, vector<2x8x8xf32> -> vector<2x8x8xf32>
    "tpu.trace_stop"() : () -> ()
    %63 = vector.shape_cast %62 : vector<2x8x8xf32> to vector<16x8xf32>
    %c0_40 = arith.constant 0 : index
    %c0_41 = arith.constant 0 : index
    %c0_42 = arith.constant 0 : index
    %64 = vector.load %arg12[%c0_40, %c0_41, %c0_42] : memref<4x8x32xf32, #tpu.memory_space<vmem>>, vector<1x8x32xf32>
    %65 = vector.shape_cast %64 : vector<1x8x32xf32> to vector<8x32xf32>
    %cst_43 = arith.constant dense<0.000000e+00> : vector<16x32xf32>
    %66 = tpu.matmul %63, %65, %cst_43 {dimension_numbers = #tpu.dot_dimension_numbers<[1], [0], [0], [1], [0, 0, 1, 1], [], []>} : vector<16x8xf32>, vector<8x32xf32>, vector<16x32xf32> -> vector<16x32xf32>
    %67 = arith.addf %18, %66 : vector<16x32xf32>
    %c1 = arith.constant 1 : index
    %c0_44 = arith.constant 0 : index
    %c0_45 = arith.constant 0 : index
    %68 = vector.load %arg6[%c1, %c0_44, %c0_45] : memref<4x32x8xf32, #tpu.memory_space<vmem>>, vector<1x32x8xf32>
    %69 = vector.shape_cast %68 : vector<1x32x8xf32> to vector<32x8xf32>
    %cst_46 = arith.constant dense<0.000000e+00> : vector<16x8xf32>
    %70 = tpu.matmul %14, %69, %cst_46 {dimension_numbers = #tpu.dot_dimension_numbers<[1], [0], [0], [1], [0, 0, 1, 1], [], []>} : vector<16x32xf32>, vector<32x8xf32>, vector<16x8xf32> -> vector<16x8xf32>
    %c1_47 = arith.constant 1 : index
    %c0_48 = arith.constant 0 : index
    %c0_49 = arith.constant 0 : index
    %71 = vector.load %arg7[%c1_47, %c0_48, %c0_49] : memref<4x1x8xf32, #tpu.memory_space<vmem>>, vector<1x1x8xf32>
    %72 = vector.shape_cast %71 : vector<1x1x8xf32> to vector<1x8xf32>
    %73 = vector.broadcast %72 : vector<1x8xf32> to vector<16x8xf32>
    %74 = arith.addf %70, %73 : vector<16x8xf32>
    %75 = vector.shape_cast %74 : vector<16x8xf32> to vector<2x8x8xf32>
    %c1_50 = arith.constant 1 : index
    %c0_51 = arith.constant 0 : index
    %c0_52 = arith.constant 0 : index
    %76 = vector.load %arg8[%c1_50, %c0_51, %c0_52] : memref<4x32x8xf32, #tpu.memory_space<vmem>>, vector<1x32x8xf32>
    %77 = vector.shape_cast %76 : vector<1x32x8xf32> to vector<32x8xf32>
    %cst_53 = arith.constant dense<0.000000e+00> : vector<16x8xf32>
    %78 = tpu.matmul %14, %77, %cst_53 {dimension_numbers = #tpu.dot_dimension_numbers<[1], [0], [0], [1], [0, 0, 1, 1], [], []>} : vector<16x32xf32>, vector<32x8xf32>, vector<16x8xf32> -> vector<16x8xf32>
    %c1_54 = arith.constant 1 : index
    %c0_55 = arith.constant 0 : index
    %c0_56 = arith.constant 0 : index
    %79 = vector.load %arg9[%c1_54, %c0_55, %c0_56] : memref<4x1x8xf32, #tpu.memory_space<vmem>>, vector<1x1x8xf32>
    %80 = vector.shape_cast %79 : vector<1x1x8xf32> to vector<1x8xf32>
    %81 = vector.broadcast %80 : vector<1x8xf32> to vector<16x8xf32>
    %82 = arith.addf %78, %81 : vector<16x8xf32>
    %83 = vector.shape_cast %82 : vector<16x8xf32> to vector<2x8x8xf32>
    %c1_57 = arith.constant 1 : index
    %c0_58 = arith.constant 0 : index
    %c0_59 = arith.constant 0 : index
    %84 = vector.load %arg10[%c1_57, %c0_58, %c0_59] : memref<4x32x8xf32, #tpu.memory_space<vmem>>, vector<1x32x8xf32>
    %85 = vector.shape_cast %84 : vector<1x32x8xf32> to vector<32x8xf32>
    %cst_60 = arith.constant dense<0.000000e+00> : vector<16x8xf32>
    %86 = tpu.matmul %14, %85, %cst_60 {dimension_numbers = #tpu.dot_dimension_numbers<[1], [0], [0], [1], [0, 0, 1, 1], [], []>} : vector<16x32xf32>, vector<32x8xf32>, vector<16x8xf32> -> vector<16x8xf32>
    %c1_61 = arith.constant 1 : index
    %c0_62 = arith.constant 0 : index
    %c0_63 = arith.constant 0 : index
    %87 = vector.load %arg11[%c1_61, %c0_62, %c0_63] : memref<4x1x8xf32, #tpu.memory_space<vmem>>, vector<1x1x8xf32>
    %88 = vector.shape_cast %87 : vector<1x1x8xf32> to vector<1x8xf32>
    %89 = vector.broadcast %88 : vector<1x8xf32> to vector<16x8xf32>
    %90 = arith.addf %86, %89 : vector<16x8xf32>
    %91 = vector.shape_cast %90 : vector<16x8xf32> to vector<2x8x8xf32>
    "tpu.trace_start"() <{level = 10 : i32, message = "bqd,bkd->bqk"}> : () -> ()
    %cst_64 = arith.constant dense<0.000000e+00> : vector<2x8x8xf32>
    %92 = tpu.matmul %75, %83, %cst_64 {dimension_numbers = #tpu.dot_dimension_numbers<[2], [2], [1], [1], [0, 0, 0, 1, 1, 1], [0], [0]>} : vector<2x8x8xf32>, vector<2x8x8xf32>, vector<2x8x8xf32> -> vector<2x8x8xf32>
    "tpu.trace_stop"() : () -> ()
    %c1_65 = arith.constant 1 : index
    %c0_66 = arith.constant 0 : index
    %c0_67 = arith.constant 0 : index
    %93 = vector.load %arg2[%c1_65, %c0_66, %c0_67] : memref<4x8x8xf32, #tpu.memory_space<vmem>>, vector<1x8x8xf32>
    %94 = vector.shape_cast %93 : vector<1x8x8xf32> to vector<8x8xf32>
    %95 = vector.shape_cast %94 : vector<8x8xf32> to vector<1x8x8xf32>
    %96 = vector.broadcast %95 : vector<1x8x8xf32> to vector<2x8x8xf32>
    %97 = arith.addf %92, %96 : vector<2x8x8xf32>
    %98 = arith.addf %97, %17 : vector<2x8x8xf32>
    %cst_68 = arith.constant 1.562500e-02 : f32
    %99 = vector.broadcast %cst_68 : f32 to vector<2x8x8xf32>
    %100 = arith.mulf %98, %99 : vector<2x8x8xf32>
    %cst_69 = arith.constant dense<0xFF800000> : vector<2x8xf32>
    %101 = vector.multi_reduction <maximumf>, %100, %cst_69 [2] : vector<2x8x8xf32> to vector<2x8xf32>
    %102 = vector.shape_cast %101 : vector<2x8xf32> to vector<2x8x1xf32>
    %103 = vector.broadcast %102 : vector<2x8x1xf32> to vector<2x8x8xf32>
    %104 = arith.subf %100, %103 : vector<2x8x8xf32>
    %105 = math.exp %104 : vector<2x8x8xf32>
    %cst_70 = arith.constant dense<0.000000e+00> : vector<2x8xf32>
    %106 = vector.multi_reduction <add>, %105, %cst_70 [2] : vector<2x8x8xf32> to vector<2x8xf32>
    %107 = vector.shape_cast %106 : vector<2x8xf32> to vector<2x8x1xf32>
    %108 = tpu.reciprocal %107 : vector<2x8x1xf32> -> vector<2x8x1xf32>
    %109 = vector.broadcast %108 : vector<2x8x1xf32> to vector<2x8x8xf32>
    %110 = arith.mulf %105, %109 : vector<2x8x8xf32>
    "tpu.trace_start"() <{level = 10 : i32, message = "bqk,bkd->bqd"}> : () -> ()
    %cst_71 = arith.constant dense<0.000000e+00> : vector<2x8x8xf32>
    %111 = tpu.matmul %110, %91, %cst_71 {dimension_numbers = #tpu.dot_dimension_numbers<[2], [1], [1], [2], [0, 0, 0, 1, 1, 2], [0], [0]>} : vector<2x8x8xf32>, vector<2x8x8xf32>, vector<2x8x8xf32> -> vector<2x8x8xf32>
    "tpu.trace_stop"() : () -> ()
    %112 = vector.shape_cast %111 : vector<2x8x8xf32> to vector<16x8xf32>
    %c1_72 = arith.constant 1 : index
    %c0_73 = arith.constant 0 : index
    %c0_74 = arith.constant 0 : index
    %113 = vector.load %arg12[%c1_72, %c0_73, %c0_74] : memref<4x8x32xf32, #tpu.memory_space<vmem>>, vector<1x8x32xf32>
    %114 = vector.shape_cast %113 : vector<1x8x32xf32> to vector<8x32xf32>
    %cst_75 = arith.constant dense<0.000000e+00> : vector<16x32xf32>
    %115 = tpu.matmul %112, %114, %cst_75 {dimension_numbers = #tpu.dot_dimension_numbers<[1], [0], [0], [1], [0, 0, 1, 1], [], []>} : vector<16x8xf32>, vector<8x32xf32>, vector<16x32xf32> -> vector<16x32xf32>
    %116 = arith.addf %67, %115 : vector<16x32xf32>
    %c2 = arith.constant 2 : index
    %c0_76 = arith.constant 0 : index
    %c0_77 = arith.constant 0 : index
    %117 = vector.load %arg6[%c2, %c0_76, %c0_77] : memref<4x32x8xf32, #tpu.memory_space<vmem>>, vector<1x32x8xf32>
    %118 = vector.shape_cast %117 : vector<1x32x8xf32> to vector<32x8xf32>
    %cst_78 = arith.constant dense<0.000000e+00> : vector<16x8xf32>
    %119 = tpu.matmul %14, %118, %cst_78 {dimension_numbers = #tpu.dot_dimension_numbers<[1], [0], [0], [1], [0, 0, 1, 1], [], []>} : vector<16x32xf32>, vector<32x8xf32>, vector<16x8xf32> -> vector<16x8xf32>
    %c2_79 = arith.constant 2 : index
    %c0_80 = arith.constant 0 : index
    %c0_81 = arith.constant 0 : index
    %120 = vector.load %arg7[%c2_79, %c0_80, %c0_81] : memref<4x1x8xf32, #tpu.memory_space<vmem>>, vector<1x1x8xf32>
    %121 = vector.shape_cast %120 : vector<1x1x8xf32> to vector<1x8xf32>
    %122 = vector.broadcast %121 : vector<1x8xf32> to vector<16x8xf32>
    %123 = arith.addf %119, %122 : vector<16x8xf32>
    %124 = vector.shape_cast %123 : vector<16x8xf32> to vector<2x8x8xf32>
    %c2_82 = arith.constant 2 : index
    %c0_83 = arith.constant 0 : index
    %c0_84 = arith.constant 0 : index
    %125 = vector.load %arg8[%c2_82, %c0_83, %c0_84] : memref<4x32x8xf32, #tpu.memory_space<vmem>>, vector<1x32x8xf32>
    %126 = vector.shape_cast %125 : vector<1x32x8xf32> to vector<32x8xf32>
    %cst_85 = arith.constant dense<0.000000e+00> : vector<16x8xf32>
    %127 = tpu.matmul %14, %126, %cst_85 {dimension_numbers = #tpu.dot_dimension_numbers<[1], [0], [0], [1], [0, 0, 1, 1], [], []>} : vector<16x32xf32>, vector<32x8xf32>, vector<16x8xf32> -> vector<16x8xf32>
    %c2_86 = arith.constant 2 : index
    %c0_87 = arith.constant 0 : index
    %c0_88 = arith.constant 0 : index
    %128 = vector.load %arg9[%c2_86, %c0_87, %c0_88] : memref<4x1x8xf32, #tpu.memory_space<vmem>>, vector<1x1x8xf32>
    %129 = vector.shape_cast %128 : vector<1x1x8xf32> to vector<1x8xf32>
    %130 = vector.broadcast %129 : vector<1x8xf32> to vector<16x8xf32>
    %131 = arith.addf %127, %130 : vector<16x8xf32>
    %132 = vector.shape_cast %131 : vector<16x8xf32> to vector<2x8x8xf32>
    %c2_89 = arith.constant 2 : index
    %c0_90 = arith.constant 0 : index
    %c0_91 = arith.constant 0 : index
    %133 = vector.load %arg10[%c2_89, %c0_90, %c0_91] : memref<4x32x8xf32, #tpu.memory_space<vmem>>, vector<1x32x8xf32>
    %134 = vector.shape_cast %133 : vector<1x32x8xf32> to vector<32x8xf32>
    %cst_92 = arith.constant dense<0.000000e+00> : vector<16x8xf32>
    %135 = tpu.matmul %14, %134, %cst_92 {dimension_numbers = #tpu.dot_dimension_numbers<[1], [0], [0], [1], [0, 0, 1, 1], [], []>} : vector<16x32xf32>, vector<32x8xf32>, vector<16x8xf32> -> vector<16x8xf32>
    %c2_93 = arith.constant 2 : index
    %c0_94 = arith.constant 0 : index
    %c0_95 = arith.constant 0 : index
    %136 = vector.load %arg11[%c2_93, %c0_94, %c0_95] : memref<4x1x8xf32, #tpu.memory_space<vmem>>, vector<1x1x8xf32>
    %137 = vector.shape_cast %136 : vector<1x1x8xf32> to vector<1x8xf32>
    %138 = vector.broadcast %137 : vector<1x8xf32> to vector<16x8xf32>
    %139 = arith.addf %135, %138 : vector<16x8xf32>
    %140 = vector.shape_cast %139 : vector<16x8xf32> to vector<2x8x8xf32>
    "tpu.trace_start"() <{level = 10 : i32, message = "bqd,bkd->bqk"}> : () -> ()
    %cst_96 = arith.constant dense<0.000000e+00> : vector<2x8x8xf32>
    %141 = tpu.matmul %124, %132, %cst_96 {dimension_numbers = #tpu.dot_dimension_numbers<[2], [2], [1], [1], [0, 0, 0, 1, 1, 1], [0], [0]>} : vector<2x8x8xf32>, vector<2x8x8xf32>, vector<2x8x8xf32> -> vector<2x8x8xf32>
    "tpu.trace_stop"() : () -> ()
    %c2_97 = arith.constant 2 : index
    %c0_98 = arith.constant 0 : index
    %c0_99 = arith.constant 0 : index
    %142 = vector.load %arg2[%c2_97, %c0_98, %c0_99] : memref<4x8x8xf32, #tpu.memory_space<vmem>>, vector<1x8x8xf32>
    %143 = vector.shape_cast %142 : vector<1x8x8xf32> to vector<8x8xf32>
    %144 = vector.shape_cast %143 : vector<8x8xf32> to vector<1x8x8xf32>
    %145 = vector.broadcast %144 : vector<1x8x8xf32> to vector<2x8x8xf32>
    %146 = arith.addf %141, %145 : vector<2x8x8xf32>
    %147 = arith.addf %146, %17 : vector<2x8x8xf32>
    %cst_100 = arith.constant 1.562500e-02 : f32
    %148 = vector.broadcast %cst_100 : f32 to vector<2x8x8xf32>
    %149 = arith.mulf %147, %148 : vector<2x8x8xf32>
    %cst_101 = arith.constant dense<0xFF800000> : vector<2x8xf32>
    %150 = vector.multi_reduction <maximumf>, %149, %cst_101 [2] : vector<2x8x8xf32> to vector<2x8xf32>
    %151 = vector.shape_cast %150 : vector<2x8xf32> to vector<2x8x1xf32>
    %152 = vector.broadcast %151 : vector<2x8x1xf32> to vector<2x8x8xf32>
    %153 = arith.subf %149, %152 : vector<2x8x8xf32>
    %154 = math.exp %153 : vector<2x8x8xf32>
    %cst_102 = arith.constant dense<0.000000e+00> : vector<2x8xf32>
    %155 = vector.multi_reduction <add>, %154, %cst_102 [2] : vector<2x8x8xf32> to vector<2x8xf32>
    %156 = vector.shape_cast %155 : vector<2x8xf32> to vector<2x8x1xf32>
    %157 = tpu.reciprocal %156 : vector<2x8x1xf32> -> vector<2x8x1xf32>
    %158 = vector.broadcast %157 : vector<2x8x1xf32> to vector<2x8x8xf32>
    %159 = arith.mulf %154, %158 : vector<2x8x8xf32>
    "tpu.trace_start"() <{level = 10 : i32, message = "bqk,bkd->bqd"}> : () -> ()
    %cst_103 = arith.constant dense<0.000000e+00> : vector<2x8x8xf32>
    %160 = tpu.matmul %159, %140, %cst_103 {dimension_numbers = #tpu.dot_dimension_numbers<[2], [1], [1], [2], [0, 0, 0, 1, 1, 2], [0], [0]>} : vector<2x8x8xf32>, vector<2x8x8xf32>, vector<2x8x8xf32> -> vector<2x8x8xf32>
    "tpu.trace_stop"() : () -> ()
    %161 = vector.shape_cast %160 : vector<2x8x8xf32> to vector<16x8xf32>
    %c2_104 = arith.constant 2 : index
    %c0_105 = arith.constant 0 : index
    %c0_106 = arith.constant 0 : index
    %162 = vector.load %arg12[%c2_104, %c0_105, %c0_106] : memref<4x8x32xf32, #tpu.memory_space<vmem>>, vector<1x8x32xf32>
    %163 = vector.shape_cast %162 : vector<1x8x32xf32> to vector<8x32xf32>
    %cst_107 = arith.constant dense<0.000000e+00> : vector<16x32xf32>
    %164 = tpu.matmul %161, %163, %cst_107 {dimension_numbers = #tpu.dot_dimension_numbers<[1], [0], [0], [1], [0, 0, 1, 1], [], []>} : vector<16x8xf32>, vector<8x32xf32>, vector<16x32xf32> -> vector<16x32xf32>
    %165 = arith.addf %116, %164 : vector<16x32xf32>
    %c3 = arith.constant 3 : index
    %c0_108 = arith.constant 0 : index
    %c0_109 = arith.constant 0 : index
    %166 = vector.load %arg6[%c3, %c0_108, %c0_109] : memref<4x32x8xf32, #tpu.memory_space<vmem>>, vector<1x32x8xf32>
    %167 = vector.shape_cast %166 : vector<1x32x8xf32> to vector<32x8xf32>
    %cst_110 = arith.constant dense<0.000000e+00> : vector<16x8xf32>
    %168 = tpu.matmul %14, %167, %cst_110 {dimension_numbers = #tpu.dot_dimension_numbers<[1], [0], [0], [1], [0, 0, 1, 1], [], []>} : vector<16x32xf32>, vector<32x8xf32>, vector<16x8xf32> -> vector<16x8xf32>
    %c3_111 = arith.constant 3 : index
    %c0_112 = arith.constant 0 : index
    %c0_113 = arith.constant 0 : index
    %169 = vector.load %arg7[%c3_111, %c0_112, %c0_113] : memref<4x1x8xf32, #tpu.memory_space<vmem>>, vector<1x1x8xf32>
    %170 = vector.shape_cast %169 : vector<1x1x8xf32> to vector<1x8xf32>
    %171 = vector.broadcast %170 : vector<1x8xf32> to vector<16x8xf32>
    %172 = arith.addf %168, %171 : vector<16x8xf32>
    %173 = vector.shape_cast %172 : vector<16x8xf32> to vector<2x8x8xf32>
    %c3_114 = arith.constant 3 : index
    %c0_115 = arith.constant 0 : index
    %c0_116 = arith.constant 0 : index
    %174 = vector.load %arg8[%c3_114, %c0_115, %c0_116] : memref<4x32x8xf32, #tpu.memory_space<vmem>>, vector<1x32x8xf32>
    %175 = vector.shape_cast %174 : vector<1x32x8xf32> to vector<32x8xf32>
    %cst_117 = arith.constant dense<0.000000e+00> : vector<16x8xf32>
    %176 = tpu.matmul %14, %175, %cst_117 {dimension_numbers = #tpu.dot_dimension_numbers<[1], [0], [0], [1], [0, 0, 1, 1], [], []>} : vector<16x32xf32>, vector<32x8xf32>, vector<16x8xf32> -> vector<16x8xf32>
    %c3_118 = arith.constant 3 : index
    %c0_119 = arith.constant 0 : index
    %c0_120 = arith.constant 0 : index
    %177 = vector.load %arg9[%c3_118, %c0_119, %c0_120] : memref<4x1x8xf32, #tpu.memory_space<vmem>>, vector<1x1x8xf32>
    %178 = vector.shape_cast %177 : vector<1x1x8xf32> to vector<1x8xf32>
    %179 = vector.broadcast %178 : vector<1x8xf32> to vector<16x8xf32>
    %180 = arith.addf %176, %179 : vector<16x8xf32>
    %181 = vector.shape_cast %180 : vector<16x8xf32> to vector<2x8x8xf32>
    %c3_121 = arith.constant 3 : index
    %c0_122 = arith.constant 0 : index
    %c0_123 = arith.constant 0 : index
    %182 = vector.load %arg10[%c3_121, %c0_122, %c0_123] : memref<4x32x8xf32, #tpu.memory_space<vmem>>, vector<1x32x8xf32>
    %183 = vector.shape_cast %182 : vector<1x32x8xf32> to vector<32x8xf32>
    %cst_124 = arith.constant dense<0.000000e+00> : vector<16x8xf32>
    %184 = tpu.matmul %14, %183, %cst_124 {dimension_numbers = #tpu.dot_dimension_numbers<[1], [0], [0], [1], [0, 0, 1, 1], [], []>} : vector<16x32xf32>, vector<32x8xf32>, vector<16x8xf32> -> vector<16x8xf32>
    %c3_125 = arith.constant 3 : index
    %c0_126 = arith.constant 0 : index
    %c0_127 = arith.constant 0 : index
    %185 = vector.load %arg11[%c3_125, %c0_126, %c0_127] : memref<4x1x8xf32, #tpu.memory_space<vmem>>, vector<1x1x8xf32>
    %186 = vector.shape_cast %185 : vector<1x1x8xf32> to vector<1x8xf32>
    %187 = vector.broadcast %186 : vector<1x8xf32> to vector<16x8xf32>
    %188 = arith.addf %184, %187 : vector<16x8xf32>
    %189 = vector.shape_cast %188 : vector<16x8xf32> to vector<2x8x8xf32>
    "tpu.trace_start"() <{level = 10 : i32, message = "bqd,bkd->bqk"}> : () -> ()
    %cst_128 = arith.constant dense<0.000000e+00> : vector<2x8x8xf32>
    %190 = tpu.matmul %173, %181, %cst_128 {dimension_numbers = #tpu.dot_dimension_numbers<[2], [2], [1], [1], [0, 0, 0, 1, 1, 1], [0], [0]>} : vector<2x8x8xf32>, vector<2x8x8xf32>, vector<2x8x8xf32> -> vector<2x8x8xf32>
    "tpu.trace_stop"() : () -> ()
    %c3_129 = arith.constant 3 : index
    %c0_130 = arith.constant 0 : index
    %c0_131 = arith.constant 0 : index
    %191 = vector.load %arg2[%c3_129, %c0_130, %c0_131] : memref<4x8x8xf32, #tpu.memory_space<vmem>>, vector<1x8x8xf32>
    %192 = vector.shape_cast %191 : vector<1x8x8xf32> to vector<8x8xf32>
    %193 = vector.shape_cast %192 : vector<8x8xf32> to vector<1x8x8xf32>
    %194 = vector.broadcast %193 : vector<1x8x8xf32> to vector<2x8x8xf32>
    %195 = arith.addf %190, %194 : vector<2x8x8xf32>
    %196 = arith.addf %195, %17 : vector<2x8x8xf32>
    %cst_132 = arith.constant 1.562500e-02 : f32
    %197 = vector.broadcast %cst_132 : f32 to vector<2x8x8xf32>
    %198 = arith.mulf %196, %197 : vector<2x8x8xf32>
    %cst_133 = arith.constant dense<0xFF800000> : vector<2x8xf32>
    %199 = vector.multi_reduction <maximumf>, %198, %cst_133 [2] : vector<2x8x8xf32> to vector<2x8xf32>
    %200 = vector.shape_cast %199 : vector<2x8xf32> to vector<2x8x1xf32>
    %201 = vector.broadcast %200 : vector<2x8x1xf32> to vector<2x8x8xf32>
    %202 = arith.subf %198, %201 : vector<2x8x8xf32>
    %203 = math.exp %202 : vector<2x8x8xf32>
    %cst_134 = arith.constant dense<0.000000e+00> : vector<2x8xf32>
    %204 = vector.multi_reduction <add>, %203, %cst_134 [2] : vector<2x8x8xf32> to vector<2x8xf32>
    %205 = vector.shape_cast %204 : vector<2x8xf32> to vector<2x8x1xf32>
    %206 = tpu.reciprocal %205 : vector<2x8x1xf32> -> vector<2x8x1xf32>
    %207 = vector.broadcast %206 : vector<2x8x1xf32> to vector<2x8x8xf32>
    %208 = arith.mulf %203, %207 : vector<2x8x8xf32>
    "tpu.trace_start"() <{level = 10 : i32, message = "bqk,bkd->bqd"}> : () -> ()
    %cst_135 = arith.constant dense<0.000000e+00> : vector<2x8x8xf32>
    %209 = tpu.matmul %208, %189, %cst_135 {dimension_numbers = #tpu.dot_dimension_numbers<[2], [1], [1], [2], [0, 0, 0, 1, 1, 2], [0], [0]>} : vector<2x8x8xf32>, vector<2x8x8xf32>, vector<2x8x8xf32> -> vector<2x8x8xf32>
    "tpu.trace_stop"() : () -> ()
    %210 = vector.shape_cast %209 : vector<2x8x8xf32> to vector<16x8xf32>
    %c3_136 = arith.constant 3 : index
    %c0_137 = arith.constant 0 : index
    %c0_138 = arith.constant 0 : index
    %211 = vector.load %arg12[%c3_136, %c0_137, %c0_138] : memref<4x8x32xf32, #tpu.memory_space<vmem>>, vector<1x8x32xf32>
    %212 = vector.shape_cast %211 : vector<1x8x32xf32> to vector<8x32xf32>
    %cst_139 = arith.constant dense<0.000000e+00> : vector<16x32xf32>
    %213 = tpu.matmul %210, %212, %cst_139 {dimension_numbers = #tpu.dot_dimension_numbers<[1], [0], [0], [1], [0, 0, 1, 1], [], []>} : vector<16x8xf32>, vector<8x32xf32>, vector<16x32xf32> -> vector<16x32xf32>
    %214 = arith.addf %165, %213 : vector<16x32xf32>
    %c0_140 = arith.constant 0 : index
    %c0_141 = arith.constant 0 : index
    %215 = vector.load %arg13[%c0_140, %c0_141] : memref<1x32xf32, #tpu.memory_space<vmem>>, vector<1x32xf32>
    %216 = vector.broadcast %215 : vector<1x32xf32> to vector<16x32xf32>
    %217 = arith.addf %214, %216 : vector<16x32xf32>
    %218 = arith.addf %0, %217 : vector<16x32xf32>
    %c0_142 = arith.constant 0 : index
    %c0_143 = arith.constant 0 : index
    %219 = vector.load %arg14[%c0_142, %c0_143] : memref<1x32xf32, #tpu.memory_space<vmem>>, vector<1x32xf32>
    %220 = arith.mulf %218, %218 : vector<16x32xf32>
    %cst_144 = arith.constant dense<0.000000e+00> : vector<16xf32>
    %221 = vector.multi_reduction <add>, %220, %cst_144 [1] : vector<16x32xf32> to vector<16xf32>
    %222 = vector.shape_cast %221 : vector<16xf32> to vector<16x1xf32>
    %cst_145 = arith.constant 3.200000e+01 : f32
    %223 = vector.broadcast %cst_145 : f32 to vector<16x1xf32>
    %224 = arith.divf %222, %223 : vector<16x1xf32>
    %cst_146 = arith.constant 9.99999997E-7 : f32
    %225 = vector.broadcast %cst_146 : f32 to vector<16x1xf32>
    %226 = arith.addf %224, %225 : vector<16x1xf32>
    %227 = math.rsqrt %226 : vector<16x1xf32>
    %228 = vector.broadcast %227 : vector<16x1xf32> to vector<16x32xf32>
    %229 = arith.mulf %218, %228 : vector<16x32xf32>
    %230 = vector.broadcast %219 : vector<1x32xf32> to vector<16x32xf32>
    %231 = arith.mulf %230, %229 : vector<16x32xf32>
    %c0_147 = arith.constant 0 : index
    %c0_148 = arith.constant 0 : index
    %c0_149 = arith.constant 0 : index
    %232 = vector.load %arg4[%c0_147, %c0_148, %c0_149] : memref<2x1x8xf32, #tpu.memory_space<vmem>>, vector<2x1x8xf32>
    %233 = vector.shape_cast %232 : vector<2x1x8xf32> to vector<2x1x8xf32>
    %234 = vector.broadcast %233 : vector<2x1x8xf32> to vector<2x8x8xf32>
    %cst_150 = arith.constant 0.000000e+00 : f32
    %235 = vector.broadcast %cst_150 : f32 to vector<16x32xf32>
    %c0_151 = arith.constant 0 : index
    %c0_152 = arith.constant 0 : index
    %c0_153 = arith.constant 0 : index
    %236 = vector.load %arg15[%c0_151, %c0_152, %c0_153] : memref<4x32x8xf32, #tpu.memory_space<vmem>>, vector<1x32x8xf32>
    %237 = vector.shape_cast %236 : vector<1x32x8xf32> to vector<32x8xf32>
    %cst_154 = arith.constant dense<0.000000e+00> : vector<16x8xf32>
    %238 = tpu.matmul %231, %237, %cst_154 {dimension_numbers = #tpu.dot_dimension_numbers<[1], [0], [0], [1], [0, 0, 1, 1], [], []>} : vector<16x32xf32>, vector<32x8xf32>, vector<16x8xf32> -> vector<16x8xf32>
    %c0_155 = arith.constant 0 : index
    %c0_156 = arith.constant 0 : index
    %c0_157 = arith.constant 0 : index
    %239 = vector.load %arg16[%c0_155, %c0_156, %c0_157] : memref<4x1x8xf32, #tpu.memory_space<vmem>>, vector<1x1x8xf32>
    %240 = vector.shape_cast %239 : vector<1x1x8xf32> to vector<1x8xf32>
    %241 = vector.broadcast %240 : vector<1x8xf32> to vector<16x8xf32>
    %242 = arith.addf %238, %241 : vector<16x8xf32>
    %243 = vector.shape_cast %242 : vector<16x8xf32> to vector<2x8x8xf32>
    %c0_158 = arith.constant 0 : index
    %c0_159 = arith.constant 0 : index
    %c0_160 = arith.constant 0 : index
    %244 = vector.load %arg17[%c0_158, %c0_159, %c0_160] : memref<4x32x8xf32, #tpu.memory_space<vmem>>, vector<1x32x8xf32>
    %245 = vector.shape_cast %244 : vector<1x32x8xf32> to vector<32x8xf32>
    %cst_161 = arith.constant dense<0.000000e+00> : vector<16x8xf32>
    %246 = tpu.matmul %1, %245, %cst_161 {dimension_numbers = #tpu.dot_dimension_numbers<[1], [0], [0], [1], [0, 0, 1, 1], [], []>} : vector<16x32xf32>, vector<32x8xf32>, vector<16x8xf32> -> vector<16x8xf32>
    %c0_162 = arith.constant 0 : index
    %c0_163 = arith.constant 0 : index
    %c0_164 = arith.constant 0 : index
    %247 = vector.load %arg18[%c0_162, %c0_163, %c0_164] : memref<4x1x8xf32, #tpu.memory_space<vmem>>, vector<1x1x8xf32>
    %248 = vector.shape_cast %247 : vector<1x1x8xf32> to vector<1x8xf32>
    %249 = vector.broadcast %248 : vector<1x8xf32> to vector<16x8xf32>
    %250 = arith.addf %246, %249 : vector<16x8xf32>
    %251 = vector.shape_cast %250 : vector<16x8xf32> to vector<2x8x8xf32>
    %c0_165 = arith.constant 0 : index
    %c0_166 = arith.constant 0 : index
    %c0_167 = arith.constant 0 : index
    %252 = vector.load %arg19[%c0_165, %c0_166, %c0_167] : memref<4x32x8xf32, #tpu.memory_space<vmem>>, vector<1x32x8xf32>
    %253 = vector.shape_cast %252 : vector<1x32x8xf32> to vector<32x8xf32>
    %cst_168 = arith.constant dense<0.000000e+00> : vector<16x8xf32>
    %254 = tpu.matmul %1, %253, %cst_168 {dimension_numbers = #tpu.dot_dimension_numbers<[1], [0], [0], [1], [0, 0, 1, 1], [], []>} : vector<16x32xf32>, vector<32x8xf32>, vector<16x8xf32> -> vector<16x8xf32>
    %c0_169 = arith.constant 0 : index
    %c0_170 = arith.constant 0 : index
    %c0_171 = arith.constant 0 : index
    %255 = vector.load %arg20[%c0_169, %c0_170, %c0_171] : memref<4x1x8xf32, #tpu.memory_space<vmem>>, vector<1x1x8xf32>
    %256 = vector.shape_cast %255 : vector<1x1x8xf32> to vector<1x8xf32>
    %257 = vector.broadcast %256 : vector<1x8xf32> to vector<16x8xf32>
    %258 = arith.addf %254, %257 : vector<16x8xf32>
    %259 = vector.shape_cast %258 : vector<16x8xf32> to vector<2x8x8xf32>
    "tpu.trace_start"() <{level = 10 : i32, message = "bqd,bkd->bqk"}> : () -> ()
    %cst_172 = arith.constant dense<0.000000e+00> : vector<2x8x8xf32>
    %260 = tpu.matmul %243, %251, %cst_172 {dimension_numbers = #tpu.dot_dimension_numbers<[2], [2], [1], [1], [0, 0, 0, 1, 1, 1], [0], [0]>} : vector<2x8x8xf32>, vector<2x8x8xf32>, vector<2x8x8xf32> -> vector<2x8x8xf32>
    "tpu.trace_stop"() : () -> ()
    %261 = arith.addf %260, %234 : vector<2x8x8xf32>
    %cst_173 = arith.constant 1.562500e-02 : f32
    %262 = vector.broadcast %cst_173 : f32 to vector<2x8x8xf32>
    %263 = arith.mulf %261, %262 : vector<2x8x8xf32>
    %cst_174 = arith.constant dense<0xFF800000> : vector<2x8xf32>
    %264 = vector.multi_reduction <maximumf>, %263, %cst_174 [2] : vector<2x8x8xf32> to vector<2x8xf32>
    %265 = vector.shape_cast %264 : vector<2x8xf32> to vector<2x8x1xf32>
    %266 = vector.broadcast %265 : vector<2x8x1xf32> to vector<2x8x8xf32>
    %267 = arith.subf %263, %266 : vector<2x8x8xf32>
    %268 = math.exp %267 : vector<2x8x8xf32>
    %cst_175 = arith.constant dense<0.000000e+00> : vector<2x8xf32>
    %269 = vector.multi_reduction <add>, %268, %cst_175 [2] : vector<2x8x8xf32> to vector<2x8xf32>
    %270 = vector.shape_cast %269 : vector<2x8xf32> to vector<2x8x1xf32>
    %271 = tpu.reciprocal %270 : vector<2x8x1xf32> -> vector<2x8x1xf32>
    %272 = vector.broadcast %271 : vector<2x8x1xf32> to vector<2x8x8xf32>
    %273 = arith.mulf %268, %272 : vector<2x8x8xf32>
    "tpu.trace_start"() <{level = 10 : i32, message = "bqk,bkd->bqd"}> : () -> ()
    %cst_176 = arith.constant dense<0.000000e+00> : vector<2x8x8xf32>
    %274 = tpu.matmul %273, %259, %cst_176 {dimension_numbers = #tpu.dot_dimension_numbers<[2], [1], [1], [2], [0, 0, 0, 1, 1, 2], [0], [0]>} : vector<2x8x8xf32>, vector<2x8x8xf32>, vector<2x8x8xf32> -> vector<2x8x8xf32>
    "tpu.trace_stop"() : () -> ()
    %275 = vector.shape_cast %274 : vector<2x8x8xf32> to vector<16x8xf32>
    %c0_177 = arith.constant 0 : index
    %c0_178 = arith.constant 0 : index
    %c0_179 = arith.constant 0 : index
    %276 = vector.load %arg21[%c0_177, %c0_178, %c0_179] : memref<4x8x32xf32, #tpu.memory_space<vmem>>, vector<1x8x32xf32>
    %277 = vector.shape_cast %276 : vector<1x8x32xf32> to vector<8x32xf32>
    %cst_180 = arith.constant dense<0.000000e+00> : vector<16x32xf32>
    %278 = tpu.matmul %275, %277, %cst_180 {dimension_numbers = #tpu.dot_dimension_numbers<[1], [0], [0], [1], [0, 0, 1, 1], [], []>} : vector<16x8xf32>, vector<8x32xf32>, vector<16x32xf32> -> vector<16x32xf32>
    %279 = arith.addf %235, %278 : vector<16x32xf32>
    %c1_181 = arith.constant 1 : index
    %c0_182 = arith.constant 0 : index
    %c0_183 = arith.constant 0 : index
    %280 = vector.load %arg15[%c1_181, %c0_182, %c0_183] : memref<4x32x8xf32, #tpu.memory_space<vmem>>, vector<1x32x8xf32>
    %281 = vector.shape_cast %280 : vector<1x32x8xf32> to vector<32x8xf32>
    %cst_184 = arith.constant dense<0.000000e+00> : vector<16x8xf32>
    %282 = tpu.matmul %231, %281, %cst_184 {dimension_numbers = #tpu.dot_dimension_numbers<[1], [0], [0], [1], [0, 0, 1, 1], [], []>} : vector<16x32xf32>, vector<32x8xf32>, vector<16x8xf32> -> vector<16x8xf32>
    %c1_185 = arith.constant 1 : index
    %c0_186 = arith.constant 0 : index
    %c0_187 = arith.constant 0 : index
    %283 = vector.load %arg16[%c1_185, %c0_186, %c0_187] : memref<4x1x8xf32, #tpu.memory_space<vmem>>, vector<1x1x8xf32>
    %284 = vector.shape_cast %283 : vector<1x1x8xf32> to vector<1x8xf32>
    %285 = vector.broadcast %284 : vector<1x8xf32> to vector<16x8xf32>
    %286 = arith.addf %282, %285 : vector<16x8xf32>
    %287 = vector.shape_cast %286 : vector<16x8xf32> to vector<2x8x8xf32>
    %c1_188 = arith.constant 1 : index
    %c0_189 = arith.constant 0 : index
    %c0_190 = arith.constant 0 : index
    %288 = vector.load %arg17[%c1_188, %c0_189, %c0_190] : memref<4x32x8xf32, #tpu.memory_space<vmem>>, vector<1x32x8xf32>
    %289 = vector.shape_cast %288 : vector<1x32x8xf32> to vector<32x8xf32>
    %cst_191 = arith.constant dense<0.000000e+00> : vector<16x8xf32>
    %290 = tpu.matmul %1, %289, %cst_191 {dimension_numbers = #tpu.dot_dimension_numbers<[1], [0], [0], [1], [0, 0, 1, 1], [], []>} : vector<16x32xf32>, vector<32x8xf32>, vector<16x8xf32> -> vector<16x8xf32>
    %c1_192 = arith.constant 1 : index
    %c0_193 = arith.constant 0 : index
    %c0_194 = arith.constant 0 : index
    %291 = vector.load %arg18[%c1_192, %c0_193, %c0_194] : memref<4x1x8xf32, #tpu.memory_space<vmem>>, vector<1x1x8xf32>
    %292 = vector.shape_cast %291 : vector<1x1x8xf32> to vector<1x8xf32>
    %293 = vector.broadcast %292 : vector<1x8xf32> to vector<16x8xf32>
    %294 = arith.addf %290, %293 : vector<16x8xf32>
    %295 = vector.shape_cast %294 : vector<16x8xf32> to vector<2x8x8xf32>
    %c1_195 = arith.constant 1 : index
    %c0_196 = arith.constant 0 : index
    %c0_197 = arith.constant 0 : index
    %296 = vector.load %arg19[%c1_195, %c0_196, %c0_197] : memref<4x32x8xf32, #tpu.memory_space<vmem>>, vector<1x32x8xf32>
    %297 = vector.shape_cast %296 : vector<1x32x8xf32> to vector<32x8xf32>
    %cst_198 = arith.constant dense<0.000000e+00> : vector<16x8xf32>
    %298 = tpu.matmul %1, %297, %cst_198 {dimension_numbers = #tpu.dot_dimension_numbers<[1], [0], [0], [1], [0, 0, 1, 1], [], []>} : vector<16x32xf32>, vector<32x8xf32>, vector<16x8xf32> -> vector<16x8xf32>
    %c1_199 = arith.constant 1 : index
    %c0_200 = arith.constant 0 : index
    %c0_201 = arith.constant 0 : index
    %299 = vector.load %arg20[%c1_199, %c0_200, %c0_201] : memref<4x1x8xf32, #tpu.memory_space<vmem>>, vector<1x1x8xf32>
    %300 = vector.shape_cast %299 : vector<1x1x8xf32> to vector<1x8xf32>
    %301 = vector.broadcast %300 : vector<1x8xf32> to vector<16x8xf32>
    %302 = arith.addf %298, %301 : vector<16x8xf32>
    %303 = vector.shape_cast %302 : vector<16x8xf32> to vector<2x8x8xf32>
    "tpu.trace_start"() <{level = 10 : i32, message = "bqd,bkd->bqk"}> : () -> ()
    %cst_202 = arith.constant dense<0.000000e+00> : vector<2x8x8xf32>
    %304 = tpu.matmul %287, %295, %cst_202 {dimension_numbers = #tpu.dot_dimension_numbers<[2], [2], [1], [1], [0, 0, 0, 1, 1, 1], [0], [0]>} : vector<2x8x8xf32>, vector<2x8x8xf32>, vector<2x8x8xf32> -> vector<2x8x8xf32>
    "tpu.trace_stop"() : () -> ()
    %305 = arith.addf %304, %234 : vector<2x8x8xf32>
    %cst_203 = arith.constant 1.562500e-02 : f32
    %306 = vector.broadcast %cst_203 : f32 to vector<2x8x8xf32>
    %307 = arith.mulf %305, %306 : vector<2x8x8xf32>
    %cst_204 = arith.constant dense<0xFF800000> : vector<2x8xf32>
    %308 = vector.multi_reduction <maximumf>, %307, %cst_204 [2] : vector<2x8x8xf32> to vector<2x8xf32>
    %309 = vector.shape_cast %308 : vector<2x8xf32> to vector<2x8x1xf32>
    %310 = vector.broadcast %309 : vector<2x8x1xf32> to vector<2x8x8xf32>
    %311 = arith.subf %307, %310 : vector<2x8x8xf32>
    %312 = math.exp %311 : vector<2x8x8xf32>
    %cst_205 = arith.constant dense<0.000000e+00> : vector<2x8xf32>
    %313 = vector.multi_reduction <add>, %312, %cst_205 [2] : vector<2x8x8xf32> to vector<2x8xf32>
    %314 = vector.shape_cast %313 : vector<2x8xf32> to vector<2x8x1xf32>
    %315 = tpu.reciprocal %314 : vector<2x8x1xf32> -> vector<2x8x1xf32>
    %316 = vector.broadcast %315 : vector<2x8x1xf32> to vector<2x8x8xf32>
    %317 = arith.mulf %312, %316 : vector<2x8x8xf32>
    "tpu.trace_start"() <{level = 10 : i32, message = "bqk,bkd->bqd"}> : () -> ()
    %cst_206 = arith.constant dense<0.000000e+00> : vector<2x8x8xf32>
    %318 = tpu.matmul %317, %303, %cst_206 {dimension_numbers = #tpu.dot_dimension_numbers<[2], [1], [1], [2], [0, 0, 0, 1, 1, 2], [0], [0]>} : vector<2x8x8xf32>, vector<2x8x8xf32>, vector<2x8x8xf32> -> vector<2x8x8xf32>
    "tpu.trace_stop"() : () -> ()
    %319 = vector.shape_cast %318 : vector<2x8x8xf32> to vector<16x8xf32>
    %c1_207 = arith.constant 1 : index
    %c0_208 = arith.constant 0 : index
    %c0_209 = arith.constant 0 : index
    %320 = vector.load %arg21[%c1_207, %c0_208, %c0_209] : memref<4x8x32xf32, #tpu.memory_space<vmem>>, vector<1x8x32xf32>
    %321 = vector.shape_cast %320 : vector<1x8x32xf32> to vector<8x32xf32>
    %cst_210 = arith.constant dense<0.000000e+00> : vector<16x32xf32>
    %322 = tpu.matmul %319, %321, %cst_210 {dimension_numbers = #tpu.dot_dimension_numbers<[1], [0], [0], [1], [0, 0, 1, 1], [], []>} : vector<16x8xf32>, vector<8x32xf32>, vector<16x32xf32> -> vector<16x32xf32>
    %323 = arith.addf %279, %322 : vector<16x32xf32>
    %c2_211 = arith.constant 2 : index
    %c0_212 = arith.constant 0 : index
    %c0_213 = arith.constant 0 : index
    %324 = vector.load %arg15[%c2_211, %c0_212, %c0_213] : memref<4x32x8xf32, #tpu.memory_space<vmem>>, vector<1x32x8xf32>
    %325 = vector.shape_cast %324 : vector<1x32x8xf32> to vector<32x8xf32>
    %cst_214 = arith.constant dense<0.000000e+00> : vector<16x8xf32>
    %326 = tpu.matmul %231, %325, %cst_214 {dimension_numbers = #tpu.dot_dimension_numbers<[1], [0], [0], [1], [0, 0, 1, 1], [], []>} : vector<16x32xf32>, vector<32x8xf32>, vector<16x8xf32> -> vector<16x8xf32>
    %c2_215 = arith.constant 2 : index
    %c0_216 = arith.constant 0 : index
    %c0_217 = arith.constant 0 : index
    %327 = vector.load %arg16[%c2_215, %c0_216, %c0_217] : memref<4x1x8xf32, #tpu.memory_space<vmem>>, vector<1x1x8xf32>
    %328 = vector.shape_cast %327 : vector<1x1x8xf32> to vector<1x8xf32>
    %329 = vector.broadcast %328 : vector<1x8xf32> to vector<16x8xf32>
    %330 = arith.addf %326, %329 : vector<16x8xf32>
    %331 = vector.shape_cast %330 : vector<16x8xf32> to vector<2x8x8xf32>
    %c2_218 = arith.constant 2 : index
    %c0_219 = arith.constant 0 : index
    %c0_220 = arith.constant 0 : index
    %332 = vector.load %arg17[%c2_218, %c0_219, %c0_220] : memref<4x32x8xf32, #tpu.memory_space<vmem>>, vector<1x32x8xf32>
    %333 = vector.shape_cast %332 : vector<1x32x8xf32> to vector<32x8xf32>
    %cst_221 = arith.constant dense<0.000000e+00> : vector<16x8xf32>
    %334 = tpu.matmul %1, %333, %cst_221 {dimension_numbers = #tpu.dot_dimension_numbers<[1], [0], [0], [1], [0, 0, 1, 1], [], []>} : vector<16x32xf32>, vector<32x8xf32>, vector<16x8xf32> -> vector<16x8xf32>
    %c2_222 = arith.constant 2 : index
    %c0_223 = arith.constant 0 : index
    %c0_224 = arith.constant 0 : index
    %335 = vector.load %arg18[%c2_222, %c0_223, %c0_224] : memref<4x1x8xf32, #tpu.memory_space<vmem>>, vector<1x1x8xf32>
    %336 = vector.shape_cast %335 : vector<1x1x8xf32> to vector<1x8xf32>
    %337 = vector.broadcast %336 : vector<1x8xf32> to vector<16x8xf32>
    %338 = arith.addf %334, %337 : vector<16x8xf32>
    %339 = vector.shape_cast %338 : vector<16x8xf32> to vector<2x8x8xf32>
    %c2_225 = arith.constant 2 : index
    %c0_226 = arith.constant 0 : index
    %c0_227 = arith.constant 0 : index
    %340 = vector.load %arg19[%c2_225, %c0_226, %c0_227] : memref<4x32x8xf32, #tpu.memory_space<vmem>>, vector<1x32x8xf32>
    %341 = vector.shape_cast %340 : vector<1x32x8xf32> to vector<32x8xf32>
    %cst_228 = arith.constant dense<0.000000e+00> : vector<16x8xf32>
    %342 = tpu.matmul %1, %341, %cst_228 {dimension_numbers = #tpu.dot_dimension_numbers<[1], [0], [0], [1], [0, 0, 1, 1], [], []>} : vector<16x32xf32>, vector<32x8xf32>, vector<16x8xf32> -> vector<16x8xf32>
    %c2_229 = arith.constant 2 : index
    %c0_230 = arith.constant 0 : index
    %c0_231 = arith.constant 0 : index
    %343 = vector.load %arg20[%c2_229, %c0_230, %c0_231] : memref<4x1x8xf32, #tpu.memory_space<vmem>>, vector<1x1x8xf32>
    %344 = vector.shape_cast %343 : vector<1x1x8xf32> to vector<1x8xf32>
    %345 = vector.broadcast %344 : vector<1x8xf32> to vector<16x8xf32>
    %346 = arith.addf %342, %345 : vector<16x8xf32>
    %347 = vector.shape_cast %346 : vector<16x8xf32> to vector<2x8x8xf32>
    "tpu.trace_start"() <{level = 10 : i32, message = "bqd,bkd->bqk"}> : () -> ()
    %cst_232 = arith.constant dense<0.000000e+00> : vector<2x8x8xf32>
    %348 = tpu.matmul %331, %339, %cst_232 {dimension_numbers = #tpu.dot_dimension_numbers<[2], [2], [1], [1], [0, 0, 0, 1, 1, 1], [0], [0]>} : vector<2x8x8xf32>, vector<2x8x8xf32>, vector<2x8x8xf32> -> vector<2x8x8xf32>
    "tpu.trace_stop"() : () -> ()
    %349 = arith.addf %348, %234 : vector<2x8x8xf32>
    %cst_233 = arith.constant 1.562500e-02 : f32
    %350 = vector.broadcast %cst_233 : f32 to vector<2x8x8xf32>
    %351 = arith.mulf %349, %350 : vector<2x8x8xf32>
    %cst_234 = arith.constant dense<0xFF800000> : vector<2x8xf32>
    %352 = vector.multi_reduction <maximumf>, %351, %cst_234 [2] : vector<2x8x8xf32> to vector<2x8xf32>
    %353 = vector.shape_cast %352 : vector<2x8xf32> to vector<2x8x1xf32>
    %354 = vector.broadcast %353 : vector<2x8x1xf32> to vector<2x8x8xf32>
    %355 = arith.subf %351, %354 : vector<2x8x8xf32>
    %356 = math.exp %355 : vector<2x8x8xf32>
    %cst_235 = arith.constant dense<0.000000e+00> : vector<2x8xf32>
    %357 = vector.multi_reduction <add>, %356, %cst_235 [2] : vector<2x8x8xf32> to vector<2x8xf32>
    %358 = vector.shape_cast %357 : vector<2x8xf32> to vector<2x8x1xf32>
    %359 = tpu.reciprocal %358 : vector<2x8x1xf32> -> vector<2x8x1xf32>
    %360 = vector.broadcast %359 : vector<2x8x1xf32> to vector<2x8x8xf32>
    %361 = arith.mulf %356, %360 : vector<2x8x8xf32>
    "tpu.trace_start"() <{level = 10 : i32, message = "bqk,bkd->bqd"}> : () -> ()
    %cst_236 = arith.constant dense<0.000000e+00> : vector<2x8x8xf32>
    %362 = tpu.matmul %361, %347, %cst_236 {dimension_numbers = #tpu.dot_dimension_numbers<[2], [1], [1], [2], [0, 0, 0, 1, 1, 2], [0], [0]>} : vector<2x8x8xf32>, vector<2x8x8xf32>, vector<2x8x8xf32> -> vector<2x8x8xf32>
    "tpu.trace_stop"() : () -> ()
    %363 = vector.shape_cast %362 : vector<2x8x8xf32> to vector<16x8xf32>
    %c2_237 = arith.constant 2 : index
    %c0_238 = arith.constant 0 : index
    %c0_239 = arith.constant 0 : index
    %364 = vector.load %arg21[%c2_237, %c0_238, %c0_239] : memref<4x8x32xf32, #tpu.memory_space<vmem>>, vector<1x8x32xf32>
    %365 = vector.shape_cast %364 : vector<1x8x32xf32> to vector<8x32xf32>
    %cst_240 = arith.constant dense<0.000000e+00> : vector<16x32xf32>
    %366 = tpu.matmul %363, %365, %cst_240 {dimension_numbers = #tpu.dot_dimension_numbers<[1], [0], [0], [1], [0, 0, 1, 1], [], []>} : vector<16x8xf32>, vector<8x32xf32>, vector<16x32xf32> -> vector<16x32xf32>
    %367 = arith.addf %323, %366 : vector<16x32xf32>
    %c3_241 = arith.constant 3 : index
    %c0_242 = arith.constant 0 : index
    %c0_243 = arith.constant 0 : index
    %368 = vector.load %arg15[%c3_241, %c0_242, %c0_243] : memref<4x32x8xf32, #tpu.memory_space<vmem>>, vector<1x32x8xf32>
    %369 = vector.shape_cast %368 : vector<1x32x8xf32> to vector<32x8xf32>
    %cst_244 = arith.constant dense<0.000000e+00> : vector<16x8xf32>
    %370 = tpu.matmul %231, %369, %cst_244 {dimension_numbers = #tpu.dot_dimension_numbers<[1], [0], [0], [1], [0, 0, 1, 1], [], []>} : vector<16x32xf32>, vector<32x8xf32>, vector<16x8xf32> -> vector<16x8xf32>
    %c3_245 = arith.constant 3 : index
    %c0_246 = arith.constant 0 : index
    %c0_247 = arith.constant 0 : index
    %371 = vector.load %arg16[%c3_245, %c0_246, %c0_247] : memref<4x1x8xf32, #tpu.memory_space<vmem>>, vector<1x1x8xf32>
    %372 = vector.shape_cast %371 : vector<1x1x8xf32> to vector<1x8xf32>
    %373 = vector.broadcast %372 : vector<1x8xf32> to vector<16x8xf32>
    %374 = arith.addf %370, %373 : vector<16x8xf32>
    %375 = vector.shape_cast %374 : vector<16x8xf32> to vector<2x8x8xf32>
    %c3_248 = arith.constant 3 : index
    %c0_249 = arith.constant 0 : index
    %c0_250 = arith.constant 0 : index
    %376 = vector.load %arg17[%c3_248, %c0_249, %c0_250] : memref<4x32x8xf32, #tpu.memory_space<vmem>>, vector<1x32x8xf32>
    %377 = vector.shape_cast %376 : vector<1x32x8xf32> to vector<32x8xf32>
    %cst_251 = arith.constant dense<0.000000e+00> : vector<16x8xf32>
    %378 = tpu.matmul %1, %377, %cst_251 {dimension_numbers = #tpu.dot_dimension_numbers<[1], [0], [0], [1], [0, 0, 1, 1], [], []>} : vector<16x32xf32>, vector<32x8xf32>, vector<16x8xf32> -> vector<16x8xf32>
    %c3_252 = arith.constant 3 : index
    %c0_253 = arith.constant 0 : index
    %c0_254 = arith.constant 0 : index
    %379 = vector.load %arg18[%c3_252, %c0_253, %c0_254] : memref<4x1x8xf32, #tpu.memory_space<vmem>>, vector<1x1x8xf32>
    %380 = vector.shape_cast %379 : vector<1x1x8xf32> to vector<1x8xf32>
    %381 = vector.broadcast %380 : vector<1x8xf32> to vector<16x8xf32>
    %382 = arith.addf %378, %381 : vector<16x8xf32>
    %383 = vector.shape_cast %382 : vector<16x8xf32> to vector<2x8x8xf32>
    %c3_255 = arith.constant 3 : index
    %c0_256 = arith.constant 0 : index
    %c0_257 = arith.constant 0 : index
    %384 = vector.load %arg19[%c3_255, %c0_256, %c0_257] : memref<4x32x8xf32, #tpu.memory_space<vmem>>, vector<1x32x8xf32>
    %385 = vector.shape_cast %384 : vector<1x32x8xf32> to vector<32x8xf32>
    %cst_258 = arith.constant dense<0.000000e+00> : vector<16x8xf32>
    %386 = tpu.matmul %1, %385, %cst_258 {dimension_numbers = #tpu.dot_dimension_numbers<[1], [0], [0], [1], [0, 0, 1, 1], [], []>} : vector<16x32xf32>, vector<32x8xf32>, vector<16x8xf32> -> vector<16x8xf32>
    %c3_259 = arith.constant 3 : index
    %c0_260 = arith.constant 0 : index
    %c0_261 = arith.constant 0 : index
    %387 = vector.load %arg20[%c3_259, %c0_260, %c0_261] : memref<4x1x8xf32, #tpu.memory_space<vmem>>, vector<1x1x8xf32>
    %388 = vector.shape_cast %387 : vector<1x1x8xf32> to vector<1x8xf32>
    %389 = vector.broadcast %388 : vector<1x8xf32> to vector<16x8xf32>
    %390 = arith.addf %386, %389 : vector<16x8xf32>
    %391 = vector.shape_cast %390 : vector<16x8xf32> to vector<2x8x8xf32>
    "tpu.trace_start"() <{level = 10 : i32, message = "bqd,bkd->bqk"}> : () -> ()
    %cst_262 = arith.constant dense<0.000000e+00> : vector<2x8x8xf32>
    %392 = tpu.matmul %375, %383, %cst_262 {dimension_numbers = #tpu.dot_dimension_numbers<[2], [2], [1], [1], [0, 0, 0, 1, 1, 1], [0], [0]>} : vector<2x8x8xf32>, vector<2x8x8xf32>, vector<2x8x8xf32> -> vector<2x8x8xf32>
    "tpu.trace_stop"() : () -> ()
    %393 = arith.addf %392, %234 : vector<2x8x8xf32>
    %cst_263 = arith.constant 1.562500e-02 : f32
    %394 = vector.broadcast %cst_263 : f32 to vector<2x8x8xf32>
    %395 = arith.mulf %393, %394 : vector<2x8x8xf32>
    %cst_264 = arith.constant dense<0xFF800000> : vector<2x8xf32>
    %396 = vector.multi_reduction <maximumf>, %395, %cst_264 [2] : vector<2x8x8xf32> to vector<2x8xf32>
    %397 = vector.shape_cast %396 : vector<2x8xf32> to vector<2x8x1xf32>
    %398 = vector.broadcast %397 : vector<2x8x1xf32> to vector<2x8x8xf32>
    %399 = arith.subf %395, %398 : vector<2x8x8xf32>
    %400 = math.exp %399 : vector<2x8x8xf32>
    %cst_265 = arith.constant dense<0.000000e+00> : vector<2x8xf32>
    %401 = vector.multi_reduction <add>, %400, %cst_265 [2] : vector<2x8x8xf32> to vector<2x8xf32>
    %402 = vector.shape_cast %401 : vector<2x8xf32> to vector<2x8x1xf32>
    %403 = tpu.reciprocal %402 : vector<2x8x1xf32> -> vector<2x8x1xf32>
    %404 = vector.broadcast %403 : vector<2x8x1xf32> to vector<2x8x8xf32>
    %405 = arith.mulf %400, %404 : vector<2x8x8xf32>
    "tpu.trace_start"() <{level = 10 : i32, message = "bqk,bkd->bqd"}> : () -> ()
    %cst_266 = arith.constant dense<0.000000e+00> : vector<2x8x8xf32>
    %406 = tpu.matmul %405, %391, %cst_266 {dimension_numbers = #tpu.dot_dimension_numbers<[2], [1], [1], [2], [0, 0, 0, 1, 1, 2], [0], [0]>} : vector<2x8x8xf32>, vector<2x8x8xf32>, vector<2x8x8xf32> -> vector<2x8x8xf32>
    "tpu.trace_stop"() : () -> ()
    %407 = vector.shape_cast %406 : vector<2x8x8xf32> to vector<16x8xf32>
    %c3_267 = arith.constant 3 : index
    %c0_268 = arith.constant 0 : index
    %c0_269 = arith.constant 0 : index
    %408 = vector.load %arg21[%c3_267, %c0_268, %c0_269] : memref<4x8x32xf32, #tpu.memory_space<vmem>>, vector<1x8x32xf32>
    %409 = vector.shape_cast %408 : vector<1x8x32xf32> to vector<8x32xf32>
    %cst_270 = arith.constant dense<0.000000e+00> : vector<16x32xf32>
    %410 = tpu.matmul %407, %409, %cst_270 {dimension_numbers = #tpu.dot_dimension_numbers<[1], [0], [0], [1], [0, 0, 1, 1], [], []>} : vector<16x8xf32>, vector<8x32xf32>, vector<16x32xf32> -> vector<16x32xf32>
    %411 = arith.addf %367, %410 : vector<16x32xf32>
    %c0_271 = arith.constant 0 : index
    %c0_272 = arith.constant 0 : index
    %412 = vector.load %arg22[%c0_271, %c0_272] : memref<1x32xf32, #tpu.memory_space<vmem>>, vector<1x32xf32>
    %413 = vector.broadcast %412 : vector<1x32xf32> to vector<16x32xf32>
    %414 = arith.addf %411, %413 : vector<16x32xf32>
    %415 = arith.addf %218, %414 : vector<16x32xf32>
    %c0_273 = arith.constant 0 : index
    %c0_274 = arith.constant 0 : index
    %416 = vector.load %arg23[%c0_273, %c0_274] : memref<1x32xf32, #tpu.memory_space<vmem>>, vector<1x32xf32>
    %417 = arith.mulf %415, %415 : vector<16x32xf32>
    %cst_275 = arith.constant dense<0.000000e+00> : vector<16xf32>
    %418 = vector.multi_reduction <add>, %417, %cst_275 [1] : vector<16x32xf32> to vector<16xf32>
    %419 = vector.shape_cast %418 : vector<16xf32> to vector<16x1xf32>
    %cst_276 = arith.constant 3.200000e+01 : f32
    %420 = vector.broadcast %cst_276 : f32 to vector<16x1xf32>
    %421 = arith.divf %419, %420 : vector<16x1xf32>
    %cst_277 = arith.constant 9.99999997E-7 : f32
    %422 = vector.broadcast %cst_277 : f32 to vector<16x1xf32>
    %423 = arith.addf %421, %422 : vector<16x1xf32>
    %424 = math.rsqrt %423 : vector<16x1xf32>
    %425 = vector.broadcast %424 : vector<16x1xf32> to vector<16x32xf32>
    %426 = arith.mulf %415, %425 : vector<16x32xf32>
    %427 = vector.broadcast %416 : vector<1x32xf32> to vector<16x32xf32>
    %428 = arith.mulf %427, %426 : vector<16x32xf32>
    %c0_278 = arith.constant 0 : index
    %c0_279 = arith.constant 0 : index
    %429 = vector.load %arg24[%c0_278, %c0_279] : memref<32x64xf32, #tpu.memory_space<vmem>>, vector<32x64xf32>
    %cst_280 = arith.constant dense<0.000000e+00> : vector<16x64xf32>
    %430 = tpu.matmul %428, %429, %cst_280 {dimension_numbers = #tpu.dot_dimension_numbers<[1], [0], [0], [1], [0, 0, 1, 1], [], []>} : vector<16x32xf32>, vector<32x64xf32>, vector<16x64xf32> -> vector<16x64xf32>
    %c0_281 = arith.constant 0 : index
    %c0_282 = arith.constant 0 : index
    %431 = vector.load %arg25[%c0_281, %c0_282] : memref<1x64xf32, #tpu.memory_space<vmem>>, vector<1x64xf32>
    %432 = vector.broadcast %431 : vector<1x64xf32> to vector<16x64xf32>
    %433 = arith.addf %430, %432 : vector<16x64xf32>
    %cst_283 = arith.constant 0.000000e+00 : f32
    %434 = vector.broadcast %cst_283 : f32 to vector<16x64xf32>
    %435 = arith.maximumf %433, %434 : vector<16x64xf32>
    %c0_284 = arith.constant 0 : index
    %c0_285 = arith.constant 0 : index
    %436 = vector.load %arg26[%c0_284, %c0_285] : memref<64x32xf32, #tpu.memory_space<vmem>>, vector<64x32xf32>
    %cst_286 = arith.constant dense<0.000000e+00> : vector<16x32xf32>
    %437 = tpu.matmul %435, %436, %cst_286 {dimension_numbers = #tpu.dot_dimension_numbers<[1], [0], [0], [1], [0, 0, 1, 1], [], []>} : vector<16x64xf32>, vector<64x32xf32>, vector<16x32xf32> -> vector<16x32xf32>
    %c0_287 = arith.constant 0 : index
    %c0_288 = arith.constant 0 : index
    %438 = vector.load %arg27[%c0_287, %c0_288] : memref<1x32xf32, #tpu.memory_space<vmem>>, vector<1x32xf32>
    %439 = vector.broadcast %438 : vector<1x32xf32> to vector<16x32xf32>
    %440 = arith.addf %437, %439 : vector<16x32xf32>
    %441 = arith.addf %415, %440 : vector<16x32xf32>
    %c0_289 = arith.constant 0 : index
    %c0_290 = arith.constant 0 : index
    %442 = vector.load %arg28[%c0_289, %c0_290] : memref<16x32xf32, #tpu.memory_space<vmem>>, vector<16x32xf32>
    tpu.vector_store %arg28[%c0_289, %c0_290], %441 {strides = array<i32>} : memref<16x32xf32, #tpu.memory_space<vmem>>, vector<16x32xf32>,
    return
  }
}

</mosaic_0001>

<llo_original>
// kernel: t5_block_forward.1
$region0: #{t5_block_forward.1}
  #allocation0 [shape = 'u32[]', space=smem, size = 0x4, offset = 0x4, fixed_abs, tag = 'smem constant byte address 0x4 - core index']
  #allocation1 [shape = 'u32[144,128]{1,0:T(1,128)}', space=vmem, size = 0x12000, scoped, tag = 'internal scratch']
  %s0 = inlined_call_operand.vmem [shape: f32[16,32], index: 0, kind: input, shape index: {}]
  %s1 = inlined_call_operand.vmem [shape: f32[16,32], index: 1, kind: input, shape index: {}]
  %s2 = inlined_call_operand.vmem [shape: f32[4,8,8], index: 2, kind: input, shape index: {}]
  %s3 = inlined_call_operand.vmem [shape: f32[2,1,8], index: 3, kind: input, shape index: {}]
  %s4 = inlined_call_operand.vmem [shape: f32[2,1,8], index: 4, kind: input, shape index: {}]
  %s5 = inlined_call_operand.vmem [shape: f32[1,32], index: 5, kind: input, shape index: {}]
  %s6 = inlined_call_operand.vmem [shape: f32[4,32,8], index: 6, kind: input, shape index: {}]
  %s7 = inlined_call_operand.vmem [shape: f32[4,1,8], index: 7, kind: input, shape index: {}]
  %s8 = inlined_call_operand.vmem [shape: f32[4,32,8], index: 8, kind: input, shape index: {}]
  %s9 = inlined_call_operand.vmem [shape: f32[4,1,8], index: 9, kind: input, shape index: {}]
  %s10 = inlined_call_operand.vmem [shape: f32[4,32,8], index: 10, kind: input, shape index: {}]
  %s11 = inlined_call_operand.vmem [shape: f32[4,1,8], index: 11, kind: input, shape index: {}]
  %s12 = inlined_call_operand.vmem [shape: f32[4,8,32], index: 12, kind: input, shape index: {}]
  %s13 = inlined_call_operand.vmem [shape: f32[1,32], index: 13, kind: input, shape index: {}]
  %s14 = inlined_call_operand.vmem [shape: f32[1,32], index: 14, kind: input, shape index: {}]
  %s15 = inlined_call_operand.vmem [shape: f32[4,32,8], index: 15, kind: input, shape index: {}]
  %s16 = inlined_call_operand.vmem [shape: f32[4,1,8], index: 16, kind: input, shape index: {}]
  %s17 = inlined_call_operand.vmem [shape: f32[4,32,8], index: 17, kind: input, shape index: {}]
  %s18 = inlined_call_operand.vmem [shape: f32[4,1,8], index: 18, kind: input, shape index: {}]
  %s19 = inlined_call_operand.vmem [shape: f32[4,32,8], index: 19, kind: input, shape index: {}]
  %s20 = inlined_call_operand.vmem [shape: f32[4,1,8], index: 20, kind: input, shape index: {}]
  %s21 = inlined_call_operand.vmem [shape: f32[4,8,32], index: 21, kind: input, shape index: {}]
  %s22 = inlined_call_operand.vmem [shape: f32[1,32], index: 22, kind: input, shape index: {}]
  %s23 = inlined_call_operand.vmem [shape: f32[1,32], index: 23, kind: input, shape index: {}]
  %s24 = inlined_call_operand.vmem [shape: f32[32,64], index: 24, kind: input, shape index: {}]
  %s25 = inlined_call_operand.vmem [shape: f32[1,64], index: 25, kind: input, shape index: {}]
  %s26 = inlined_call_operand.vmem [shape: f32[64,32], index: 26, kind: input, shape index: {}]
  %s27 = inlined_call_operand.vmem [shape: f32[1,32], index: 27, kind: input, shape index: {}]
  %s28 = inlined_call_operand.hbm [shape: f32[16,32], index: 28, kind: output, shape index: {}]
  %s29 = sld [smem:[#allocation0]]
  $region122: #{t5_block_forward.1} parent=0
    _
  %s31 = ssub.s32 1, %s29
  %s32 = scalar_select 0, %s31, %s29
  $region1: #{t5_block_forward.1} parent=0
    #allocation2 [shape = 'u8[8192]{0}', space=vmem, size = 0x2000, scoped, tag = 'output window, operand 0, single buffered']
    #allocation3 [shape = 's32[1]{0}', space=sflag, size = 0x4, scoped, tag = 'scoped memory for t5_block_forward.1']
    %33 = vsyncpa [#allocation3], 0
    // Predicated region
    $region2: #{t5_block_forward.1} parent=1 // pred_check
      _
    $region3: #{t5_block_forward.1} parent=1 // pred_check_branch
      %35 = sbr.rel (0) target = $region5
    $region4: #{t5_block_forward.1} parent=1 // pred_region
      _
    $region5: #{t5_block_forward.1} parent=1 // pred_fallthru
      _
    // Predicated region
    $region6: #{t5_block_forward.1} parent=1 // pred_check
      _
    $region7: #{t5_block_forward.1} parent=1 // pred_check_branch
      %37 = sbr.rel (0) target = $region9
    $region8: #{t5_block_forward.1} parent=1 // pred_region
      _
    $region9: #{t5_block_forward.1} parent=1 // pred_fallthru
      _
    // Predicated region
    $region10: #{t5_block_forward.1} parent=1 // pred_check
      _
    $region11: #{t5_block_forward.1} parent=1 // pred_check_branch
      %39 = sbr.rel (0) target = $region13
    $region12: #{t5_block_forward.1} parent=1 // pred_region
      _
    $region13: #{t5_block_forward.1} parent=1 // pred_fallthru
      _
    // Predicated region
    $region14: #{t5_block_forward.1} parent=1 // pred_check
      _
    $region15: #{t5_block_forward.1} parent=1 // pred_check_branch
      %41 = sbr.rel (0) target = $region17
    $region16: #{t5_block_forward.1} parent=1 // pred_region
      _
    $region17: #{t5_block_forward.1} parent=1 // pred_fallthru
      _
    // Predicated region
    $region18: #{t5_block_forward.1} parent=1 // pred_check
      _
    $region19: #{t5_block_forward.1} parent=1 // pred_check_branch
      %43 = sbr.rel (0) target = $region21
    $region20: #{t5_block_forward.1} parent=1 // pred_region
      _
    $region21: #{t5_block_forward.1} parent=1 // pred_fallthru
      _
    // Predicated region
    $region22: #{t5_block_forward.1} parent=1 // pred_check
      _
    $region23: #{t5_block_forward.1} parent=1 // pred_check_branch
      %45 = sbr.rel (0) target = $region25
    $region24: #{t5_block_forward.1} parent=1 // pred_region
      _
    $region25: #{t5_block_forward.1} parent=1 // pred_fallthru
      _
    // Predicated region
    $region26: #{t5_block_forward.1} parent=1 // pred_check
      _
    $region27: #{t5_block_forward.1} parent=1 // pred_check_branch
      %47 = sbr.rel (0) target = $region29
    $region28: #{t5_block_forward.1} parent=1 // pred_region
      _
    $region29: #{t5_block_forward.1} parent=1 // pred_fallthru
      _
    // Predicated region
    $region30: #{t5_block_forward.1} parent=1 // pred_check
      _
    $region31: #{t5_block_forward.1} parent=1 // pred_check_branch
      %49 = sbr.rel (0) target = $region33
    $region32: #{t5_block_forward.1} parent=1 // pred_region
      _
    $region33: #{t5_block_forward.1} parent=1 // pred_fallthru
      _
    // Predicated region
    $region34: #{t5_block_forward.1} parent=1 // pred_check
      _
    $region35: #{t5_block_forward.1} parent=1 // pred_check_branch
      %51 = sbr.rel (0) target = $region37
    $region36: #{t5_block_forward.1} parent=1 // pred_region
      _
    $region37: #{t5_block_forward.1} parent=1 // pred_fallthru
      _
    // Predicated region
    $region38: #{t5_block_forward.1} parent=1 // pred_check
      _
    $region39: #{t5_block_forward.1} parent=1 // pred_check_branch
      %53 = sbr.rel (0) target = $region41
    $region40: #{t5_block_forward.1} parent=1 // pred_region
      _
    $region41: #{t5_block_forward.1} parent=1 // pred_fallthru
      _
    // Predicated region
    $region42: #{t5_block_forward.1} parent=1 // pred_check
      _
    $region43: #{t5_block_forward.1} parent=1 // pred_check_branch
      %55 = sbr.rel (0) target = $region45
    $region44: #{t5_block_forward.1} parent=1 // pred_region
      _
    $region45: #{t5_block_forward.1} parent=1 // pred_fallthru
      _
    // Predicated region
    $region46: #{t5_block_forward.1} parent=1 // pred_check
      _
    $region47: #{t5_block_forward.1} parent=1 // pred_check_branch
      %57 = sbr.rel (0) target = $region49
    $region48: #{t5_block_forward.1} parent=1 // pred_region
      _
    $region49: #{t5_block_forward.1} parent=1 // pred_fallthru
      _
    // Predicated region
    $region50: #{t5_block_forward.1} parent=1 // pred_check
      _
    $region51: #{t5_block_forward.1} parent=1 // pred_check_branch
      %59 = sbr.rel (0) target = $region53
    $region52: #{t5_block_forward.1} parent=1 // pred_region
      _
    $region53: #{t5_block_forward.1} parent=1 // pred_fallthru
      _
    // Predicated region
    $region54: #{t5_block_forward.1} parent=1 // pred_check
      _
    $region55: #{t5_block_forward.1} parent=1 // pred_check_branch
      %61 = sbr.rel (0) target = $region57
    $region56: #{t5_block_forward.1} parent=1 // pred_region
      _
    $region57: #{t5_block_forward.1} parent=1 // pred_fallthru
      _
    // Predicated region
    $region58: #{t5_block_forward.1} parent=1 // pred_check
      _
    $region59: #{t5_block_forward.1} parent=1 // pred_check_branch
      %63 = sbr.rel (0) target = $region61
    $region60: #{t5_block_forward.1} parent=1 // pred_region
      _
    $region61: #{t5_block_forward.1} parent=1 // pred_fallthru
      _
    // Predicated region
    $region62: #{t5_block_forward.1} parent=1 // pred_check
      _
    $region63: #{t5_block_forward.1} parent=1 // pred_check_branch
      %65 = sbr.rel (0) target = $region65
    $region64: #{t5_block_forward.1} parent=1 // pred_region
      _
    $region65: #{t5_block_forward.1} parent=1 // pred_fallthru
      _
    // Predicated region
    $region66: #{t5_block_forward.1} parent=1 // pred_check
      _
    $region67: #{t5_block_forward.1} parent=1 // pred_check_branch
      %67 = sbr.rel (0) target = $region69
    $region68: #{t5_block_forward.1} parent=1 // pred_region
      _
    $region69: #{t5_block_forward.1} parent=1 // pred_fallthru
      _
    // Predicated region
    $region70: #{t5_block_forward.1} parent=1 // pred_check
      _
    $region71: #{t5_block_forward.1} parent=1 // pred_check_branch
      %69 = sbr.rel (0) target = $region73
    $region72: #{t5_block_forward.1} parent=1 // pred_region
      _
    $region73: #{t5_block_forward.1} parent=1 // pred_fallthru
      _
    // Predicated region
    $region74: #{t5_block_forward.1} parent=1 // pred_check
      _
    $region75: #{t5_block_forward.1} parent=1 // pred_check_branch
      %71 = sbr.rel (0) target = $region77
    $region76: #{t5_block_forward.1} parent=1 // pred_region
      _
    $region77: #{t5_block_forward.1} parent=1 // pred_fallthru
      _
    // Predicated region
    $region78: #{t5_block_forward.1} parent=1 // pred_check
      _
    $region79: #{t5_block_forward.1} parent=1 // pred_check_branch
      %73 = sbr.rel (0) target = $region81
    $region80: #{t5_block_forward.1} parent=1 // pred_region
      _
    $region81: #{t5_block_forward.1} parent=1 // pred_fallthru
      _
    // Predicated region
    $region82: #{t5_block_forward.1} parent=1 // pred_check
      _
    $region83: #{t5_block_forward.1} parent=1 // pred_check_branch
      %75 = sbr.rel (0) target = $region85
    $region84: #{t5_block_forward.1} parent=1 // pred_region
      _
    $region85: #{t5_block_forward.1} parent=1 // pred_fallthru
      _
    // Predicated region
    $region86: #{t5_block_forward.1} parent=1 // pred_check
      _
    $region87: #{t5_block_forward.1} parent=1 // pred_check_branch
      %77 = sbr.rel (0) target = $region89
    $region88: #{t5_block_forward.1} parent=1 // pred_region
      _
    $region89: #{t5_block_forward.1} parent=1 // pred_fallthru
      _
    // Predicated region
    $region90: #{t5_block_forward.1} parent=1 // pred_check
      _
    $region91: #{t5_block_forward.1} parent=1 // pred_check_branch
      %79 = sbr.rel (0) target = $region93
    $region92: #{t5_block_forward.1} parent=1 // pred_region
      _
    $region93: #{t5_block_forward.1} parent=1 // pred_fallthru
      _
    // Predicated region
    $region94: #{t5_block_forward.1} parent=1 // pred_check
      _
    $region95: #{t5_block_forward.1} parent=1 // pred_check_branch
      %81 = sbr.rel (0) target = $region97
    $region96: #{t5_block_forward.1} parent=1 // pred_region
      _
    $region97: #{t5_block_forward.1} parent=1 // pred_fallthru
      _
    // Predicated region
    $region98: #{t5_block_forward.1} parent=1 // pred_check
      _
    $region99: #{t5_block_forward.1} parent=1 // pred_check_branch
      %83 = sbr.rel (0) target = $region101
    $region100: #{t5_block_forward.1} parent=1 // pred_region
      _
    $region101: #{t5_block_forward.1} parent=1 // pred_fallthru
      _
    // Predicated region
    $region102: #{t5_block_forward.1} parent=1 // pred_check
      _
    $region103: #{t5_block_forward.1} parent=1 // pred_check_branch
      %85 = sbr.rel (0) target = $region105
    $region104: #{t5_block_forward.1} parent=1 // pred_region
      _
    $region105: #{t5_block_forward.1} parent=1 // pred_fallthru
      _
    // Predicated region
    $region106: #{t5_block_forward.1} parent=1 // pred_check
      _
    $region107: #{t5_block_forward.1} parent=1 // pred_check_branch
      %87 = sbr.rel (0) target = $region109
    $region108: #{t5_block_forward.1} parent=1 // pred_region
      _
    $region109: #{t5_block_forward.1} parent=1 // pred_fallthru
      _
    // Predicated region
    $region110: #{t5_block_forward.1} parent=1 // pred_check
      _
    $region111: #{t5_block_forward.1} parent=1 // pred_check_branch
      %89 = sbr.rel (0) target = $region113
    $region112: #{t5_block_forward.1} parent=1 // pred_region
      _
    $region113: #{t5_block_forward.1} parent=1 // pred_fallthru
      _
    %v90 = vld [vmem:[%s0] sm:$0xff]
    %v91 = vld [vmem:[%s0 + $0x8] sm:$0xff]
    %v92 = vld [vmem:[%s1] sm:$0xff]
    %v93 = vld [vmem:[%s1 + $0x8] sm:$0xff]
    %v94 = vld [vmem:[%s5] sm:$0x1]
    %v95 = vmul.f32 %v90, %v90
    %v96 = vmul.f32 %v91, %v91
    %vm97 = vcmask 261120
    %v98 = vsel %vm97, %v95, 0.0
    %99 = vadd.xlane.f32.xlu0 %v98
    %v100 = vpop.xlane.xlu0 %99
    %v101 = vsel %vm97, %v96, 0.0
    %102 = vadd.xlane.f32.xlu0 %v101
    %v103 = vpop.xlane.xlu0 %102
    %v104 = vrcp.pop 32.0
    %v105 = vmul.f32 %v100, %v104
    %v106 = vmul.f32 %v103, %v104
    %v107 = vadd.f32 %v105, 1e-06
    %v108 = vadd.f32 %v106, 1e-06
    %v109 = vrsqrt.pop %v107
    %v110 = vrsqrt.pop %v108
    %v111 = vmul.f32 %v90, %v109
    %v112 = vmul.f32 %v91, %v110
    %v114 = vlaneseq
    %v115 = vshrl.u32 %v114, 7
    %v116 = vsub.s32 0, %v115
    %v117 = vrot.slane %v94, %v116
    %v119 = vmul.f32 %v117, %v111
    %v120 = vmul.f32 %v117, %v112
    %v121 = vld [vmem:[%s3] sm:$0x1]
    %v122 = vld [vmem:[%s3 + $0x1] sm:$0x1]
    %v125 = vlaneseq
    %v126 = vshrl.u32 %v125, 7
    %v127 = vsub.s32 0, %v126
    %v128 = vrot.slane %v121, %v127
    %v129 = vlaneseq
    %v130 = vshrl.u32 %v129, 7
    %v131 = vsub.s32 0, %v130
    %v132 = vrot.slane %v122, %v131
    %v135 = vld [vmem:[%s6] sm:$0xff]
    %v136 = vld [vmem:[%s6 + $0x8] sm:$0xff]
    %v137 = vld [vmem:[%s6 + $0x10] sm:$0xff]
    %v138 = vld [vmem:[%s6 + $0x18] sm:$0xff]
    %v139 = vld [vmem:[%s7] sm:$0x1]
    %v141 = vlaneseq
    %v142 = vshrl.u32 %v141, 7
    %v143 = vsub.s32 0, %v142
    %v144 = vrot.slane %v139, %v143
    %v147 = vsel %vm97, %v119, 0
    %v150 = vsel %vm97, %v120, 0
    %152 = vmatprep.subr.mxu0 0.0
    %153 = vmatpush1.msra.mxu0 %v135
    %154 = vmatprep.subr.mxu0 0.0
    %155 = vmatpush1.msra.mxu0 %v136
    %156 = vmatprep.subr.mxu0 0.0
    %157 = vmatpush1.msra.mxu0 %v137
    %158 = vmatprep.subr.mxu0 0.0
    %159 = vmatpush1.msra.mxu0 %v138
    %160 = vmatprep.subr.mxu0 0.0
    %161 = vmatpush1.msra.mxu0 0.0
    %162 = vmatprep.subr.mxu0 0.0
    %163 = vmatpush1.msra.mxu0 0.0
    %164 = vmatprep.subr.mxu0 0.0
    %165 = vmatpush1.msra.mxu0 0.0
    %166 = vmatprep.subr.mxu0 0.0
    %167 = vmatpush1.msra.mxu0 0.0
    %168 = vmatprep.subr.mxu0 0.0
    %169 = vmatpush1.msra.mxu0 0.0
    %170 = vmatprep.subr.mxu0 0.0
    %171 = vmatpush1.msra.mxu0 0.0
    %172 = vmatprep.subr.mxu0 0.0
    %173 = vmatpush1.msra.mxu0 0.0
    %174 = vmatprep.subr.mxu0 0.0
    %175 = vmatpush1.msra.mxu0 0.0
    %176 = vmatprep.subr.mxu0 0.0
    %177 = vmatpush1.msra.mxu0 0.0
    %178 = vmatprep.subr.mxu0 0.0
    %179 = vmatpush1.msra.mxu0 0.0
    %180 = vmatprep.subr.mxu0 0.0
    %181 = vmatpush1.msra.mxu0 0.0
    %182 = vmatprep.subr.mxu0 0.0
    %183 = vmatpush1.msra.mxu0 0.0
    %184 = vmatprep.subr.mxu0 0.0
    %185 = vmatpush1.msra.mxu0 0.0
    %186 = vmatprep.subr.mxu0 0.0
    %187 = vmatpush1.msra.mxu0 0.0
    %188 = vmatprep.subr.mxu0 0.0
    %189 = vmatpush1.msra.mxu0 0.0
    %190 = vmatprep.subr.mxu0 0.0
    %191 = vmatpush1.msra.mxu0 0.0
    %192 = vmatprep.subr.mxu0 0.0
    %193 = vmatpush1.msra.mxu0 0.0
    %194 = vmatprep.subr.mxu0 0.0
    %195 = vmatpush1.msra.mxu0 0.0
    %196 = vmatprep.subr.mxu0 0.0
    %197 = vmatpush1.msra.mxu0 0.0
    %198 = vmatprep.subr.mxu0 0.0
    %199 = vmatpush1.msra.mxu0 0.0
    %200 = vmatprep.subr.mxu0 0.0
    %201 = vmatpush1.msra.mxu0 0.0
    %202 = vmatprep.subr.mxu0 0.0
    %203 = vmatpush1.msra.mxu0 0.0
    %204 = vmatprep.subr.mxu0 0.0
    %205 = vmatpush1.msra.mxu0 0.0
    %206 = vmatprep.subr.mxu0 0.0
    %207 = vmatpush1.msra.mxu0 0.0
    %208 = vmatprep.subr.mxu0 0.0
    %209 = vmatpush1.msra.mxu0 0.0
    %210 = vmatprep.subr.mxu0 0.0
    %211 = vmatpush1.msra.mxu0 0.0
    %212 = vmatprep.subr.mxu0 0.0
    %213 = vmatpush1.msra.mxu0 0.0
    %214 = vmatprep.subr.mxu0 0.0
    %215 = vmatpush1.msra.mxu0 0.0
    %216 = vmatprep.mubr.f32.mxu0 0.0
    %217 = vmatmul.mubr.f32.gmra.mrb[0].mxu0 %v147
    %v218 = vpop.f32.mrb[0].mxu0
    %v219 = vadd.f32 %v144, %v218
    %v220 = vpop.f32.mrb[0].mxu0
    %221 = vmatprep.mubr.f32.mxu0 0.0
    %222 = vmatmul.mubr.f32.gmra.mrb[0].mxu0 %v150
    %v223 = vpop.f32.mrb[0].mxu0
    %v224 = vadd.f32 %v144, %v223
    %v225 = vpop.f32.mrb[0].mxu0
    %226 = vdwg.mxu0
    %v227 = vld [vmem:[%s8] sm:$0xff]
    %v228 = vld [vmem:[%s8 + $0x8] sm:$0xff]
    %v229 = vld [vmem:[%s8 + $0x10] sm:$0xff]
    %v230 = vld [vmem:[%s8 + $0x18] sm:$0xff]
    %v231 = vld [vmem:[%s9] sm:$0x1]
    %v233 = vlaneseq
    %v234 = vshrl.u32 %v233, 7
    %v235 = vsub.s32 0, %v234
    %v236 = vrot.slane %v231, %v235
    %238 = vmatprep.subr.mxu0 0.0
    %239 = vmatpush1.msra.mxu0 %v227
    %240 = vmatprep.subr.mxu0 0.0
    %241 = vmatpush1.msra.mxu0 %v228
    %242 = vmatprep.subr.mxu0 0.0
    %243 = vmatpush1.msra.mxu0 %v229
    %244 = vmatprep.subr.mxu0 0.0
    %245 = vmatpush1.msra.mxu0 %v230
    %246 = vmatprep.subr.mxu0 0.0
    %247 = vmatpush1.msra.mxu0 0.0
    %248 = vmatprep.subr.mxu0 0.0
    %249 = vmatpush1.msra.mxu0 0.0
    %250 = vmatprep.subr.mxu0 0.0
    %251 = vmatpush1.msra.mxu0 0.0
    %252 = vmatprep.subr.mxu0 0.0
    %253 = vmatpush1.msra.mxu0 0.0
    %254 = vmatprep.subr.mxu0 0.0
    %255 = vmatpush1.msra.mxu0 0.0
    %256 = vmatprep.subr.mxu0 0.0
    %257 = vmatpush1.msra.mxu0 0.0
    %258 = vmatprep.subr.mxu0 0.0
    %259 = vmatpush1.msra.mxu0 0.0
    %260 = vmatprep.subr.mxu0 0.0
    %261 = vmatpush1.msra.mxu0 0.0
    %262 = vmatprep.subr.mxu0 0.0
    %263 = vmatpush1.msra.mxu0 0.0
    %264 = vmatprep.subr.mxu0 0.0
    %265 = vmatpush1.msra.mxu0 0.0
    %266 = vmatprep.subr.mxu0 0.0
    %267 = vmatpush1.msra.mxu0 0.0
    %268 = vmatprep.subr.mxu0 0.0
    %269 = vmatpush1.msra.mxu0 0.0
    %270 = vmatprep.subr.mxu0 0.0
    %271 = vmatpush1.msra.mxu0 0.0
    %272 = vmatprep.subr.mxu0 0.0
    %273 = vmatpush1.msra.mxu0 0.0
    %274 = vmatprep.subr.mxu0 0.0
    %275 = vmatpush1.msra.mxu0 0.0
    %276 = vmatprep.subr.mxu0 0.0
    %277 = vmatpush1.msra.mxu0 0.0
    %278 = vmatprep.subr.mxu0 0.0
    %279 = vmatpush1.msra.mxu0 0.0
    %280 = vmatprep.subr.mxu0 0.0
    %281 = vmatpush1.msra.mxu0 0.0
    %282 = vmatprep.subr.mxu0 0.0
    %283 = vmatpush1.msra.mxu0 0.0
    %284 = vmatprep.subr.mxu0 0.0
    %285 = vmatpush1.msra.mxu0 0.0
    %286 = vmatprep.subr.mxu0 0.0
    %287 = vmatpush1.msra.mxu0 0.0
    %288 = vmatprep.subr.mxu0 0.0
    %289 = vmatpush1.msra.mxu0 0.0
    %290 = vmatprep.subr.mxu0 0.0
    %291 = vmatpush1.msra.mxu0 0.0
    %292 = vmatprep.subr.mxu0 0.0
    %293 = vmatpush1.msra.mxu0 0.0
    %294 = vmatprep.subr.mxu0 0.0
    %295 = vmatpush1.msra.mxu0 0.0
    %296 = vmatprep.subr.mxu0 0.0
    %297 = vmatpush1.msra.mxu0 0.0
    %298 = vmatprep.subr.mxu0 0.0
    %299 = vmatpush1.msra.mxu0 0.0
    %300 = vmatprep.subr.mxu0 0.0
    %301 = vmatpush1.msra.mxu0 0.0
    %302 = vmatprep.mubr.f32.mxu0 0.0
    %303 = vmatmul.mubr.f32.gmra.mrb[0].mxu0 %v147
    %v304 = vpop.f32.mrb[0].mxu0
    %v305 = vadd.f32 %v236, %v304
    %v306 = vpop.f32.mrb[0].mxu0
    %307 = vmatprep.mubr.f32.mxu0 0.0
    %308 = vmatmul.mubr.f32.gmra.mrb[0].mxu0 %v150
    %v309 = vpop.f32.mrb[0].mxu0
    %v310 = vadd.f32 %v236, %v309
    %v311 = vpop.f32.mrb[0].mxu0
    %312 = vdwg.mxu0
    %v313 = vld [vmem:[%s10] sm:$0xff]
    %v314 = vld [vmem:[%s10 + $0x8] sm:$0xff]
    %v315 = vld [vmem:[%s10 + $0x10] sm:$0xff]
    %v316 = vld [vmem:[%s10 + $0x18] sm:$0xff]
    %v317 = vld [vmem:[%s11] sm:$0x1]
    %v319 = vlaneseq
    %v320 = vshrl.u32 %v319, 7
    %v321 = vsub.s32 0, %v320
    %v322 = vrot.slane %v317, %v321
    %324 = vmatprep.subr.mxu0 0.0
    %325 = vmatpush1.msra.mxu0 %v313
    %326 = vmatprep.subr.mxu0 0.0
    %327 = vmatpush1.msra.mxu0 %v314
    %328 = vmatprep.subr.mxu0 0.0
    %329 = vmatpush1.msra.mxu0 %v315
    %330 = vmatprep.subr.mxu0 0.0
    %331 = vmatpush1.msra.mxu0 %v316
    %332 = vmatprep.subr.mxu0 0.0
    %333 = vmatpush1.msra.mxu0 0.0
    %334 = vmatprep.subr.mxu0 0.0
    %335 = vmatpush1.msra.mxu0 0.0
    %336 = vmatprep.subr.mxu0 0.0
    %337 = vmatpush1.msra.mxu0 0.0
    %338 = vmatprep.subr.mxu0 0.0
    %339 = vmatpush1.msra.mxu0 0.0
    %340 = vmatprep.subr.mxu0 0.0
    %341 = vmatpush1.msra.mxu0 0.0
    %342 = vmatprep.subr.mxu0 0.0
    %343 = vmatpush1.msra.mxu0 0.0
    %344 = vmatprep.subr.mxu0 0.0
    %345 = vmatpush1.msra.mxu0 0.0
    %346 = vmatprep.subr.mxu0 0.0
    %347 = vmatpush1.msra.mxu0 0.0
    %348 = vmatprep.subr.mxu0 0.0
    %349 = vmatpush1.msra.mxu0 0.0
    %350 = vmatprep.subr.mxu0 0.0
    %351 = vmatpush1.msra.mxu0 0.0
    %352 = vmatprep.subr.mxu0 0.0
    %353 = vmatpush1.msra.mxu0 0.0
    %354 = vmatprep.subr.mxu0 0.0
    %355 = vmatpush1.msra.mxu0 0.0
    %356 = vmatprep.subr.mxu0 0.0
    %357 = vmatpush1.msra.mxu0 0.0
    %358 = vmatprep.subr.mxu0 0.0
    %359 = vmatpush1.msra.mxu0 0.0
    %360 = vmatprep.subr.mxu0 0.0
    %361 = vmatpush1.msra.mxu0 0.0
    %362 = vmatprep.subr.mxu0 0.0
    %363 = vmatpush1.msra.mxu0 0.0
    %364 = vmatprep.subr.mxu0 0.0
    %365 = vmatpush1.msra.mxu0 0.0
    %366 = vmatprep.subr.mxu0 0.0
    %367 = vmatpush1.msra.mxu0 0.0
    %368 = vmatprep.subr.mxu0 0.0
    %369 = vmatpush1.msra.mxu0 0.0
    %370 = vmatprep.subr.mxu0 0.0
    %371 = vmatpush1.msra.mxu0 0.0
    %372 = vmatprep.subr.mxu0 0.0
    %373 = vmatpush1.msra.mxu0 0.0
    %374 = vmatprep.subr.mxu0 0.0
    %375 = vmatpush1.msra.mxu0 0.0
    %376 = vmatprep.subr.mxu0 0.0
    %377 = vmatpush1.msra.mxu0 0.0
    %378 = vmatprep.subr.mxu0 0.0
    %379 = vmatpush1.msra.mxu0 0.0
    %380 = vmatprep.subr.mxu0 0.0
    %381 = vmatpush1.msra.mxu0 0.0
    %382 = vmatprep.subr.mxu0 0.0
    %383 = vmatpush1.msra.mxu0 0.0
    %384 = vmatprep.subr.mxu0 0.0
    %385 = vmatpush1.msra.mxu0 0.0
    %386 = vmatprep.subr.mxu0 0.0
    %387 = vmatpush1.msra.mxu0 0.0
    %388 = vmatprep.mubr.f32.mxu0 0.0
    %389 = vmatmul.mubr.f32.gmra.mrb[0].mxu0 %v147
    %v390 = vpop.f32.mrb[0].mxu0
    %v391 = vadd.f32 %v322, %v390
    %v392 = vpop.f32.mrb[0].mxu0
    %393 = vmatprep.mubr.f32.mxu0 0.0
    %394 = vmatmul.mubr.f32.gmra.mrb[0].mxu0 %v150
    %v395 = vpop.f32.mrb[0].mxu0
    %v396 = vadd.f32 %v322, %v395
    %v397 = vpop.f32.mrb[0].mxu0
    %398 = vdwg.mxu0
    %v399 = vld [vmem:[%s2] sm:$0xff]
    %vm400 = vcmask 64512
    %v402 = vsel %vm400, %v219, 0
    %v405 = vsel %vm400, %v305, 0
    %407 = vmatprep.subr.mxu0 0.0
    %408 = vmatpush1.xpose.msra.mxu0 %v405
    %409 = vmatprep.subr.mxu0 0.0
    %410 = vmatpush1.xpose.msra.mxu0 0.0
    %411 = vmatprep.subr.mxu0 0.0
    %412 = vmatpush1.xpose.msra.mxu0 0.0
    %413 = vmatprep.subr.mxu0 0.0
    %414 = vmatpush1.xpose.msra.mxu0 0.0
    %415 = vmatprep.subr.mxu0 0.0
    %416 = vmatpush1.xpose.msra.mxu0 0.0
    %417 = vmatprep.subr.mxu0 0.0
    %418 = vmatpush1.xpose.msra.mxu0 0.0
    %419 = vmatprep.subr.mxu0 0.0
    %420 = vmatpush1.xpose.msra.mxu0 0.0
    %421 = vmatprep.subr.mxu0 0.0
    %422 = vmatpush1.xpose.msra.mxu0 0.0
    %423 = vmatprep.subr.mxu0 0.0
    %424 = vmatpush1.xpose.msra.mxu0 0.0
    %425 = vmatprep.subr.mxu0 0.0
    %426 = vmatpush1.xpose.msra.mxu0 0.0
    %427 = vmatprep.subr.mxu0 0.0
    %428 = vmatpush1.xpose.msra.mxu0 0.0
    %429 = vmatprep.subr.mxu0 0.0
    %430 = vmatpush1.xpose.msra.mxu0 0.0
    %431 = vmatprep.subr.mxu0 0.0
    %432 = vmatpush1.xpose.msra.mxu0 0.0
    %433 = vmatprep.subr.mxu0 0.0
    %434 = vmatpush1.xpose.msra.mxu0 0.0
    %435 = vmatprep.subr.mxu0 0.0
    %436 = vmatpush1.xpose.msra.mxu0 0.0
    %437 = vmatprep.subr.mxu0 0.0
    %438 = vmatpush1.xpose.msra.mxu0 0.0
    %439 = vmatprep.subr.mxu0 0.0
    %440 = vmatpush1.xpose.msra.mxu0 0.0
    %441 = vmatprep.subr.mxu0 0.0
    %442 = vmatpush1.xpose.msra.mxu0 0.0
    %443 = vmatprep.subr.mxu0 0.0
    %444 = vmatpush1.xpose.msra.mxu0 0.0
    %445 = vmatprep.subr.mxu0 0.0
    %446 = vmatpush1.xpose.msra.mxu0 0.0
    %447 = vmatprep.subr.mxu0 0.0
    %448 = vmatpush1.xpose.msra.mxu0 0.0
    %449 = vmatprep.subr.mxu0 0.0
    %450 = vmatpush1.xpose.msra.mxu0 0.0
    %451 = vmatprep.subr.mxu0 0.0
    %452 = vmatpush1.xpose.msra.mxu0 0.0
    %453 = vmatprep.subr.mxu0 0.0
    %454 = vmatpush1.xpose.msra.mxu0 0.0
    %455 = vmatprep.subr.mxu0 0.0
    %456 = vmatpush1.xpose.msra.mxu0 0.0
    %457 = vmatprep.subr.mxu0 0.0
    %458 = vmatpush1.xpose.msra.mxu0 0.0
    %459 = vmatprep.subr.mxu0 0.0
    %460 = vmatpush1.xpose.msra.mxu0 0.0
    %461 = vmatprep.subr.mxu0 0.0
    %462 = vmatpush1.xpose.msra.mxu0 0.0
    %463 = vmatprep.subr.mxu0 0.0
    %464 = vmatpush1.xpose.msra.mxu0 0.0
    %465 = vmatprep.subr.mxu0 0.0
    %466 = vmatpush1.xpose.msra.mxu0 0.0
    %467 = vmatprep.subr.mxu0 0.0
    %468 = vmatpush1.xpose.msra.mxu0 0.0
    %469 = vmatprep.subr.mxu0 0.0
    %470 = vmatpush1.xpose.msra.mxu0 0.0
    %471 = vmatprep.mubr.f32.mxu0 0.0
    %472 = vmatmul.mubr.f32.gmra.mrb[0].mxu0 %v402
    %v473 = vpop.f32.mrb[0].mxu0
    %v474 = vadd.f32 %v399, %v473
    %v475 = vpop.f32.mrb[0].mxu0
    %476 = vdwg.mxu0
    %v478 = vsel %vm400, %v224, 0
    %v481 = vsel %vm400, %v310, 0
    %483 = vmatprep.subr.mxu0 0.0
    %484 = vmatpush1.xpose.msra.mxu0 %v481
    %485 = vmatprep.subr.mxu0 0.0
    %486 = vmatpush1.xpose.msra.mxu0 0.0
    %487 = vmatprep.subr.mxu0 0.0
    %488 = vmatpush1.xpose.msra.mxu0 0.0
    %489 = vmatprep.subr.mxu0 0.0
    %490 = vmatpush1.xpose.msra.mxu0 0.0
    %491 = vmatprep.subr.mxu0 0.0
    %492 = vmatpush1.xpose.msra.mxu0 0.0
    %493 = vmatprep.subr.mxu0 0.0
    %494 = vmatpush1.xpose.msra.mxu0 0.0
    %495 = vmatprep.subr.mxu0 0.0
    %496 = vmatpush1.xpose.msra.mxu0 0.0
    %497 = vmatprep.subr.mxu0 0.0
    %498 = vmatpush1.xpose.msra.mxu0 0.0
    %499 = vmatprep.subr.mxu0 0.0
    %500 = vmatpush1.xpose.msra.mxu0 0.0
    %501 = vmatprep.subr.mxu0 0.0
    %502 = vmatpush1.xpose.msra.mxu0 0.0
    %503 = vmatprep.subr.mxu0 0.0
    %504 = vmatpush1.xpose.msra.mxu0 0.0
    %505 = vmatprep.subr.mxu0 0.0
    %506 = vmatpush1.xpose.msra.mxu0 0.0
    %507 = vmatprep.subr.mxu0 0.0
    %508 = vmatpush1.xpose.msra.mxu0 0.0
    %509 = vmatprep.subr.mxu0 0.0
    %510 = vmatpush1.xpose.msra.mxu0 0.0
    %511 = vmatprep.subr.mxu0 0.0
    %512 = vmatpush1.xpose.msra.mxu0 0.0
    %513 = vmatprep.subr.mxu0 0.0
    %514 = vmatpush1.xpose.msra.mxu0 0.0
    %515 = vmatprep.subr.mxu0 0.0
    %516 = vmatpush1.xpose.msra.mxu0 0.0
    %517 = vmatprep.subr.mxu0 0.0
    %518 = vmatpush1.xpose.msra.mxu0 0.0
    %519 = vmatprep.subr.mxu0 0.0
    %520 = vmatpush1.xpose.msra.mxu0 0.0
    %521 = vmatprep.subr.mxu0 0.0
    %522 = vmatpush1.xpose.msra.mxu0 0.0
    %523 = vmatprep.subr.mxu0 0.0
    %524 = vmatpush1.xpose.msra.mxu0 0.0
    %525 = vmatprep.subr.mxu0 0.0
    %526 = vmatpush1.xpose.msra.mxu0 0.0
    %527 = vmatprep.subr.mxu0 0.0
    %528 = vmatpush1.xpose.msra.mxu0 0.0
    %529 = vmatprep.subr.mxu0 0.0
    %530 = vmatpush1.xpose.msra.mxu0 0.0
    %531 = vmatprep.subr.mxu0 0.0
    %532 = vmatpush1.xpose.msra.mxu0 0.0
    %533 = vmatprep.subr.mxu0 0.0
    %534 = vmatpush1.xpose.msra.mxu0 0.0
    %535 = vmatprep.subr.mxu0 0.0
    %536 = vmatpush1.xpose.msra.mxu0 0.0
    %537 = vmatprep.subr.mxu0 0.0
    %538 = vmatpush1.xpose.msra.mxu0 0.0
    %539 = vmatprep.subr.mxu0 0.0
    %540 = vmatpush1.xpose.msra.mxu0 0.0
    %541 = vmatprep.subr.mxu0 0.0
    %542 = vmatpush1.xpose.msra.mxu0 0.0
    %543 = vmatprep.subr.mxu0 0.0
    %544 = vmatpush1.xpose.msra.mxu0 0.0
    %545 = vmatprep.subr.mxu0 0.0
    %546 = vmatpush1.xpose.msra.mxu0 0.0
    %547 = vmatprep.mubr.f32.mxu0 0.0
    %548 = vmatmul.mubr.f32.gmra.mrb[0].mxu0 %v478
    %v549 = vpop.f32.mrb[0].mxu0
    %v550 = vadd.f32 %v399, %v549
    %v551 = vpop.f32.mrb[0].mxu0
    %552 = vdwg.mxu0
    %v553 = vadd.f32 %v474, %v128
    %v554 = vadd.f32 %v550, %v132
    %v555 = vmul.f32 %v553, 0.015625
    %v556 = vmul.f32 %v554, 0.015625
    %v557 = vsel %vm400, %v555, -inf
    %558 = vmax.xlane.f32.xlu0 %v557
    %v559 = vpop.xlane.xlu0 %558
    %v560 = vsel %vm400, %v556, -inf
    %561 = vmax.xlane.f32.xlu0 %v560
    %v562 = vpop.xlane.xlu0 %561
    %v563 = vsub.f32 %v555, %v559
    %v564 = vsub.f32 %v556, %v562
    %v565 = vmul.f32 %v563, 1.442695
    %v566 = vpow.pop %v565
    %v567 = vmul.f32 %v564, 1.442695
    %v568 = vpow.pop %v567
    %v569 = vsel %vm400, %v566, 0.0
    %570 = vadd.xlane.f32.xlu0 %v569
    %v571 = vpop.xlane.xlu0 %570
    %v572 = vsel %vm400, %v568, 0.0
    %573 = vadd.xlane.f32.xlu0 %v572
    %v574 = vpop.xlane.xlu0 %573
    %v575 = vrcp.pop %v571
    %v576 = vrcp.pop %v574
    %v577 = vmul.f32 %v566, %v575
    %v578 = vmul.f32 %v568, %v576
    %v580 = vsel %vm400, %v577, 0
    %582 = vmatprep.subr.mxu0 0.0
    %583 = vmatpush1.msra.mxu0 %v391
    %584 = vmatprep.subr.mxu0 0.0
    %585 = vmatpush1.msra.mxu0 0.0
    %586 = vmatprep.subr.mxu0 0.0
    %587 = vmatpush1.msra.mxu0 0.0
    %588 = vmatprep.subr.mxu0 0.0
    %589 = vmatpush1.msra.mxu0 0.0
    %590 = vmatprep.subr.mxu0 0.0
    %591 = vmatpush1.msra.mxu0 0.0
    %592 = vmatprep.subr.mxu0 0.0
    %593 = vmatpush1.msra.mxu0 0.0
    %594 = vmatprep.subr.mxu0 0.0
    %595 = vmatpush1.msra.mxu0 0.0
    %596 = vmatprep.subr.mxu0 0.0
    %597 = vmatpush1.msra.mxu0 0.0
    %598 = vmatprep.subr.mxu0 0.0
    %599 = vmatpush1.msra.mxu0 0.0
    %600 = vmatprep.subr.mxu0 0.0
    %601 = vmatpush1.msra.mxu0 0.0
    %602 = vmatprep.subr.mxu0 0.0
    %603 = vmatpush1.msra.mxu0 0.0
    %604 = vmatprep.subr.mxu0 0.0
    %605 = vmatpush1.msra.mxu0 0.0
    %606 = vmatprep.subr.mxu0 0.0
    %607 = vmatpush1.msra.mxu0 0.0
    %608 = vmatprep.subr.mxu0 0.0
    %609 = vmatpush1.msra.mxu0 0.0
    %610 = vmatprep.subr.mxu0 0.0
    %611 = vmatpush1.msra.mxu0 0.0
    %612 = vmatprep.subr.mxu0 0.0
    %613 = vmatpush1.msra.mxu0 0.0
    %614 = vmatprep.subr.mxu0 0.0
    %615 = vmatpush1.msra.mxu0 0.0
    %616 = vmatprep.subr.mxu0 0.0
    %617 = vmatpush1.msra.mxu0 0.0
    %618 = vmatprep.subr.mxu0 0.0
    %619 = vmatpush1.msra.mxu0 0.0
    %620 = vmatprep.subr.mxu0 0.0
    %621 = vmatpush1.msra.mxu0 0.0
    %622 = vmatprep.subr.mxu0 0.0
    %623 = vmatpush1.msra.mxu0 0.0
    %624 = vmatprep.subr.mxu0 0.0
    %625 = vmatpush1.msra.mxu0 0.0
    %626 = vmatprep.subr.mxu0 0.0
    %627 = vmatpush1.msra.mxu0 0.0
    %628 = vmatprep.subr.mxu0 0.0
    %629 = vmatpush1.msra.mxu0 0.0
    %630 = vmatprep.subr.mxu0 0.0
    %631 = vmatpush1.msra.mxu0 0.0
    %632 = vmatprep.subr.mxu0 0.0
    %633 = vmatpush1.msra.mxu0 0.0
    %634 = vmatprep.subr.mxu0 0.0
    %635 = vmatpush1.msra.mxu0 0.0
    %636 = vmatprep.subr.mxu0 0.0
    %637 = vmatpush1.msra.mxu0 0.0
    %638 = vmatprep.subr.mxu0 0.0
    %639 = vmatpush1.msra.mxu0 0.0
    %640 = vmatprep.subr.mxu0 0.0
    %641 = vmatpush1.msra.mxu0 0.0
    %642 = vmatprep.subr.mxu0 0.0
    %643 = vmatpush1.msra.mxu0 0.0
    %644 = vmatprep.subr.mxu0 0.0
    %645 = vmatpush1.msra.mxu0 0.0
    %646 = vmatprep.mubr.f32.mxu0 0.0
    %647 = vmatmul.mubr.f32.gmra.mrb[0].mxu0 %v580
    %v648 = vpop.f32.mrb[0].mxu0
    %v649 = vadd.f32 0.0, %v648
    %v650 = vpop.f32.mrb[0].mxu0
    %651 = vdwg.mxu0
    %v653 = vsel %vm400, %v578, 0
    %655 = vmatprep.subr.mxu0 0.0
    %656 = vmatpush1.msra.mxu0 %v396
    %657 = vmatprep.subr.mxu0 0.0
    %658 = vmatpush1.msra.mxu0 0.0
    %659 = vmatprep.subr.mxu0 0.0
    %660 = vmatpush1.msra.mxu0 0.0
    %661 = vmatprep.subr.mxu0 0.0
    %662 = vmatpush1.msra.mxu0 0.0
    %663 = vmatprep.subr.mxu0 0.0
    %664 = vmatpush1.msra.mxu0 0.0
    %665 = vmatprep.subr.mxu0 0.0
    %666 = vmatpush1.msra.mxu0 0.0
    %667 = vmatprep.subr.mxu0 0.0
    %668 = vmatpush1.msra.mxu0 0.0
    %669 = vmatprep.subr.mxu0 0.0
    %670 = vmatpush1.msra.mxu0 0.0
    %671 = vmatprep.subr.mxu0 0.0
    %672 = vmatpush1.msra.mxu0 0.0
    %673 = vmatprep.subr.mxu0 0.0
    %674 = vmatpush1.msra.mxu0 0.0
    %675 = vmatprep.subr.mxu0 0.0
    %676 = vmatpush1.msra.mxu0 0.0
    %677 = vmatprep.subr.mxu0 0.0
    %678 = vmatpush1.msra.mxu0 0.0
    %679 = vmatprep.subr.mxu0 0.0
    %680 = vmatpush1.msra.mxu0 0.0
    %681 = vmatprep.subr.mxu0 0.0
    %682 = vmatpush1.msra.mxu0 0.0
    %683 = vmatprep.subr.mxu0 0.0
    %684 = vmatpush1.msra.mxu0 0.0
    %685 = vmatprep.subr.mxu0 0.0
    %686 = vmatpush1.msra.mxu0 0.0
    %687 = vmatprep.subr.mxu0 0.0
    %688 = vmatpush1.msra.mxu0 0.0
    %689 = vmatprep.subr.mxu0 0.0
    %690 = vmatpush1.msra.mxu0 0.0
    %691 = vmatprep.subr.mxu0 0.0
    %692 = vmatpush1.msra.mxu0 0.0
    %693 = vmatprep.subr.mxu0 0.0
    %694 = vmatpush1.msra.mxu0 0.0
    %695 = vmatprep.subr.mxu0 0.0
    %696 = vmatpush1.msra.mxu0 0.0
    %697 = vmatprep.subr.mxu0 0.0
    %698 = vmatpush1.msra.mxu0 0.0
    %699 = vmatprep.subr.mxu0 0.0
    %700 = vmatpush1.msra.mxu0 0.0
    %701 = vmatprep.subr.mxu0 0.0
    %702 = vmatpush1.msra.mxu0 0.0
    %703 = vmatprep.subr.mxu0 0.0
    %704 = vmatpush1.msra.mxu0 0.0
    %705 = vmatprep.subr.mxu0 0.0
    %706 = vmatpush1.msra.mxu0 0.0
    %707 = vmatprep.subr.mxu0 0.0
    %708 = vmatpush1.msra.mxu0 0.0
    %709 = vmatprep.subr.mxu0 0.0
    %710 = vmatpush1.msra.mxu0 0.0
    %711 = vmatprep.subr.mxu0 0.0
    %712 = vmatpush1.msra.mxu0 0.0
    %713 = vmatprep.subr.mxu0 0.0
    %714 = vmatpush1.msra.mxu0 0.0
    %715 = vmatprep.subr.mxu0 0.0
    %716 = vmatpush1.msra.mxu0 0.0
    %717 = vmatprep.subr.mxu0 0.0
    %718 = vmatpush1.msra.mxu0 0.0
    %719 = vmatprep.mubr.f32.mxu0 0.0
    %720 = vmatmul.mubr.f32.gmra.mrb[0].mxu0 %v653
    %v721 = vpop.f32.mrb[0].mxu0
    %v722 = vadd.f32 0.0, %v721
    %v723 = vpop.f32.mrb[0].mxu0
    %724 = vdwg.mxu0
    %v725 = vld [vmem:[%s12] sm:$0xff]
    %s726 = scalar_lea.vmem %s6, 32
    %v727 = vld [vmem:[%s726] sm:$0xff]
    %v728 = vld [vmem:[%s726 + $0x8] sm:$0xff]
    %v729 = vld [vmem:[%s726 + $0x10] sm:$0xff]
    %v730 = vld [vmem:[%s726 + $0x18] sm:$0xff]
    %s731 = scalar_lea.vmem %s7, 1
    %v732 = vld [vmem:[%s731] sm:$0x1]
    %v734 = vlaneseq
    %v735 = vshrl.u32 %v734, 7
    %v736 = vsub.s32 0, %v735
    %v737 = vrot.slane %v732, %v736
    %739 = vmatprep.subr.mxu0 0.0
    %740 = vmatpush1.msra.mxu0 %v727
    %741 = vmatprep.subr.mxu0 0.0
    %742 = vmatpush1.msra.mxu0 %v728
    %743 = vmatprep.subr.mxu0 0.0
    %744 = vmatpush1.msra.mxu0 %v729
    %745 = vmatprep.subr.mxu0 0.0
    %746 = vmatpush1.msra.mxu0 %v730
    %747 = vmatprep.subr.mxu0 0.0
    %748 = vmatpush1.msra.mxu0 0.0
    %749 = vmatprep.subr.mxu0 0.0
    %750 = vmatpush1.msra.mxu0 0.0
    %751 = vmatprep.subr.mxu0 0.0
    %752 = vmatpush1.msra.mxu0 0.0
    %753 = vmatprep.subr.mxu0 0.0
    %754 = vmatpush1.msra.mxu0 0.0
    %755 = vmatprep.subr.mxu0 0.0
    %756 = vmatpush1.msra.mxu0 0.0
    %757 = vmatprep.subr.mxu0 0.0
    %758 = vmatpush1.msra.mxu0 0.0
    %759 = vmatprep.subr.mxu0 0.0
    %760 = vmatpush1.msra.mxu0 0.0
    %761 = vmatprep.subr.mxu0 0.0
    %762 = vmatpush1.msra.mxu0 0.0
    %763 = vmatprep.subr.mxu0 0.0
    %764 = vmatpush1.msra.mxu0 0.0
    %765 = vmatprep.subr.mxu0 0.0
    %766 = vmatpush1.msra.mxu0 0.0
    %767 = vmatprep.subr.mxu0 0.0
    %768 = vmatpush1.msra.mxu0 0.0
    %769 = vmatprep.subr.mxu0 0.0
    %770 = vmatpush1.msra.mxu0 0.0
    %771 = vmatprep.subr.mxu0 0.0
    %772 = vmatpush1.msra.mxu0 0.0
    %773 = vmatprep.subr.mxu0 0.0
    %774 = vmatpush1.msra.mxu0 0.0
    %775 = vmatprep.subr.mxu0 0.0
    %776 = vmatpush1.msra.mxu0 0.0
    %777 = vmatprep.subr.mxu0 0.0
    %778 = vmatpush1.msra.mxu0 0.0
    %779 = vmatprep.subr.mxu0 0.0
    %780 = vmatpush1.msra.mxu0 0.0
    %781 = vmatprep.subr.mxu0 0.0
    %782 = vmatpush1.msra.mxu0 0.0
    %783 = vmatprep.subr.mxu0 0.0
    %784 = vmatpush1.msra.mxu0 0.0
    %785 = vmatprep.subr.mxu0 0.0
    %786 = vmatpush1.msra.mxu0 0.0
    %787 = vmatprep.subr.mxu0 0.0
    %788 = vmatpush1.msra.mxu0 0.0
    %789 = vmatprep.subr.mxu0 0.0
    %790 = vmatpush1.msra.mxu0 0.0
    %791 = vmatprep.subr.mxu0 0.0
    %792 = vmatpush1.msra.mxu0 0.0
    %793 = vmatprep.subr.mxu0 0.0
    %794 = vmatpush1.msra.mxu0 0.0
    %795 = vmatprep.subr.mxu0 0.0
    %796 = vmatpush1.msra.mxu0 0.0
    %797 = vmatprep.subr.mxu0 0.0
    %798 = vmatpush1.msra.mxu0 0.0
    %799 = vmatprep.subr.mxu0 0.0
    %800 = vmatpush1.msra.mxu0 0.0
    %801 = vmatprep.subr.mxu0 0.0
    %802 = vmatpush1.msra.mxu0 0.0
    %803 = vmatprep.mubr.f32.mxu0 0.0
    %804 = vmatmul.mubr.f32.gmra.mrb[0].mxu0 %v147
    %v805 = vpop.f32.mrb[0].mxu0
    %v806 = vadd.f32 %v737, %v805
    %v807 = vpop.f32.mrb[0].mxu0
    %808 = vmatprep.mubr.f32.mxu0 0.0
    %809 = vmatmul.mubr.f32.gmra.mrb[0].mxu0 %v150
    %v810 = vpop.f32.mrb[0].mxu0
    %v811 = vadd.f32 %v737, %v810
    %v812 = vpop.f32.mrb[0].mxu0
    %813 = vdwg.mxu0
    %s814 = scalar_lea.vmem %s8, 32
    %v815 = vld [vmem:[%s814] sm:$0xff]
    %v816 = vld [vmem:[%s814 + $0x8] sm:$0xff]
    %v817 = vld [vmem:[%s814 + $0x10] sm:$0xff]
    %v818 = vld [vmem:[%s814 + $0x18] sm:$0xff]
    %s819 = scalar_lea.vmem %s9, 1
    %v820 = vld [vmem:[%s819] sm:$0x1]
    %v822 = vlaneseq
    %v823 = vshrl.u32 %v822, 7
    %v824 = vsub.s32 0, %v823
    %v825 = vrot.slane %v820, %v824
    %827 = vmatprep.subr.mxu0 0.0
    %828 = vmatpush1.msra.mxu0 %v815
    %829 = vmatprep.subr.mxu0 0.0
    %830 = vmatpush1.msra.mxu0 %v816
    %831 = vmatprep.subr.mxu0 0.0
    %832 = vmatpush1.msra.mxu0 %v817
    %833 = vmatprep.subr.mxu0 0.0
    %834 = vmatpush1.msra.mxu0 %v818
    %835 = vmatprep.subr.mxu0 0.0
    %836 = vmatpush1.msra.mxu0 0.0
    %837 = vmatprep.subr.mxu0 0.0
    %838 = vmatpush1.msra.mxu0 0.0
    %839 = vmatprep.subr.mxu0 0.0
    %840 = vmatpush1.msra.mxu0 0.0
    %841 = vmatprep.subr.mxu0 0.0
    %842 = vmatpush1.msra.mxu0 0.0
    %843 = vmatprep.subr.mxu0 0.0
    %844 = vmatpush1.msra.mxu0 0.0
    %845 = vmatprep.subr.mxu0 0.0
    %846 = vmatpush1.msra.mxu0 0.0
    %847 = vmatprep.subr.mxu0 0.0
    %848 = vmatpush1.msra.mxu0 0.0
    %849 = vmatprep.subr.mxu0 0.0
    %850 = vmatpush1.msra.mxu0 0.0
    %851 = vmatprep.subr.mxu0 0.0
    %852 = vmatpush1.msra.mxu0 0.0
    %853 = vmatprep.subr.mxu0 0.0
    %854 = vmatpush1.msra.mxu0 0.0
    %855 = vmatprep.subr.mxu0 0.0
    %856 = vmatpush1.msra.mxu0 0.0
    %857 = vmatprep.subr.mxu0 0.0
    %858 = vmatpush1.msra.mxu0 0.0
    %859 = vmatprep.subr.mxu0 0.0
    %860 = vmatpush1.msra.mxu0 0.0
    %861 = vmatprep.subr.mxu0 0.0
    %862 = vmatpush1.msra.mxu0 0.0
    %863 = vmatprep.subr.mxu0 0.0
    %864 = vmatpush1.msra.mxu0 0.0
    %865 = vmatprep.subr.mxu0 0.0
    %866 = vmatpush1.msra.mxu0 0.0
    %867 = vmatprep.subr.mxu0 0.0
    %868 = vmatpush1.msra.mxu0 0.0
    %869 = vmatprep.subr.mxu0 0.0
    %870 = vmatpush1.msra.mxu0 0.0
    %871 = vmatprep.subr.mxu0 0.0
    %872 = vmatpush1.msra.mxu0 0.0
    %873 = vmatprep.subr.mxu0 0.0
    %874 = vmatpush1.msra.mxu0 0.0
    %875 = vmatprep.subr.mxu0 0.0
    %876 = vmatpush1.msra.mxu0 0.0
    %877 = vmatprep.subr.mxu0 0.0
    %878 = vmatpush1.msra.mxu0 0.0
    %879 = vmatprep.subr.mxu0 0.0
    %880 = vmatpush1.msra.mxu0 0.0
    %881 = vmatprep.subr.mxu0 0.0
    %882 = vmatpush1.msra.mxu0 0.0
    %883 = vmatprep.subr.mxu0 0.0
    %884 = vmatpush1.msra.mxu0 0.0
    %885 = vmatprep.subr.mxu0 0.0
    %886 = vmatpush1.msra.mxu0 0.0
    %887 = vmatprep.subr.mxu0 0.0
    %888 = vmatpush1.msra.mxu0 0.0
    %889 = vmatprep.subr.mxu0 0.0
    %890 = vmatpush1.msra.mxu0 0.0
    %891 = vmatprep.mubr.f32.mxu0 0.0
    %892 = vmatmul.mubr.f32.gmra.mrb[0].mxu0 %v147
    %v893 = vpop.f32.mrb[0].mxu0
    %v894 = vadd.f32 %v825, %v893
    %v895 = vpop.f32.mrb[0].mxu0
    %896 = vmatprep.mubr.f32.mxu0 0.0
    %897 = vmatmul.mubr.f32.gmra.mrb[0].mxu0 %v150
    %v898 = vpop.f32.mrb[0].mxu0
    %v899 = vadd.f32 %v825, %v898
    %v900 = vpop.f32.mrb[0].mxu0
    %901 = vdwg.mxu0
    %s902 = scalar_lea.vmem %s10, 32
    %v903 = vld [vmem:[%s902] sm:$0xff]
    %v904 = vld [vmem:[%s902 + $0x8] sm:$0xff]
    %v905 = vld [vmem:[%s902 + $0x10] sm:$0xff]
    %v906 = vld [vmem:[%s902 + $0x18] sm:$0xff]
    %s907 = scalar_lea.vmem %s11, 1
    %v908 = vld [vmem:[%s907] sm:$0x1]
    %v910 = vlaneseq
    %v911 = vshrl.u32 %v910, 7
    %v912 = vsub.s32 0, %v911
    %v913 = vrot.slane %v908, %v912
    %915 = vmatprep.subr.mxu0 0.0
    %916 = vmatpush1.msra.mxu0 %v903
    %917 = vmatprep.subr.mxu0 0.0
    %918 = vmatpush1.msra.mxu0 %v904
    %919 = vmatprep.subr.mxu0 0.0
    %920 = vmatpush1.msra.mxu0 %v905
    %921 = vmatprep.subr.mxu0 0.0
    %922 = vmatpush1.msra.mxu0 %v906
    %923 = vmatprep.subr.mxu0 0.0
    %924 = vmatpush1.msra.mxu0 0.0
    %925 = vmatprep.subr.mxu0 0.0
    %926 = vmatpush1.msra.mxu0 0.0
    %927 = vmatprep.subr.mxu0 0.0
    %928 = vmatpush1.msra.mxu0 0.0
    %929 = vmatprep.subr.mxu0 0.0
    %930 = vmatpush1.msra.mxu0 0.0
    %931 = vmatprep.subr.mxu0 0.0
    %932 = vmatpush1.msra.mxu0 0.0
    %933 = vmatprep.subr.mxu0 0.0
    %934 = vmatpush1.msra.mxu0 0.0
    %935 = vmatprep.subr.mxu0 0.0
    %936 = vmatpush1.msra.mxu0 0.0
    %937 = vmatprep.subr.mxu0 0.0
    %938 = vmatpush1.msra.mxu0 0.0
    %939 = vmatprep.subr.mxu0 0.0
    %940 = vmatpush1.msra.mxu0 0.0
    %941 = vmatprep.subr.mxu0 0.0
    %942 = vmatpush1.msra.mxu0 0.0
    %943 = vmatprep.subr.mxu0 0.0
    %944 = vmatpush1.msra.mxu0 0.0
    %945 = vmatprep.subr.mxu0 0.0
    %946 = vmatpush1.msra.mxu0 0.0
    %947 = vmatprep.subr.mxu0 0.0
    %948 = vmatpush1.msra.mxu0 0.0
    %949 = vmatprep.subr.mxu0 0.0
    %950 = vmatpush1.msra.mxu0 0.0
    %951 = vmatprep.subr.mxu0 0.0
    %952 = vmatpush1.msra.mxu0 0.0
    %953 = vmatprep.subr.mxu0 0.0
    %954 = vmatpush1.msra.mxu0 0.0
    %955 = vmatprep.subr.mxu0 0.0
    %956 = vmatpush1.msra.mxu0 0.0
    %957 = vmatprep.subr.mxu0 0.0
    %958 = vmatpush1.msra.mxu0 0.0
    %959 = vmatprep.subr.mxu0 0.0
    %960 = vmatpush1.msra.mxu0 0.0
    %961 = vmatprep.subr.mxu0 0.0
    %962 = vmatpush1.msra.mxu0 0.0
    %963 = vmatprep.subr.mxu0 0.0
    %964 = vmatpush1.msra.mxu0 0.0
    %965 = vmatprep.subr.mxu0 0.0
    %966 = vmatpush1.msra.mxu0 0.0
    %967 = vmatprep.subr.mxu0 0.0
    %968 = vmatpush1.msra.mxu0 0.0
    %969 = vmatprep.subr.mxu0 0.0
    %970 = vmatpush1.msra.mxu0 0.0
    %971 = vmatprep.subr.mxu0 0.0
    %972 = vmatpush1.msra.mxu0 0.0
    %973 = vmatprep.subr.mxu0 0.0
    %974 = vmatpush1.msra.mxu0 0.0
    %975 = vmatprep.subr.mxu0 0.0
    %976 = vmatpush1.msra.mxu0 0.0
    %977 = vmatprep.subr.mxu0 0.0
    %978 = vmatpush1.msra.mxu0 0.0
    %979 = vmatprep.mubr.f32.mxu0 0.0
    %980 = vmatmul.mubr.f32.gmra.mrb[0].mxu0 %v147
    %v981 = vpop.f32.mrb[0].mxu0
    %v982 = vadd.f32 %v913, %v981
    %v983 = vpop.f32.mrb[0].mxu0
    %984 = vmatprep.mubr.f32.mxu0 0.0
    %985 = vmatmul.mubr.f32.gmra.mrb[0].mxu0 %v150
    %v986 = vpop.f32.mrb[0].mxu0
    %v987 = vadd.f32 %v913, %v986
    %v988 = vpop.f32.mrb[0].mxu0
    %989 = vdwg.mxu0
    %s990 = scalar_lea.vmem %s2, 8
    %v991 = vld [vmem:[%s990] sm:$0xff]
    %v993 = vsel %vm400, %v806, 0
    %v996 = vsel %vm400, %v894, 0
    %998 = vmatprep.subr.mxu0 0.0
    %999 = vmatpush1.xpose.msra.mxu0 %v996
    %1000 = vmatprep.subr.mxu0 0.0
    %1001 = vmatpush1.xpose.msra.mxu0 0.0
    %1002 = vmatprep.subr.mxu0 0.0
    %1003 = vmatpush1.xpose.msra.mxu0 0.0
    %1004 = vmatprep.subr.mxu0 0.0
    %1005 = vmatpush1.xpose.msra.mxu0 0.0
    %1006 = vmatprep.subr.mxu0 0.0
    %1007 = vmatpush1.xpose.msra.mxu0 0.0
    %1008 = vmatprep.subr.mxu0 0.0
    %1009 = vmatpush1.xpose.msra.mxu0 0.0
    %1010 = vmatprep.subr.mxu0 0.0
    %1011 = vmatpush1.xpose.msra.mxu0 0.0
    %1012 = vmatprep.subr.mxu0 0.0
    %1013 = vmatpush1.xpose.msra.mxu0 0.0
    %1014 = vmatprep.subr.mxu0 0.0
    %1015 = vmatpush1.xpose.msra.mxu0 0.0
    %1016 = vmatprep.subr.mxu0 0.0
    %1017 = vmatpush1.xpose.msra.mxu0 0.0
    %1018 = vmatprep.subr.mxu0 0.0
    %1019 = vmatpush1.xpose.msra.mxu0 0.0
    %1020 = vmatprep.subr.mxu0 0.0
    %1021 = vmatpush1.xpose.msra.mxu0 0.0
    %1022 = vmatprep.subr.mxu0 0.0
    %1023 = vmatpush1.xpose.msra.mxu0 0.0
    %1024 = vmatprep.subr.mxu0 0.0
    %1025 = vmatpush1.xpose.msra.mxu0 0.0
    %1026 = vmatprep.subr.mxu0 0.0
    %1027 = vmatpush1.xpose.msra.mxu0 0.0
    %1028 = vmatprep.subr.mxu0 0.0
    %1029 = vmatpush1.xpose.msra.mxu0 0.0
    %1030 = vmatprep.subr.mxu0 0.0
    %1031 = vmatpush1.xpose.msra.mxu0 0.0
    %1032 = vmatprep.subr.mxu0 0.0
    %1033 = vmatpush1.xpose.msra.mxu0 0.0
    %1034 = vmatprep.subr.mxu0 0.0
    %1035 = vmatpush1.xpose.msra.mxu0 0.0
    %1036 = vmatprep.subr.mxu0 0.0
    %1037 = vmatpush1.xpose.msra.mxu0 0.0
    %1038 = vmatprep.subr.mxu0 0.0
    %1039 = vmatpush1.xpose.msra.mxu0 0.0
    %1040 = vmatprep.subr.mxu0 0.0
    %1041 = vmatpush1.xpose.msra.mxu0 0.0
    %1042 = vmatprep.subr.mxu0 0.0
    %1043 = vmatpush1.xpose.msra.mxu0 0.0
    %1044 = vmatprep.subr.mxu0 0.0
    %1045 = vmatpush1.xpose.msra.mxu0 0.0
    %1046 = vmatprep.subr.mxu0 0.0
    %1047 = vmatpush1.xpose.msra.mxu0 0.0
    %1048 = vmatprep.subr.mxu0 0.0
    %1049 = vmatpush1.xpose.msra.mxu0 0.0
    %1050 = vmatprep.subr.mxu0 0.0
    %1051 = vmatpush1.xpose.msra.mxu0 0.0
    %1052 = vmatprep.subr.mxu0 0.0
    %1053 = vmatpush1.xpose.msra.mxu0 0.0
    %1054 = vmatprep.subr.mxu0 0.0
    %1055 = vmatpush1.xpose.msra.mxu0 0.0
    %1056 = vmatprep.subr.mxu0 0.0
    %1057 = vmatpush1.xpose.msra.mxu0 0.0
    %1058 = vmatprep.subr.mxu0 0.0
    %1059 = vmatpush1.xpose.msra.mxu0 0.0
    %1060 = vmatprep.subr.mxu0 0.0
    %1061 = vmatpush1.xpose.msra.mxu0 0.0
    %1062 = vmatprep.mubr.f32.mxu0 0.0
    %1063 = vmatmul.mubr.f32.gmra.mrb[0].mxu0 %v993
    %v1064 = vpop.f32.mrb[0].mxu0
    %v1065 = vadd.f32 %v991, %v1064
    %v1066 = vpop.f32.mrb[0].mxu0
    %1067 = vdwg.mxu0
    %v1069 = vsel %vm400, %v811, 0
    %v1072 = vsel %vm400, %v899, 0
    %1074 = vmatprep.subr.mxu0 0.0
    %1075 = vmatpush1.xpose.msra.mxu0 %v1072
    %1076 = vmatprep.subr.mxu0 0.0
    %1077 = vmatpush1.xpose.msra.mxu0 0.0
    %1078 = vmatprep.subr.mxu0 0.0
    %1079 = vmatpush1.xpose.msra.mxu0 0.0
    %1080 = vmatprep.subr.mxu0 0.0
    %1081 = vmatpush1.xpose.msra.mxu0 0.0
    %1082 = vmatprep.subr.mxu0 0.0
    %1083 = vmatpush1.xpose.msra.mxu0 0.0
    %1084 = vmatprep.subr.mxu0 0.0
    %1085 = vmatpush1.xpose.msra.mxu0 0.0
    %1086 = vmatprep.subr.mxu0 0.0
    %1087 = vmatpush1.xpose.msra.mxu0 0.0
    %1088 = vmatprep.subr.mxu0 0.0
    %1089 = vmatpush1.xpose.msra.mxu0 0.0
    %1090 = vmatprep.subr.mxu0 0.0
    %1091 = vmatpush1.xpose.msra.mxu0 0.0
    %1092 = vmatprep.subr.mxu0 0.0
    %1093 = vmatpush1.xpose.msra.mxu0 0.0
    %1094 = vmatprep.subr.mxu0 0.0
    %1095 = vmatpush1.xpose.msra.mxu0 0.0
    %1096 = vmatprep.subr.mxu0 0.0
    %1097 = vmatpush1.xpose.msra.mxu0 0.0
    %1098 = vmatprep.subr.mxu0 0.0
    %1099 = vmatpush1.xpose.msra.mxu0 0.0
    %1100 = vmatprep.subr.mxu0 0.0
    %1101 = vmatpush1.xpose.msra.mxu0 0.0
    %1102 = vmatprep.subr.mxu0 0.0
    %1103 = vmatpush1.xpose.msra.mxu0 0.0
    %1104 = vmatprep.subr.mxu0 0.0
    %1105 = vmatpush1.xpose.msra.mxu0 0.0
    %1106 = vmatprep.subr.mxu0 0.0
    %1107 = vmatpush1.xpose.msra.mxu0 0.0
    %1108 = vmatprep.subr.mxu0 0.0
    %1109 = vmatpush1.xpose.msra.mxu0 0.0
    %1110 = vmatprep.subr.mxu0 0.0
    %1111 = vmatpush1.xpose.msra.mxu0 0.0
    %1112 = vmatprep.subr.mxu0 0.0
    %1113 = vmatpush1.xpose.msra.mxu0 0.0
    %1114 = vmatprep.subr.mxu0 0.0
    %1115 = vmatpush1.xpose.msra.mxu0 0.0
    %1116 = vmatprep.subr.mxu0 0.0
    %1117 = vmatpush1.xpose.msra.mxu0 0.0
    %1118 = vmatprep.subr.mxu0 0.0
    %1119 = vmatpush1.xpose.msra.mxu0 0.0
    %1120 = vmatprep.subr.mxu0 0.0
    %1121 = vmatpush1.xpose.msra.mxu0 0.0
    %1122 = vmatprep.subr.mxu0 0.0
    %1123 = vmatpush1.xpose.msra.mxu0 0.0
    %1124 = vmatprep.subr.mxu0 0.0
    %1125 = vmatpush1.xpose.msra.mxu0 0.0
    %1126 = vmatprep.subr.mxu0 0.0
    %1127 = vmatpush1.xpose.msra.mxu0 0.0
    %1128 = vmatprep.subr.mxu0 0.0
    %1129 = vmatpush1.xpose.msra.mxu0 0.0
    %1130 = vmatprep.subr.mxu0 0.0
    %1131 = vmatpush1.xpose.msra.mxu0 0.0
    %1132 = vmatprep.subr.mxu0 0.0
    %1133 = vmatpush1.xpose.msra.mxu0 0.0
    %1134 = vmatprep.subr.mxu0 0.0
    %1135 = vmatpush1.xpose.msra.mxu0 0.0
    %1136 = vmatprep.subr.mxu0 0.0
    %1137 = vmatpush1.xpose.msra.mxu0 0.0
    %1138 = vmatprep.mubr.f32.mxu0 0.0
    %1139 = vmatmul.mubr.f32.gmra.mrb[0].mxu0 %v1069
    %v1140 = vpop.f32.mrb[0].mxu0
    %v1141 = vadd.f32 %v991, %v1140
    %v1142 = vpop.f32.mrb[0].mxu0
    %1143 = vdwg.mxu0
    %v1144 = vadd.f32 %v1065, %v128
    %v1145 = vadd.f32 %v1141, %v132
    %v1146 = vmul.f32 %v1144, 0.015625
    %v1147 = vmul.f32 %v1145, 0.015625
    %v1148 = vsel %vm400, %v1146, -inf
    %1149 = vmax.xlane.f32.xlu0 %v1148
    %v1150 = vpop.xlane.xlu0 %1149
    %v1151 = vsel %vm400, %v1147, -inf
    %1152 = vmax.xlane.f32.xlu0 %v1151
    %v1153 = vpop.xlane.xlu0 %1152
    %v1154 = vsub.f32 %v1146, %v1150
    %v1155 = vsub.f32 %v1147, %v1153
    %v1156 = vmul.f32 %v1154, 1.442695
    %v1157 = vpow.pop %v1156
    %v1158 = vmul.f32 %v1155, 1.442695
    %v1159 = vpow.pop %v1158
    %v1160 = vsel %vm400, %v1157, 0.0
    %1161 = vadd.xlane.f32.xlu0 %v1160
    %v1162 = vpop.xlane.xlu0 %1161
    %v1163 = vsel %vm400, %v1159, 0.0
    %1164 = vadd.xlane.f32.xlu0 %v1163
    %v1165 = vpop.xlane.xlu0 %1164
    %v1166 = vrcp.pop %v1162
    %v1167 = vrcp.pop %v1165
    %v1168 = vmul.f32 %v1157, %v1166
    %v1169 = vmul.f32 %v1159, %v1167
    %v1171 = vsel %vm400, %v1168, 0
    %1173 = vmatprep.subr.mxu0 0.0
    %1174 = vmatpush1.msra.mxu0 %v982
    %1175 = vmatprep.subr.mxu0 0.0
    %1176 = vmatpush1.msra.mxu0 0.0
    %1177 = vmatprep.subr.mxu0 0.0
    %1178 = vmatpush1.msra.mxu0 0.0
    %1179 = vmatprep.subr.mxu0 0.0
    %1180 = vmatpush1.msra.mxu0 0.0
    %1181 = vmatprep.subr.mxu0 0.0
    %1182 = vmatpush1.msra.mxu0 0.0
    %1183 = vmatprep.subr.mxu0 0.0
    %1184 = vmatpush1.msra.mxu0 0.0
    %1185 = vmatprep.subr.mxu0 0.0
    %1186 = vmatpush1.msra.mxu0 0.0
    %1187 = vmatprep.subr.mxu0 0.0
    %1188 = vmatpush1.msra.mxu0 0.0
    %1189 = vmatprep.subr.mxu0 0.0
    %1190 = vmatpush1.msra.mxu0 0.0
    %1191 = vmatprep.subr.mxu0 0.0
    %1192 = vmatpush1.msra.mxu0 0.0
    %1193 = vmatprep.subr.mxu0 0.0
    %1194 = vmatpush1.msra.mxu0 0.0
    %1195 = vmatprep.subr.mxu0 0.0
    %1196 = vmatpush1.msra.mxu0 0.0
    %1197 = vmatprep.subr.mxu0 0.0
    %1198 = vmatpush1.msra.mxu0 0.0
    %1199 = vmatprep.subr.mxu0 0.0
    %1200 = vmatpush1.msra.mxu0 0.0
    %1201 = vmatprep.subr.mxu0 0.0
    %1202 = vmatpush1.msra.mxu0 0.0
    %1203 = vmatprep.subr.mxu0 0.0
    %1204 = vmatpush1.msra.mxu0 0.0
    %1205 = vmatprep.subr.mxu0 0.0
    %1206 = vmatpush1.msra.mxu0 0.0
    %1207 = vmatprep.subr.mxu0 0.0
    %1208 = vmatpush1.msra.mxu0 0.0
    %1209 = vmatprep.subr.mxu0 0.0
    %1210 = vmatpush1.msra.mxu0 0.0
    %1211 = vmatprep.subr.mxu0 0.0
    %1212 = vmatpush1.msra.mxu0 0.0
    %1213 = vmatprep.subr.mxu0 0.0
    %1214 = vmatpush1.msra.mxu0 0.0
    %1215 = vmatprep.subr.mxu0 0.0
    %1216 = vmatpush1.msra.mxu0 0.0
    %1217 = vmatprep.subr.mxu0 0.0
    %1218 = vmatpush1.msra.mxu0 0.0
    %1219 = vmatprep.subr.mxu0 0.0
    %1220 = vmatpush1.msra.mxu0 0.0
    %1221 = vmatprep.subr.mxu0 0.0
    %1222 = vmatpush1.msra.mxu0 0.0
    %1223 = vmatprep.subr.mxu0 0.0
    %1224 = vmatpush1.msra.mxu0 0.0
    %1225 = vmatprep.subr.mxu0 0.0
    %1226 = vmatpush1.msra.mxu0 0.0
    %1227 = vmatprep.subr.mxu0 0.0
    %1228 = vmatpush1.msra.mxu0 0.0
    %1229 = vmatprep.subr.mxu0 0.0
    %1230 = vmatpush1.msra.mxu0 0.0
    %1231 = vmatprep.subr.mxu0 0.0
    %1232 = vmatpush1.msra.mxu0 0.0
    %1233 = vmatprep.subr.mxu0 0.0
    %1234 = vmatpush1.msra.mxu0 0.0
    %1235 = vmatprep.subr.mxu0 0.0
    %1236 = vmatpush1.msra.mxu0 0.0
    %1237 = vmatprep.mubr.f32.mxu0 0.0
    %1238 = vmatmul.mubr.f32.gmra.mrb[0].mxu0 %v1171
    %v1239 = vpop.f32.mrb[0].mxu0
    %v1240 = vadd.f32 0.0, %v1239
    %v1241 = vpop.f32.mrb[0].mxu0
    %1242 = vdwg.mxu0
    %v1244 = vsel %vm400, %v1169, 0
    %1246 = vmatprep.subr.mxu0 0.0
    %1247 = vmatpush1.msra.mxu0 %v987
    %1248 = vmatprep.subr.mxu0 0.0
    %1249 = vmatpush1.msra.mxu0 0.0
    %1250 = vmatprep.subr.mxu0 0.0
    %1251 = vmatpush1.msra.mxu0 0.0
    %1252 = vmatprep.subr.mxu0 0.0
    %1253 = vmatpush1.msra.mxu0 0.0
    %1254 = vmatprep.subr.mxu0 0.0
    %1255 = vmatpush1.msra.mxu0 0.0
    %1256 = vmatprep.subr.mxu0 0.0
    %1257 = vmatpush1.msra.mxu0 0.0
    %1258 = vmatprep.subr.mxu0 0.0
    %1259 = vmatpush1.msra.mxu0 0.0
    %1260 = vmatprep.subr.mxu0 0.0
    %1261 = vmatpush1.msra.mxu0 0.0
    %1262 = vmatprep.subr.mxu0 0.0
    %1263 = vmatpush1.msra.mxu0 0.0
    %1264 = vmatprep.subr.mxu0 0.0
    %1265 = vmatpush1.msra.mxu0 0.0
    %1266 = vmatprep.subr.mxu0 0.0
    %1267 = vmatpush1.msra.mxu0 0.0
    %1268 = vmatprep.subr.mxu0 0.0
    %1269 = vmatpush1.msra.mxu0 0.0
    %1270 = vmatprep.subr.mxu0 0.0
    %1271 = vmatpush1.msra.mxu0 0.0
    %1272 = vmatprep.subr.mxu0 0.0
    %1273 = vmatpush1.msra.mxu0 0.0
    %1274 = vmatprep.subr.mxu0 0.0
    %1275 = vmatpush1.msra.mxu0 0.0
    %1276 = vmatprep.subr.mxu0 0.0
    %1277 = vmatpush1.msra.mxu0 0.0
    %1278 = vmatprep.subr.mxu0 0.0
    %1279 = vmatpush1.msra.mxu0 0.0
    %1280 = vmatprep.subr.mxu0 0.0
    %1281 = vmatpush1.msra.mxu0 0.0
    %1282 = vmatprep.subr.mxu0 0.0
    %1283 = vmatpush1.msra.mxu0 0.0
    %1284 = vmatprep.subr.mxu0 0.0
    %1285 = vmatpush1.msra.mxu0 0.0
    %1286 = vmatprep.subr.mxu0 0.0
    %1287 = vmatpush1.msra.mxu0 0.0
    %1288 = vmatprep.subr.mxu0 0.0
    %1289 = vmatpush1.msra.mxu0 0.0
    %1290 = vmatprep.subr.mxu0 0.0
    %1291 = vmatpush1.msra.mxu0 0.0
    %1292 = vmatprep.subr.mxu0 0.0
    %1293 = vmatpush1.msra.mxu0 0.0
    %1294 = vmatprep.subr.mxu0 0.0
    %1295 = vmatpush1.msra.mxu0 0.0
    %1296 = vmatprep.subr.mxu0 0.0
    %1297 = vmatpush1.msra.mxu0 0.0
    %1298 = vmatprep.subr.mxu0 0.0
    %1299 = vmatpush1.msra.mxu0 0.0
    %1300 = vmatprep.subr.mxu0 0.0
    %1301 = vmatpush1.msra.mxu0 0.0
    %1302 = vmatprep.subr.mxu0 0.0
    %1303 = vmatpush1.msra.mxu0 0.0
    %1304 = vmatprep.subr.mxu0 0.0
    %1305 = vmatpush1.msra.mxu0 0.0
    %1306 = vmatprep.subr.mxu0 0.0
    %1307 = vmatpush1.msra.mxu0 0.0
    %1308 = vmatprep.subr.mxu0 0.0
    %1309 = vmatpush1.msra.mxu0 0.0
    %1310 = vmatprep.mubr.f32.mxu0 0.0
    %1311 = vmatmul.mubr.f32.gmra.mrb[0].mxu0 %v1244
    %v1312 = vpop.f32.mrb[0].mxu0
    %v1313 = vadd.f32 0.0, %v1312
    %v1314 = vpop.f32.mrb[0].mxu0
    %1315 = vdwg.mxu0
    %s1316 = scalar_lea.vmem %s12, 8
    %v1317 = vld [vmem:[%s1316] sm:$0xff]
    %v1319 = vsel %vm400, %v1240, 0
    %v1322 = vsel %vm400, %v1313, 0
    %1324 = vmatprep.subr.mxu0 0.0
    %1325 = vmatpush1.msra.mxu0 %v1317
    %1326 = vmatprep.subr.mxu0 0.0
    %1327 = vmatpush1.msra.mxu0 0.0
    %1328 = vmatprep.subr.mxu0 0.0
    %1329 = vmatpush1.msra.mxu0 0.0
    %1330 = vmatprep.subr.mxu0 0.0
    %1331 = vmatpush1.msra.mxu0 0.0
    %1332 = vmatprep.subr.mxu0 0.0
    %1333 = vmatpush1.msra.mxu0 0.0
    %1334 = vmatprep.subr.mxu0 0.0
    %1335 = vmatpush1.msra.mxu0 0.0
    %1336 = vmatprep.subr.mxu0 0.0
    %1337 = vmatpush1.msra.mxu0 0.0
    %1338 = vmatprep.subr.mxu0 0.0
    %1339 = vmatpush1.msra.mxu0 0.0
    %1340 = vmatprep.subr.mxu0 0.0
    %1341 = vmatpush1.msra.mxu0 0.0
    %1342 = vmatprep.subr.mxu0 0.0
    %1343 = vmatpush1.msra.mxu0 0.0
    %1344 = vmatprep.subr.mxu0 0.0
    %1345 = vmatpush1.msra.mxu0 0.0
    %1346 = vmatprep.subr.mxu0 0.0
    %1347 = vmatpush1.msra.mxu0 0.0
    %1348 = vmatprep.subr.mxu0 0.0
    %1349 = vmatpush1.msra.mxu0 0.0
    %1350 = vmatprep.subr.mxu0 0.0
    %1351 = vmatpush1.msra.mxu0 0.0
    %1352 = vmatprep.subr.mxu0 0.0
    %1353 = vmatpush1.msra.mxu0 0.0
    %1354 = vmatprep.subr.mxu0 0.0
    %1355 = vmatpush1.msra.mxu0 0.0
    %1356 = vmatprep.subr.mxu0 0.0
    %1357 = vmatpush1.msra.mxu0 0.0
    %1358 = vmatprep.subr.mxu0 0.0
    %1359 = vmatpush1.msra.mxu0 0.0
    %1360 = vmatprep.subr.mxu0 0.0
    %1361 = vmatpush1.msra.mxu0 0.0
    %1362 = vmatprep.subr.mxu0 0.0
    %1363 = vmatpush1.msra.mxu0 0.0
    %1364 = vmatprep.subr.mxu0 0.0
    %1365 = vmatpush1.msra.mxu0 0.0
    %1366 = vmatprep.subr.mxu0 0.0
    %1367 = vmatpush1.msra.mxu0 0.0
    %1368 = vmatprep.subr.mxu0 0.0
    %1369 = vmatpush1.msra.mxu0 0.0
    %1370 = vmatprep.subr.mxu0 0.0
    %1371 = vmatpush1.msra.mxu0 0.0
    %1372 = vmatprep.subr.mxu0 0.0
    %1373 = vmatpush1.msra.mxu0 0.0
    %1374 = vmatprep.subr.mxu0 0.0
    %1375 = vmatpush1.msra.mxu0 0.0
    %1376 = vmatprep.subr.mxu0 0.0
    %1377 = vmatpush1.msra.mxu0 0.0
    %1378 = vmatprep.subr.mxu0 0.0
    %1379 = vmatpush1.msra.mxu0 0.0
    %1380 = vmatprep.subr.mxu0 0.0
    %1381 = vmatpush1.msra.mxu0 0.0
    %1382 = vmatprep.subr.mxu0 0.0
    %1383 = vmatpush1.msra.mxu0 0.0
    %1384 = vmatprep.subr.mxu0 0.0
    %1385 = vmatpush1.msra.mxu0 0.0
    %1386 = vmatprep.subr.mxu0 0.0
    %1387 = vmatpush1.msra.mxu0 0.0
    %1388 = vmatprep.mubr.f32.mxu0 0.0
    %1389 = vmatmul.mubr.f32.gmra.mrb[0].mxu0 %v1319
    %v1390 = vpop.f32.mrb[0].mxu0
    %v1391 = vadd.f32 0.0, %v1390
    %v1392 = vpop.f32.mrb[0].mxu0
    %1393 = vmatprep.mubr.f32.mxu0 0.0
    %1394 = vmatmul.mubr.f32.gmra.mrb[0].mxu0 %v1322
    %v1395 = vpop.f32.mrb[0].mxu0
    %v1396 = vadd.f32 0.0, %v1395
    %v1397 = vpop.f32.mrb[0].mxu0
    %1398 = vdwg.mxu0
    %v1400 = vsel %vm400, %v649, 0
    %v1403 = vsel %vm400, %v722, 0
    %1405 = vmatprep.subr.mxu0 0.0
    %1406 = vmatpush1.msra.mxu0 %v725
    %1407 = vmatprep.subr.mxu0 0.0
    %1408 = vmatpush1.msra.mxu0 0.0
    %1409 = vmatprep.subr.mxu0 0.0
    %1410 = vmatpush1.msra.mxu0 0.0
    %1411 = vmatprep.subr.mxu0 0.0
    %1412 = vmatpush1.msra.mxu0 0.0
    %1413 = vmatprep.subr.mxu0 0.0
    %1414 = vmatpush1.msra.mxu0 0.0
    %1415 = vmatprep.subr.mxu0 0.0
    %1416 = vmatpush1.msra.mxu0 0.0
    %1417 = vmatprep.subr.mxu0 0.0
    %1418 = vmatpush1.msra.mxu0 0.0
    %1419 = vmatprep.subr.mxu0 0.0
    %1420 = vmatpush1.msra.mxu0 0.0
    %1421 = vmatprep.subr.mxu0 0.0
    %1422 = vmatpush1.msra.mxu0 0.0
    %1423 = vmatprep.subr.mxu0 0.0
    %1424 = vmatpush1.msra.mxu0 0.0
    %1425 = vmatprep.subr.mxu0 0.0
    %1426 = vmatpush1.msra.mxu0 0.0
    %1427 = vmatprep.subr.mxu0 0.0
    %1428 = vmatpush1.msra.mxu0 0.0
    %1429 = vmatprep.subr.mxu0 0.0
    %1430 = vmatpush1.msra.mxu0 0.0
    %1431 = vmatprep.subr.mxu0 0.0
    %1432 = vmatpush1.msra.mxu0 0.0
    %1433 = vmatprep.subr.mxu0 0.0
    %1434 = vmatpush1.msra.mxu0 0.0
    %1435 = vmatprep.subr.mxu0 0.0
    %1436 = vmatpush1.msra.mxu0 0.0
    %1437 = vmatprep.subr.mxu0 0.0
    %1438 = vmatpush1.msra.mxu0 0.0
    %1439 = vmatprep.subr.mxu0 0.0
    %1440 = vmatpush1.msra.mxu0 0.0
    %1441 = vmatprep.subr.mxu0 0.0
    %1442 = vmatpush1.msra.mxu0 0.0
    %1443 = vmatprep.subr.mxu0 0.0
    %1444 = vmatpush1.msra.mxu0 0.0
    %1445 = vmatprep.subr.mxu0 0.0
    %1446 = vmatpush1.msra.mxu0 0.0
    %1447 = vmatprep.subr.mxu0 0.0
    %1448 = vmatpush1.msra.mxu0 0.0
    %1449 = vmatprep.subr.mxu0 0.0
    %1450 = vmatpush1.msra.mxu0 0.0
    %1451 = vmatprep.subr.mxu0 0.0
    %1452 = vmatpush1.msra.mxu0 0.0
    %1453 = vmatprep.subr.mxu0 0.0
    %1454 = vmatpush1.msra.mxu0 0.0
    %1455 = vmatprep.subr.mxu0 0.0
    %1456 = vmatpush1.msra.mxu0 0.0
    %1457 = vmatprep.subr.mxu0 0.0
    %1458 = vmatpush1.msra.mxu0 0.0
    %1459 = vmatprep.subr.mxu0 0.0
    %1460 = vmatpush1.msra.mxu0 0.0
    %1461 = vmatprep.subr.mxu0 0.0
    %1462 = vmatpush1.msra.mxu0 0.0
    %1463 = vmatprep.subr.mxu0 0.0
    %1464 = vmatpush1.msra.mxu0 0.0
    %1465 = vmatprep.subr.mxu0 0.0
    %1466 = vmatpush1.msra.mxu0 0.0
    %1467 = vmatprep.subr.mxu0 0.0
    %1468 = vmatpush1.msra.mxu0 0.0
    %1469 = vmatprep.mubr.f32.mxu0 0.0
    %1470 = vmatmul.mubr.f32.gmra.mrb[0].mxu0 %v1400
    %v1471 = vpop.f32.mrb[0].mxu0
    %v1472 = vadd.f32 %v1391, %v1471
    %v1473 = vpop.f32.mrb[0].mxu0
    %1474 = vmatprep.mubr.f32.mxu0 0.0
    %1475 = vmatmul.mubr.f32.gmra.mrb[0].mxu0 %v1403
    %v1476 = vpop.f32.mrb[0].mxu0
    %v1477 = vadd.f32 %v1396, %v1476
    %v1478 = vpop.f32.mrb[0].mxu0
    %1479 = vdwg.mxu0
    %s1480 = scalar_lea.vmem %s6, 64
    %v1481 = vld [vmem:[%s1480] sm:$0xff]
    %v1482 = vld [vmem:[%s1480 + $0x8] sm:$0xff]
    %v1483 = vld [vmem:[%s1480 + $0x10] sm:$0xff]
    %v1484 = vld [vmem:[%s1480 + $0x18] sm:$0xff]
    %s1485 = scalar_lea.vmem %s7, 2
    %v1486 = vld [vmem:[%s1485] sm:$0x1]
    %v1488 = vlaneseq
    %v1489 = vshrl.u32 %v1488, 7
    %v1490 = vsub.s32 0, %v1489
    %v1491 = vrot.slane %v1486, %v1490
    %1493 = vmatprep.subr.mxu0 0.0
    %1494 = vmatpush1.msra.mxu0 %v1481
    %1495 = vmatprep.subr.mxu0 0.0
    %1496 = vmatpush1.msra.mxu0 %v1482
    %1497 = vmatprep.subr.mxu0 0.0
    %1498 = vmatpush1.msra.mxu0 %v1483
    %1499 = vmatprep.subr.mxu0 0.0
    %1500 = vmatpush1.msra.mxu0 %v1484
    %1501 = vmatprep.subr.mxu0 0.0
    %1502 = vmatpush1.msra.mxu0 0.0
    %1503 = vmatprep.subr.mxu0 0.0
    %1504 = vmatpush1.msra.mxu0 0.0
    %1505 = vmatprep.subr.mxu0 0.0
    %1506 = vmatpush1.msra.mxu0 0.0
    %1507 = vmatprep.subr.mxu0 0.0
    %1508 = vmatpush1.msra.mxu0 0.0
    %1509 = vmatprep.subr.mxu0 0.0
    %1510 = vmatpush1.msra.mxu0 0.0
    %1511 = vmatprep.subr.mxu0 0.0
    %1512 = vmatpush1.msra.mxu0 0.0
    %1513 = vmatprep.subr.mxu0 0.0
    %1514 = vmatpush1.msra.mxu0 0.0
    %1515 = vmatprep.subr.mxu0 0.0
    %1516 = vmatpush1.msra.mxu0 0.0
    %1517 = vmatprep.subr.mxu0 0.0
    %1518 = vmatpush1.msra.mxu0 0.0
    %1519 = vmatprep.subr.mxu0 0.0
    %1520 = vmatpush1.msra.mxu0 0.0
    %1521 = vmatprep.subr.mxu0 0.0
    %1522 = vmatpush1.msra.mxu0 0.0
    %1523 = vmatprep.subr.mxu0 0.0
    %1524 = vmatpush1.msra.mxu0 0.0
    %1525 = vmatprep.subr.mxu0 0.0
    %1526 = vmatpush1.msra.mxu0 0.0
    %1527 = vmatprep.subr.mxu0 0.0
    %1528 = vmatpush1.msra.mxu0 0.0
    %1529 = vmatprep.subr.mxu0 0.0
    %1530 = vmatpush1.msra.mxu0 0.0
    %1531 = vmatprep.subr.mxu0 0.0
    %1532 = vmatpush1.msra.mxu0 0.0
    %1533 = vmatprep.subr.mxu0 0.0
    %1534 = vmatpush1.msra.mxu0 0.0
    %1535 = vmatprep.subr.mxu0 0.0
    %1536 = vmatpush1.msra.mxu0 0.0
    %1537 = vmatprep.subr.mxu0 0.0
    %1538 = vmatpush1.msra.mxu0 0.0
    %1539 = vmatprep.subr.mxu0 0.0
    %1540 = vmatpush1.msra.mxu0 0.0
    %1541 = vmatprep.subr.mxu0 0.0
    %1542 = vmatpush1.msra.mxu0 0.0
    %1543 = vmatprep.subr.mxu0 0.0
    %1544 = vmatpush1.msra.mxu0 0.0
    %1545 = vmatprep.subr.mxu0 0.0
    %1546 = vmatpush1.msra.mxu0 0.0
    %1547 = vmatprep.subr.mxu0 0.0
    %1548 = vmatpush1.msra.mxu0 0.0
    %1549 = vmatprep.subr.mxu0 0.0
    %1550 = vmatpush1.msra.mxu0 0.0
    %1551 = vmatprep.subr.mxu0 0.0
    %1552 = vmatpush1.msra.mxu0 0.0
    %1553 = vmatprep.subr.mxu0 0.0
    %1554 = vmatpush1.msra.mxu0 0.0
    %1555 = vmatprep.subr.mxu0 0.0
    %1556 = vmatpush1.msra.mxu0 0.0
    %1557 = vmatprep.mubr.f32.mxu0 0.0
    %1558 = vmatmul.mubr.f32.gmra.mrb[0].mxu0 %v147
    %v1559 = vpop.f32.mrb[0].mxu0
    %v1560 = vadd.f32 %v1491, %v1559
    %v1561 = vpop.f32.mrb[0].mxu0
    %1562 = vmatprep.mubr.f32.mxu0 0.0
    %1563 = vmatmul.mubr.f32.gmra.mrb[0].mxu0 %v150
    %v1564 = vpop.f32.mrb[0].mxu0
    %v1565 = vadd.f32 %v1491, %v1564
    %v1566 = vpop.f32.mrb[0].mxu0
    %1567 = vdwg.mxu0
    %s1568 = scalar_lea.vmem %s8, 64
    %v1569 = vld [vmem:[%s1568] sm:$0xff]
    %v1570 = vld [vmem:[%s1568 + $0x8] sm:$0xff]
    %v1571 = vld [vmem:[%s1568 + $0x10] sm:$0xff]
    %v1572 = vld [vmem:[%s1568 + $0x18] sm:$0xff]
    %s1573 = scalar_lea.vmem %s9, 2
    %v1574 = vld [vmem:[%s1573] sm:$0x1]
    %v1576 = vlaneseq
    %v1577 = vshrl.u32 %v1576, 7
    %v1578 = vsub.s32 0, %v1577
    %v1579 = vrot.slane %v1574, %v1578
    %1581 = vmatprep.subr.mxu0 0.0
    %1582 = vmatpush1.msra.mxu0 %v1569
    %1583 = vmatprep.subr.mxu0 0.0
    %1584 = vmatpush1.msra.mxu0 %v1570
    %1585 = vmatprep.subr.mxu0 0.0
    %1586 = vmatpush1.msra.mxu0 %v1571
    %1587 = vmatprep.subr.mxu0 0.0
    %1588 = vmatpush1.msra.mxu0 %v1572
    %1589 = vmatprep.subr.mxu0 0.0
    %1590 = vmatpush1.msra.mxu0 0.0
    %1591 = vmatprep.subr.mxu0 0.0
    %1592 = vmatpush1.msra.mxu0 0.0
    %1593 = vmatprep.subr.mxu0 0.0
    %1594 = vmatpush1.msra.mxu0 0.0
    %1595 = vmatprep.subr.mxu0 0.0
    %1596 = vmatpush1.msra.mxu0 0.0
    %1597 = vmatprep.subr.mxu0 0.0
    %1598 = vmatpush1.msra.mxu0 0.0
    %1599 = vmatprep.subr.mxu0 0.0
    %1600 = vmatpush1.msra.mxu0 0.0
    %1601 = vmatprep.subr.mxu0 0.0
    %1602 = vmatpush1.msra.mxu0 0.0
    %1603 = vmatprep.subr.mxu0 0.0
    %1604 = vmatpush1.msra.mxu0 0.0
    %1605 = vmatprep.subr.mxu0 0.0
    %1606 = vmatpush1.msra.mxu0 0.0
    %1607 = vmatprep.subr.mxu0 0.0
    %1608 = vmatpush1.msra.mxu0 0.0
    %1609 = vmatprep.subr.mxu0 0.0
    %1610 = vmatpush1.msra.mxu0 0.0
    %1611 = vmatprep.subr.mxu0 0.0
    %1612 = vmatpush1.msra.mxu0 0.0
    %1613 = vmatprep.subr.mxu0 0.0
    %1614 = vmatpush1.msra.mxu0 0.0
    %1615 = vmatprep.subr.mxu0 0.0
    %1616 = vmatpush1.msra.mxu0 0.0
    %1617 = vmatprep.subr.mxu0 0.0
    %1618 = vmatpush1.msra.mxu0 0.0
    %1619 = vmatprep.subr.mxu0 0.0
    %1620 = vmatpush1.msra.mxu0 0.0
    %1621 = vmatprep.subr.mxu0 0.0
    %1622 = vmatpush1.msra.mxu0 0.0
    %1623 = vmatprep.subr.mxu0 0.0
    %1624 = vmatpush1.msra.mxu0 0.0
    %1625 = vmatprep.subr.mxu0 0.0
    %1626 = vmatpush1.msra.mxu0 0.0
    %1627 = vmatprep.subr.mxu0 0.0
    %1628 = vmatpush1.msra.mxu0 0.0
    %1629 = vmatprep.subr.mxu0 0.0
    %1630 = vmatpush1.msra.mxu0 0.0
    %1631 = vmatprep.subr.mxu0 0.0
    %1632 = vmatpush1.msra.mxu0 0.0
    %1633 = vmatprep.subr.mxu0 0.0
    %1634 = vmatpush1.msra.mxu0 0.0
    %1635 = vmatprep.subr.mxu0 0.0
    %1636 = vmatpush1.msra.mxu0 0.0
    %1637 = vmatprep.subr.mxu0 0.0
    %1638 = vmatpush1.msra.mxu0 0.0
    %1639 = vmatprep.subr.mxu0 0.0
    %1640 = vmatpush1.msra.mxu0 0.0
    %1641 = vmatprep.subr.mxu0 0.0
    %1642 = vmatpush1.msra.mxu0 0.0
    %1643 = vmatprep.subr.mxu0 0.0
    %1644 = vmatpush1.msra.mxu0 0.0
    %1645 = vmatprep.mubr.f32.mxu0 0.0
    %1646 = vmatmul.mubr.f32.gmra.mrb[0].mxu0 %v147
    %v1647 = vpop.f32.mrb[0].mxu0
    %v1648 = vadd.f32 %v1579, %v1647
    %v1649 = vpop.f32.mrb[0].mxu0
    %1650 = vmatprep.mubr.f32.mxu0 0.0
    %1651 = vmatmul.mubr.f32.gmra.mrb[0].mxu0 %v150
    %v1652 = vpop.f32.mrb[0].mxu0
    %v1653 = vadd.f32 %v1579, %v1652
    %v1654 = vpop.f32.mrb[0].mxu0
    %1655 = vdwg.mxu0
    %s1656 = scalar_lea.vmem %s10, 64
    %v1657 = vld [vmem:[%s1656] sm:$0xff]
    %v1658 = vld [vmem:[%s1656 + $0x8] sm:$0xff]
    %v1659 = vld [vmem:[%s1656 + $0x10] sm:$0xff]
    %v1660 = vld [vmem:[%s1656 + $0x18] sm:$0xff]
    %s1661 = scalar_lea.vmem %s11, 2
    %v1662 = vld [vmem:[%s1661] sm:$0x1]
    %v1664 = vlaneseq
    %v1665 = vshrl.u32 %v1664, 7
    %v1666 = vsub.s32 0, %v1665
    %v1667 = vrot.slane %v1662, %v1666
    %1669 = vmatprep.subr.mxu0 0.0
    %1670 = vmatpush1.msra.mxu0 %v1657
    %1671 = vmatprep.subr.mxu0 0.0
    %1672 = vmatpush1.msra.mxu0 %v1658
    %1673 = vmatprep.subr.mxu0 0.0
    %1674 = vmatpush1.msra.mxu0 %v1659
    %1675 = vmatprep.subr.mxu0 0.0
    %1676 = vmatpush1.msra.mxu0 %v1660
    %1677 = vmatprep.subr.mxu0 0.0
    %1678 = vmatpush1.msra.mxu0 0.0
    %1679 = vmatprep.subr.mxu0 0.0
    %1680 = vmatpush1.msra.mxu0 0.0
    %1681 = vmatprep.subr.mxu0 0.0
    %1682 = vmatpush1.msra.mxu0 0.0
    %1683 = vmatprep.subr.mxu0 0.0
    %1684 = vmatpush1.msra.mxu0 0.0
    %1685 = vmatprep.subr.mxu0 0.0
    %1686 = vmatpush1.msra.mxu0 0.0
    %1687 = vmatprep.subr.mxu0 0.0
    %1688 = vmatpush1.msra.mxu0 0.0
    %1689 = vmatprep.subr.mxu0 0.0
    %1690 = vmatpush1.msra.mxu0 0.0
    %1691 = vmatprep.subr.mxu0 0.0
    %1692 = vmatpush1.msra.mxu0 0.0
    %1693 = vmatprep.subr.mxu0 0.0
    %1694 = vmatpush1.msra.mxu0 0.0
    %1695 = vmatprep.subr.mxu0 0.0
    %1696 = vmatpush1.msra.mxu0 0.0
    %1697 = vmatprep.subr.mxu0 0.0
    %1698 = vmatpush1.msra.mxu0 0.0
    %1699 = vmatprep.subr.mxu0 0.0
    %1700 = vmatpush1.msra.mxu0 0.0
    %1701 = vmatprep.subr.mxu0 0.0
    %1702 = vmatpush1.msra.mxu0 0.0
    %1703 = vmatprep.subr.mxu0 0.0
    %1704 = vmatpush1.msra.mxu0 0.0
    %1705 = vmatprep.subr.mxu0 0.0
    %1706 = vmatpush1.msra.mxu0 0.0
    %1707 = vmatprep.subr.mxu0 0.0
    %1708 = vmatpush1.msra.mxu0 0.0
    %1709 = vmatprep.subr.mxu0 0.0
    %1710 = vmatpush1.msra.mxu0 0.0
    %1711 = vmatprep.subr.mxu0 0.0
    %1712 = vmatpush1.msra.mxu0 0.0
    %1713 = vmatprep.subr.mxu0 0.0
    %1714 = vmatpush1.msra.mxu0 0.0
    %1715 = vmatprep.subr.mxu0 0.0
    %1716 = vmatpush1.msra.mxu0 0.0
    %1717 = vmatprep.subr.mxu0 0.0
    %1718 = vmatpush1.msra.mxu0 0.0
    %1719 = vmatprep.subr.mxu0 0.0
    %1720 = vmatpush1.msra.mxu0 0.0
    %1721 = vmatprep.subr.mxu0 0.0
    %1722 = vmatpush1.msra.mxu0 0.0
    %1723 = vmatprep.subr.mxu0 0.0
    %1724 = vmatpush1.msra.mxu0 0.0
    %1725 = vmatprep.subr.mxu0 0.0
    %1726 = vmatpush1.msra.mxu0 0.0
    %1727 = vmatprep.subr.mxu0 0.0
    %1728 = vmatpush1.msra.mxu0 0.0
    %1729 = vmatprep.subr.mxu0 0.0
    %1730 = vmatpush1.msra.mxu0 0.0
    %1731 = vmatprep.subr.mxu0 0.0
    %1732 = vmatpush1.msra.mxu0 0.0
    %1733 = vmatprep.mubr.f32.mxu0 0.0
    %1734 = vmatmul.mubr.f32.gmra.mrb[0].mxu0 %v147
    %v1735 = vpop.f32.mrb[0].mxu0
    %v1736 = vadd.f32 %v1667, %v1735
    %v1737 = vpop.f32.mrb[0].mxu0
    %1738 = vmatprep.mubr.f32.mxu0 0.0
    %1739 = vmatmul.mubr.f32.gmra.mrb[0].mxu0 %v150
    %v1740 = vpop.f32.mrb[0].mxu0
    %v1741 = vadd.f32 %v1667, %v1740
    %v1742 = vpop.f32.mrb[0].mxu0
    %1743 = vdwg.mxu0
    %s1744 = scalar_lea.vmem %s2, 16
    %v1745 = vld [vmem:[%s1744] sm:$0xff]
    %v1747 = vsel %vm400, %v1560, 0
    %v1750 = vsel %vm400, %v1648, 0
    %1752 = vmatprep.subr.mxu0 0.0
    %1753 = vmatpush1.xpose.msra.mxu0 %v1750
    %1754 = vmatprep.subr.mxu0 0.0
    %1755 = vmatpush1.xpose.msra.mxu0 0.0
    %1756 = vmatprep.subr.mxu0 0.0
    %1757 = vmatpush1.xpose.msra.mxu0 0.0
    %1758 = vmatprep.subr.mxu0 0.0
    %1759 = vmatpush1.xpose.msra.mxu0 0.0
    %1760 = vmatprep.subr.mxu0 0.0
    %1761 = vmatpush1.xpose.msra.mxu0 0.0
    %1762 = vmatprep.subr.mxu0 0.0
    %1763 = vmatpush1.xpose.msra.mxu0 0.0
    %1764 = vmatprep.subr.mxu0 0.0
    %1765 = vmatpush1.xpose.msra.mxu0 0.0
    %1766 = vmatprep.subr.mxu0 0.0
    %1767 = vmatpush1.xpose.msra.mxu0 0.0
    %1768 = vmatprep.subr.mxu0 0.0
    %1769 = vmatpush1.xpose.msra.mxu0 0.0
    %1770 = vmatprep.subr.mxu0 0.0
    %1771 = vmatpush1.xpose.msra.mxu0 0.0
    %1772 = vmatprep.subr.mxu0 0.0
    %1773 = vmatpush1.xpose.msra.mxu0 0.0
    %1774 = vmatprep.subr.mxu0 0.0
    %1775 = vmatpush1.xpose.msra.mxu0 0.0
    %1776 = vmatprep.subr.mxu0 0.0
    %1777 = vmatpush1.xpose.msra.mxu0 0.0
    %1778 = vmatprep.subr.mxu0 0.0
    %1779 = vmatpush1.xpose.msra.mxu0 0.0
    %1780 = vmatprep.subr.mxu0 0.0
    %1781 = vmatpush1.xpose.msra.mxu0 0.0
    %1782 = vmatprep.subr.mxu0 0.0
    %1783 = vmatpush1.xpose.msra.mxu0 0.0
    %1784 = vmatprep.subr.mxu0 0.0
    %1785 = vmatpush1.xpose.msra.mxu0 0.0
    %1786 = vmatprep.subr.mxu0 0.0
    %1787 = vmatpush1.xpose.msra.mxu0 0.0
    %1788 = vmatprep.subr.mxu0 0.0
    %1789 = vmatpush1.xpose.msra.mxu0 0.0
    %1790 = vmatprep.subr.mxu0 0.0
    %1791 = vmatpush1.xpose.msra.mxu0 0.0
    %1792 = vmatprep.subr.mxu0 0.0
    %1793 = vmatpush1.xpose.msra.mxu0 0.0
    %1794 = vmatprep.subr.mxu0 0.0
    %1795 = vmatpush1.xpose.msra.mxu0 0.0
    %1796 = vmatprep.subr.mxu0 0.0
    %1797 = vmatpush1.xpose.msra.mxu0 0.0
    %1798 = vmatprep.subr.mxu0 0.0
    %1799 = vmatpush1.xpose.msra.mxu0 0.0
    %1800 = vmatprep.subr.mxu0 0.0
    %1801 = vmatpush1.xpose.msra.mxu0 0.0
    %1802 = vmatprep.subr.mxu0 0.0
    %1803 = vmatpush1.xpose.msra.mxu0 0.0
    %1804 = vmatprep.subr.mxu0 0.0
    %1805 = vmatpush1.xpose.msra.mxu0 0.0
    %1806 = vmatprep.subr.mxu0 0.0
    %1807 = vmatpush1.xpose.msra.mxu0 0.0
    %1808 = vmatprep.subr.mxu0 0.0
    %1809 = vmatpush1.xpose.msra.mxu0 0.0
    %1810 = vmatprep.subr.mxu0 0.0
    %1811 = vmatpush1.xpose.msra.mxu0 0.0
    %1812 = vmatprep.subr.mxu0 0.0
    %1813 = vmatpush1.xpose.msra.mxu0 0.0
    %1814 = vmatprep.subr.mxu0 0.0
    %1815 = vmatpush1.xpose.msra.mxu0 0.0
    %1816 = vmatprep.mubr.f32.mxu0 0.0
    %1817 = vmatmul.mubr.f32.gmra.mrb[0].mxu0 %v1747
    %v1818 = vpop.f32.mrb[0].mxu0
    %v1819 = vadd.f32 %v1745, %v1818
    %v1820 = vpop.f32.mrb[0].mxu0
    %1821 = vdwg.mxu0
    %v1823 = vsel %vm400, %v1565, 0
    %v1826 = vsel %vm400, %v1653, 0
    %1828 = vmatprep.subr.mxu0 0.0
    %1829 = vmatpush1.xpose.msra.mxu0 %v1826
    %1830 = vmatprep.subr.mxu0 0.0
    %1831 = vmatpush1.xpose.msra.mxu0 0.0
    %1832 = vmatprep.subr.mxu0 0.0
    %1833 = vmatpush1.xpose.msra.mxu0 0.0
    %1834 = vmatprep.subr.mxu0 0.0
    %1835 = vmatpush1.xpose.msra.mxu0 0.0
    %1836 = vmatprep.subr.mxu0 0.0
    %1837 = vmatpush1.xpose.msra.mxu0 0.0
    %1838 = vmatprep.subr.mxu0 0.0
    %1839 = vmatpush1.xpose.msra.mxu0 0.0
    %1840 = vmatprep.subr.mxu0 0.0
    %1841 = vmatpush1.xpose.msra.mxu0 0.0
    %1842 = vmatprep.subr.mxu0 0.0
    %1843 = vmatpush1.xpose.msra.mxu0 0.0
    %1844 = vmatprep.subr.mxu0 0.0
    %1845 = vmatpush1.xpose.msra.mxu0 0.0
    %1846 = vmatprep.subr.mxu0 0.0
    %1847 = vmatpush1.xpose.msra.mxu0 0.0
    %1848 = vmatprep.subr.mxu0 0.0
    %1849 = vmatpush1.xpose.msra.mxu0 0.0
    %1850 = vmatprep.subr.mxu0 0.0
    %1851 = vmatpush1.xpose.msra.mxu0 0.0
    %1852 = vmatprep.subr.mxu0 0.0
    %1853 = vmatpush1.xpose.msra.mxu0 0.0
    %1854 = vmatprep.subr.mxu0 0.0
    %1855 = vmatpush1.xpose.msra.mxu0 0.0
    %1856 = vmatprep.subr.mxu0 0.0
    %1857 = vmatpush1.xpose.msra.mxu0 0.0
    %1858 = vmatprep.subr.mxu0 0.0
    %1859 = vmatpush1.xpose.msra.mxu0 0.0
    %1860 = vmatprep.subr.mxu0 0.0
    %1861 = vmatpush1.xpose.msra.mxu0 0.0
    %1862 = vmatprep.subr.mxu0 0.0
    %1863 = vmatpush1.xpose.msra.mxu0 0.0
    %1864 = vmatprep.subr.mxu0 0.0
    %1865 = vmatpush1.xpose.msra.mxu0 0.0
    %1866 = vmatprep.subr.mxu0 0.0
    %1867 = vmatpush1.xpose.msra.mxu0 0.0
    %1868 = vmatprep.subr.mxu0 0.0
    %1869 = vmatpush1.xpose.msra.mxu0 0.0
    %1870 = vmatprep.subr.mxu0 0.0
    %1871 = vmatpush1.xpose.msra.mxu0 0.0
    %1872 = vmatprep.subr.mxu0 0.0
    %1873 = vmatpush1.xpose.msra.mxu0 0.0
    %1874 = vmatprep.subr.mxu0 0.0
    %1875 = vmatpush1.xpose.msra.mxu0 0.0
    %1876 = vmatprep.subr.mxu0 0.0
    %1877 = vmatpush1.xpose.msra.mxu0 0.0
    %1878 = vmatprep.subr.mxu0 0.0
    %1879 = vmatpush1.xpose.msra.mxu0 0.0
    %1880 = vmatprep.subr.mxu0 0.0
    %1881 = vmatpush1.xpose.msra.mxu0 0.0
    %1882 = vmatprep.subr.mxu0 0.0
    %1883 = vmatpush1.xpose.msra.mxu0 0.0
    %1884 = vmatprep.subr.mxu0 0.0
    %1885 = vmatpush1.xpose.msra.mxu0 0.0
    %1886 = vmatprep.subr.mxu0 0.0
    %1887 = vmatpush1.xpose.msra.mxu0 0.0
    %1888 = vmatprep.subr.mxu0 0.0
    %1889 = vmatpush1.xpose.msra.mxu0 0.0
    %1890 = vmatprep.subr.mxu0 0.0
    %1891 = vmatpush1.xpose.msra.mxu0 0.0
    %1892 = vmatprep.mubr.f32.mxu0 0.0
    %1893 = vmatmul.mubr.f32.gmra.mrb[0].mxu0 %v1823
    %v1894 = vpop.f32.mrb[0].mxu0
    %v1895 = vadd.f32 %v1745, %v1894
    %v1896 = vpop.f32.mrb[0].mxu0
    %1897 = vdwg.mxu0
    %v1898 = vadd.f32 %v1819, %v128
    %v1899 = vadd.f32 %v1895, %v132
    %v1900 = vmul.f32 %v1898, 0.015625
    %v1901 = vmul.f32 %v1899, 0.015625
    %v1902 = vsel %vm400, %v1900, -inf
    %1903 = vmax.xlane.f32.xlu0 %v1902
    %v1904 = vpop.xlane.xlu0 %1903
    %v1905 = vsel %vm400, %v1901, -inf
    %1906 = vmax.xlane.f32.xlu0 %v1905
    %v1907 = vpop.xlane.xlu0 %1906
    %v1908 = vsub.f32 %v1900, %v1904
    %v1909 = vsub.f32 %v1901, %v1907
    %v1910 = vmul.f32 %v1908, 1.442695
    %v1911 = vpow.pop %v1910
    %v1912 = vmul.f32 %v1909, 1.442695
    %v1913 = vpow.pop %v1912
    %v1914 = vsel %vm400, %v1911, 0.0
    %1915 = vadd.xlane.f32.xlu0 %v1914
    %v1916 = vpop.xlane.xlu0 %1915
    %v1917 = vsel %vm400, %v1913, 0.0
    %1918 = vadd.xlane.f32.xlu0 %v1917
    %v1919 = vpop.xlane.xlu0 %1918
    %v1920 = vrcp.pop %v1916
    %v1921 = vrcp.pop %v1919
    %v1922 = vmul.f32 %v1911, %v1920
    %v1923 = vmul.f32 %v1913, %v1921
    %v1925 = vsel %vm400, %v1922, 0
    %1927 = vmatprep.subr.mxu0 0.0
    %1928 = vmatpush1.msra.mxu0 %v1736
    %1929 = vmatprep.subr.mxu0 0.0
    %1930 = vmatpush1.msra.mxu0 0.0
    %1931 = vmatprep.subr.mxu0 0.0
    %1932 = vmatpush1.msra.mxu0 0.0
    %1933 = vmatprep.subr.mxu0 0.0
    %1934 = vmatpush1.msra.mxu0 0.0
    %1935 = vmatprep.subr.mxu0 0.0
    %1936 = vmatpush1.msra.mxu0 0.0
    %1937 = vmatprep.subr.mxu0 0.0
    %1938 = vmatpush1.msra.mxu0 0.0
    %1939 = vmatprep.subr.mxu0 0.0
    %1940 = vmatpush1.msra.mxu0 0.0
    %1941 = vmatprep.subr.mxu0 0.0
    %1942 = vmatpush1.msra.mxu0 0.0
    %1943 = vmatprep.subr.mxu0 0.0
    %1944 = vmatpush1.msra.mxu0 0.0
    %1945 = vmatprep.subr.mxu0 0.0
    %1946 = vmatpush1.msra.mxu0 0.0
    %1947 = vmatprep.subr.mxu0 0.0
    %1948 = vmatpush1.msra.mxu0 0.0
    %1949 = vmatprep.subr.mxu0 0.0
    %1950 = vmatpush1.msra.mxu0 0.0
    %1951 = vmatprep.subr.mxu0 0.0
    %1952 = vmatpush1.msra.mxu0 0.0
    %1953 = vmatprep.subr.mxu0 0.0
    %1954 = vmatpush1.msra.mxu0 0.0
    %1955 = vmatprep.subr.mxu0 0.0
    %1956 = vmatpush1.msra.mxu0 0.0
    %1957 = vmatprep.subr.mxu0 0.0
    %1958 = vmatpush1.msra.mxu0 0.0
    %1959 = vmatprep.subr.mxu0 0.0
    %1960 = vmatpush1.msra.mxu0 0.0
    %1961 = vmatprep.subr.mxu0 0.0
    %1962 = vmatpush1.msra.mxu0 0.0
    %1963 = vmatprep.subr.mxu0 0.0
    %1964 = vmatpush1.msra.mxu0 0.0
    %1965 = vmatprep.subr.mxu0 0.0
    %1966 = vmatpush1.msra.mxu0 0.0
    %1967 = vmatprep.subr.mxu0 0.0
    %1968 = vmatpush1.msra.mxu0 0.0
    %1969 = vmatprep.subr.mxu0 0.0
    %1970 = vmatpush1.msra.mxu0 0.0
    %1971 = vmatprep.subr.mxu0 0.0
    %1972 = vmatpush1.msra.mxu0 0.0
    %1973 = vmatprep.subr.mxu0 0.0
    %1974 = vmatpush1.msra.mxu0 0.0
    %1975 = vmatprep.subr.mxu0 0.0
    %1976 = vmatpush1.msra.mxu0 0.0
    %1977 = vmatprep.subr.mxu0 0.0
    %1978 = vmatpush1.msra.mxu0 0.0
    %1979 = vmatprep.subr.mxu0 0.0
    %1980 = vmatpush1.msra.mxu0 0.0
    %1981 = vmatprep.subr.mxu0 0.0
    %1982 = vmatpush1.msra.mxu0 0.0
    %1983 = vmatprep.subr.mxu0 0.0
    %1984 = vmatpush1.msra.mxu0 0.0
    %1985 = vmatprep.subr.mxu0 0.0
    %1986 = vmatpush1.msra.mxu0 0.0
    %1987 = vmatprep.subr.mxu0 0.0
    %1988 = vmatpush1.msra.mxu0 0.0
    %1989 = vmatprep.subr.mxu0 0.0
    %1990 = vmatpush1.msra.mxu0 0.0
    %1991 = vmatprep.mubr.f32.mxu0 0.0
    %1992 = vmatmul.mubr.f32.gmra.mrb[0].mxu0 %v1925
    %v1993 = vpop.f32.mrb[0].mxu0
    %v1994 = vadd.f32 0.0, %v1993
    %v1995 = vpop.f32.mrb[0].mxu0
    %1996 = vdwg.mxu0
    %v1998 = vsel %vm400, %v1923, 0
    %2000 = vmatprep.subr.mxu0 0.0
    %2001 = vmatpush1.msra.mxu0 %v1741
    %2002 = vmatprep.subr.mxu0 0.0
    %2003 = vmatpush1.msra.mxu0 0.0
    %2004 = vmatprep.subr.mxu0 0.0
    %2005 = vmatpush1.msra.mxu0 0.0
    %2006 = vmatprep.subr.mxu0 0.0
    %2007 = vmatpush1.msra.mxu0 0.0
    %2008 = vmatprep.subr.mxu0 0.0
    %2009 = vmatpush1.msra.mxu0 0.0
    %2010 = vmatprep.subr.mxu0 0.0
    %2011 = vmatpush1.msra.mxu0 0.0
    %2012 = vmatprep.subr.mxu0 0.0
    %2013 = vmatpush1.msra.mxu0 0.0
    %2014 = vmatprep.subr.mxu0 0.0
    %2015 = vmatpush1.msra.mxu0 0.0
    %2016 = vmatprep.subr.mxu0 0.0
    %2017 = vmatpush1.msra.mxu0 0.0
    %2018 = vmatprep.subr.mxu0 0.0
    %2019 = vmatpush1.msra.mxu0 0.0
    %2020 = vmatprep.subr.mxu0 0.0
    %2021 = vmatpush1.msra.mxu0 0.0
    %2022 = vmatprep.subr.mxu0 0.0
    %2023 = vmatpush1.msra.mxu0 0.0
    %2024 = vmatprep.subr.mxu0 0.0
    %2025 = vmatpush1.msra.mxu0 0.0
    %2026 = vmatprep.subr.mxu0 0.0
    %2027 = vmatpush1.msra.mxu0 0.0
    %2028 = vmatprep.subr.mxu0 0.0
    %2029 = vmatpush1.msra.mxu0 0.0
    %2030 = vmatprep.subr.mxu0 0.0
    %2031 = vmatpush1.msra.mxu0 0.0
    %2032 = vmatprep.subr.mxu0 0.0
    %2033 = vmatpush1.msra.mxu0 0.0
    %2034 = vmatprep.subr.mxu0 0.0
    %2035 = vmatpush1.msra.mxu0 0.0
    %2036 = vmatprep.subr.mxu0 0.0
    %2037 = vmatpush1.msra.mxu0 0.0
    %2038 = vmatprep.subr.mxu0 0.0
    %2039 = vmatpush1.msra.mxu0 0.0
    %2040 = vmatprep.subr.mxu0 0.0
    %2041 = vmatpush1.msra.mxu0 0.0
    %2042 = vmatprep.subr.mxu0 0.0
    %2043 = vmatpush1.msra.mxu0 0.0
    %2044 = vmatprep.subr.mxu0 0.0
    %2045 = vmatpush1.msra.mxu0 0.0
    %2046 = vmatprep.subr.mxu0 0.0
    %2047 = vmatpush1.msra.mxu0 0.0
    %2048 = vmatprep.subr.mxu0 0.0
    %2049 = vmatpush1.msra.mxu0 0.0
    %2050 = vmatprep.subr.mxu0 0.0
    %2051 = vmatpush1.msra.mxu0 0.0
    %2052 = vmatprep.subr.mxu0 0.0
    %2053 = vmatpush1.msra.mxu0 0.0
    %2054 = vmatprep.subr.mxu0 0.0
    %2055 = vmatpush1.msra.mxu0 0.0
    %2056 = vmatprep.subr.mxu0 0.0
    %2057 = vmatpush1.msra.mxu0 0.0
    %2058 = vmatprep.subr.mxu0 0.0
    %2059 = vmatpush1.msra.mxu0 0.0
    %2060 = vmatprep.subr.mxu0 0.0
    %2061 = vmatpush1.msra.mxu0 0.0
    %2062 = vmatprep.subr.mxu0 0.0
    %2063 = vmatpush1.msra.mxu0 0.0
    %2064 = vmatprep.mubr.f32.mxu0 0.0
    %2065 = vmatmul.mubr.f32.gmra.mrb[0].mxu0 %v1998
    %v2066 = vpop.f32.mrb[0].mxu0
    %v2067 = vadd.f32 0.0, %v2066
    %v2068 = vpop.f32.mrb[0].mxu0
    %2069 = vdwg.mxu0
    %s2070 = scalar_lea.vmem %s12, 16
    %v2071 = vld [vmem:[%s2070] sm:$0xff]
    %v2073 = vsel %vm400, %v1994, 0
    %v2076 = vsel %vm400, %v2067, 0
    %2078 = vmatprep.subr.mxu0 0.0
    %2079 = vmatpush1.msra.mxu0 %v2071
    %2080 = vmatprep.subr.mxu0 0.0
    %2081 = vmatpush1.msra.mxu0 0.0
    %2082 = vmatprep.subr.mxu0 0.0
    %2083 = vmatpush1.msra.mxu0 0.0
    %2084 = vmatprep.subr.mxu0 0.0
    %2085 = vmatpush1.msra.mxu0 0.0
    %2086 = vmatprep.subr.mxu0 0.0
    %2087 = vmatpush1.msra.mxu0 0.0
    %2088 = vmatprep.subr.mxu0 0.0
    %2089 = vmatpush1.msra.mxu0 0.0
    %2090 = vmatprep.subr.mxu0 0.0
    %2091 = vmatpush1.msra.mxu0 0.0
    %2092 = vmatprep.subr.mxu0 0.0
    %2093 = vmatpush1.msra.mxu0 0.0
    %2094 = vmatprep.subr.mxu0 0.0
    %2095 = vmatpush1.msra.mxu0 0.0
    %2096 = vmatprep.subr.mxu0 0.0
    %2097 = vmatpush1.msra.mxu0 0.0
    %2098 = vmatprep.subr.mxu0 0.0
    %2099 = vmatpush1.msra.mxu0 0.0
    %2100 = vmatprep.subr.mxu0 0.0
    %2101 = vmatpush1.msra.mxu0 0.0
    %2102 = vmatprep.subr.mxu0 0.0
    %2103 = vmatpush1.msra.mxu0 0.0
    %2104 = vmatprep.subr.mxu0 0.0
    %2105 = vmatpush1.msra.mxu0 0.0
    %2106 = vmatprep.subr.mxu0 0.0
    %2107 = vmatpush1.msra.mxu0 0.0
    %2108 = vmatprep.subr.mxu0 0.0
    %2109 = vmatpush1.msra.mxu0 0.0
    %2110 = vmatprep.subr.mxu0 0.0
    %2111 = vmatpush1.msra.mxu0 0.0
    %2112 = vmatprep.subr.mxu0 0.0
    %2113 = vmatpush1.msra.mxu0 0.0
    %2114 = vmatprep.subr.mxu0 0.0
    %2115 = vmatpush1.msra.mxu0 0.0
    %2116 = vmatprep.subr.mxu0 0.0
    %2117 = vmatpush1.msra.mxu0 0.0
    %2118 = vmatprep.subr.mxu0 0.0
    %2119 = vmatpush1.msra.mxu0 0.0
    %2120 = vmatprep.subr.mxu0 0.0
    %2121 = vmatpush1.msra.mxu0 0.0
    %2122 = vmatprep.subr.mxu0 0.0
    %2123 = vmatpush1.msra.mxu0 0.0
    %2124 = vmatprep.subr.mxu0 0.0
    %2125 = vmatpush1.msra.mxu0 0.0
    %2126 = vmatprep.subr.mxu0 0.0
    %2127 = vmatpush1.msra.mxu0 0.0
    %2128 = vmatprep.subr.mxu0 0.0
    %2129 = vmatpush1.msra.mxu0 0.0
    %2130 = vmatprep.subr.mxu0 0.0
    %2131 = vmatpush1.msra.mxu0 0.0
    %2132 = vmatprep.subr.mxu0 0.0
    %2133 = vmatpush1.msra.mxu0 0.0
    %2134 = vmatprep.subr.mxu0 0.0
    %2135 = vmatpush1.msra.mxu0 0.0
    %2136 = vmatprep.subr.mxu0 0.0
    %2137 = vmatpush1.msra.mxu0 0.0
    %2138 = vmatprep.subr.mxu0 0.0
    %2139 = vmatpush1.msra.mxu0 0.0
    %2140 = vmatprep.subr.mxu0 0.0
    %2141 = vmatpush1.msra.mxu0 0.0
    %2142 = vmatprep.mubr.f32.mxu0 0.0
    %2143 = vmatmul.mubr.f32.gmra.mrb[0].mxu0 %v2073
    %v2144 = vpop.f32.mrb[0].mxu0
    %v2145 = vadd.f32 0.0, %v2144
    %v2146 = vpop.f32.mrb[0].mxu0
    %2147 = vmatprep.mubr.f32.mxu0 0.0
    %2148 = vmatmul.mubr.f32.gmra.mrb[0].mxu0 %v2076
    %v2149 = vpop.f32.mrb[0].mxu0
    %v2150 = vadd.f32 0.0, %v2149
    %v2151 = vpop.f32.mrb[0].mxu0
    %2152 = vdwg.mxu0
    %v2153 = vadd.f32 %v1472, %v2145
    %v2154 = vadd.f32 %v1477, %v2150
    %s2155 = scalar_lea.vmem %s6, 96
    %v2156 = vld [vmem:[%s2155] sm:$0xff]
    %v2157 = vld [vmem:[%s2155 + $0x8] sm:$0xff]
    %v2158 = vld [vmem:[%s2155 + $0x10] sm:$0xff]
    %v2159 = vld [vmem:[%s2155 + $0x18] sm:$0xff]
    %s2160 = scalar_lea.vmem %s7, 3
    %v2161 = vld [vmem:[%s2160] sm:$0x1]
    %v2163 = vlaneseq
    %v2164 = vshrl.u32 %v2163, 7
    %v2165 = vsub.s32 0, %v2164
    %v2166 = vrot.slane %v2161, %v2165
    %2168 = vmatprep.subr.mxu0 0.0
    %2169 = vmatpush1.msra.mxu0 %v2156
    %2170 = vmatprep.subr.mxu0 0.0
    %2171 = vmatpush1.msra.mxu0 %v2157
    %2172 = vmatprep.subr.mxu0 0.0
    %2173 = vmatpush1.msra.mxu0 %v2158
    %2174 = vmatprep.subr.mxu0 0.0
    %2175 = vmatpush1.msra.mxu0 %v2159
    %2176 = vmatprep.subr.mxu0 0.0
    %2177 = vmatpush1.msra.mxu0 0.0
    %2178 = vmatprep.subr.mxu0 0.0
    %2179 = vmatpush1.msra.mxu0 0.0
    %2180 = vmatprep.subr.mxu0 0.0
    %2181 = vmatpush1.msra.mxu0 0.0
    %2182 = vmatprep.subr.mxu0 0.0
    %2183 = vmatpush1.msra.mxu0 0.0
    %2184 = vmatprep.subr.mxu0 0.0
    %2185 = vmatpush1.msra.mxu0 0.0
    %2186 = vmatprep.subr.mxu0 0.0
    %2187 = vmatpush1.msra.mxu0 0.0
    %2188 = vmatprep.subr.mxu0 0.0
    %2189 = vmatpush1.msra.mxu0 0.0
    %2190 = vmatprep.subr.mxu0 0.0
    %2191 = vmatpush1.msra.mxu0 0.0
    %2192 = vmatprep.subr.mxu0 0.0
    %2193 = vmatpush1.msra.mxu0 0.0
    %2194 = vmatprep.subr.mxu0 0.0
    %2195 = vmatpush1.msra.mxu0 0.0
    %2196 = vmatprep.subr.mxu0 0.0
    %2197 = vmatpush1.msra.mxu0 0.0
    %2198 = vmatprep.subr.mxu0 0.0
    %2199 = vmatpush1.msra.mxu0 0.0
    %2200 = vmatprep.subr.mxu0 0.0
    %2201 = vmatpush1.msra.mxu0 0.0
    %2202 = vmatprep.subr.mxu0 0.0
    %2203 = vmatpush1.msra.mxu0 0.0
    %2204 = vmatprep.subr.mxu0 0.0
    %2205 = vmatpush1.msra.mxu0 0.0
    %2206 = vmatprep.subr.mxu0 0.0
    %2207 = vmatpush1.msra.mxu0 0.0
    %2208 = vmatprep.subr.mxu0 0.0
    %2209 = vmatpush1.msra.mxu0 0.0
    %2210 = vmatprep.subr.mxu0 0.0
    %2211 = vmatpush1.msra.mxu0 0.0
    %2212 = vmatprep.subr.mxu0 0.0
    %2213 = vmatpush1.msra.mxu0 0.0
    %2214 = vmatprep.subr.mxu0 0.0
    %2215 = vmatpush1.msra.mxu0 0.0
    %2216 = vmatprep.subr.mxu0 0.0
    %2217 = vmatpush1.msra.mxu0 0.0
    %2218 = vmatprep.subr.mxu0 0.0
    %2219 = vmatpush1.msra.mxu0 0.0
    %2220 = vmatprep.subr.mxu0 0.0
    %2221 = vmatpush1.msra.mxu0 0.0
    %2222 = vmatprep.subr.mxu0 0.0
    %2223 = vmatpush1.msra.mxu0 0.0
    %2224 = vmatprep.subr.mxu0 0.0
    %2225 = vmatpush1.msra.mxu0 0.0
    %2226 = vmatprep.subr.mxu0 0.0
    %2227 = vmatpush1.msra.mxu0 0.0
    %2228 = vmatprep.subr.mxu0 0.0
    %2229 = vmatpush1.msra.mxu0 0.0
    %2230 = vmatprep.subr.mxu0 0.0
    %2231 = vmatpush1.msra.mxu0 0.0
    %2232 = vmatprep.mubr.f32.mxu0 0.0
    %2233 = vmatmul.mubr.f32.gmra.mrb[0].mxu0 %v147
    %v2234 = vpop.f32.mrb[0].mxu0
    %v2235 = vadd.f32 %v2166, %v2234
    %v2236 = vpop.f32.mrb[0].mxu0
    %2237 = vmatprep.mubr.f32.mxu0 0.0
    %2238 = vmatmul.mubr.f32.gmra.mrb[0].mxu0 %v150
    %v2239 = vpop.f32.mrb[0].mxu0
    %v2240 = vadd.f32 %v2166, %v2239
    %v2241 = vpop.f32.mrb[0].mxu0
    %2242 = vdwg.mxu0
    %s2243 = scalar_lea.vmem %s8, 96
    %v2244 = vld [vmem:[%s2243] sm:$0xff]
    %v2245 = vld [vmem:[%s2243 + $0x8] sm:$0xff]
    %v2246 = vld [vmem:[%s2243 + $0x10] sm:$0xff]
    %v2247 = vld [vmem:[%s2243 + $0x18] sm:$0xff]
    %s2248 = scalar_lea.vmem %s9, 3
    %v2249 = vld [vmem:[%s2248] sm:$0x1]
    %v2251 = vlaneseq
    %v2252 = vshrl.u32 %v2251, 7
    %v2253 = vsub.s32 0, %v2252
    %v2254 = vrot.slane %v2249, %v2253
    %2256 = vmatprep.subr.mxu0 0.0
    %2257 = vmatpush1.msra.mxu0 %v2244
    %2258 = vmatprep.subr.mxu0 0.0
    %2259 = vmatpush1.msra.mxu0 %v2245
    %2260 = vmatprep.subr.mxu0 0.0
    %2261 = vmatpush1.msra.mxu0 %v2246
    %2262 = vmatprep.subr.mxu0 0.0
    %2263 = vmatpush1.msra.mxu0 %v2247
    %2264 = vmatprep.subr.mxu0 0.0
    %2265 = vmatpush1.msra.mxu0 0.0
    %2266 = vmatprep.subr.mxu0 0.0
    %2267 = vmatpush1.msra.mxu0 0.0
    %2268 = vmatprep.subr.mxu0 0.0
    %2269 = vmatpush1.msra.mxu0 0.0
    %2270 = vmatprep.subr.mxu0 0.0
    %2271 = vmatpush1.msra.mxu0 0.0
    %2272 = vmatprep.subr.mxu0 0.0
    %2273 = vmatpush1.msra.mxu0 0.0
    %2274 = vmatprep.subr.mxu0 0.0
    %2275 = vmatpush1.msra.mxu0 0.0
    %2276 = vmatprep.subr.mxu0 0.0
    %2277 = vmatpush1.msra.mxu0 0.0
    %2278 = vmatprep.subr.mxu0 0.0
    %2279 = vmatpush1.msra.mxu0 0.0
    %2280 = vmatprep.subr.mxu0 0.0
    %2281 = vmatpush1.msra.mxu0 0.0
    %2282 = vmatprep.subr.mxu0 0.0
    %2283 = vmatpush1.msra.mxu0 0.0
    %2284 = vmatprep.subr.mxu0 0.0
    %2285 = vmatpush1.msra.mxu0 0.0
    %2286 = vmatprep.subr.mxu0 0.0
    %2287 = vmatpush1.msra.mxu0 0.0
    %2288 = vmatprep.subr.mxu0 0.0
    %2289 = vmatpush1.msra.mxu0 0.0
    %2290 = vmatprep.subr.mxu0 0.0
    %2291 = vmatpush1.msra.mxu0 0.0
    %2292 = vmatprep.subr.mxu0 0.0
    %2293 = vmatpush1.msra.mxu0 0.0
    %2294 = vmatprep.subr.mxu0 0.0
    %2295 = vmatpush1.msra.mxu0 0.0
    %2296 = vmatprep.subr.mxu0 0.0
    %2297 = vmatpush1.msra.mxu0 0.0
    %2298 = vmatprep.subr.mxu0 0.0
    %2299 = vmatpush1.msra.mxu0 0.0
    %2300 = vmatprep.subr.mxu0 0.0
    %2301 = vmatpush1.msra.mxu0 0.0
    %2302 = vmatprep.subr.mxu0 0.0
    %2303 = vmatpush1.msra.mxu0 0.0
    %2304 = vmatprep.subr.mxu0 0.0
    %2305 = vmatpush1.msra.mxu0 0.0
    %2306 = vmatprep.subr.mxu0 0.0
    %2307 = vmatpush1.msra.mxu0 0.0
    %2308 = vmatprep.subr.mxu0 0.0
    %2309 = vmatpush1.msra.mxu0 0.0
    %2310 = vmatprep.subr.mxu0 0.0
    %2311 = vmatpush1.msra.mxu0 0.0
    %2312 = vmatprep.subr.mxu0 0.0
    %2313 = vmatpush1.msra.mxu0 0.0
    %2314 = vmatprep.subr.mxu0 0.0
    %2315 = vmatpush1.msra.mxu0 0.0
    %2316 = vmatprep.subr.mxu0 0.0
    %2317 = vmatpush1.msra.mxu0 0.0
    %2318 = vmatprep.subr.mxu0 0.0
    %2319 = vmatpush1.msra.mxu0 0.0
    %2320 = vmatprep.mubr.f32.mxu0 0.0
    %2321 = vmatmul.mubr.f32.gmra.mrb[0].mxu0 %v147
    %v2322 = vpop.f32.mrb[0].mxu0
    %v2323 = vadd.f32 %v2254, %v2322
    %v2324 = vpop.f32.mrb[0].mxu0
    %2325 = vmatprep.mubr.f32.mxu0 0.0
    %2326 = vmatmul.mubr.f32.gmra.mrb[0].mxu0 %v150
    %v2327 = vpop.f32.mrb[0].mxu0
    %v2328 = vadd.f32 %v2254, %v2327
    %v2329 = vpop.f32.mrb[0].mxu0
    %2330 = vdwg.mxu0
    %s2331 = scalar_lea.vmem %s10, 96
    %v2332 = vld [vmem:[%s2331] sm:$0xff]
    %v2333 = vld [vmem:[%s2331 + $0x8] sm:$0xff]
    %v2334 = vld [vmem:[%s2331 + $0x10] sm:$0xff]
    %v2335 = vld [vmem:[%s2331 + $0x18] sm:$0xff]
    %s2336 = scalar_lea.vmem %s11, 3
    %v2337 = vld [vmem:[%s2336] sm:$0x1]
    %v2339 = vlaneseq
    %v2340 = vshrl.u32 %v2339, 7
    %v2341 = vsub.s32 0, %v2340
    %v2342 = vrot.slane %v2337, %v2341
    %2344 = vmatprep.subr.mxu0 0.0
    %2345 = vmatpush1.msra.mxu0 %v2332
    %2346 = vmatprep.subr.mxu0 0.0
    %2347 = vmatpush1.msra.mxu0 %v2333
    %2348 = vmatprep.subr.mxu0 0.0
    %2349 = vmatpush1.msra.mxu0 %v2334
    %2350 = vmatprep.subr.mxu0 0.0
    %2351 = vmatpush1.msra.mxu0 %v2335
    %2352 = vmatprep.subr.mxu0 0.0
    %2353 = vmatpush1.msra.mxu0 0.0
    %2354 = vmatprep.subr.mxu0 0.0
    %2355 = vmatpush1.msra.mxu0 0.0
    %2356 = vmatprep.subr.mxu0 0.0
    %2357 = vmatpush1.msra.mxu0 0.0
    %2358 = vmatprep.subr.mxu0 0.0
    %2359 = vmatpush1.msra.mxu0 0.0
    %2360 = vmatprep.subr.mxu0 0.0
    %2361 = vmatpush1.msra.mxu0 0.0
    %2362 = vmatprep.subr.mxu0 0.0
    %2363 = vmatpush1.msra.mxu0 0.0
    %2364 = vmatprep.subr.mxu0 0.0
    %2365 = vmatpush1.msra.mxu0 0.0
    %2366 = vmatprep.subr.mxu0 0.0
    %2367 = vmatpush1.msra.mxu0 0.0
    %2368 = vmatprep.subr.mxu0 0.0
    %2369 = vmatpush1.msra.mxu0 0.0
    %2370 = vmatprep.subr.mxu0 0.0
    %2371 = vmatpush1.msra.mxu0 0.0
    %2372 = vmatprep.subr.mxu0 0.0
    %2373 = vmatpush1.msra.mxu0 0.0
    %2374 = vmatprep.subr.mxu0 0.0
    %2375 = vmatpush1.msra.mxu0 0.0
    %2376 = vmatprep.subr.mxu0 0.0
    %2377 = vmatpush1.msra.mxu0 0.0
    %2378 = vmatprep.subr.mxu0 0.0
    %2379 = vmatpush1.msra.mxu0 0.0
    %2380 = vmatprep.subr.mxu0 0.0
    %2381 = vmatpush1.msra.mxu0 0.0
    %2382 = vmatprep.subr.mxu0 0.0
    %2383 = vmatpush1.msra.mxu0 0.0
    %2384 = vmatprep.subr.mxu0 0.0
    %2385 = vmatpush1.msra.mxu0 0.0
    %2386 = vmatprep.subr.mxu0 0.0
    %2387 = vmatpush1.msra.mxu0 0.0
    %2388 = vmatprep.subr.mxu0 0.0
    %2389 = vmatpush1.msra.mxu0 0.0
    %2390 = vmatprep.subr.mxu0 0.0
    %2391 = vmatpush1.msra.mxu0 0.0
    %2392 = vmatprep.subr.mxu0 0.0
    %2393 = vmatpush1.msra.mxu0 0.0
    %2394 = vmatprep.subr.mxu0 0.0
    %2395 = vmatpush1.msra.mxu0 0.0
    %2396 = vmatprep.subr.mxu0 0.0
    %2397 = vmatpush1.msra.mxu0 0.0
    %2398 = vmatprep.subr.mxu0 0.0
    %2399 = vmatpush1.msra.mxu0 0.0
    %2400 = vmatprep.subr.mxu0 0.0
    %2401 = vmatpush1.msra.mxu0 0.0
    %2402 = vmatprep.subr.mxu0 0.0
    %2403 = vmatpush1.msra.mxu0 0.0
    %2404 = vmatprep.subr.mxu0 0.0
    %2405 = vmatpush1.msra.mxu0 0.0
    %2406 = vmatprep.subr.mxu0 0.0
    %2407 = vmatpush1.msra.mxu0 0.0
    %2408 = vmatprep.mubr.f32.mxu0 0.0
    %2409 = vmatmul.mubr.f32.gmra.mrb[0].mxu0 %v147
    %v2410 = vpop.f32.mrb[0].mxu0
    %v2411 = vadd.f32 %v2342, %v2410
    %v2412 = vpop.f32.mrb[0].mxu0
    %2413 = vmatprep.mubr.f32.mxu0 0.0
    %2414 = vmatmul.mubr.f32.gmra.mrb[0].mxu0 %v150
    %v2415 = vpop.f32.mrb[0].mxu0
    %v2416 = vadd.f32 %v2342, %v2415
    %v2417 = vpop.f32.mrb[0].mxu0
    %2418 = vdwg.mxu0
    %s2419 = scalar_lea.vmem %s2, 24
    %v2420 = vld [vmem:[%s2419] sm:$0xff]
    %v2422 = vsel %vm400, %v2235, 0
    %v2425 = vsel %vm400, %v2323, 0
    %2427 = vmatprep.subr.mxu0 0.0
    %2428 = vmatpush1.xpose.msra.mxu0 %v2425
    %2429 = vmatprep.subr.mxu0 0.0
    %2430 = vmatpush1.xpose.msra.mxu0 0.0
    %2431 = vmatprep.subr.mxu0 0.0
    %2432 = vmatpush1.xpose.msra.mxu0 0.0
    %2433 = vmatprep.subr.mxu0 0.0
    %2434 = vmatpush1.xpose.msra.mxu0 0.0
    %2435 = vmatprep.subr.mxu0 0.0
    %2436 = vmatpush1.xpose.msra.mxu0 0.0
    %2437 = vmatprep.subr.mxu0 0.0
    %2438 = vmatpush1.xpose.msra.mxu0 0.0
    %2439 = vmatprep.subr.mxu0 0.0
    %2440 = vmatpush1.xpose.msra.mxu0 0.0
    %2441 = vmatprep.subr.mxu0 0.0
    %2442 = vmatpush1.xpose.msra.mxu0 0.0
    %2443 = vmatprep.subr.mxu0 0.0
    %2444 = vmatpush1.xpose.msra.mxu0 0.0
    %2445 = vmatprep.subr.mxu0 0.0
    %2446 = vmatpush1.xpose.msra.mxu0 0.0
    %2447 = vmatprep.subr.mxu0 0.0
    %2448 = vmatpush1.xpose.msra.mxu0 0.0
    %2449 = vmatprep.subr.mxu0 0.0
    %2450 = vmatpush1.xpose.msra.mxu0 0.0
    %2451 = vmatprep.subr.mxu0 0.0
    %2452 = vmatpush1.xpose.msra.mxu0 0.0
    %2453 = vmatprep.subr.mxu0 0.0
    %2454 = vmatpush1.xpose.msra.mxu0 0.0
    %2455 = vmatprep.subr.mxu0 0.0
    %2456 = vmatpush1.xpose.msra.mxu0 0.0
    %2457 = vmatprep.subr.mxu0 0.0
    %2458 = vmatpush1.xpose.msra.mxu0 0.0
    %2459 = vmatprep.subr.mxu0 0.0
    %2460 = vmatpush1.xpose.msra.mxu0 0.0
    %2461 = vmatprep.subr.mxu0 0.0
    %2462 = vmatpush1.xpose.msra.mxu0 0.0
    %2463 = vmatprep.subr.mxu0 0.0
    %2464 = vmatpush1.xpose.msra.mxu0 0.0
    %2465 = vmatprep.subr.mxu0 0.0
    %2466 = vmatpush1.xpose.msra.mxu0 0.0
    %2467 = vmatprep.subr.mxu0 0.0
    %2468 = vmatpush1.xpose.msra.mxu0 0.0
    %2469 = vmatprep.subr.mxu0 0.0
    %2470 = vmatpush1.xpose.msra.mxu0 0.0
    %2471 = vmatprep.subr.mxu0 0.0
    %2472 = vmatpush1.xpose.msra.mxu0 0.0
    %2473 = vmatprep.subr.mxu0 0.0
    %2474 = vmatpush1.xpose.msra.mxu0 0.0
    %2475 = vmatprep.subr.mxu0 0.0
    %2476 = vmatpush1.xpose.msra.mxu0 0.0
    %2477 = vmatprep.subr.mxu0 0.0
    %2478 = vmatpush1.xpose.msra.mxu0 0.0
    %2479 = vmatprep.subr.mxu0 0.0
    %2480 = vmatpush1.xpose.msra.mxu0 0.0
    %2481 = vmatprep.subr.mxu0 0.0
    %2482 = vmatpush1.xpose.msra.mxu0 0.0
    %2483 = vmatprep.subr.mxu0 0.0
    %2484 = vmatpush1.xpose.msra.mxu0 0.0
    %2485 = vmatprep.subr.mxu0 0.0
    %2486 = vmatpush1.xpose.msra.mxu0 0.0
    %2487 = vmatprep.subr.mxu0 0.0
    %2488 = vmatpush1.xpose.msra.mxu0 0.0
    %2489 = vmatprep.subr.mxu0 0.0
    %2490 = vmatpush1.xpose.msra.mxu0 0.0
    %2491 = vmatprep.mubr.f32.mxu0 0.0
    %2492 = vmatmul.mubr.f32.gmra.mrb[0].mxu0 %v2422
    %v2493 = vpop.f32.mrb[0].mxu0
    %v2494 = vadd.f32 %v2420, %v2493
    %v2495 = vpop.f32.mrb[0].mxu0
    %2496 = vdwg.mxu0
    %v2498 = vsel %vm400, %v2240, 0
    %v2501 = vsel %vm400, %v2328, 0
    %2503 = vmatprep.subr.mxu0 0.0
    %2504 = vmatpush1.xpose.msra.mxu0 %v2501
    %2505 = vmatprep.subr.mxu0 0.0
    %2506 = vmatpush1.xpose.msra.mxu0 0.0
    %2507 = vmatprep.subr.mxu0 0.0
    %2508 = vmatpush1.xpose.msra.mxu0 0.0
    %2509 = vmatprep.subr.mxu0 0.0
    %2510 = vmatpush1.xpose.msra.mxu0 0.0
    %2511 = vmatprep.subr.mxu0 0.0
    %2512 = vmatpush1.xpose.msra.mxu0 0.0
    %2513 = vmatprep.subr.mxu0 0.0
    %2514 = vmatpush1.xpose.msra.mxu0 0.0
    %2515 = vmatprep.subr.mxu0 0.0
    %2516 = vmatpush1.xpose.msra.mxu0 0.0
    %2517 = vmatprep.subr.mxu0 0.0
    %2518 = vmatpush1.xpose.msra.mxu0 0.0
    %2519 = vmatprep.subr.mxu0 0.0
    %2520 = vmatpush1.xpose.msra.mxu0 0.0
    %2521 = vmatprep.subr.mxu0 0.0
    %2522 = vmatpush1.xpose.msra.mxu0 0.0
    %2523 = vmatprep.subr.mxu0 0.0
    %2524 = vmatpush1.xpose.msra.mxu0 0.0
    %2525 = vmatprep.subr.mxu0 0.0
    %2526 = vmatpush1.xpose.msra.mxu0 0.0
    %2527 = vmatprep.subr.mxu0 0.0
    %2528 = vmatpush1.xpose.msra.mxu0 0.0
    %2529 = vmatprep.subr.mxu0 0.0
    %2530 = vmatpush1.xpose.msra.mxu0 0.0
    %2531 = vmatprep.subr.mxu0 0.0
    %2532 = vmatpush1.xpose.msra.mxu0 0.0
    %2533 = vmatprep.subr.mxu0 0.0
    %2534 = vmatpush1.xpose.msra.mxu0 0.0
    %2535 = vmatprep.subr.mxu0 0.0
    %2536 = vmatpush1.xpose.msra.mxu0 0.0
    %2537 = vmatprep.subr.mxu0 0.0
    %2538 = vmatpush1.xpose.msra.mxu0 0.0
    %2539 = vmatprep.subr.mxu0 0.0
    %2540 = vmatpush1.xpose.msra.mxu0 0.0
    %2541 = vmatprep.subr.mxu0 0.0
    %2542 = vmatpush1.xpose.msra.mxu0 0.0
    %2543 = vmatprep.subr.mxu0 0.0
    %2544 = vmatpush1.xpose.msra.mxu0 0.0
    %2545 = vmatprep.subr.mxu0 0.0
    %2546 = vmatpush1.xpose.msra.mxu0 0.0
    %2547 = vmatprep.subr.mxu0 0.0
    %2548 = vmatpush1.xpose.msra.mxu0 0.0
    %2549 = vmatprep.subr.mxu0 0.0
    %2550 = vmatpush1.xpose.msra.mxu0 0.0
    %2551 = vmatprep.subr.mxu0 0.0
    %2552 = vmatpush1.xpose.msra.mxu0 0.0
    %2553 = vmatprep.subr.mxu0 0.0
    %2554 = vmatpush1.xpose.msra.mxu0 0.0
    %2555 = vmatprep.subr.mxu0 0.0
    %2556 = vmatpush1.xpose.msra.mxu0 0.0
    %2557 = vmatprep.subr.mxu0 0.0
    %2558 = vmatpush1.xpose.msra.mxu0 0.0
    %2559 = vmatprep.subr.mxu0 0.0
    %2560 = vmatpush1.xpose.msra.mxu0 0.0
    %2561 = vmatprep.subr.mxu0 0.0
    %2562 = vmatpush1.xpose.msra.mxu0 0.0
    %2563 = vmatprep.subr.mxu0 0.0
    %2564 = vmatpush1.xpose.msra.mxu0 0.0
    %2565 = vmatprep.subr.mxu0 0.0
    %2566 = vmatpush1.xpose.msra.mxu0 0.0
    %2567 = vmatprep.mubr.f32.mxu0 0.0
    %2568 = vmatmul.mubr.f32.gmra.mrb[0].mxu0 %v2498
    %v2569 = vpop.f32.mrb[0].mxu0
    %v2570 = vadd.f32 %v2420, %v2569
    %v2571 = vpop.f32.mrb[0].mxu0
    %2572 = vdwg.mxu0
    %v2573 = vadd.f32 %v2494, %v128
    %v2574 = vadd.f32 %v2570, %v132
    %v2575 = vmul.f32 %v2573, 0.015625
    %v2576 = vmul.f32 %v2574, 0.015625
    %v2577 = vsel %vm400, %v2575, -inf
    %2578 = vmax.xlane.f32.xlu0 %v2577
    %v2579 = vpop.xlane.xlu0 %2578
    %v2580 = vsel %vm400, %v2576, -inf
    %2581 = vmax.xlane.f32.xlu0 %v2580
    %v2582 = vpop.xlane.xlu0 %2581
    %v2583 = vsub.f32 %v2575, %v2579
    %v2584 = vsub.f32 %v2576, %v2582
    %v2585 = vmul.f32 %v2583, 1.442695
    %v2586 = vpow.pop %v2585
    %v2587 = vmul.f32 %v2584, 1.442695
    %v2588 = vpow.pop %v2587
    %v2589 = vsel %vm400, %v2586, 0.0
    %2590 = vadd.xlane.f32.xlu0 %v2589
    %v2591 = vpop.xlane.xlu0 %2590
    %v2592 = vsel %vm400, %v2588, 0.0
    %2593 = vadd.xlane.f32.xlu0 %v2592
    %v2594 = vpop.xlane.xlu0 %2593
    %v2595 = vrcp.pop %v2591
    %v2596 = vrcp.pop %v2594
    %v2597 = vmul.f32 %v2586, %v2595
    %v2598 = vmul.f32 %v2588, %v2596
    %v2600 = vsel %vm400, %v2597, 0
    %2602 = vmatprep.subr.mxu0 0.0
    %2603 = vmatpush1.msra.mxu0 %v2411
    %2604 = vmatprep.subr.mxu0 0.0
    %2605 = vmatpush1.msra.mxu0 0.0
    %2606 = vmatprep.subr.mxu0 0.0
    %2607 = vmatpush1.msra.mxu0 0.0
    %2608 = vmatprep.subr.mxu0 0.0
    %2609 = vmatpush1.msra.mxu0 0.0
    %2610 = vmatprep.subr.mxu0 0.0
    %2611 = vmatpush1.msra.mxu0 0.0
    %2612 = vmatprep.subr.mxu0 0.0
    %2613 = vmatpush1.msra.mxu0 0.0
    %2614 = vmatprep.subr.mxu0 0.0
    %2615 = vmatpush1.msra.mxu0 0.0
    %2616 = vmatprep.subr.mxu0 0.0
    %2617 = vmatpush1.msra.mxu0 0.0
    %2618 = vmatprep.subr.mxu0 0.0
    %2619 = vmatpush1.msra.mxu0 0.0
    %2620 = vmatprep.subr.mxu0 0.0
    %2621 = vmatpush1.msra.mxu0 0.0
    %2622 = vmatprep.subr.mxu0 0.0
    %2623 = vmatpush1.msra.mxu0 0.0
    %2624 = vmatprep.subr.mxu0 0.0
    %2625 = vmatpush1.msra.mxu0 0.0
    %2626 = vmatprep.subr.mxu0 0.0
    %2627 = vmatpush1.msra.mxu0 0.0
    %2628 = vmatprep.subr.mxu0 0.0
    %2629 = vmatpush1.msra.mxu0 0.0
    %2630 = vmatprep.subr.mxu0 0.0
    %2631 = vmatpush1.msra.mxu0 0.0
    %2632 = vmatprep.subr.mxu0 0.0
    %2633 = vmatpush1.msra.mxu0 0.0
    %2634 = vmatprep.subr.mxu0 0.0
    %2635 = vmatpush1.msra.mxu0 0.0
    %2636 = vmatprep.subr.mxu0 0.0
    %2637 = vmatpush1.msra.mxu0 0.0
    %2638 = vmatprep.subr.mxu0 0.0
    %2639 = vmatpush1.msra.mxu0 0.0
    %2640 = vmatprep.subr.mxu0 0.0
    %2641 = vmatpush1.msra.mxu0 0.0
    %2642 = vmatprep.subr.mxu0 0.0
    %2643 = vmatpush1.msra.mxu0 0.0
    %2644 = vmatprep.subr.mxu0 0.0
    %2645 = vmatpush1.msra.mxu0 0.0
    %2646 = vmatprep.subr.mxu0 0.0
    %2647 = vmatpush1.msra.mxu0 0.0
    %2648 = vmatprep.subr.mxu0 0.0
    %2649 = vmatpush1.msra.mxu0 0.0
    %2650 = vmatprep.subr.mxu0 0.0
    %2651 = vmatpush1.msra.mxu0 0.0
    %2652 = vmatprep.subr.mxu0 0.0
    %2653 = vmatpush1.msra.mxu0 0.0
    %2654 = vmatprep.subr.mxu0 0.0
    %2655 = vmatpush1.msra.mxu0 0.0
    %2656 = vmatprep.subr.mxu0 0.0
    %2657 = vmatpush1.msra.mxu0 0.0
    %2658 = vmatprep.subr.mxu0 0.0
    %2659 = vmatpush1.msra.mxu0 0.0
    %2660 = vmatprep.subr.mxu0 0.0
    %2661 = vmatpush1.msra.mxu0 0.0
    %2662 = vmatprep.subr.mxu0 0.0
    %2663 = vmatpush1.msra.mxu0 0.0
    %2664 = vmatprep.subr.mxu0 0.0
    %2665 = vmatpush1.msra.mxu0 0.0
    %2666 = vmatprep.mubr.f32.mxu0 0.0
    %2667 = vmatmul.mubr.f32.gmra.mrb[0].mxu0 %v2600
    %v2668 = vpop.f32.mrb[0].mxu0
    %v2669 = vadd.f32 0.0, %v2668
    %v2670 = vpop.f32.mrb[0].mxu0
    %2671 = vdwg.mxu0
    %v2673 = vsel %vm400, %v2598, 0
    %2675 = vmatprep.subr.mxu0 0.0
    %2676 = vmatpush1.msra.mxu0 %v2416
    %2677 = vmatprep.subr.mxu0 0.0
    %2678 = vmatpush1.msra.mxu0 0.0
    %2679 = vmatprep.subr.mxu0 0.0
    %2680 = vmatpush1.msra.mxu0 0.0
    %2681 = vmatprep.subr.mxu0 0.0
    %2682 = vmatpush1.msra.mxu0 0.0
    %2683 = vmatprep.subr.mxu0 0.0
    %2684 = vmatpush1.msra.mxu0 0.0
    %2685 = vmatprep.subr.mxu0 0.0
    %2686 = vmatpush1.msra.mxu0 0.0
    %2687 = vmatprep.subr.mxu0 0.0
    %2688 = vmatpush1.msra.mxu0 0.0
    %2689 = vmatprep.subr.mxu0 0.0
    %2690 = vmatpush1.msra.mxu0 0.0
    %2691 = vmatprep.subr.mxu0 0.0
    %2692 = vmatpush1.msra.mxu0 0.0
    %2693 = vmatprep.subr.mxu0 0.0
    %2694 = vmatpush1.msra.mxu0 0.0
    %2695 = vmatprep.subr.mxu0 0.0
    %2696 = vmatpush1.msra.mxu0 0.0
    %2697 = vmatprep.subr.mxu0 0.0
    %2698 = vmatpush1.msra.mxu0 0.0
    %2699 = vmatprep.subr.mxu0 0.0
    %2700 = vmatpush1.msra.mxu0 0.0
    %2701 = vmatprep.subr.mxu0 0.0
    %2702 = vmatpush1.msra.mxu0 0.0
    %2703 = vmatprep.subr.mxu0 0.0
    %2704 = vmatpush1.msra.mxu0 0.0
    %2705 = vmatprep.subr.mxu0 0.0
    %2706 = vmatpush1.msra.mxu0 0.0
    %2707 = vmatprep.subr.mxu0 0.0
    %2708 = vmatpush1.msra.mxu0 0.0
    %2709 = vmatprep.subr.mxu0 0.0
    %2710 = vmatpush1.msra.mxu0 0.0
    %2711 = vmatprep.subr.mxu0 0.0
    %2712 = vmatpush1.msra.mxu0 0.0
    %2713 = vmatprep.subr.mxu0 0.0
    %2714 = vmatpush1.msra.mxu0 0.0
    %2715 = vmatprep.subr.mxu0 0.0
    %2716 = vmatpush1.msra.mxu0 0.0
    %2717 = vmatprep.subr.mxu0 0.0
    %2718 = vmatpush1.msra.mxu0 0.0
    %2719 = vmatprep.subr.mxu0 0.0
    %2720 = vmatpush1.msra.mxu0 0.0
    %2721 = vmatprep.subr.mxu0 0.0
    %2722 = vmatpush1.msra.mxu0 0.0
    %2723 = vmatprep.subr.mxu0 0.0
    %2724 = vmatpush1.msra.mxu0 0.0
    %2725 = vmatprep.subr.mxu0 0.0
    %2726 = vmatpush1.msra.mxu0 0.0
    %2727 = vmatprep.subr.mxu0 0.0
    %2728 = vmatpush1.msra.mxu0 0.0
    %2729 = vmatprep.subr.mxu0 0.0
    %2730 = vmatpush1.msra.mxu0 0.0
    %2731 = vmatprep.subr.mxu0 0.0
    %2732 = vmatpush1.msra.mxu0 0.0
    %2733 = vmatprep.subr.mxu0 0.0
    %2734 = vmatpush1.msra.mxu0 0.0
    %2735 = vmatprep.subr.mxu0 0.0
    %2736 = vmatpush1.msra.mxu0 0.0
    %2737 = vmatprep.subr.mxu0 0.0
    %2738 = vmatpush1.msra.mxu0 0.0
    %2739 = vmatprep.mubr.f32.mxu0 0.0
    %2740 = vmatmul.mubr.f32.gmra.mrb[0].mxu0 %v2673
    %v2741 = vpop.f32.mrb[0].mxu0
    %v2742 = vadd.f32 0.0, %v2741
    %v2743 = vpop.f32.mrb[0].mxu0
    %2744 = vdwg.mxu0
    %s2745 = scalar_lea.vmem %s12, 24
    %v2746 = vld [vmem:[%s2745] sm:$0xff]
    %v2748 = vsel %vm400, %v2669, 0
    %v2751 = vsel %vm400, %v2742, 0
    %2753 = vmatprep.subr.mxu0 0.0
    %2754 = vmatpush1.msra.mxu0 %v2746
    %2755 = vmatprep.subr.mxu0 0.0
    %2756 = vmatpush1.msra.mxu0 0.0
    %2757 = vmatprep.subr.mxu0 0.0
    %2758 = vmatpush1.msra.mxu0 0.0
    %2759 = vmatprep.subr.mxu0 0.0
    %2760 = vmatpush1.msra.mxu0 0.0
    %2761 = vmatprep.subr.mxu0 0.0
    %2762 = vmatpush1.msra.mxu0 0.0
    %2763 = vmatprep.subr.mxu0 0.0
    %2764 = vmatpush1.msra.mxu0 0.0
    %2765 = vmatprep.subr.mxu0 0.0
    %2766 = vmatpush1.msra.mxu0 0.0
    %2767 = vmatprep.subr.mxu0 0.0
    %2768 = vmatpush1.msra.mxu0 0.0
    %2769 = vmatprep.subr.mxu0 0.0
    %2770 = vmatpush1.msra.mxu0 0.0
    %2771 = vmatprep.subr.mxu0 0.0
    %2772 = vmatpush1.msra.mxu0 0.0
    %2773 = vmatprep.subr.mxu0 0.0
    %2774 = vmatpush1.msra.mxu0 0.0
    %2775 = vmatprep.subr.mxu0 0.0
    %2776 = vmatpush1.msra.mxu0 0.0
    %2777 = vmatprep.subr.mxu0 0.0
    %2778 = vmatpush1.msra.mxu0 0.0
    %2779 = vmatprep.subr.mxu0 0.0
    %2780 = vmatpush1.msra.mxu0 0.0
    %2781 = vmatprep.subr.mxu0 0.0
    %2782 = vmatpush1.msra.mxu0 0.0
    %2783 = vmatprep.subr.mxu0 0.0
    %2784 = vmatpush1.msra.mxu0 0.0
    %2785 = vmatprep.subr.mxu0 0.0
    %2786 = vmatpush1.msra.mxu0 0.0
    %2787 = vmatprep.subr.mxu0 0.0
    %2788 = vmatpush1.msra.mxu0 0.0
    %2789 = vmatprep.subr.mxu0 0.0
    %2790 = vmatpush1.msra.mxu0 0.0
    %2791 = vmatprep.subr.mxu0 0.0
    %2792 = vmatpush1.msra.mxu0 0.0
    %2793 = vmatprep.subr.mxu0 0.0
    %2794 = vmatpush1.msra.mxu0 0.0
    %2795 = vmatprep.subr.mxu0 0.0
    %2796 = vmatpush1.msra.mxu0 0.0
    %2797 = vmatprep.subr.mxu0 0.0
    %2798 = vmatpush1.msra.mxu0 0.0
    %2799 = vmatprep.subr.mxu0 0.0
    %2800 = vmatpush1.msra.mxu0 0.0
    %2801 = vmatprep.subr.mxu0 0.0
    %2802 = vmatpush1.msra.mxu0 0.0
    %2803 = vmatprep.subr.mxu0 0.0
    %2804 = vmatpush1.msra.mxu0 0.0
    %2805 = vmatprep.subr.mxu0 0.0
    %2806 = vmatpush1.msra.mxu0 0.0
    %2807 = vmatprep.subr.mxu0 0.0
    %2808 = vmatpush1.msra.mxu0 0.0
    %2809 = vmatprep.subr.mxu0 0.0
    %2810 = vmatpush1.msra.mxu0 0.0
    %2811 = vmatprep.subr.mxu0 0.0
    %2812 = vmatpush1.msra.mxu0 0.0
    %2813 = vmatprep.subr.mxu0 0.0
    %2814 = vmatpush1.msra.mxu0 0.0
    %2815 = vmatprep.subr.mxu0 0.0
    %2816 = vmatpush1.msra.mxu0 0.0
    %2817 = vmatprep.mubr.f32.mxu0 0.0
    %2818 = vmatmul.mubr.f32.gmra.mrb[0].mxu0 %v2748
    %v2819 = vpop.f32.mrb[0].mxu0
    %v2820 = vadd.f32 0.0, %v2819
    %v2821 = vpop.f32.mrb[0].mxu0
    %2822 = vmatprep.mubr.f32.mxu0 0.0
    %2823 = vmatmul.mubr.f32.gmra.mrb[0].mxu0 %v2751
    %v2824 = vpop.f32.mrb[0].mxu0
    %v2825 = vadd.f32 0.0, %v2824
    %v2826 = vpop.f32.mrb[0].mxu0
    %2827 = vdwg.mxu0
    %v2828 = vadd.f32 %v2153, %v2820
    %v2829 = vadd.f32 %v2154, %v2825
    %v2830 = vld [vmem:[%s13] sm:$0x1]
    %v2832 = vlaneseq
    %v2833 = vshrl.u32 %v2832, 7
    %v2834 = vsub.s32 0, %v2833
    %v2835 = vrot.slane %v2830, %v2834
    %v2837 = vadd.f32 %v2828, %v2835
    %v2838 = vadd.f32 %v2829, %v2835
    %v2839 = vadd.f32 %v90, %v2837
    %v2840 = vadd.f32 %v91, %v2838
    %v2841 = vld [vmem:[%s14] sm:$0x1]
    %v2842 = vmul.f32 %v2839, %v2839
    %v2843 = vmul.f32 %v2840, %v2840
    %v2844 = vsel %vm97, %v2842, 0.0
    %2845 = vadd.xlane.f32.xlu0 %v2844
    %v2846 = vpop.xlane.xlu0 %2845
    %v2847 = vsel %vm97, %v2843, 0.0
    %2848 = vadd.xlane.f32.xlu0 %v2847
    %v2849 = vpop.xlane.xlu0 %2848
    %v2850 = vmul.f32 %v2846, %v104
    %v2851 = vmul.f32 %v2849, %v104
    %v2852 = vadd.f32 %v2850, 1e-06
    %v2853 = vadd.f32 %v2851, 1e-06
    %v2854 = vrsqrt.pop %v2852
    %v2855 = vrsqrt.pop %v2853
    %v2856 = vmul.f32 %v2839, %v2854
    %v2857 = vmul.f32 %v2840, %v2855
    %v2859 = vlaneseq
    %v2860 = vshrl.u32 %v2859, 7
    %v2861 = vsub.s32 0, %v2860
    %v2862 = vrot.slane %v2841, %v2861
    %v2864 = vmul.f32 %v2862, %v2856
    %v2865 = vmul.f32 %v2862, %v2857
    %v2866 = vld [vmem:[%s4] sm:$0x1]
    %v2867 = vld [vmem:[%s4 + $0x1] sm:$0x1]
    %v2870 = vlaneseq
    %v2871 = vshrl.u32 %v2870, 7
    %v2872 = vsub.s32 0, %v2871
    %v2873 = vrot.slane %v2866, %v2872
    %v2874 = vlaneseq
    %v2875 = vshrl.u32 %v2874, 7
    %v2876 = vsub.s32 0, %v2875
    %v2877 = vrot.slane %v2867, %v2876
    %v2880 = vld [vmem:[%s15] sm:$0xff]
    %v2881 = vld [vmem:[%s15 + $0x8] sm:$0xff]
    %v2882 = vld [vmem:[%s15 + $0x10] sm:$0xff]
    %v2883 = vld [vmem:[%s15 + $0x18] sm:$0xff]
    %v2884 = vld [vmem:[%s16] sm:$0x1]
    %v2886 = vlaneseq
    %v2887 = vshrl.u32 %v2886, 7
    %v2888 = vsub.s32 0, %v2887
    %v2889 = vrot.slane %v2884, %v2888
    %v2892 = vsel %vm97, %v2864, 0
    %v2895 = vsel %vm97, %v2865, 0
    %2897 = vmatprep.subr.mxu0 0.0
    %2898 = vmatpush1.msra.mxu0 %v2880
    %2899 = vmatprep.subr.mxu0 0.0
    %2900 = vmatpush1.msra.mxu0 %v2881
    %2901 = vmatprep.subr.mxu0 0.0
    %2902 = vmatpush1.msra.mxu0 %v2882
    %2903 = vmatprep.subr.mxu0 0.0
    %2904 = vmatpush1.msra.mxu0 %v2883
    %2905 = vmatprep.subr.mxu0 0.0
    %2906 = vmatpush1.msra.mxu0 0.0
    %2907 = vmatprep.subr.mxu0 0.0
    %2908 = vmatpush1.msra.mxu0 0.0
    %2909 = vmatprep.subr.mxu0 0.0
    %2910 = vmatpush1.msra.mxu0 0.0
    %2911 = vmatprep.subr.mxu0 0.0
    %2912 = vmatpush1.msra.mxu0 0.0
    %2913 = vmatprep.subr.mxu0 0.0
    %2914 = vmatpush1.msra.mxu0 0.0
    %2915 = vmatprep.subr.mxu0 0.0
    %2916 = vmatpush1.msra.mxu0 0.0
    %2917 = vmatprep.subr.mxu0 0.0
    %2918 = vmatpush1.msra.mxu0 0.0
    %2919 = vmatprep.subr.mxu0 0.0
    %2920 = vmatpush1.msra.mxu0 0.0
    %2921 = vmatprep.subr.mxu0 0.0
    %2922 = vmatpush1.msra.mxu0 0.0
    %2923 = vmatprep.subr.mxu0 0.0
    %2924 = vmatpush1.msra.mxu0 0.0
    %2925 = vmatprep.subr.mxu0 0.0
    %2926 = vmatpush1.msra.mxu0 0.0
    %2927 = vmatprep.subr.mxu0 0.0
    %2928 = vmatpush1.msra.mxu0 0.0
    %2929 = vmatprep.subr.mxu0 0.0
    %2930 = vmatpush1.msra.mxu0 0.0
    %2931 = vmatprep.subr.mxu0 0.0
    %2932 = vmatpush1.msra.mxu0 0.0
    %2933 = vmatprep.subr.mxu0 0.0
    %2934 = vmatpush1.msra.mxu0 0.0
    %2935 = vmatprep.subr.mxu0 0.0
    %2936 = vmatpush1.msra.mxu0 0.0
    %2937 = vmatprep.subr.mxu0 0.0
    %2938 = vmatpush1.msra.mxu0 0.0
    %2939 = vmatprep.subr.mxu0 0.0
    %2940 = vmatpush1.msra.mxu0 0.0
    %2941 = vmatprep.subr.mxu0 0.0
    %2942 = vmatpush1.msra.mxu0 0.0
    %2943 = vmatprep.subr.mxu0 0.0
    %2944 = vmatpush1.msra.mxu0 0.0
    %2945 = vmatprep.subr.mxu0 0.0
    %2946 = vmatpush1.msra.mxu0 0.0
    %2947 = vmatprep.subr.mxu0 0.0
    %2948 = vmatpush1.msra.mxu0 0.0
    %2949 = vmatprep.subr.mxu0 0.0
    %2950 = vmatpush1.msra.mxu0 0.0
    %2951 = vmatprep.subr.mxu0 0.0
    %2952 = vmatpush1.msra.mxu0 0.0
    %2953 = vmatprep.subr.mxu0 0.0
    %2954 = vmatpush1.msra.mxu0 0.0
    %2955 = vmatprep.subr.mxu0 0.0
    %2956 = vmatpush1.msra.mxu0 0.0
    %2957 = vmatprep.subr.mxu0 0.0
    %2958 = vmatpush1.msra.mxu0 0.0
    %2959 = vmatprep.subr.mxu0 0.0
    %2960 = vmatpush1.msra.mxu0 0.0
    %2961 = vmatprep.mubr.f32.mxu0 0.0
    %2962 = vmatmul.mubr.f32.gmra.mrb[0].mxu0 %v2892
    %v2963 = vpop.f32.mrb[0].mxu0
    %v2964 = vadd.f32 %v2889, %v2963
    %v2965 = vpop.f32.mrb[0].mxu0
    %2966 = vmatprep.mubr.f32.mxu0 0.0
    %2967 = vmatmul.mubr.f32.gmra.mrb[0].mxu0 %v2895
    %v2968 = vpop.f32.mrb[0].mxu0
    %v2969 = vadd.f32 %v2889, %v2968
    %v2970 = vpop.f32.mrb[0].mxu0
    %2971 = vdwg.mxu0
    %v2972 = vld [vmem:[%s17] sm:$0xff]
    %v2973 = vld [vmem:[%s17 + $0x8] sm:$0xff]
    %v2974 = vld [vmem:[%s17 + $0x10] sm:$0xff]
    %v2975 = vld [vmem:[%s17 + $0x18] sm:$0xff]
    %v2976 = vld [vmem:[%s18] sm:$0x1]
    %v2978 = vlaneseq
    %v2979 = vshrl.u32 %v2978, 7
    %v2980 = vsub.s32 0, %v2979
    %v2981 = vrot.slane %v2976, %v2980
    %v2984 = vsel %vm97, %v92, 0
    %v2987 = vsel %vm97, %v93, 0
    %2989 = vmatprep.subr.mxu0 0.0
    %2990 = vmatpush1.msra.mxu0 %v2972
    %2991 = vmatprep.subr.mxu0 0.0
    %2992 = vmatpush1.msra.mxu0 %v2973
    %2993 = vmatprep.subr.mxu0 0.0
    %2994 = vmatpush1.msra.mxu0 %v2974
    %2995 = vmatprep.subr.mxu0 0.0
    %2996 = vmatpush1.msra.mxu0 %v2975
    %2997 = vmatprep.subr.mxu0 0.0
    %2998 = vmatpush1.msra.mxu0 0.0
    %2999 = vmatprep.subr.mxu0 0.0
    %3000 = vmatpush1.msra.mxu0 0.0
    %3001 = vmatprep.subr.mxu0 0.0
    %3002 = vmatpush1.msra.mxu0 0.0
    %3003 = vmatprep.subr.mxu0 0.0
    %3004 = vmatpush1.msra.mxu0 0.0
    %3005 = vmatprep.subr.mxu0 0.0
    %3006 = vmatpush1.msra.mxu0 0.0
    %3007 = vmatprep.subr.mxu0 0.0
    %3008 = vmatpush1.msra.mxu0 0.0
    %3009 = vmatprep.subr.mxu0 0.0
    %3010 = vmatpush1.msra.mxu0 0.0
    %3011 = vmatprep.subr.mxu0 0.0
    %3012 = vmatpush1.msra.mxu0 0.0
    %3013 = vmatprep.subr.mxu0 0.0
    %3014 = vmatpush1.msra.mxu0 0.0
    %3015 = vmatprep.subr.mxu0 0.0
    %3016 = vmatpush1.msra.mxu0 0.0
    %3017 = vmatprep.subr.mxu0 0.0
    %3018 = vmatpush1.msra.mxu0 0.0
    %3019 = vmatprep.subr.mxu0 0.0
    %3020 = vmatpush1.msra.mxu0 0.0
    %3021 = vmatprep.subr.mxu0 0.0
    %3022 = vmatpush1.msra.mxu0 0.0
    %3023 = vmatprep.subr.mxu0 0.0
    %3024 = vmatpush1.msra.mxu0 0.0
    %3025 = vmatprep.subr.mxu0 0.0
    %3026 = vmatpush1.msra.mxu0 0.0
    %3027 = vmatprep.subr.mxu0 0.0
    %3028 = vmatpush1.msra.mxu0 0.0
    %3029 = vmatprep.subr.mxu0 0.0
    %3030 = vmatpush1.msra.mxu0 0.0
    %3031 = vmatprep.subr.mxu0 0.0
    %3032 = vmatpush1.msra.mxu0 0.0
    %3033 = vmatprep.subr.mxu0 0.0
    %3034 = vmatpush1.msra.mxu0 0.0
    %3035 = vmatprep.subr.mxu0 0.0
    %3036 = vmatpush1.msra.mxu0 0.0
    %3037 = vmatprep.subr.mxu0 0.0
    %3038 = vmatpush1.msra.mxu0 0.0
    %3039 = vmatprep.subr.mxu0 0.0
    %3040 = vmatpush1.msra.mxu0 0.0
    %3041 = vmatprep.subr.mxu0 0.0
    %3042 = vmatpush1.msra.mxu0 0.0
    %3043 = vmatprep.subr.mxu0 0.0
    %3044 = vmatpush1.msra.mxu0 0.0
    %3045 = vmatprep.subr.mxu0 0.0
    %3046 = vmatpush1.msra.mxu0 0.0
    %3047 = vmatprep.subr.mxu0 0.0
    %3048 = vmatpush1.msra.mxu0 0.0
    %3049 = vmatprep.subr.mxu0 0.0
    %3050 = vmatpush1.msra.mxu0 0.0
    %3051 = vmatprep.subr.mxu0 0.0
    %3052 = vmatpush1.msra.mxu0 0.0
    %3053 = vmatprep.mubr.f32.mxu0 0.0
    %3054 = vmatmul.mubr.f32.gmra.mrb[0].mxu0 %v2984
    %v3055 = vpop.f32.mrb[0].mxu0
    %v3056 = vadd.f32 %v2981, %v3055
    %v3057 = vpop.f32.mrb[0].mxu0
    %3058 = vmatprep.mubr.f32.mxu0 0.0
    %3059 = vmatmul.mubr.f32.gmra.mrb[0].mxu0 %v2987
    %v3060 = vpop.f32.mrb[0].mxu0
    %v3061 = vadd.f32 %v2981, %v3060
    %v3062 = vpop.f32.mrb[0].mxu0
    %3063 = vdwg.mxu0
    %v3064 = vld [vmem:[%s19] sm:$0xff]
    %v3065 = vld [vmem:[%s19 + $0x8] sm:$0xff]
    %v3066 = vld [vmem:[%s19 + $0x10] sm:$0xff]
    %v3067 = vld [vmem:[%s19 + $0x18] sm:$0xff]
    %v3068 = vld [vmem:[%s20] sm:$0x1]
    %v3070 = vlaneseq
    %v3071 = vshrl.u32 %v3070, 7
    %v3072 = vsub.s32 0, %v3071
    %v3073 = vrot.slane %v3068, %v3072
    %3075 = vmatprep.subr.mxu0 0.0
    %3076 = vmatpush1.msra.mxu0 %v3064
    %3077 = vmatprep.subr.mxu0 0.0
    %3078 = vmatpush1.msra.mxu0 %v3065
    %3079 = vmatprep.subr.mxu0 0.0
    %3080 = vmatpush1.msra.mxu0 %v3066
    %3081 = vmatprep.subr.mxu0 0.0
    %3082 = vmatpush1.msra.mxu0 %v3067
    %3083 = vmatprep.subr.mxu0 0.0
    %3084 = vmatpush1.msra.mxu0 0.0
    %3085 = vmatprep.subr.mxu0 0.0
    %3086 = vmatpush1.msra.mxu0 0.0
    %3087 = vmatprep.subr.mxu0 0.0
    %3088 = vmatpush1.msra.mxu0 0.0
    %3089 = vmatprep.subr.mxu0 0.0
    %3090 = vmatpush1.msra.mxu0 0.0
    %3091 = vmatprep.subr.mxu0 0.0
    %3092 = vmatpush1.msra.mxu0 0.0
    %3093 = vmatprep.subr.mxu0 0.0
    %3094 = vmatpush1.msra.mxu0 0.0
    %3095 = vmatprep.subr.mxu0 0.0
    %3096 = vmatpush1.msra.mxu0 0.0
    %3097 = vmatprep.subr.mxu0 0.0
    %3098 = vmatpush1.msra.mxu0 0.0
    %3099 = vmatprep.subr.mxu0 0.0
    %3100 = vmatpush1.msra.mxu0 0.0
    %3101 = vmatprep.subr.mxu0 0.0
    %3102 = vmatpush1.msra.mxu0 0.0
    %3103 = vmatprep.subr.mxu0 0.0
    %3104 = vmatpush1.msra.mxu0 0.0
    %3105 = vmatprep.subr.mxu0 0.0
    %3106 = vmatpush1.msra.mxu0 0.0
    %3107 = vmatprep.subr.mxu0 0.0
    %3108 = vmatpush1.msra.mxu0 0.0
    %3109 = vmatprep.subr.mxu0 0.0
    %3110 = vmatpush1.msra.mxu0 0.0
    %3111 = vmatprep.subr.mxu0 0.0
    %3112 = vmatpush1.msra.mxu0 0.0
    %3113 = vmatprep.subr.mxu0 0.0
    %3114 = vmatpush1.msra.mxu0 0.0
    %3115 = vmatprep.subr.mxu0 0.0
    %3116 = vmatpush1.msra.mxu0 0.0
    %3117 = vmatprep.subr.mxu0 0.0
    %3118 = vmatpush1.msra.mxu0 0.0
    %3119 = vmatprep.subr.mxu0 0.0
    %3120 = vmatpush1.msra.mxu0 0.0
    %3121 = vmatprep.subr.mxu0 0.0
    %3122 = vmatpush1.msra.mxu0 0.0
    %3123 = vmatprep.subr.mxu0 0.0
    %3124 = vmatpush1.msra.mxu0 0.0
    %3125 = vmatprep.subr.mxu0 0.0
    %3126 = vmatpush1.msra.mxu0 0.0
    %3127 = vmatprep.subr.mxu0 0.0
    %3128 = vmatpush1.msra.mxu0 0.0
    %3129 = vmatprep.subr.mxu0 0.0
    %3130 = vmatpush1.msra.mxu0 0.0
    %3131 = vmatprep.subr.mxu0 0.0
    %3132 = vmatpush1.msra.mxu0 0.0
    %3133 = vmatprep.subr.mxu0 0.0
    %3134 = vmatpush1.msra.mxu0 0.0
    %3135 = vmatprep.subr.mxu0 0.0
    %3136 = vmatpush1.msra.mxu0 0.0
    %3137 = vmatprep.subr.mxu0 0.0
    %3138 = vmatpush1.msra.mxu0 0.0
    %3139 = vmatprep.mubr.f32.mxu0 0.0
    %3140 = vmatmul.mubr.f32.gmra.mrb[0].mxu0 %v2984
    %v3141 = vpop.f32.mrb[0].mxu0
    %v3142 = vadd.f32 %v3073, %v3141
    %v3143 = vpop.f32.mrb[0].mxu0
    %3144 = vmatprep.mubr.f32.mxu0 0.0
    %3145 = vmatmul.mubr.f32.gmra.mrb[0].mxu0 %v2987
    %v3146 = vpop.f32.mrb[0].mxu0
    %v3147 = vadd.f32 %v3073, %v3146
    %v3148 = vpop.f32.mrb[0].mxu0
    %3149 = vdwg.mxu0
    %v3151 = vsel %vm400, %v2964, 0
    %v3154 = vsel %vm400, %v3056, 0
    %3156 = vmatprep.subr.mxu0 0.0
    %3157 = vmatpush1.xpose.msra.mxu0 %v3154
    %3158 = vmatprep.subr.mxu0 0.0
    %3159 = vmatpush1.xpose.msra.mxu0 0.0
    %3160 = vmatprep.subr.mxu0 0.0
    %3161 = vmatpush1.xpose.msra.mxu0 0.0
    %3162 = vmatprep.subr.mxu0 0.0
    %3163 = vmatpush1.xpose.msra.mxu0 0.0
    %3164 = vmatprep.subr.mxu0 0.0
    %3165 = vmatpush1.xpose.msra.mxu0 0.0
    %3166 = vmatprep.subr.mxu0 0.0
    %3167 = vmatpush1.xpose.msra.mxu0 0.0
    %3168 = vmatprep.subr.mxu0 0.0
    %3169 = vmatpush1.xpose.msra.mxu0 0.0
    %3170 = vmatprep.subr.mxu0 0.0
    %3171 = vmatpush1.xpose.msra.mxu0 0.0
    %3172 = vmatprep.subr.mxu0 0.0
    %3173 = vmatpush1.xpose.msra.mxu0 0.0
    %3174 = vmatprep.subr.mxu0 0.0
    %3175 = vmatpush1.xpose.msra.mxu0 0.0
    %3176 = vmatprep.subr.mxu0 0.0
    %3177 = vmatpush1.xpose.msra.mxu0 0.0
    %3178 = vmatprep.subr.mxu0 0.0
    %3179 = vmatpush1.xpose.msra.mxu0 0.0
    %3180 = vmatprep.subr.mxu0 0.0
    %3181 = vmatpush1.xpose.msra.mxu0 0.0
    %3182 = vmatprep.subr.mxu0 0.0
    %3183 = vmatpush1.xpose.msra.mxu0 0.0
    %3184 = vmatprep.subr.mxu0 0.0
    %3185 = vmatpush1.xpose.msra.mxu0 0.0
    %3186 = vmatprep.subr.mxu0 0.0
    %3187 = vmatpush1.xpose.msra.mxu0 0.0
    %3188 = vmatprep.subr.mxu0 0.0
    %3189 = vmatpush1.xpose.msra.mxu0 0.0
    %3190 = vmatprep.subr.mxu0 0.0
    %3191 = vmatpush1.xpose.msra.mxu0 0.0
    %3192 = vmatprep.subr.mxu0 0.0
    %3193 = vmatpush1.xpose.msra.mxu0 0.0
    %3194 = vmatprep.subr.mxu0 0.0
    %3195 = vmatpush1.xpose.msra.mxu0 0.0
    %3196 = vmatprep.subr.mxu0 0.0
    %3197 = vmatpush1.xpose.msra.mxu0 0.0
    %3198 = vmatprep.subr.mxu0 0.0
    %3199 = vmatpush1.xpose.msra.mxu0 0.0
    %3200 = vmatprep.subr.mxu0 0.0
    %3201 = vmatpush1.xpose.msra.mxu0 0.0
    %3202 = vmatprep.subr.mxu0 0.0
    %3203 = vmatpush1.xpose.msra.mxu0 0.0
    %3204 = vmatprep.subr.mxu0 0.0
    %3205 = vmatpush1.xpose.msra.mxu0 0.0
    %3206 = vmatprep.subr.mxu0 0.0
    %3207 = vmatpush1.xpose.msra.mxu0 0.0
    %3208 = vmatprep.subr.mxu0 0.0
    %3209 = vmatpush1.xpose.msra.mxu0 0.0
    %3210 = vmatprep.subr.mxu0 0.0
    %3211 = vmatpush1.xpose.msra.mxu0 0.0
    %3212 = vmatprep.subr.mxu0 0.0
    %3213 = vmatpush1.xpose.msra.mxu0 0.0
    %3214 = vmatprep.subr.mxu0 0.0
    %3215 = vmatpush1.xpose.msra.mxu0 0.0
    %3216 = vmatprep.subr.mxu0 0.0
    %3217 = vmatpush1.xpose.msra.mxu0 0.0
    %3218 = vmatprep.subr.mxu0 0.0
    %3219 = vmatpush1.xpose.msra.mxu0 0.0
    %3220 = vmatprep.mubr.f32.mxu0 0.0
    %3221 = vmatmul.mubr.f32.gmra.mrb[0].mxu0 %v3151
    %v3222 = vpop.f32.mrb[0].mxu0
    %v3223 = vadd.f32 %v2873, %v3222
    %v3224 = vpop.f32.mrb[0].mxu0
    %3225 = vdwg.mxu0
    %v3227 = vsel %vm400, %v2969, 0
    %v3230 = vsel %vm400, %v3061, 0
    %3232 = vmatprep.subr.mxu0 0.0
    %3233 = vmatpush1.xpose.msra.mxu0 %v3230
    %3234 = vmatprep.subr.mxu0 0.0
    %3235 = vmatpush1.xpose.msra.mxu0 0.0
    %3236 = vmatprep.subr.mxu0 0.0
    %3237 = vmatpush1.xpose.msra.mxu0 0.0
    %3238 = vmatprep.subr.mxu0 0.0
    %3239 = vmatpush1.xpose.msra.mxu0 0.0
    %3240 = vmatprep.subr.mxu0 0.0
    %3241 = vmatpush1.xpose.msra.mxu0 0.0
    %3242 = vmatprep.subr.mxu0 0.0
    %3243 = vmatpush1.xpose.msra.mxu0 0.0
    %3244 = vmatprep.subr.mxu0 0.0
    %3245 = vmatpush1.xpose.msra.mxu0 0.0
    %3246 = vmatprep.subr.mxu0 0.0
    %3247 = vmatpush1.xpose.msra.mxu0 0.0
    %3248 = vmatprep.subr.mxu0 0.0
    %3249 = vmatpush1.xpose.msra.mxu0 0.0
    %3250 = vmatprep.subr.mxu0 0.0
    %3251 = vmatpush1.xpose.msra.mxu0 0.0
    %3252 = vmatprep.subr.mxu0 0.0
    %3253 = vmatpush1.xpose.msra.mxu0 0.0
    %3254 = vmatprep.subr.mxu0 0.0
    %3255 = vmatpush1.xpose.msra.mxu0 0.0
    %3256 = vmatprep.subr.mxu0 0.0
    %3257 = vmatpush1.xpose.msra.mxu0 0.0
    %3258 = vmatprep.subr.mxu0 0.0
    %3259 = vmatpush1.xpose.msra.mxu0 0.0
    %3260 = vmatprep.subr.mxu0 0.0
    %3261 = vmatpush1.xpose.msra.mxu0 0.0
    %3262 = vmatprep.subr.mxu0 0.0
    %3263 = vmatpush1.xpose.msra.mxu0 0.0
    %3264 = vmatprep.subr.mxu0 0.0
    %3265 = vmatpush1.xpose.msra.mxu0 0.0
    %3266 = vmatprep.subr.mxu0 0.0
    %3267 = vmatpush1.xpose.msra.mxu0 0.0
    %3268 = vmatprep.subr.mxu0 0.0
    %3269 = vmatpush1.xpose.msra.mxu0 0.0
    %3270 = vmatprep.subr.mxu0 0.0
    %3271 = vmatpush1.xpose.msra.mxu0 0.0
    %3272 = vmatprep.subr.mxu0 0.0
    %3273 = vmatpush1.xpose.msra.mxu0 0.0
    %3274 = vmatprep.subr.mxu0 0.0
    %3275 = vmatpush1.xpose.msra.mxu0 0.0
    %3276 = vmatprep.subr.mxu0 0.0
    %3277 = vmatpush1.xpose.msra.mxu0 0.0
    %3278 = vmatprep.subr.mxu0 0.0
    %3279 = vmatpush1.xpose.msra.mxu0 0.0
    %3280 = vmatprep.subr.mxu0 0.0
    %3281 = vmatpush1.xpose.msra.mxu0 0.0
    %3282 = vmatprep.subr.mxu0 0.0
    %3283 = vmatpush1.xpose.msra.mxu0 0.0
    %3284 = vmatprep.subr.mxu0 0.0
    %3285 = vmatpush1.xpose.msra.mxu0 0.0
    %3286 = vmatprep.subr.mxu0 0.0
    %3287 = vmatpush1.xpose.msra.mxu0 0.0
    %3288 = vmatprep.subr.mxu0 0.0
    %3289 = vmatpush1.xpose.msra.mxu0 0.0
    %3290 = vmatprep.subr.mxu0 0.0
    %3291 = vmatpush1.xpose.msra.mxu0 0.0
    %3292 = vmatprep.subr.mxu0 0.0
    %3293 = vmatpush1.xpose.msra.mxu0 0.0
    %3294 = vmatprep.subr.mxu0 0.0
    %3295 = vmatpush1.xpose.msra.mxu0 0.0
    %3296 = vmatprep.mubr.f32.mxu0 0.0
    %3297 = vmatmul.mubr.f32.gmra.mrb[0].mxu0 %v3227
    %v3298 = vpop.f32.mrb[0].mxu0
    %v3299 = vadd.f32 %v2877, %v3298
    %v3300 = vpop.f32.mrb[0].mxu0
    %3301 = vdwg.mxu0
    %v3302 = vmul.f32 %v3223, 0.015625
    %v3303 = vmul.f32 %v3299, 0.015625
    %v3304 = vsel %vm400, %v3302, -inf
    %3305 = vmax.xlane.f32.xlu0 %v3304
    %v3306 = vpop.xlane.xlu0 %3305
    %v3307 = vsel %vm400, %v3303, -inf
    %3308 = vmax.xlane.f32.xlu0 %v3307
    %v3309 = vpop.xlane.xlu0 %3308
    %v3310 = vsub.f32 %v3302, %v3306
    %v3311 = vsub.f32 %v3303, %v3309
    %v3312 = vmul.f32 %v3310, 1.442695
    %v3313 = vpow.pop %v3312
    %v3314 = vmul.f32 %v3311, 1.442695
    %v3315 = vpow.pop %v3314
    %v3316 = vsel %vm400, %v3313, 0.0
    %3317 = vadd.xlane.f32.xlu0 %v3316
    %v3318 = vpop.xlane.xlu0 %3317
    %v3319 = vsel %vm400, %v3315, 0.0
    %3320 = vadd.xlane.f32.xlu0 %v3319
    %v3321 = vpop.xlane.xlu0 %3320
    %v3322 = vrcp.pop %v3318
    %v3323 = vrcp.pop %v3321
    %v3324 = vmul.f32 %v3313, %v3322
    %v3325 = vmul.f32 %v3315, %v3323
    %v3327 = vsel %vm400, %v3324, 0
    %3329 = vmatprep.subr.mxu0 0.0
    %3330 = vmatpush1.msra.mxu0 %v3142
    %3331 = vmatprep.subr.mxu0 0.0
    %3332 = vmatpush1.msra.mxu0 0.0
    %3333 = vmatprep.subr.mxu0 0.0
    %3334 = vmatpush1.msra.mxu0 0.0
    %3335 = vmatprep.subr.mxu0 0.0
    %3336 = vmatpush1.msra.mxu0 0.0
    %3337 = vmatprep.subr.mxu0 0.0
    %3338 = vmatpush1.msra.mxu0 0.0
    %3339 = vmatprep.subr.mxu0 0.0
    %3340 = vmatpush1.msra.mxu0 0.0
    %3341 = vmatprep.subr.mxu0 0.0
    %3342 = vmatpush1.msra.mxu0 0.0
    %3343 = vmatprep.subr.mxu0 0.0
    %3344 = vmatpush1.msra.mxu0 0.0
    %3345 = vmatprep.subr.mxu0 0.0
    %3346 = vmatpush1.msra.mxu0 0.0
    %3347 = vmatprep.subr.mxu0 0.0
    %3348 = vmatpush1.msra.mxu0 0.0
    %3349 = vmatprep.subr.mxu0 0.0
    %3350 = vmatpush1.msra.mxu0 0.0
    %3351 = vmatprep.subr.mxu0 0.0
    %3352 = vmatpush1.msra.mxu0 0.0
    %3353 = vmatprep.subr.mxu0 0.0
    %3354 = vmatpush1.msra.mxu0 0.0
    %3355 = vmatprep.subr.mxu0 0.0
    %3356 = vmatpush1.msra.mxu0 0.0
    %3357 = vmatprep.subr.mxu0 0.0
    %3358 = vmatpush1.msra.mxu0 0.0
    %3359 = vmatprep.subr.mxu0 0.0
    %3360 = vmatpush1.msra.mxu0 0.0
    %3361 = vmatprep.subr.mxu0 0.0
    %3362 = vmatpush1.msra.mxu0 0.0
    %3363 = vmatprep.subr.mxu0 0.0
    %3364 = vmatpush1.msra.mxu0 0.0
    %3365 = vmatprep.subr.mxu0 0.0
    %3366 = vmatpush1.msra.mxu0 0.0
    %3367 = vmatprep.subr.mxu0 0.0
    %3368 = vmatpush1.msra.mxu0 0.0
    %3369 = vmatprep.subr.mxu0 0.0
    %3370 = vmatpush1.msra.mxu0 0.0
    %3371 = vmatprep.subr.mxu0 0.0
    %3372 = vmatpush1.msra.mxu0 0.0
    %3373 = vmatprep.subr.mxu0 0.0
    %3374 = vmatpush1.msra.mxu0 0.0
    %3375 = vmatprep.subr.mxu0 0.0
    %3376 = vmatpush1.msra.mxu0 0.0
    %3377 = vmatprep.subr.mxu0 0.0
    %3378 = vmatpush1.msra.mxu0 0.0
    %3379 = vmatprep.subr.mxu0 0.0
    %3380 = vmatpush1.msra.mxu0 0.0
    %3381 = vmatprep.subr.mxu0 0.0
    %3382 = vmatpush1.msra.mxu0 0.0
    %3383 = vmatprep.subr.mxu0 0.0
    %3384 = vmatpush1.msra.mxu0 0.0
    %3385 = vmatprep.subr.mxu0 0.0
    %3386 = vmatpush1.msra.mxu0 0.0
    %3387 = vmatprep.subr.mxu0 0.0
    %3388 = vmatpush1.msra.mxu0 0.0
    %3389 = vmatprep.subr.mxu0 0.0
    %3390 = vmatpush1.msra.mxu0 0.0
    %3391 = vmatprep.subr.mxu0 0.0
    %3392 = vmatpush1.msra.mxu0 0.0
    %3393 = vmatprep.mubr.f32.mxu0 0.0
    %3394 = vmatmul.mubr.f32.gmra.mrb[0].mxu0 %v3327
    %v3395 = vpop.f32.mrb[0].mxu0
    %v3396 = vadd.f32 0.0, %v3395
    %v3397 = vpop.f32.mrb[0].mxu0
    %3398 = vdwg.mxu0
    %v3400 = vsel %vm400, %v3325, 0
    %3402 = vmatprep.subr.mxu0 0.0
    %3403 = vmatpush1.msra.mxu0 %v3147
    %3404 = vmatprep.subr.mxu0 0.0
    %3405 = vmatpush1.msra.mxu0 0.0
    %3406 = vmatprep.subr.mxu0 0.0
    %3407 = vmatpush1.msra.mxu0 0.0
    %3408 = vmatprep.subr.mxu0 0.0
    %3409 = vmatpush1.msra.mxu0 0.0
    %3410 = vmatprep.subr.mxu0 0.0
    %3411 = vmatpush1.msra.mxu0 0.0
    %3412 = vmatprep.subr.mxu0 0.0
    %3413 = vmatpush1.msra.mxu0 0.0
    %3414 = vmatprep.subr.mxu0 0.0
    %3415 = vmatpush1.msra.mxu0 0.0
    %3416 = vmatprep.subr.mxu0 0.0
    %3417 = vmatpush1.msra.mxu0 0.0
    %3418 = vmatprep.subr.mxu0 0.0
    %3419 = vmatpush1.msra.mxu0 0.0
    %3420 = vmatprep.subr.mxu0 0.0
    %3421 = vmatpush1.msra.mxu0 0.0
    %3422 = vmatprep.subr.mxu0 0.0
    %3423 = vmatpush1.msra.mxu0 0.0
    %3424 = vmatprep.subr.mxu0 0.0
    %3425 = vmatpush1.msra.mxu0 0.0
    %3426 = vmatprep.subr.mxu0 0.0
    %3427 = vmatpush1.msra.mxu0 0.0
    %3428 = vmatprep.subr.mxu0 0.0
    %3429 = vmatpush1.msra.mxu0 0.0
    %3430 = vmatprep.subr.mxu0 0.0
    %3431 = vmatpush1.msra.mxu0 0.0
    %3432 = vmatprep.subr.mxu0 0.0
    %3433 = vmatpush1.msra.mxu0 0.0
    %3434 = vmatprep.subr.mxu0 0.0
    %3435 = vmatpush1.msra.mxu0 0.0
    %3436 = vmatprep.subr.mxu0 0.0
    %3437 = vmatpush1.msra.mxu0 0.0
    %3438 = vmatprep.subr.mxu0 0.0
    %3439 = vmatpush1.msra.mxu0 0.0
    %3440 = vmatprep.subr.mxu0 0.0
    %3441 = vmatpush1.msra.mxu0 0.0
    %3442 = vmatprep.subr.mxu0 0.0
    %3443 = vmatpush1.msra.mxu0 0.0
    %3444 = vmatprep.subr.mxu0 0.0
    %3445 = vmatpush1.msra.mxu0 0.0
    %3446 = vmatprep.subr.mxu0 0.0
    %3447 = vmatpush1.msra.mxu0 0.0
    %3448 = vmatprep.subr.mxu0 0.0
    %3449 = vmatpush1.msra.mxu0 0.0
    %3450 = vmatprep.subr.mxu0 0.0
    %3451 = vmatpush1.msra.mxu0 0.0
    %3452 = vmatprep.subr.mxu0 0.0
    %3453 = vmatpush1.msra.mxu0 0.0
    %3454 = vmatprep.subr.mxu0 0.0
    %3455 = vmatpush1.msra.mxu0 0.0
    %3456 = vmatprep.subr.mxu0 0.0
    %3457 = vmatpush1.msra.mxu0 0.0
    %3458 = vmatprep.subr.mxu0 0.0
    %3459 = vmatpush1.msra.mxu0 0.0
    %3460 = vmatprep.subr.mxu0 0.0
    %3461 = vmatpush1.msra.mxu0 0.0
    %3462 = vmatprep.subr.mxu0 0.0
    %3463 = vmatpush1.msra.mxu0 0.0
    %3464 = vmatprep.subr.mxu0 0.0
    %3465 = vmatpush1.msra.mxu0 0.0
    %3466 = vmatprep.mubr.f32.mxu0 0.0
    %3467 = vmatmul.mubr.f32.gmra.mrb[0].mxu0 %v3400
    %v3468 = vpop.f32.mrb[0].mxu0
    %v3469 = vadd.f32 0.0, %v3468
    %v3470 = vpop.f32.mrb[0].mxu0
    %3471 = vdwg.mxu0
    %v3472 = vld [vmem:[%s21] sm:$0xff]
    %s3473 = scalar_lea.vmem %s15, 32
    %v3474 = vld [vmem:[%s3473] sm:$0xff]
    %v3475 = vld [vmem:[%s3473 + $0x8] sm:$0xff]
    %v3476 = vld [vmem:[%s3473 + $0x10] sm:$0xff]
    %v3477 = vld [vmem:[%s3473 + $0x18] sm:$0xff]
    %s3478 = scalar_lea.vmem %s16, 1
    %v3479 = vld [vmem:[%s3478] sm:$0x1]
    %v3481 = vlaneseq
    %v3482 = vshrl.u32 %v3481, 7
    %v3483 = vsub.s32 0, %v3482
    %v3484 = vrot.slane %v3479, %v3483
    %3486 = vmatprep.subr.mxu0 0.0
    %3487 = vmatpush1.msra.mxu0 %v3474
    %3488 = vmatprep.subr.mxu0 0.0
    %3489 = vmatpush1.msra.mxu0 %v3475
    %3490 = vmatprep.subr.mxu0 0.0
    %3491 = vmatpush1.msra.mxu0 %v3476
    %3492 = vmatprep.subr.mxu0 0.0
    %3493 = vmatpush1.msra.mxu0 %v3477
    %3494 = vmatprep.subr.mxu0 0.0
    %3495 = vmatpush1.msra.mxu0 0.0
    %3496 = vmatprep.subr.mxu0 0.0
    %3497 = vmatpush1.msra.mxu0 0.0
    %3498 = vmatprep.subr.mxu0 0.0
    %3499 = vmatpush1.msra.mxu0 0.0
    %3500 = vmatprep.subr.mxu0 0.0
    %3501 = vmatpush1.msra.mxu0 0.0
    %3502 = vmatprep.subr.mxu0 0.0
    %3503 = vmatpush1.msra.mxu0 0.0
    %3504 = vmatprep.subr.mxu0 0.0
    %3505 = vmatpush1.msra.mxu0 0.0
    %3506 = vmatprep.subr.mxu0 0.0
    %3507 = vmatpush1.msra.mxu0 0.0
    %3508 = vmatprep.subr.mxu0 0.0
    %3509 = vmatpush1.msra.mxu0 0.0
    %3510 = vmatprep.subr.mxu0 0.0
    %3511 = vmatpush1.msra.mxu0 0.0
    %3512 = vmatprep.subr.mxu0 0.0
    %3513 = vmatpush1.msra.mxu0 0.0
    %3514 = vmatprep.subr.mxu0 0.0
    %3515 = vmatpush1.msra.mxu0 0.0
    %3516 = vmatprep.subr.mxu0 0.0
    %3517 = vmatpush1.msra.mxu0 0.0
    %3518 = vmatprep.subr.mxu0 0.0
    %3519 = vmatpush1.msra.mxu0 0.0
    %3520 = vmatprep.subr.mxu0 0.0
    %3521 = vmatpush1.msra.mxu0 0.0
    %3522 = vmatprep.subr.mxu0 0.0
    %3523 = vmatpush1.msra.mxu0 0.0
    %3524 = vmatprep.subr.mxu0 0.0
    %3525 = vmatpush1.msra.mxu0 0.0
    %3526 = vmatprep.subr.mxu0 0.0
    %3527 = vmatpush1.msra.mxu0 0.0
    %3528 = vmatprep.subr.mxu0 0.0
    %3529 = vmatpush1.msra.mxu0 0.0
    %3530 = vmatprep.subr.mxu0 0.0
    %3531 = vmatpush1.msra.mxu0 0.0
    %3532 = vmatprep.subr.mxu0 0.0
    %3533 = vmatpush1.msra.mxu0 0.0
    %3534 = vmatprep.subr.mxu0 0.0
    %3535 = vmatpush1.msra.mxu0 0.0
    %3536 = vmatprep.subr.mxu0 0.0
    %3537 = vmatpush1.msra.mxu0 0.0
    %3538 = vmatprep.subr.mxu0 0.0
    %3539 = vmatpush1.msra.mxu0 0.0
    %3540 = vmatprep.subr.mxu0 0.0
    %3541 = vmatpush1.msra.mxu0 0.0
    %3542 = vmatprep.subr.mxu0 0.0
    %3543 = vmatpush1.msra.mxu0 0.0
    %3544 = vmatprep.subr.mxu0 0.0
    %3545 = vmatpush1.msra.mxu0 0.0
    %3546 = vmatprep.subr.mxu0 0.0
    %3547 = vmatpush1.msra.mxu0 0.0
    %3548 = vmatprep.subr.mxu0 0.0
    %3549 = vmatpush1.msra.mxu0 0.0
    %3550 = vmatprep.mubr.f32.mxu0 0.0
    %3551 = vmatmul.mubr.f32.gmra.mrb[0].mxu0 %v2892
    %v3552 = vpop.f32.mrb[0].mxu0
    %v3553 = vadd.f32 %v3484, %v3552
    %v3554 = vpop.f32.mrb[0].mxu0
    %3555 = vmatprep.mubr.f32.mxu0 0.0
    %3556 = vmatmul.mubr.f32.gmra.mrb[0].mxu0 %v2895
    %v3557 = vpop.f32.mrb[0].mxu0
    %v3558 = vadd.f32 %v3484, %v3557
    %v3559 = vpop.f32.mrb[0].mxu0
    %3560 = vdwg.mxu0
    %s3561 = scalar_lea.vmem %s17, 32
    %v3562 = vld [vmem:[%s3561] sm:$0xff]
    %v3563 = vld [vmem:[%s3561 + $0x8] sm:$0xff]
    %v3564 = vld [vmem:[%s3561 + $0x10] sm:$0xff]
    %v3565 = vld [vmem:[%s3561 + $0x18] sm:$0xff]
    %s3566 = scalar_lea.vmem %s18, 1
    %v3567 = vld [vmem:[%s3566] sm:$0x1]
    %v3569 = vlaneseq
    %v3570 = vshrl.u32 %v3569, 7
    %v3571 = vsub.s32 0, %v3570
    %v3572 = vrot.slane %v3567, %v3571
    %3574 = vmatprep.subr.mxu0 0.0
    %3575 = vmatpush1.msra.mxu0 %v3562
    %3576 = vmatprep.subr.mxu0 0.0
    %3577 = vmatpush1.msra.mxu0 %v3563
    %3578 = vmatprep.subr.mxu0 0.0
    %3579 = vmatpush1.msra.mxu0 %v3564
    %3580 = vmatprep.subr.mxu0 0.0
    %3581 = vmatpush1.msra.mxu0 %v3565
    %3582 = vmatprep.subr.mxu0 0.0
    %3583 = vmatpush1.msra.mxu0 0.0
    %3584 = vmatprep.subr.mxu0 0.0
    %3585 = vmatpush1.msra.mxu0 0.0
    %3586 = vmatprep.subr.mxu0 0.0
    %3587 = vmatpush1.msra.mxu0 0.0
    %3588 = vmatprep.subr.mxu0 0.0
    %3589 = vmatpush1.msra.mxu0 0.0
    %3590 = vmatprep.subr.mxu0 0.0
    %3591 = vmatpush1.msra.mxu0 0.0
    %3592 = vmatprep.subr.mxu0 0.0
    %3593 = vmatpush1.msra.mxu0 0.0
    %3594 = vmatprep.subr.mxu0 0.0
    %3595 = vmatpush1.msra.mxu0 0.0
    %3596 = vmatprep.subr.mxu0 0.0
    %3597 = vmatpush1.msra.mxu0 0.0
    %3598 = vmatprep.subr.mxu0 0.0
    %3599 = vmatpush1.msra.mxu0 0.0
    %3600 = vmatprep.subr.mxu0 0.0
    %3601 = vmatpush1.msra.mxu0 0.0
    %3602 = vmatprep.subr.mxu0 0.0
    %3603 = vmatpush1.msra.mxu0 0.0
    %3604 = vmatprep.subr.mxu0 0.0
    %3605 = vmatpush1.msra.mxu0 0.0
    %3606 = vmatprep.subr.mxu0 0.0
    %3607 = vmatpush1.msra.mxu0 0.0
    %3608 = vmatprep.subr.mxu0 0.0
    %3609 = vmatpush1.msra.mxu0 0.0
    %3610 = vmatprep.subr.mxu0 0.0
    %3611 = vmatpush1.msra.mxu0 0.0
    %3612 = vmatprep.subr.mxu0 0.0
    %3613 = vmatpush1.msra.mxu0 0.0
    %3614 = vmatprep.subr.mxu0 0.0
    %3615 = vmatpush1.msra.mxu0 0.0
    %3616 = vmatprep.subr.mxu0 0.0
    %3617 = vmatpush1.msra.mxu0 0.0
    %3618 = vmatprep.subr.mxu0 0.0
    %3619 = vmatpush1.msra.mxu0 0.0
    %3620 = vmatprep.subr.mxu0 0.0
    %3621 = vmatpush1.msra.mxu0 0.0
    %3622 = vmatprep.subr.mxu0 0.0
    %3623 = vmatpush1.msra.mxu0 0.0
    %3624 = vmatprep.subr.mxu0 0.0
    %3625 = vmatpush1.msra.mxu0 0.0
    %3626 = vmatprep.subr.mxu0 0.0
    %3627 = vmatpush1.msra.mxu0 0.0
    %3628 = vmatprep.subr.mxu0 0.0
    %3629 = vmatpush1.msra.mxu0 0.0
    %3630 = vmatprep.subr.mxu0 0.0
    %3631 = vmatpush1.msra.mxu0 0.0
    %3632 = vmatprep.subr.mxu0 0.0
    %3633 = vmatpush1.msra.mxu0 0.0
    %3634 = vmatprep.subr.mxu0 0.0
    %3635 = vmatpush1.msra.mxu0 0.0
    %3636 = vmatprep.subr.mxu0 0.0
    %3637 = vmatpush1.msra.mxu0 0.0
    %3638 = vmatprep.mubr.f32.mxu0 0.0
    %3639 = vmatmul.mubr.f32.gmra.mrb[0].mxu0 %v2984
    %v3640 = vpop.f32.mrb[0].mxu0
    %v3641 = vadd.f32 %v3572, %v3640
    %v3642 = vpop.f32.mrb[0].mxu0
    %3643 = vmatprep.mubr.f32.mxu0 0.0
    %3644 = vmatmul.mubr.f32.gmra.mrb[0].mxu0 %v2987
    %v3645 = vpop.f32.mrb[0].mxu0
    %v3646 = vadd.f32 %v3572, %v3645
    %v3647 = vpop.f32.mrb[0].mxu0
    %3648 = vdwg.mxu0
    %s3649 = scalar_lea.vmem %s19, 32
    %v3650 = vld [vmem:[%s3649] sm:$0xff]
    %v3651 = vld [vmem:[%s3649 + $0x8] sm:$0xff]
    %v3652 = vld [vmem:[%s3649 + $0x10] sm:$0xff]
    %v3653 = vld [vmem:[%s3649 + $0x18] sm:$0xff]
    %s3654 = scalar_lea.vmem %s20, 1
    %v3655 = vld [vmem:[%s3654] sm:$0x1]
    %v3657 = vlaneseq
    %v3658 = vshrl.u32 %v3657, 7
    %v3659 = vsub.s32 0, %v3658
    %v3660 = vrot.slane %v3655, %v3659
    %3662 = vmatprep.subr.mxu0 0.0
    %3663 = vmatpush1.msra.mxu0 %v3650
    %3664 = vmatprep.subr.mxu0 0.0
    %3665 = vmatpush1.msra.mxu0 %v3651
    %3666 = vmatprep.subr.mxu0 0.0
    %3667 = vmatpush1.msra.mxu0 %v3652
    %3668 = vmatprep.subr.mxu0 0.0
    %3669 = vmatpush1.msra.mxu0 %v3653
    %3670 = vmatprep.subr.mxu0 0.0
    %3671 = vmatpush1.msra.mxu0 0.0
    %3672 = vmatprep.subr.mxu0 0.0
    %3673 = vmatpush1.msra.mxu0 0.0
    %3674 = vmatprep.subr.mxu0 0.0
    %3675 = vmatpush1.msra.mxu0 0.0
    %3676 = vmatprep.subr.mxu0 0.0
    %3677 = vmatpush1.msra.mxu0 0.0
    %3678 = vmatprep.subr.mxu0 0.0
    %3679 = vmatpush1.msra.mxu0 0.0
    %3680 = vmatprep.subr.mxu0 0.0
    %3681 = vmatpush1.msra.mxu0 0.0
    %3682 = vmatprep.subr.mxu0 0.0
    %3683 = vmatpush1.msra.mxu0 0.0
    %3684 = vmatprep.subr.mxu0 0.0
    %3685 = vmatpush1.msra.mxu0 0.0
    %3686 = vmatprep.subr.mxu0 0.0
    %3687 = vmatpush1.msra.mxu0 0.0
    %3688 = vmatprep.subr.mxu0 0.0
    %3689 = vmatpush1.msra.mxu0 0.0
    %3690 = vmatprep.subr.mxu0 0.0
    %3691 = vmatpush1.msra.mxu0 0.0
    %3692 = vmatprep.subr.mxu0 0.0
    %3693 = vmatpush1.msra.mxu0 0.0
    %3694 = vmatprep.subr.mxu0 0.0
    %3695 = vmatpush1.msra.mxu0 0.0
    %3696 = vmatprep.subr.mxu0 0.0
    %3697 = vmatpush1.msra.mxu0 0.0
    %3698 = vmatprep.subr.mxu0 0.0
    %3699 = vmatpush1.msra.mxu0 0.0
    %3700 = vmatprep.subr.mxu0 0.0
    %3701 = vmatpush1.msra.mxu0 0.0
    %3702 = vmatprep.subr.mxu0 0.0
    %3703 = vmatpush1.msra.mxu0 0.0
    %3704 = vmatprep.subr.mxu0 0.0
    %3705 = vmatpush1.msra.mxu0 0.0
    %3706 = vmatprep.subr.mxu0 0.0
    %3707 = vmatpush1.msra.mxu0 0.0
    %3708 = vmatprep.subr.mxu0 0.0
    %3709 = vmatpush1.msra.mxu0 0.0
    %3710 = vmatprep.subr.mxu0 0.0
    %3711 = vmatpush1.msra.mxu0 0.0
    %3712 = vmatprep.subr.mxu0 0.0
    %3713 = vmatpush1.msra.mxu0 0.0
    %3714 = vmatprep.subr.mxu0 0.0
    %3715 = vmatpush1.msra.mxu0 0.0
    %3716 = vmatprep.subr.mxu0 0.0
    %3717 = vmatpush1.msra.mxu0 0.0
    %3718 = vmatprep.subr.mxu0 0.0
    %3719 = vmatpush1.msra.mxu0 0.0
    %3720 = vmatprep.subr.mxu0 0.0
    %3721 = vmatpush1.msra.mxu0 0.0
    %3722 = vmatprep.subr.mxu0 0.0
    %3723 = vmatpush1.msra.mxu0 0.0
    %3724 = vmatprep.subr.mxu0 0.0
    %3725 = vmatpush1.msra.mxu0 0.0
    %3726 = vmatprep.mubr.f32.mxu0 0.0
    %3727 = vmatmul.mubr.f32.gmra.mrb[0].mxu0 %v2984
    %v3728 = vpop.f32.mrb[0].mxu0
    %v3729 = vadd.f32 %v3660, %v3728
    %v3730 = vpop.f32.mrb[0].mxu0
    %3731 = vmatprep.mubr.f32.mxu0 0.0
    %3732 = vmatmul.mubr.f32.gmra.mrb[0].mxu0 %v2987
    %v3733 = vpop.f32.mrb[0].mxu0
    %v3734 = vadd.f32 %v3660, %v3733
    %v3735 = vpop.f32.mrb[0].mxu0
    %3736 = vdwg.mxu0
    %v3738 = vsel %vm400, %v3553, 0
    %v3741 = vsel %vm400, %v3641, 0
    %3743 = vmatprep.subr.mxu0 0.0
    %3744 = vmatpush1.xpose.msra.mxu0 %v3741
    %3745 = vmatprep.subr.mxu0 0.0
    %3746 = vmatpush1.xpose.msra.mxu0 0.0
    %3747 = vmatprep.subr.mxu0 0.0
    %3748 = vmatpush1.xpose.msra.mxu0 0.0
    %3749 = vmatprep.subr.mxu0 0.0
    %3750 = vmatpush1.xpose.msra.mxu0 0.0
    %3751 = vmatprep.subr.mxu0 0.0
    %3752 = vmatpush1.xpose.msra.mxu0 0.0
    %3753 = vmatprep.subr.mxu0 0.0
    %3754 = vmatpush1.xpose.msra.mxu0 0.0
    %3755 = vmatprep.subr.mxu0 0.0
    %3756 = vmatpush1.xpose.msra.mxu0 0.0
    %3757 = vmatprep.subr.mxu0 0.0
    %3758 = vmatpush1.xpose.msra.mxu0 0.0
    %3759 = vmatprep.subr.mxu0 0.0
    %3760 = vmatpush1.xpose.msra.mxu0 0.0
    %3761 = vmatprep.subr.mxu0 0.0
    %3762 = vmatpush1.xpose.msra.mxu0 0.0
    %3763 = vmatprep.subr.mxu0 0.0
    %3764 = vmatpush1.xpose.msra.mxu0 0.0
    %3765 = vmatprep.subr.mxu0 0.0
    %3766 = vmatpush1.xpose.msra.mxu0 0.0
    %3767 = vmatprep.subr.mxu0 0.0
    %3768 = vmatpush1.xpose.msra.mxu0 0.0
    %3769 = vmatprep.subr.mxu0 0.0
    %3770 = vmatpush1.xpose.msra.mxu0 0.0
    %3771 = vmatprep.subr.mxu0 0.0
    %3772 = vmatpush1.xpose.msra.mxu0 0.0
    %3773 = vmatprep.subr.mxu0 0.0
    %3774 = vmatpush1.xpose.msra.mxu0 0.0
    %3775 = vmatprep.subr.mxu0 0.0
    %3776 = vmatpush1.xpose.msra.mxu0 0.0
    %3777 = vmatprep.subr.mxu0 0.0
    %3778 = vmatpush1.xpose.msra.mxu0 0.0
    %3779 = vmatprep.subr.mxu0 0.0
    %3780 = vmatpush1.xpose.msra.mxu0 0.0
    %3781 = vmatprep.subr.mxu0 0.0
    %3782 = vmatpush1.xpose.msra.mxu0 0.0
    %3783 = vmatprep.subr.mxu0 0.0
    %3784 = vmatpush1.xpose.msra.mxu0 0.0
    %3785 = vmatprep.subr.mxu0 0.0
    %3786 = vmatpush1.xpose.msra.mxu0 0.0
    %3787 = vmatprep.subr.mxu0 0.0
    %3788 = vmatpush1.xpose.msra.mxu0 0.0
    %3789 = vmatprep.subr.mxu0 0.0
    %3790 = vmatpush1.xpose.msra.mxu0 0.0
    %3791 = vmatprep.subr.mxu0 0.0
    %3792 = vmatpush1.xpose.msra.mxu0 0.0
    %3793 = vmatprep.subr.mxu0 0.0
    %3794 = vmatpush1.xpose.msra.mxu0 0.0
    %3795 = vmatprep.subr.mxu0 0.0
    %3796 = vmatpush1.xpose.msra.mxu0 0.0
    %3797 = vmatprep.subr.mxu0 0.0
    %3798 = vmatpush1.xpose.msra.mxu0 0.0
    %3799 = vmatprep.subr.mxu0 0.0
    %3800 = vmatpush1.xpose.msra.mxu0 0.0
    %3801 = vmatprep.subr.mxu0 0.0
    %3802 = vmatpush1.xpose.msra.mxu0 0.0
    %3803 = vmatprep.subr.mxu0 0.0
    %3804 = vmatpush1.xpose.msra.mxu0 0.0
    %3805 = vmatprep.subr.mxu0 0.0
    %3806 = vmatpush1.xpose.msra.mxu0 0.0
    %3807 = vmatprep.mubr.f32.mxu0 0.0
    %3808 = vmatmul.mubr.f32.gmra.mrb[0].mxu0 %v3738
    %v3809 = vpop.f32.mrb[0].mxu0
    %v3810 = vadd.f32 %v2873, %v3809
    %v3811 = vpop.f32.mrb[0].mxu0
    %3812 = vdwg.mxu0
    %v3814 = vsel %vm400, %v3558, 0
    %v3817 = vsel %vm400, %v3646, 0
    %3819 = vmatprep.subr.mxu0 0.0
    %3820 = vmatpush1.xpose.msra.mxu0 %v3817
    %3821 = vmatprep.subr.mxu0 0.0
    %3822 = vmatpush1.xpose.msra.mxu0 0.0
    %3823 = vmatprep.subr.mxu0 0.0
    %3824 = vmatpush1.xpose.msra.mxu0 0.0
    %3825 = vmatprep.subr.mxu0 0.0
    %3826 = vmatpush1.xpose.msra.mxu0 0.0
    %3827 = vmatprep.subr.mxu0 0.0
    %3828 = vmatpush1.xpose.msra.mxu0 0.0
    %3829 = vmatprep.subr.mxu0 0.0
    %3830 = vmatpush1.xpose.msra.mxu0 0.0
    %3831 = vmatprep.subr.mxu0 0.0
    %3832 = vmatpush1.xpose.msra.mxu0 0.0
    %3833 = vmatprep.subr.mxu0 0.0
    %3834 = vmatpush1.xpose.msra.mxu0 0.0
    %3835 = vmatprep.subr.mxu0 0.0
    %3836 = vmatpush1.xpose.msra.mxu0 0.0
    %3837 = vmatprep.subr.mxu0 0.0
    %3838 = vmatpush1.xpose.msra.mxu0 0.0
    %3839 = vmatprep.subr.mxu0 0.0
    %3840 = vmatpush1.xpose.msra.mxu0 0.0
    %3841 = vmatprep.subr.mxu0 0.0
    %3842 = vmatpush1.xpose.msra.mxu0 0.0
    %3843 = vmatprep.subr.mxu0 0.0
    %3844 = vmatpush1.xpose.msra.mxu0 0.0
    %3845 = vmatprep.subr.mxu0 0.0
    %3846 = vmatpush1.xpose.msra.mxu0 0.0
    %3847 = vmatprep.subr.mxu0 0.0
    %3848 = vmatpush1.xpose.msra.mxu0 0.0
    %3849 = vmatprep.subr.mxu0 0.0
    %3850 = vmatpush1.xpose.msra.mxu0 0.0
    %3851 = vmatprep.subr.mxu0 0.0
    %3852 = vmatpush1.xpose.msra.mxu0 0.0
    %3853 = vmatprep.subr.mxu0 0.0
    %3854 = vmatpush1.xpose.msra.mxu0 0.0
    %3855 = vmatprep.subr.mxu0 0.0
    %3856 = vmatpush1.xpose.msra.mxu0 0.0
    %3857 = vmatprep.subr.mxu0 0.0
    %3858 = vmatpush1.xpose.msra.mxu0 0.0
    %3859 = vmatprep.subr.mxu0 0.0
    %3860 = vmatpush1.xpose.msra.mxu0 0.0
    %3861 = vmatprep.subr.mxu0 0.0
    %3862 = vmatpush1.xpose.msra.mxu0 0.0
    %3863 = vmatprep.subr.mxu0 0.0
    %3864 = vmatpush1.xpose.msra.mxu0 0.0
    %3865 = vmatprep.subr.mxu0 0.0
    %3866 = vmatpush1.xpose.msra.mxu0 0.0
    %3867 = vmatprep.subr.mxu0 0.0
    %3868 = vmatpush1.xpose.msra.mxu0 0.0
    %3869 = vmatprep.subr.mxu0 0.0
    %3870 = vmatpush1.xpose.msra.mxu0 0.0
    %3871 = vmatprep.subr.mxu0 0.0
    %3872 = vmatpush1.xpose.msra.mxu0 0.0
    %3873 = vmatprep.subr.mxu0 0.0
    %3874 = vmatpush1.xpose.msra.mxu0 0.0
    %3875 = vmatprep.subr.mxu0 0.0
    %3876 = vmatpush1.xpose.msra.mxu0 0.0
    %3877 = vmatprep.subr.mxu0 0.0
    %3878 = vmatpush1.xpose.msra.mxu0 0.0
    %3879 = vmatprep.subr.mxu0 0.0
    %3880 = vmatpush1.xpose.msra.mxu0 0.0
    %3881 = vmatprep.subr.mxu0 0.0
    %3882 = vmatpush1.xpose.msra.mxu0 0.0
    %3883 = vmatprep.mubr.f32.mxu0 0.0
    %3884 = vmatmul.mubr.f32.gmra.mrb[0].mxu0 %v3814
    %v3885 = vpop.f32.mrb[0].mxu0
    %v3886 = vadd.f32 %v2877, %v3885
    %v3887 = vpop.f32.mrb[0].mxu0
    %3888 = vdwg.mxu0
    %v3889 = vmul.f32 %v3810, 0.015625
    %v3890 = vmul.f32 %v3886, 0.015625
    %v3891 = vsel %vm400, %v3889, -inf
    %3892 = vmax.xlane.f32.xlu0 %v3891
    %v3893 = vpop.xlane.xlu0 %3892
    %v3894 = vsel %vm400, %v3890, -inf
    %3895 = vmax.xlane.f32.xlu0 %v3894
    %v3896 = vpop.xlane.xlu0 %3895
    %v3897 = vsub.f32 %v3889, %v3893
    %v3898 = vsub.f32 %v3890, %v3896
    %v3899 = vmul.f32 %v3897, 1.442695
    %v3900 = vpow.pop %v3899
    %v3901 = vmul.f32 %v3898, 1.442695
    %v3902 = vpow.pop %v3901
    %v3903 = vsel %vm400, %v3900, 0.0
    %3904 = vadd.xlane.f32.xlu0 %v3903
    %v3905 = vpop.xlane.xlu0 %3904
    %v3906 = vsel %vm400, %v3902, 0.0
    %3907 = vadd.xlane.f32.xlu0 %v3906
    %v3908 = vpop.xlane.xlu0 %3907
    %v3909 = vrcp.pop %v3905
    %v3910 = vrcp.pop %v3908
    %v3911 = vmul.f32 %v3900, %v3909
    %v3912 = vmul.f32 %v3902, %v3910
    %v3914 = vsel %vm400, %v3911, 0
    %3916 = vmatprep.subr.mxu0 0.0
    %3917 = vmatpush1.msra.mxu0 %v3729
    %3918 = vmatprep.subr.mxu0 0.0
    %3919 = vmatpush1.msra.mxu0 0.0
    %3920 = vmatprep.subr.mxu0 0.0
    %3921 = vmatpush1.msra.mxu0 0.0
    %3922 = vmatprep.subr.mxu0 0.0
    %3923 = vmatpush1.msra.mxu0 0.0
    %3924 = vmatprep.subr.mxu0 0.0
    %3925 = vmatpush1.msra.mxu0 0.0
    %3926 = vmatprep.subr.mxu0 0.0
    %3927 = vmatpush1.msra.mxu0 0.0
    %3928 = vmatprep.subr.mxu0 0.0
    %3929 = vmatpush1.msra.mxu0 0.0
    %3930 = vmatprep.subr.mxu0 0.0
    %3931 = vmatpush1.msra.mxu0 0.0
    %3932 = vmatprep.subr.mxu0 0.0
    %3933 = vmatpush1.msra.mxu0 0.0
    %3934 = vmatprep.subr.mxu0 0.0
    %3935 = vmatpush1.msra.mxu0 0.0
    %3936 = vmatprep.subr.mxu0 0.0
    %3937 = vmatpush1.msra.mxu0 0.0
    %3938 = vmatprep.subr.mxu0 0.0
    %3939 = vmatpush1.msra.mxu0 0.0
    %3940 = vmatprep.subr.mxu0 0.0
    %3941 = vmatpush1.msra.mxu0 0.0
    %3942 = vmatprep.subr.mxu0 0.0
    %3943 = vmatpush1.msra.mxu0 0.0
    %3944 = vmatprep.subr.mxu0 0.0
    %3945 = vmatpush1.msra.mxu0 0.0
    %3946 = vmatprep.subr.mxu0 0.0
    %3947 = vmatpush1.msra.mxu0 0.0
    %3948 = vmatprep.subr.mxu0 0.0
    %3949 = vmatpush1.msra.mxu0 0.0
    %3950 = vmatprep.subr.mxu0 0.0
    %3951 = vmatpush1.msra.mxu0 0.0
    %3952 = vmatprep.subr.mxu0 0.0
    %3953 = vmatpush1.msra.mxu0 0.0
    %3954 = vmatprep.subr.mxu0 0.0
    %3955 = vmatpush1.msra.mxu0 0.0
    %3956 = vmatprep.subr.mxu0 0.0
    %3957 = vmatpush1.msra.mxu0 0.0
    %3958 = vmatprep.subr.mxu0 0.0
    %3959 = vmatpush1.msra.mxu0 0.0
    %3960 = vmatprep.subr.mxu0 0.0
    %3961 = vmatpush1.msra.mxu0 0.0
    %3962 = vmatprep.subr.mxu0 0.0
    %3963 = vmatpush1.msra.mxu0 0.0
    %3964 = vmatprep.subr.mxu0 0.0
    %3965 = vmatpush1.msra.mxu0 0.0
    %3966 = vmatprep.subr.mxu0 0.0
    %3967 = vmatpush1.msra.mxu0 0.0
    %3968 = vmatprep.subr.mxu0 0.0
    %3969 = vmatpush1.msra.mxu0 0.0
    %3970 = vmatprep.subr.mxu0 0.0
    %3971 = vmatpush1.msra.mxu0 0.0
    %3972 = vmatprep.subr.mxu0 0.0
    %3973 = vmatpush1.msra.mxu0 0.0
    %3974 = vmatprep.subr.mxu0 0.0
    %3975 = vmatpush1.msra.mxu0 0.0
    %3976 = vmatprep.subr.mxu0 0.0
    %3977 = vmatpush1.msra.mxu0 0.0
    %3978 = vmatprep.subr.mxu0 0.0
    %3979 = vmatpush1.msra.mxu0 0.0
    %3980 = vmatprep.mubr.f32.mxu0 0.0
    %3981 = vmatmul.mubr.f32.gmra.mrb[0].mxu0 %v3914
    %v3982 = vpop.f32.mrb[0].mxu0
    %v3983 = vadd.f32 0.0, %v3982
    %v3984 = vpop.f32.mrb[0].mxu0
    %3985 = vdwg.mxu0
    %v3987 = vsel %vm400, %v3912, 0
    %3989 = vmatprep.subr.mxu0 0.0
    %3990 = vmatpush1.msra.mxu0 %v3734
    %3991 = vmatprep.subr.mxu0 0.0
    %3992 = vmatpush1.msra.mxu0 0.0
    %3993 = vmatprep.subr.mxu0 0.0
    %3994 = vmatpush1.msra.mxu0 0.0
    %3995 = vmatprep.subr.mxu0 0.0
    %3996 = vmatpush1.msra.mxu0 0.0
    %3997 = vmatprep.subr.mxu0 0.0
    %3998 = vmatpush1.msra.mxu0 0.0
    %3999 = vmatprep.subr.mxu0 0.0
    %4000 = vmatpush1.msra.mxu0 0.0
    %4001 = vmatprep.subr.mxu0 0.0
    %4002 = vmatpush1.msra.mxu0 0.0
    %4003 = vmatprep.subr.mxu0 0.0
    %4004 = vmatpush1.msra.mxu0 0.0
    %4005 = vmatprep.subr.mxu0 0.0
    %4006 = vmatpush1.msra.mxu0 0.0
    %4007 = vmatprep.subr.mxu0 0.0
    %4008 = vmatpush1.msra.mxu0 0.0
    %4009 = vmatprep.subr.mxu0 0.0
    %4010 = vmatpush1.msra.mxu0 0.0
    %4011 = vmatprep.subr.mxu0 0.0
    %4012 = vmatpush1.msra.mxu0 0.0
    %4013 = vmatprep.subr.mxu0 0.0
    %4014 = vmatpush1.msra.mxu0 0.0
    %4015 = vmatprep.subr.mxu0 0.0
    %4016 = vmatpush1.msra.mxu0 0.0
    %4017 = vmatprep.subr.mxu0 0.0
    %4018 = vmatpush1.msra.mxu0 0.0
    %4019 = vmatprep.subr.mxu0 0.0
    %4020 = vmatpush1.msra.mxu0 0.0
    %4021 = vmatprep.subr.mxu0 0.0
    %4022 = vmatpush1.msra.mxu0 0.0
    %4023 = vmatprep.subr.mxu0 0.0
    %4024 = vmatpush1.msra.mxu0 0.0
    %4025 = vmatprep.subr.mxu0 0.0
    %4026 = vmatpush1.msra.mxu0 0.0
    %4027 = vmatprep.subr.mxu0 0.0
    %4028 = vmatpush1.msra.mxu0 0.0
    %4029 = vmatprep.subr.mxu0 0.0
    %4030 = vmatpush1.msra.mxu0 0.0
    %4031 = vmatprep.subr.mxu0 0.0
    %4032 = vmatpush1.msra.mxu0 0.0
    %4033 = vmatprep.subr.mxu0 0.0
    %4034 = vmatpush1.msra.mxu0 0.0
    %4035 = vmatprep.subr.mxu0 0.0
    %4036 = vmatpush1.msra.mxu0 0.0
    %4037 = vmatprep.subr.mxu0 0.0
    %4038 = vmatpush1.msra.mxu0 0.0
    %4039 = vmatprep.subr.mxu0 0.0
    %4040 = vmatpush1.msra.mxu0 0.0
    %4041 = vmatprep.subr.mxu0 0.0
    %4042 = vmatpush1.msra.mxu0 0.0
    %4043 = vmatprep.subr.mxu0 0.0
    %4044 = vmatpush1.msra.mxu0 0.0
    %4045 = vmatprep.subr.mxu0 0.0
    %4046 = vmatpush1.msra.mxu0 0.0
    %4047 = vmatprep.subr.mxu0 0.0
    %4048 = vmatpush1.msra.mxu0 0.0
    %4049 = vmatprep.subr.mxu0 0.0
    %4050 = vmatpush1.msra.mxu0 0.0
    %4051 = vmatprep.subr.mxu0 0.0
    %4052 = vmatpush1.msra.mxu0 0.0
    %4053 = vmatprep.mubr.f32.mxu0 0.0
    %4054 = vmatmul.mubr.f32.gmra.mrb[0].mxu0 %v3987
    %v4055 = vpop.f32.mrb[0].mxu0
    %v4056 = vadd.f32 0.0, %v4055
    %v4057 = vpop.f32.mrb[0].mxu0
    %4058 = vdwg.mxu0
    %s4059 = scalar_lea.vmem %s21, 8
    %v4060 = vld [vmem:[%s4059] sm:$0xff]
    %v4062 = vsel %vm400, %v3983, 0
    %v4065 = vsel %vm400, %v4056, 0
    %4067 = vmatprep.subr.mxu0 0.0
    %4068 = vmatpush1.msra.mxu0 %v4060
    %4069 = vmatprep.subr.mxu0 0.0
    %4070 = vmatpush1.msra.mxu0 0.0
    %4071 = vmatprep.subr.mxu0 0.0
    %4072 = vmatpush1.msra.mxu0 0.0
    %4073 = vmatprep.subr.mxu0 0.0
    %4074 = vmatpush1.msra.mxu0 0.0
    %4075 = vmatprep.subr.mxu0 0.0
    %4076 = vmatpush1.msra.mxu0 0.0
    %4077 = vmatprep.subr.mxu0 0.0
    %4078 = vmatpush1.msra.mxu0 0.0
    %4079 = vmatprep.subr.mxu0 0.0
    %4080 = vmatpush1.msra.mxu0 0.0
    %4081 = vmatprep.subr.mxu0 0.0
    %4082 = vmatpush1.msra.mxu0 0.0
    %4083 = vmatprep.subr.mxu0 0.0
    %4084 = vmatpush1.msra.mxu0 0.0
    %4085 = vmatprep.subr.mxu0 0.0
    %4086 = vmatpush1.msra.mxu0 0.0
    %4087 = vmatprep.subr.mxu0 0.0
    %4088 = vmatpush1.msra.mxu0 0.0
    %4089 = vmatprep.subr.mxu0 0.0
    %4090 = vmatpush1.msra.mxu0 0.0
    %4091 = vmatprep.subr.mxu0 0.0
    %4092 = vmatpush1.msra.mxu0 0.0
    %4093 = vmatprep.subr.mxu0 0.0
    %4094 = vmatpush1.msra.mxu0 0.0
    %4095 = vmatprep.subr.mxu0 0.0
    %4096 = vmatpush1.msra.mxu0 0.0
    %4097 = vmatprep.subr.mxu0 0.0
    %4098 = vmatpush1.msra.mxu0 0.0
    %4099 = vmatprep.subr.mxu0 0.0
    %4100 = vmatpush1.msra.mxu0 0.0
    %4101 = vmatprep.subr.mxu0 0.0
    %4102 = vmatpush1.msra.mxu0 0.0
    %4103 = vmatprep.subr.mxu0 0.0
    %4104 = vmatpush1.msra.mxu0 0.0
    %4105 = vmatprep.subr.mxu0 0.0
    %4106 = vmatpush1.msra.mxu0 0.0
    %4107 = vmatprep.subr.mxu0 0.0
    %4108 = vmatpush1.msra.mxu0 0.0
    %4109 = vmatprep.subr.mxu0 0.0
    %4110 = vmatpush1.msra.mxu0 0.0
    %4111 = vmatprep.subr.mxu0 0.0
    %4112 = vmatpush1.msra.mxu0 0.0
    %4113 = vmatprep.subr.mxu0 0.0
    %4114 = vmatpush1.msra.mxu0 0.0
    %4115 = vmatprep.subr.mxu0 0.0
    %4116 = vmatpush1.msra.mxu0 0.0
    %4117 = vmatprep.subr.mxu0 0.0
    %4118 = vmatpush1.msra.mxu0 0.0
    %4119 = vmatprep.subr.mxu0 0.0
    %4120 = vmatpush1.msra.mxu0 0.0
    %4121 = vmatprep.subr.mxu0 0.0
    %4122 = vmatpush1.msra.mxu0 0.0
    %4123 = vmatprep.subr.mxu0 0.0
    %4124 = vmatpush1.msra.mxu0 0.0
    %4125 = vmatprep.subr.mxu0 0.0
    %4126 = vmatpush1.msra.mxu0 0.0
    %4127 = vmatprep.subr.mxu0 0.0
    %4128 = vmatpush1.msra.mxu0 0.0
    %4129 = vmatprep.subr.mxu0 0.0
    %4130 = vmatpush1.msra.mxu0 0.0
    %4131 = vmatprep.mubr.f32.mxu0 0.0
    %4132 = vmatmul.mubr.f32.gmra.mrb[0].mxu0 %v4062
    %v4133 = vpop.f32.mrb[0].mxu0
    %v4134 = vadd.f32 0.0, %v4133
    %v4135 = vpop.f32.mrb[0].mxu0
    %4136 = vmatprep.mubr.f32.mxu0 0.0
    %4137 = vmatmul.mubr.f32.gmra.mrb[0].mxu0 %v4065
    %v4138 = vpop.f32.mrb[0].mxu0
    %v4139 = vadd.f32 0.0, %v4138
    %v4140 = vpop.f32.mrb[0].mxu0
    %4141 = vdwg.mxu0
    %v4143 = vsel %vm400, %v3396, 0
    %v4146 = vsel %vm400, %v3469, 0
    %4148 = vmatprep.subr.mxu0 0.0
    %4149 = vmatpush1.msra.mxu0 %v3472
    %4150 = vmatprep.subr.mxu0 0.0
    %4151 = vmatpush1.msra.mxu0 0.0
    %4152 = vmatprep.subr.mxu0 0.0
    %4153 = vmatpush1.msra.mxu0 0.0
    %4154 = vmatprep.subr.mxu0 0.0
    %4155 = vmatpush1.msra.mxu0 0.0
    %4156 = vmatprep.subr.mxu0 0.0
    %4157 = vmatpush1.msra.mxu0 0.0
    %4158 = vmatprep.subr.mxu0 0.0
    %4159 = vmatpush1.msra.mxu0 0.0
    %4160 = vmatprep.subr.mxu0 0.0
    %4161 = vmatpush1.msra.mxu0 0.0
    %4162 = vmatprep.subr.mxu0 0.0
    %4163 = vmatpush1.msra.mxu0 0.0
    %4164 = vmatprep.subr.mxu0 0.0
    %4165 = vmatpush1.msra.mxu0 0.0
    %4166 = vmatprep.subr.mxu0 0.0
    %4167 = vmatpush1.msra.mxu0 0.0
    %4168 = vmatprep.subr.mxu0 0.0
    %4169 = vmatpush1.msra.mxu0 0.0
    %4170 = vmatprep.subr.mxu0 0.0
    %4171 = vmatpush1.msra.mxu0 0.0
    %4172 = vmatprep.subr.mxu0 0.0
    %4173 = vmatpush1.msra.mxu0 0.0
    %4174 = vmatprep.subr.mxu0 0.0
    %4175 = vmatpush1.msra.mxu0 0.0
    %4176 = vmatprep.subr.mxu0 0.0
    %4177 = vmatpush1.msra.mxu0 0.0
    %4178 = vmatprep.subr.mxu0 0.0
    %4179 = vmatpush1.msra.mxu0 0.0
    %4180 = vmatprep.subr.mxu0 0.0
    %4181 = vmatpush1.msra.mxu0 0.0
    %4182 = vmatprep.subr.mxu0 0.0
    %4183 = vmatpush1.msra.mxu0 0.0
    %4184 = vmatprep.subr.mxu0 0.0
    %4185 = vmatpush1.msra.mxu0 0.0
    %4186 = vmatprep.subr.mxu0 0.0
    %4187 = vmatpush1.msra.mxu0 0.0
    %4188 = vmatprep.subr.mxu0 0.0
    %4189 = vmatpush1.msra.mxu0 0.0
    %4190 = vmatprep.subr.mxu0 0.0
    %4191 = vmatpush1.msra.mxu0 0.0
    %4192 = vmatprep.subr.mxu0 0.0
    %4193 = vmatpush1.msra.mxu0 0.0
    %4194 = vmatprep.subr.mxu0 0.0
    %4195 = vmatpush1.msra.mxu0 0.0
    %4196 = vmatprep.subr.mxu0 0.0
    %4197 = vmatpush1.msra.mxu0 0.0
    %4198 = vmatprep.subr.mxu0 0.0
    %4199 = vmatpush1.msra.mxu0 0.0
    %4200 = vmatprep.subr.mxu0 0.0
    %4201 = vmatpush1.msra.mxu0 0.0
    %4202 = vmatprep.subr.mxu0 0.0
    %4203 = vmatpush1.msra.mxu0 0.0
    %4204 = vmatprep.subr.mxu0 0.0
    %4205 = vmatpush1.msra.mxu0 0.0
    %4206 = vmatprep.subr.mxu0 0.0
    %4207 = vmatpush1.msra.mxu0 0.0
    %4208 = vmatprep.subr.mxu0 0.0
    %4209 = vmatpush1.msra.mxu0 0.0
    %4210 = vmatprep.subr.mxu0 0.0
    %4211 = vmatpush1.msra.mxu0 0.0
    %4212 = vmatprep.mubr.f32.mxu0 0.0
    %4213 = vmatmul.mubr.f32.gmra.mrb[0].mxu0 %v4143
    %v4214 = vpop.f32.mrb[0].mxu0
    %v4215 = vadd.f32 %v4134, %v4214
    %v4216 = vpop.f32.mrb[0].mxu0
    %4217 = vmatprep.mubr.f32.mxu0 0.0
    %4218 = vmatmul.mubr.f32.gmra.mrb[0].mxu0 %v4146
    %v4219 = vpop.f32.mrb[0].mxu0
    %v4220 = vadd.f32 %v4139, %v4219
    %v4221 = vpop.f32.mrb[0].mxu0
    %4222 = vdwg.mxu0
    %s4223 = scalar_lea.vmem %s15, 64
    %v4224 = vld [vmem:[%s4223] sm:$0xff]
    %v4225 = vld [vmem:[%s4223 + $0x8] sm:$0xff]
    %v4226 = vld [vmem:[%s4223 + $0x10] sm:$0xff]
    %v4227 = vld [vmem:[%s4223 + $0x18] sm:$0xff]
    %s4228 = scalar_lea.vmem %s16, 2
    %v4229 = vld [vmem:[%s4228] sm:$0x1]
    %v4231 = vlaneseq
    %v4232 = vshrl.u32 %v4231, 7
    %v4233 = vsub.s32 0, %v4232
    %v4234 = vrot.slane %v4229, %v4233
    %4236 = vmatprep.subr.mxu0 0.0
    %4237 = vmatpush1.msra.mxu0 %v4224
    %4238 = vmatprep.subr.mxu0 0.0
    %4239 = vmatpush1.msra.mxu0 %v4225
    %4240 = vmatprep.subr.mxu0 0.0
    %4241 = vmatpush1.msra.mxu0 %v4226
    %4242 = vmatprep.subr.mxu0 0.0
    %4243 = vmatpush1.msra.mxu0 %v4227
    %4244 = vmatprep.subr.mxu0 0.0
    %4245 = vmatpush1.msra.mxu0 0.0
    %4246 = vmatprep.subr.mxu0 0.0
    %4247 = vmatpush1.msra.mxu0 0.0
    %4248 = vmatprep.subr.mxu0 0.0
    %4249 = vmatpush1.msra.mxu0 0.0
    %4250 = vmatprep.subr.mxu0 0.0
    %4251 = vmatpush1.msra.mxu0 0.0
    %4252 = vmatprep.subr.mxu0 0.0
    %4253 = vmatpush1.msra.mxu0 0.0
    %4254 = vmatprep.subr.mxu0 0.0
    %4255 = vmatpush1.msra.mxu0 0.0
    %4256 = vmatprep.subr.mxu0 0.0
    %4257 = vmatpush1.msra.mxu0 0.0
    %4258 = vmatprep.subr.mxu0 0.0
    %4259 = vmatpush1.msra.mxu0 0.0
    %4260 = vmatprep.subr.mxu0 0.0
    %4261 = vmatpush1.msra.mxu0 0.0
    %4262 = vmatprep.subr.mxu0 0.0
    %4263 = vmatpush1.msra.mxu0 0.0
    %4264 = vmatprep.subr.mxu0 0.0
    %4265 = vmatpush1.msra.mxu0 0.0
    %4266 = vmatprep.subr.mxu0 0.0
    %4267 = vmatpush1.msra.mxu0 0.0
    %4268 = vmatprep.subr.mxu0 0.0
    %4269 = vmatpush1.msra.mxu0 0.0
    %4270 = vmatprep.subr.mxu0 0.0
    %4271 = vmatpush1.msra.mxu0 0.0
    %4272 = vmatprep.subr.mxu0 0.0
    %4273 = vmatpush1.msra.mxu0 0.0
    %4274 = vmatprep.subr.mxu0 0.0
    %4275 = vmatpush1.msra.mxu0 0.0
    %4276 = vmatprep.subr.mxu0 0.0
    %4277 = vmatpush1.msra.mxu0 0.0
    %4278 = vmatprep.subr.mxu0 0.0
    %4279 = vmatpush1.msra.mxu0 0.0
    %4280 = vmatprep.subr.mxu0 0.0
    %4281 = vmatpush1.msra.mxu0 0.0
    %4282 = vmatprep.subr.mxu0 0.0
    %4283 = vmatpush1.msra.mxu0 0.0
    %4284 = vmatprep.subr.mxu0 0.0
    %4285 = vmatpush1.msra.mxu0 0.0
    %4286 = vmatprep.subr.mxu0 0.0
    %4287 = vmatpush1.msra.mxu0 0.0
    %4288 = vmatprep.subr.mxu0 0.0
    %4289 = vmatpush1.msra.mxu0 0.0
    %4290 = vmatprep.subr.mxu0 0.0
    %4291 = vmatpush1.msra.mxu0 0.0
    %4292 = vmatprep.subr.mxu0 0.0
    %4293 = vmatpush1.msra.mxu0 0.0
    %4294 = vmatprep.subr.mxu0 0.0
    %4295 = vmatpush1.msra.mxu0 0.0
    %4296 = vmatprep.subr.mxu0 0.0
    %4297 = vmatpush1.msra.mxu0 0.0
    %4298 = vmatprep.subr.mxu0 0.0
    %4299 = vmatpush1.msra.mxu0 0.0
    %4300 = vmatprep.mubr.f32.mxu0 0.0
    %4301 = vmatmul.mubr.f32.gmra.mrb[0].mxu0 %v2892
    %v4302 = vpop.f32.mrb[0].mxu0
    %v4303 = vadd.f32 %v4234, %v4302
    %v4304 = vpop.f32.mrb[0].mxu0
    %4305 = vmatprep.mubr.f32.mxu0 0.0
    %4306 = vmatmul.mubr.f32.gmra.mrb[0].mxu0 %v2895
    %v4307 = vpop.f32.mrb[0].mxu0
    %v4308 = vadd.f32 %v4234, %v4307
    %v4309 = vpop.f32.mrb[0].mxu0
    %4310 = vdwg.mxu0
    %s4311 = scalar_lea.vmem %s17, 64
    %v4312 = vld [vmem:[%s4311] sm:$0xff]
    %v4313 = vld [vmem:[%s4311 + $0x8] sm:$0xff]
    %v4314 = vld [vmem:[%s4311 + $0x10] sm:$0xff]
    %v4315 = vld [vmem:[%s4311 + $0x18] sm:$0xff]
    %s4316 = scalar_lea.vmem %s18, 2
    %v4317 = vld [vmem:[%s4316] sm:$0x1]
    %v4319 = vlaneseq
    %v4320 = vshrl.u32 %v4319, 7
    %v4321 = vsub.s32 0, %v4320
    %v4322 = vrot.slane %v4317, %v4321
    %4324 = vmatprep.subr.mxu0 0.0
    %4325 = vmatpush1.msra.mxu0 %v4312
    %4326 = vmatprep.subr.mxu0 0.0
    %4327 = vmatpush1.msra.mxu0 %v4313
    %4328 = vmatprep.subr.mxu0 0.0
    %4329 = vmatpush1.msra.mxu0 %v4314
    %4330 = vmatprep.subr.mxu0 0.0
    %4331 = vmatpush1.msra.mxu0 %v4315
    %4332 = vmatprep.subr.mxu0 0.0
    %4333 = vmatpush1.msra.mxu0 0.0
    %4334 = vmatprep.subr.mxu0 0.0
    %4335 = vmatpush1.msra.mxu0 0.0
    %4336 = vmatprep.subr.mxu0 0.0
    %4337 = vmatpush1.msra.mxu0 0.0
    %4338 = vmatprep.subr.mxu0 0.0
    %4339 = vmatpush1.msra.mxu0 0.0
    %4340 = vmatprep.subr.mxu0 0.0
    %4341 = vmatpush1.msra.mxu0 0.0
    %4342 = vmatprep.subr.mxu0 0.0
    %4343 = vmatpush1.msra.mxu0 0.0
    %4344 = vmatprep.subr.mxu0 0.0
    %4345 = vmatpush1.msra.mxu0 0.0
    %4346 = vmatprep.subr.mxu0 0.0
    %4347 = vmatpush1.msra.mxu0 0.0
    %4348 = vmatprep.subr.mxu0 0.0
    %4349 = vmatpush1.msra.mxu0 0.0
    %4350 = vmatprep.subr.mxu0 0.0
    %4351 = vmatpush1.msra.mxu0 0.0
    %4352 = vmatprep.subr.mxu0 0.0
    %4353 = vmatpush1.msra.mxu0 0.0
    %4354 = vmatprep.subr.mxu0 0.0
    %4355 = vmatpush1.msra.mxu0 0.0
    %4356 = vmatprep.subr.mxu0 0.0
    %4357 = vmatpush1.msra.mxu0 0.0
    %4358 = vmatprep.subr.mxu0 0.0
    %4359 = vmatpush1.msra.mxu0 0.0
    %4360 = vmatprep.subr.mxu0 0.0
    %4361 = vmatpush1.msra.mxu0 0.0
    %4362 = vmatprep.subr.mxu0 0.0
    %4363 = vmatpush1.msra.mxu0 0.0
    %4364 = vmatprep.subr.mxu0 0.0
    %4365 = vmatpush1.msra.mxu0 0.0
    %4366 = vmatprep.subr.mxu0 0.0
    %4367 = vmatpush1.msra.mxu0 0.0
    %4368 = vmatprep.subr.mxu0 0.0
    %4369 = vmatpush1.msra.mxu0 0.0
    %4370 = vmatprep.subr.mxu0 0.0
    %4371 = vmatpush1.msra.mxu0 0.0
    %4372 = vmatprep.subr.mxu0 0.0
    %4373 = vmatpush1.msra.mxu0 0.0
    %4374 = vmatprep.subr.mxu0 0.0
    %4375 = vmatpush1.msra.mxu0 0.0
    %4376 = vmatprep.subr.mxu0 0.0
    %4377 = vmatpush1.msra.mxu0 0.0
    %4378 = vmatprep.subr.mxu0 0.0
    %4379 = vmatpush1.msra.mxu0 0.0
    %4380 = vmatprep.subr.mxu0 0.0
    %4381 = vmatpush1.msra.mxu0 0.0
    %4382 = vmatprep.subr.mxu0 0.0
    %4383 = vmatpush1.msra.mxu0 0.0
    %4384 = vmatprep.subr.mxu0 0.0
    %4385 = vmatpush1.msra.mxu0 0.0
    %4386 = vmatprep.subr.mxu0 0.0
    %4387 = vmatpush1.msra.mxu0 0.0
    %4388 = vmatprep.mubr.f32.mxu0 0.0
    %4389 = vmatmul.mubr.f32.gmra.mrb[0].mxu0 %v2984
    %v4390 = vpop.f32.mrb[0].mxu0
    %v4391 = vadd.f32 %v4322, %v4390
    %v4392 = vpop.f32.mrb[0].mxu0
    %4393 = vmatprep.mubr.f32.mxu0 0.0
    %4394 = vmatmul.mubr.f32.gmra.mrb[0].mxu0 %v2987
    %v4395 = vpop.f32.mrb[0].mxu0
    %v4396 = vadd.f32 %v4322, %v4395
    %v4397 = vpop.f32.mrb[0].mxu0
    %4398 = vdwg.mxu0
    %s4399 = scalar_lea.vmem %s19, 64
    %v4400 = vld [vmem:[%s4399] sm:$0xff]
    %v4401 = vld [vmem:[%s4399 + $0x8] sm:$0xff]
    %v4402 = vld [vmem:[%s4399 + $0x10] sm:$0xff]
    %v4403 = vld [vmem:[%s4399 + $0x18] sm:$0xff]
    %s4404 = scalar_lea.vmem %s20, 2
    %v4405 = vld [vmem:[%s4404] sm:$0x1]
    %v4407 = vlaneseq
    %v4408 = vshrl.u32 %v4407, 7
    %v4409 = vsub.s32 0, %v4408
    %v4410 = vrot.slane %v4405, %v4409
    %4412 = vmatprep.subr.mxu0 0.0
    %4413 = vmatpush1.msra.mxu0 %v4400
    %4414 = vmatprep.subr.mxu0 0.0
    %4415 = vmatpush1.msra.mxu0 %v4401
    %4416 = vmatprep.subr.mxu0 0.0
    %4417 = vmatpush1.msra.mxu0 %v4402
    %4418 = vmatprep.subr.mxu0 0.0
    %4419 = vmatpush1.msra.mxu0 %v4403
    %4420 = vmatprep.subr.mxu0 0.0
    %4421 = vmatpush1.msra.mxu0 0.0
    %4422 = vmatprep.subr.mxu0 0.0
    %4423 = vmatpush1.msra.mxu0 0.0
    %4424 = vmatprep.subr.mxu0 0.0
    %4425 = vmatpush1.msra.mxu0 0.0
    %4426 = vmatprep.subr.mxu0 0.0
    %4427 = vmatpush1.msra.mxu0 0.0
    %4428 = vmatprep.subr.mxu0 0.0
    %4429 = vmatpush1.msra.mxu0 0.0
    %4430 = vmatprep.subr.mxu0 0.0
    %4431 = vmatpush1.msra.mxu0 0.0
    %4432 = vmatprep.subr.mxu0 0.0
    %4433 = vmatpush1.msra.mxu0 0.0
    %4434 = vmatprep.subr.mxu0 0.0
    %4435 = vmatpush1.msra.mxu0 0.0
    %4436 = vmatprep.subr.mxu0 0.0
    %4437 = vmatpush1.msra.mxu0 0.0
    %4438 = vmatprep.subr.mxu0 0.0
    %4439 = vmatpush1.msra.mxu0 0.0
    %4440 = vmatprep.subr.mxu0 0.0
    %4441 = vmatpush1.msra.mxu0 0.0
    %4442 = vmatprep.subr.mxu0 0.0
    %4443 = vmatpush1.msra.mxu0 0.0
    %4444 = vmatprep.subr.mxu0 0.0
    %4445 = vmatpush1.msra.mxu0 0.0
    %4446 = vmatprep.subr.mxu0 0.0
    %4447 = vmatpush1.msra.mxu0 0.0
    %4448 = vmatprep.subr.mxu0 0.0
    %4449 = vmatpush1.msra.mxu0 0.0
    %4450 = vmatprep.subr.mxu0 0.0
    %4451 = vmatpush1.msra.mxu0 0.0
    %4452 = vmatprep.subr.mxu0 0.0
    %4453 = vmatpush1.msra.mxu0 0.0
    %4454 = vmatprep.subr.mxu0 0.0
    %4455 = vmatpush1.msra.mxu0 0.0
    %4456 = vmatprep.subr.mxu0 0.0
    %4457 = vmatpush1.msra.mxu0 0.0
    %4458 = vmatprep.subr.mxu0 0.0
    %4459 = vmatpush1.msra.mxu0 0.0
    %4460 = vmatprep.subr.mxu0 0.0
    %4461 = vmatpush1.msra.mxu0 0.0
    %4462 = vmatprep.subr.mxu0 0.0
    %4463 = vmatpush1.msra.mxu0 0.0
    %4464 = vmatprep.subr.mxu0 0.0
    %4465 = vmatpush1.msra.mxu0 0.0
    %4466 = vmatprep.subr.mxu0 0.0
    %4467 = vmatpush1.msra.mxu0 0.0
    %4468 = vmatprep.subr.mxu0 0.0
    %4469 = vmatpush1.msra.mxu0 0.0
    %4470 = vmatprep.subr.mxu0 0.0
    %4471 = vmatpush1.msra.mxu0 0.0
    %4472 = vmatprep.subr.mxu0 0.0
    %4473 = vmatpush1.msra.mxu0 0.0
    %4474 = vmatprep.subr.mxu0 0.0
    %4475 = vmatpush1.msra.mxu0 0.0
    %4476 = vmatprep.mubr.f32.mxu0 0.0
    %4477 = vmatmul.mubr.f32.gmra.mrb[0].mxu0 %v2984
    %v4478 = vpop.f32.mrb[0].mxu0
    %v4479 = vadd.f32 %v4410, %v4478
    %v4480 = vpop.f32.mrb[0].mxu0
    %4481 = vmatprep.mubr.f32.mxu0 0.0
    %4482 = vmatmul.mubr.f32.gmra.mrb[0].mxu0 %v2987
    %v4483 = vpop.f32.mrb[0].mxu0
    %v4484 = vadd.f32 %v4410, %v4483
    %v4485 = vpop.f32.mrb[0].mxu0
    %4486 = vdwg.mxu0
    %v4488 = vsel %vm400, %v4303, 0
    %v4491 = vsel %vm400, %v4391, 0
    %4493 = vmatprep.subr.mxu0 0.0
    %4494 = vmatpush1.xpose.msra.mxu0 %v4491
    %4495 = vmatprep.subr.mxu0 0.0
    %4496 = vmatpush1.xpose.msra.mxu0 0.0
    %4497 = vmatprep.subr.mxu0 0.0
    %4498 = vmatpush1.xpose.msra.mxu0 0.0
    %4499 = vmatprep.subr.mxu0 0.0
    %4500 = vmatpush1.xpose.msra.mxu0 0.0
    %4501 = vmatprep.subr.mxu0 0.0
    %4502 = vmatpush1.xpose.msra.mxu0 0.0
    %4503 = vmatprep.subr.mxu0 0.0
    %4504 = vmatpush1.xpose.msra.mxu0 0.0
    %4505 = vmatprep.subr.mxu0 0.0
    %4506 = vmatpush1.xpose.msra.mxu0 0.0
    %4507 = vmatprep.subr.mxu0 0.0
    %4508 = vmatpush1.xpose.msra.mxu0 0.0
    %4509 = vmatprep.subr.mxu0 0.0
    %4510 = vmatpush1.xpose.msra.mxu0 0.0
    %4511 = vmatprep.subr.mxu0 0.0
    %4512 = vmatpush1.xpose.msra.mxu0 0.0
    %4513 = vmatprep.subr.mxu0 0.0
    %4514 = vmatpush1.xpose.msra.mxu0 0.0
    %4515 = vmatprep.subr.mxu0 0.0
    %4516 = vmatpush1.xpose.msra.mxu0 0.0
    %4517 = vmatprep.subr.mxu0 0.0
    %4518 = vmatpush1.xpose.msra.mxu0 0.0
    %4519 = vmatprep.subr.mxu0 0.0
    %4520 = vmatpush1.xpose.msra.mxu0 0.0
    %4521 = vmatprep.subr.mxu0 0.0
    %4522 = vmatpush1.xpose.msra.mxu0 0.0
    %4523 = vmatprep.subr.mxu0 0.0
    %4524 = vmatpush1.xpose.msra.mxu0 0.0
    %4525 = vmatprep.subr.mxu0 0.0
    %4526 = vmatpush1.xpose.msra.mxu0 0.0
    %4527 = vmatprep.subr.mxu0 0.0
    %4528 = vmatpush1.xpose.msra.mxu0 0.0
    %4529 = vmatprep.subr.mxu0 0.0
    %4530 = vmatpush1.xpose.msra.mxu0 0.0
    %4531 = vmatprep.subr.mxu0 0.0
    %4532 = vmatpush1.xpose.msra.mxu0 0.0
    %4533 = vmatprep.subr.mxu0 0.0
    %4534 = vmatpush1.xpose.msra.mxu0 0.0
    %4535 = vmatprep.subr.mxu0 0.0
    %4536 = vmatpush1.xpose.msra.mxu0 0.0
    %4537 = vmatprep.subr.mxu0 0.0
    %4538 = vmatpush1.xpose.msra.mxu0 0.0
    %4539 = vmatprep.subr.mxu0 0.0
    %4540 = vmatpush1.xpose.msra.mxu0 0.0
    %4541 = vmatprep.subr.mxu0 0.0
    %4542 = vmatpush1.xpose.msra.mxu0 0.0
    %4543 = vmatprep.subr.mxu0 0.0
    %4544 = vmatpush1.xpose.msra.mxu0 0.0
    %4545 = vmatprep.subr.mxu0 0.0
    %4546 = vmatpush1.xpose.msra.mxu0 0.0
    %4547 = vmatprep.subr.mxu0 0.0
    %4548 = vmatpush1.xpose.msra.mxu0 0.0
    %4549 = vmatprep.subr.mxu0 0.0
    %4550 = vmatpush1.xpose.msra.mxu0 0.0
    %4551 = vmatprep.subr.mxu0 0.0
    %4552 = vmatpush1.xpose.msra.mxu0 0.0
    %4553 = vmatprep.subr.mxu0 0.0
    %4554 = vmatpush1.xpose.msra.mxu0 0.0
    %4555 = vmatprep.subr.mxu0 0.0
    %4556 = vmatpush1.xpose.msra.mxu0 0.0
    %4557 = vmatprep.mubr.f32.mxu0 0.0
    %4558 = vmatmul.mubr.f32.gmra.mrb[0].mxu0 %v4488
    %v4559 = vpop.f32.mrb[0].mxu0
    %v4560 = vadd.f32 %v2873, %v4559
    %v4561 = vpop.f32.mrb[0].mxu0
    %4562 = vdwg.mxu0
    %v4564 = vsel %vm400, %v4308, 0
    %v4567 = vsel %vm400, %v4396, 0
    %4569 = vmatprep.subr.mxu0 0.0
    %4570 = vmatpush1.xpose.msra.mxu0 %v4567
    %4571 = vmatprep.subr.mxu0 0.0
    %4572 = vmatpush1.xpose.msra.mxu0 0.0
    %4573 = vmatprep.subr.mxu0 0.0
    %4574 = vmatpush1.xpose.msra.mxu0 0.0
    %4575 = vmatprep.subr.mxu0 0.0
    %4576 = vmatpush1.xpose.msra.mxu0 0.0
    %4577 = vmatprep.subr.mxu0 0.0
    %4578 = vmatpush1.xpose.msra.mxu0 0.0
    %4579 = vmatprep.subr.mxu0 0.0
    %4580 = vmatpush1.xpose.msra.mxu0 0.0
    %4581 = vmatprep.subr.mxu0 0.0
    %4582 = vmatpush1.xpose.msra.mxu0 0.0
    %4583 = vmatprep.subr.mxu0 0.0
    %4584 = vmatpush1.xpose.msra.mxu0 0.0
    %4585 = vmatprep.subr.mxu0 0.0
    %4586 = vmatpush1.xpose.msra.mxu0 0.0
    %4587 = vmatprep.subr.mxu0 0.0
    %4588 = vmatpush1.xpose.msra.mxu0 0.0
    %4589 = vmatprep.subr.mxu0 0.0
    %4590 = vmatpush1.xpose.msra.mxu0 0.0
    %4591 = vmatprep.subr.mxu0 0.0
    %4592 = vmatpush1.xpose.msra.mxu0 0.0
    %4593 = vmatprep.subr.mxu0 0.0
    %4594 = vmatpush1.xpose.msra.mxu0 0.0
    %4595 = vmatprep.subr.mxu0 0.0
    %4596 = vmatpush1.xpose.msra.mxu0 0.0
    %4597 = vmatprep.subr.mxu0 0.0
    %4598 = vmatpush1.xpose.msra.mxu0 0.0
    %4599 = vmatprep.subr.mxu0 0.0
    %4600 = vmatpush1.xpose.msra.mxu0 0.0
    %4601 = vmatprep.subr.mxu0 0.0
    %4602 = vmatpush1.xpose.msra.mxu0 0.0
    %4603 = vmatprep.subr.mxu0 0.0
    %4604 = vmatpush1.xpose.msra.mxu0 0.0
    %4605 = vmatprep.subr.mxu0 0.0
    %4606 = vmatpush1.xpose.msra.mxu0 0.0
    %4607 = vmatprep.subr.mxu0 0.0
    %4608 = vmatpush1.xpose.msra.mxu0 0.0
    %4609 = vmatprep.subr.mxu0 0.0
    %4610 = vmatpush1.xpose.msra.mxu0 0.0
    %4611 = vmatprep.subr.mxu0 0.0
    %4612 = vmatpush1.xpose.msra.mxu0 0.0
    %4613 = vmatprep.subr.mxu0 0.0
    %4614 = vmatpush1.xpose.msra.mxu0 0.0
    %4615 = vmatprep.subr.mxu0 0.0
    %4616 = vmatpush1.xpose.msra.mxu0 0.0
    %4617 = vmatprep.subr.mxu0 0.0
    %4618 = vmatpush1.xpose.msra.mxu0 0.0
    %4619 = vmatprep.subr.mxu0 0.0
    %4620 = vmatpush1.xpose.msra.mxu0 0.0
    %4621 = vmatprep.subr.mxu0 0.0
    %4622 = vmatpush1.xpose.msra.mxu0 0.0
    %4623 = vmatprep.subr.mxu0 0.0
    %4624 = vmatpush1.xpose.msra.mxu0 0.0
    %4625 = vmatprep.subr.mxu0 0.0
    %4626 = vmatpush1.xpose.msra.mxu0 0.0
    %4627 = vmatprep.subr.mxu0 0.0
    %4628 = vmatpush1.xpose.msra.mxu0 0.0
    %4629 = vmatprep.subr.mxu0 0.0
    %4630 = vmatpush1.xpose.msra.mxu0 0.0
    %4631 = vmatprep.subr.mxu0 0.0
    %4632 = vmatpush1.xpose.msra.mxu0 0.0
    %4633 = vmatprep.mubr.f32.mxu0 0.0
    %4634 = vmatmul.mubr.f32.gmra.mrb[0].mxu0 %v4564
    %v4635 = vpop.f32.mrb[0].mxu0
    %v4636 = vadd.f32 %v2877, %v4635
    %v4637 = vpop.f32.mrb[0].mxu0
    %4638 = vdwg.mxu0
    %v4639 = vmul.f32 %v4560, 0.015625
    %v4640 = vmul.f32 %v4636, 0.015625
    %v4641 = vsel %vm400, %v4639, -inf
    %4642 = vmax.xlane.f32.xlu0 %v4641
    %v4643 = vpop.xlane.xlu0 %4642
    %v4644 = vsel %vm400, %v4640, -inf
    %4645 = vmax.xlane.f32.xlu0 %v4644
    %v4646 = vpop.xlane.xlu0 %4645
    %v4647 = vsub.f32 %v4639, %v4643
    %v4648 = vsub.f32 %v4640, %v4646
    %v4649 = vmul.f32 %v4647, 1.442695
    %v4650 = vpow.pop %v4649
    %v4651 = vmul.f32 %v4648, 1.442695
    %v4652 = vpow.pop %v4651
    %v4653 = vsel %vm400, %v4650, 0.0
    %4654 = vadd.xlane.f32.xlu0 %v4653
    %v4655 = vpop.xlane.xlu0 %4654
    %v4656 = vsel %vm400, %v4652, 0.0
    %4657 = vadd.xlane.f32.xlu0 %v4656
    %v4658 = vpop.xlane.xlu0 %4657
    %v4659 = vrcp.pop %v4655
    %v4660 = vrcp.pop %v4658
    %v4661 = vmul.f32 %v4650, %v4659
    %v4662 = vmul.f32 %v4652, %v4660
    %v4664 = vsel %vm400, %v4661, 0
    %4666 = vmatprep.subr.mxu0 0.0
    %4667 = vmatpush1.msra.mxu0 %v4479
    %4668 = vmatprep.subr.mxu0 0.0
    %4669 = vmatpush1.msra.mxu0 0.0
    %4670 = vmatprep.subr.mxu0 0.0
    %4671 = vmatpush1.msra.mxu0 0.0
    %4672 = vmatprep.subr.mxu0 0.0
    %4673 = vmatpush1.msra.mxu0 0.0
    %4674 = vmatprep.subr.mxu0 0.0
    %4675 = vmatpush1.msra.mxu0 0.0
    %4676 = vmatprep.subr.mxu0 0.0
    %4677 = vmatpush1.msra.mxu0 0.0
    %4678 = vmatprep.subr.mxu0 0.0
    %4679 = vmatpush1.msra.mxu0 0.0
    %4680 = vmatprep.subr.mxu0 0.0
    %4681 = vmatpush1.msra.mxu0 0.0
    %4682 = vmatprep.subr.mxu0 0.0
    %4683 = vmatpush1.msra.mxu0 0.0
    %4684 = vmatprep.subr.mxu0 0.0
    %4685 = vmatpush1.msra.mxu0 0.0
    %4686 = vmatprep.subr.mxu0 0.0
    %4687 = vmatpush1.msra.mxu0 0.0
    %4688 = vmatprep.subr.mxu0 0.0
    %4689 = vmatpush1.msra.mxu0 0.0
    %4690 = vmatprep.subr.mxu0 0.0
    %4691 = vmatpush1.msra.mxu0 0.0
    %4692 = vmatprep.subr.mxu0 0.0
    %4693 = vmatpush1.msra.mxu0 0.0
    %4694 = vmatprep.subr.mxu0 0.0
    %4695 = vmatpush1.msra.mxu0 0.0
    %4696 = vmatprep.subr.mxu0 0.0
    %4697 = vmatpush1.msra.mxu0 0.0
    %4698 = vmatprep.subr.mxu0 0.0
    %4699 = vmatpush1.msra.mxu0 0.0
    %4700 = vmatprep.subr.mxu0 0.0
    %4701 = vmatpush1.msra.mxu0 0.0
    %4702 = vmatprep.subr.mxu0 0.0
    %4703 = vmatpush1.msra.mxu0 0.0
    %4704 = vmatprep.subr.mxu0 0.0
    %4705 = vmatpush1.msra.mxu0 0.0
    %4706 = vmatprep.subr.mxu0 0.0
    %4707 = vmatpush1.msra.mxu0 0.0
    %4708 = vmatprep.subr.mxu0 0.0
    %4709 = vmatpush1.msra.mxu0 0.0
    %4710 = vmatprep.subr.mxu0 0.0
    %4711 = vmatpush1.msra.mxu0 0.0
    %4712 = vmatprep.subr.mxu0 0.0
    %4713 = vmatpush1.msra.mxu0 0.0
    %4714 = vmatprep.subr.mxu0 0.0
    %4715 = vmatpush1.msra.mxu0 0.0
    %4716 = vmatprep.subr.mxu0 0.0
    %4717 = vmatpush1.msra.mxu0 0.0
    %4718 = vmatprep.subr.mxu0 0.0
    %4719 = vmatpush1.msra.mxu0 0.0
    %4720 = vmatprep.subr.mxu0 0.0
    %4721 = vmatpush1.msra.mxu0 0.0
    %4722 = vmatprep.subr.mxu0 0.0
    %4723 = vmatpush1.msra.mxu0 0.0
    %4724 = vmatprep.subr.mxu0 0.0
    %4725 = vmatpush1.msra.mxu0 0.0
    %4726 = vmatprep.subr.mxu0 0.0
    %4727 = vmatpush1.msra.mxu0 0.0
    %4728 = vmatprep.subr.mxu0 0.0
    %4729 = vmatpush1.msra.mxu0 0.0
    %4730 = vmatprep.mubr.f32.mxu0 0.0
    %4731 = vmatmul.mubr.f32.gmra.mrb[0].mxu0 %v4664
    %v4732 = vpop.f32.mrb[0].mxu0
    %v4733 = vadd.f32 0.0, %v4732
    %v4734 = vpop.f32.mrb[0].mxu0
    %4735 = vdwg.mxu0
    %v4737 = vsel %vm400, %v4662, 0
    %4739 = vmatprep.subr.mxu0 0.0
    %4740 = vmatpush1.msra.mxu0 %v4484
    %4741 = vmatprep.subr.mxu0 0.0
    %4742 = vmatpush1.msra.mxu0 0.0
    %4743 = vmatprep.subr.mxu0 0.0
    %4744 = vmatpush1.msra.mxu0 0.0
    %4745 = vmatprep.subr.mxu0 0.0
    %4746 = vmatpush1.msra.mxu0 0.0
    %4747 = vmatprep.subr.mxu0 0.0
    %4748 = vmatpush1.msra.mxu0 0.0
    %4749 = vmatprep.subr.mxu0 0.0
    %4750 = vmatpush1.msra.mxu0 0.0
    %4751 = vmatprep.subr.mxu0 0.0
    %4752 = vmatpush1.msra.mxu0 0.0
    %4753 = vmatprep.subr.mxu0 0.0
    %4754 = vmatpush1.msra.mxu0 0.0
    %4755 = vmatprep.subr.mxu0 0.0
    %4756 = vmatpush1.msra.mxu0 0.0
    %4757 = vmatprep.subr.mxu0 0.0
    %4758 = vmatpush1.msra.mxu0 0.0
    %4759 = vmatprep.subr.mxu0 0.0
    %4760 = vmatpush1.msra.mxu0 0.0
    %4761 = vmatprep.subr.mxu0 0.0
    %4762 = vmatpush1.msra.mxu0 0.0
    %4763 = vmatprep.subr.mxu0 0.0
    %4764 = vmatpush1.msra.mxu0 0.0
    %4765 = vmatprep.subr.mxu0 0.0
    %4766 = vmatpush1.msra.mxu0 0.0
    %4767 = vmatprep.subr.mxu0 0.0
    %4768 = vmatpush1.msra.mxu0 0.0
    %4769 = vmatprep.subr.mxu0 0.0
    %4770 = vmatpush1.msra.mxu0 0.0
    %4771 = vmatprep.subr.mxu0 0.0
    %4772 = vmatpush1.msra.mxu0 0.0
    %4773 = vmatprep.subr.mxu0 0.0
    %4774 = vmatpush1.msra.mxu0 0.0
    %4775 = vmatprep.subr.mxu0 0.0
    %4776 = vmatpush1.msra.mxu0 0.0
    %4777 = vmatprep.subr.mxu0 0.0
    %4778 = vmatpush1.msra.mxu0 0.0
    %4779 = vmatprep.subr.mxu0 0.0
    %4780 = vmatpush1.msra.mxu0 0.0
    %4781 = vmatprep.subr.mxu0 0.0
    %4782 = vmatpush1.msra.mxu0 0.0
    %4783 = vmatprep.subr.mxu0 0.0
    %4784 = vmatpush1.msra.mxu0 0.0
    %4785 = vmatprep.subr.mxu0 0.0
    %4786 = vmatpush1.msra.mxu0 0.0
    %4787 = vmatprep.subr.mxu0 0.0
    %4788 = vmatpush1.msra.mxu0 0.0
    %4789 = vmatprep.subr.mxu0 0.0
    %4790 = vmatpush1.msra.mxu0 0.0
    %4791 = vmatprep.subr.mxu0 0.0
    %4792 = vmatpush1.msra.mxu0 0.0
    %4793 = vmatprep.subr.mxu0 0.0
    %4794 = vmatpush1.msra.mxu0 0.0
    %4795 = vmatprep.subr.mxu0 0.0
    %4796 = vmatpush1.msra.mxu0 0.0
    %4797 = vmatprep.subr.mxu0 0.0
    %4798 = vmatpush1.msra.mxu0 0.0
    %4799 = vmatprep.subr.mxu0 0.0
    %4800 = vmatpush1.msra.mxu0 0.0
    %4801 = vmatprep.subr.mxu0 0.0
    %4802 = vmatpush1.msra.mxu0 0.0
    %4803 = vmatprep.mubr.f32.mxu0 0.0
    %4804 = vmatmul.mubr.f32.gmra.mrb[0].mxu0 %v4737
    %v4805 = vpop.f32.mrb[0].mxu0
    %v4806 = vadd.f32 0.0, %v4805
    %v4807 = vpop.f32.mrb[0].mxu0
    %4808 = vdwg.mxu0
    %s4809 = scalar_lea.vmem %s21, 16
    %v4810 = vld [vmem:[%s4809] sm:$0xff]
    %v4812 = vsel %vm400, %v4733, 0
    %v4815 = vsel %vm400, %v4806, 0
    %4817 = vmatprep.subr.mxu0 0.0
    %4818 = vmatpush1.msra.mxu0 %v4810
    %4819 = vmatprep.subr.mxu0 0.0
    %4820 = vmatpush1.msra.mxu0 0.0
    %4821 = vmatprep.subr.mxu0 0.0
    %4822 = vmatpush1.msra.mxu0 0.0
    %4823 = vmatprep.subr.mxu0 0.0
    %4824 = vmatpush1.msra.mxu0 0.0
    %4825 = vmatprep.subr.mxu0 0.0
    %4826 = vmatpush1.msra.mxu0 0.0
    %4827 = vmatprep.subr.mxu0 0.0
    %4828 = vmatpush1.msra.mxu0 0.0
    %4829 = vmatprep.subr.mxu0 0.0
    %4830 = vmatpush1.msra.mxu0 0.0
    %4831 = vmatprep.subr.mxu0 0.0
    %4832 = vmatpush1.msra.mxu0 0.0
    %4833 = vmatprep.subr.mxu0 0.0
    %4834 = vmatpush1.msra.mxu0 0.0
    %4835 = vmatprep.subr.mxu0 0.0
    %4836 = vmatpush1.msra.mxu0 0.0
    %4837 = vmatprep.subr.mxu0 0.0
    %4838 = vmatpush1.msra.mxu0 0.0
    %4839 = vmatprep.subr.mxu0 0.0
    %4840 = vmatpush1.msra.mxu0 0.0
    %4841 = vmatprep.subr.mxu0 0.0
    %4842 = vmatpush1.msra.mxu0 0.0
    %4843 = vmatprep.subr.mxu0 0.0
    %4844 = vmatpush1.msra.mxu0 0.0
    %4845 = vmatprep.subr.mxu0 0.0
    %4846 = vmatpush1.msra.mxu0 0.0
    %4847 = vmatprep.subr.mxu0 0.0
    %4848 = vmatpush1.msra.mxu0 0.0
    %4849 = vmatprep.subr.mxu0 0.0
    %4850 = vmatpush1.msra.mxu0 0.0
    %4851 = vmatprep.subr.mxu0 0.0
    %4852 = vmatpush1.msra.mxu0 0.0
    %4853 = vmatprep.subr.mxu0 0.0
    %4854 = vmatpush1.msra.mxu0 0.0
    %4855 = vmatprep.subr.mxu0 0.0
    %4856 = vmatpush1.msra.mxu0 0.0
    %4857 = vmatprep.subr.mxu0 0.0
    %4858 = vmatpush1.msra.mxu0 0.0
    %4859 = vmatprep.subr.mxu0 0.0
    %4860 = vmatpush1.msra.mxu0 0.0
    %4861 = vmatprep.subr.mxu0 0.0
    %4862 = vmatpush1.msra.mxu0 0.0
    %4863 = vmatprep.subr.mxu0 0.0
    %4864 = vmatpush1.msra.mxu0 0.0
    %4865 = vmatprep.subr.mxu0 0.0
    %4866 = vmatpush1.msra.mxu0 0.0
    %4867 = vmatprep.subr.mxu0 0.0
    %4868 = vmatpush1.msra.mxu0 0.0
    %4869 = vmatprep.subr.mxu0 0.0
    %4870 = vmatpush1.msra.mxu0 0.0
    %4871 = vmatprep.subr.mxu0 0.0
    %4872 = vmatpush1.msra.mxu0 0.0
    %4873 = vmatprep.subr.mxu0 0.0
    %4874 = vmatpush1.msra.mxu0 0.0
    %4875 = vmatprep.subr.mxu0 0.0
    %4876 = vmatpush1.msra.mxu0 0.0
    %4877 = vmatprep.subr.mxu0 0.0
    %4878 = vmatpush1.msra.mxu0 0.0
    %4879 = vmatprep.subr.mxu0 0.0
    %4880 = vmatpush1.msra.mxu0 0.0
    %4881 = vmatprep.mubr.f32.mxu0 0.0
    %4882 = vmatmul.mubr.f32.gmra.mrb[0].mxu0 %v4812
    %v4883 = vpop.f32.mrb[0].mxu0
    %v4884 = vadd.f32 0.0, %v4883
    %v4885 = vpop.f32.mrb[0].mxu0
    %4886 = vmatprep.mubr.f32.mxu0 0.0
    %4887 = vmatmul.mubr.f32.gmra.mrb[0].mxu0 %v4815
    %v4888 = vpop.f32.mrb[0].mxu0
    %v4889 = vadd.f32 0.0, %v4888
    %v4890 = vpop.f32.mrb[0].mxu0
    %4891 = vdwg.mxu0
    %v4892 = vadd.f32 %v4215, %v4884
    %v4893 = vadd.f32 %v4220, %v4889
    %s4894 = scalar_lea.vmem %s15, 96
    %v4895 = vld [vmem:[%s4894] sm:$0xff]
    %v4896 = vld [vmem:[%s4894 + $0x8] sm:$0xff]
    %v4897 = vld [vmem:[%s4894 + $0x10] sm:$0xff]
    %v4898 = vld [vmem:[%s4894 + $0x18] sm:$0xff]
    %s4899 = scalar_lea.vmem %s16, 3
    %v4900 = vld [vmem:[%s4899] sm:$0x1]
    %v4902 = vlaneseq
    %v4903 = vshrl.u32 %v4902, 7
    %v4904 = vsub.s32 0, %v4903
    %v4905 = vrot.slane %v4900, %v4904
    %4907 = vmatprep.subr.mxu0 0.0
    %4908 = vmatpush1.msra.mxu0 %v4895
    %4909 = vmatprep.subr.mxu0 0.0
    %4910 = vmatpush1.msra.mxu0 %v4896
    %4911 = vmatprep.subr.mxu0 0.0
    %4912 = vmatpush1.msra.mxu0 %v4897
    %4913 = vmatprep.subr.mxu0 0.0
    %4914 = vmatpush1.msra.mxu0 %v4898
    %4915 = vmatprep.subr.mxu0 0.0
    %4916 = vmatpush1.msra.mxu0 0.0
    %4917 = vmatprep.subr.mxu0 0.0
    %4918 = vmatpush1.msra.mxu0 0.0
    %4919 = vmatprep.subr.mxu0 0.0
    %4920 = vmatpush1.msra.mxu0 0.0
    %4921 = vmatprep.subr.mxu0 0.0
    %4922 = vmatpush1.msra.mxu0 0.0
    %4923 = vmatprep.subr.mxu0 0.0
    %4924 = vmatpush1.msra.mxu0 0.0
    %4925 = vmatprep.subr.mxu0 0.0
    %4926 = vmatpush1.msra.mxu0 0.0
    %4927 = vmatprep.subr.mxu0 0.0
    %4928 = vmatpush1.msra.mxu0 0.0
    %4929 = vmatprep.subr.mxu0 0.0
    %4930 = vmatpush1.msra.mxu0 0.0
    %4931 = vmatprep.subr.mxu0 0.0
    %4932 = vmatpush1.msra.mxu0 0.0
    %4933 = vmatprep.subr.mxu0 0.0
    %4934 = vmatpush1.msra.mxu0 0.0
    %4935 = vmatprep.subr.mxu0 0.0
    %4936 = vmatpush1.msra.mxu0 0.0
    %4937 = vmatprep.subr.mxu0 0.0
    %4938 = vmatpush1.msra.mxu0 0.0
    %4939 = vmatprep.subr.mxu0 0.0
    %4940 = vmatpush1.msra.mxu0 0.0
    %4941 = vmatprep.subr.mxu0 0.0
    %4942 = vmatpush1.msra.mxu0 0.0
    %4943 = vmatprep.subr.mxu0 0.0
    %4944 = vmatpush1.msra.mxu0 0.0
    %4945 = vmatprep.subr.mxu0 0.0
    %4946 = vmatpush1.msra.mxu0 0.0
    %4947 = vmatprep.subr.mxu0 0.0
    %4948 = vmatpush1.msra.mxu0 0.0
    %4949 = vmatprep.subr.mxu0 0.0
    %4950 = vmatpush1.msra.mxu0 0.0
    %4951 = vmatprep.subr.mxu0 0.0
    %4952 = vmatpush1.msra.mxu0 0.0
    %4953 = vmatprep.subr.mxu0 0.0
    %4954 = vmatpush1.msra.mxu0 0.0
    %4955 = vmatprep.subr.mxu0 0.0
    %4956 = vmatpush1.msra.mxu0 0.0
    %4957 = vmatprep.subr.mxu0 0.0
    %4958 = vmatpush1.msra.mxu0 0.0
    %4959 = vmatprep.subr.mxu0 0.0
    %4960 = vmatpush1.msra.mxu0 0.0
    %4961 = vmatprep.subr.mxu0 0.0
    %4962 = vmatpush1.msra.mxu0 0.0
    %4963 = vmatprep.subr.mxu0 0.0
    %4964 = vmatpush1.msra.mxu0 0.0
    %4965 = vmatprep.subr.mxu0 0.0
    %4966 = vmatpush1.msra.mxu0 0.0
    %4967 = vmatprep.subr.mxu0 0.0
    %4968 = vmatpush1.msra.mxu0 0.0
    %4969 = vmatprep.subr.mxu0 0.0
    %4970 = vmatpush1.msra.mxu0 0.0
    %4971 = vmatprep.mubr.f32.mxu0 0.0
    %4972 = vmatmul.mubr.f32.gmra.mrb[0].mxu0 %v2892
    %v4973 = vpop.f32.mrb[0].mxu0
    %v4974 = vadd.f32 %v4905, %v4973
    %v4975 = vpop.f32.mrb[0].mxu0
    %4976 = vmatprep.mubr.f32.mxu0 0.0
    %4977 = vmatmul.mubr.f32.gmra.mrb[0].mxu0 %v2895
    %v4978 = vpop.f32.mrb[0].mxu0
    %v4979 = vadd.f32 %v4905, %v4978
    %v4980 = vpop.f32.mrb[0].mxu0
    %4981 = vdwg.mxu0
    %s4982 = scalar_lea.vmem %s17, 96
    %v4983 = vld [vmem:[%s4982] sm:$0xff]
    %v4984 = vld [vmem:[%s4982 + $0x8] sm:$0xff]
    %v4985 = vld [vmem:[%s4982 + $0x10] sm:$0xff]
    %v4986 = vld [vmem:[%s4982 + $0x18] sm:$0xff]
    %s4987 = scalar_lea.vmem %s18, 3
    %v4988 = vld [vmem:[%s4987] sm:$0x1]
    %v4990 = vlaneseq
    %v4991 = vshrl.u32 %v4990, 7
    %v4992 = vsub.s32 0, %v4991
    %v4993 = vrot.slane %v4988, %v4992
    %4995 = vmatprep.subr.mxu0 0.0
    %4996 = vmatpush1.msra.mxu0 %v4983
    %4997 = vmatprep.subr.mxu0 0.0
    %4998 = vmatpush1.msra.mxu0 %v4984
    %4999 = vmatprep.subr.mxu0 0.0
    %5000 = vmatpush1.msra.mxu0 %v4985
    %5001 = vmatprep.subr.mxu0 0.0
    %5002 = vmatpush1.msra.mxu0 %v4986
    %5003 = vmatprep.subr.mxu0 0.0
    %5004 = vmatpush1.msra.mxu0 0.0
    %5005 = vmatprep.subr.mxu0 0.0
    %5006 = vmatpush1.msra.mxu0 0.0
    %5007 = vmatprep.subr.mxu0 0.0
    %5008 = vmatpush1.msra.mxu0 0.0
    %5009 = vmatprep.subr.mxu0 0.0
    %5010 = vmatpush1.msra.mxu0 0.0
    %5011 = vmatprep.subr.mxu0 0.0
    %5012 = vmatpush1.msra.mxu0 0.0
    %5013 = vmatprep.subr.mxu0 0.0
    %5014 = vmatpush1.msra.mxu0 0.0
    %5015 = vmatprep.subr.mxu0 0.0
    %5016 = vmatpush1.msra.mxu0 0.0
    %5017 = vmatprep.subr.mxu0 0.0
    %5018 = vmatpush1.msra.mxu0 0.0
    %5019 = vmatprep.subr.mxu0 0.0
    %5020 = vmatpush1.msra.mxu0 0.0
    %5021 = vmatprep.subr.mxu0 0.0
    %5022 = vmatpush1.msra.mxu0 0.0
    %5023 = vmatprep.subr.mxu0 0.0
    %5024 = vmatpush1.msra.mxu0 0.0
    %5025 = vmatprep.subr.mxu0 0.0
    %5026 = vmatpush1.msra.mxu0 0.0
    %5027 = vmatprep.subr.mxu0 0.0
    %5028 = vmatpush1.msra.mxu0 0.0
    %5029 = vmatprep.subr.mxu0 0.0
    %5030 = vmatpush1.msra.mxu0 0.0
    %5031 = vmatprep.subr.mxu0 0.0
    %5032 = vmatpush1.msra.mxu0 0.0
    %5033 = vmatprep.subr.mxu0 0.0
    %5034 = vmatpush1.msra.mxu0 0.0
    %5035 = vmatprep.subr.mxu0 0.0
    %5036 = vmatpush1.msra.mxu0 0.0
    %5037 = vmatprep.subr.mxu0 0.0
    %5038 = vmatpush1.msra.mxu0 0.0
    %5039 = vmatprep.subr.mxu0 0.0
    %5040 = vmatpush1.msra.mxu0 0.0
    %5041 = vmatprep.subr.mxu0 0.0
    %5042 = vmatpush1.msra.mxu0 0.0
    %5043 = vmatprep.subr.mxu0 0.0
    %5044 = vmatpush1.msra.mxu0 0.0
    %5045 = vmatprep.subr.mxu0 0.0
    %5046 = vmatpush1.msra.mxu0 0.0
    %5047 = vmatprep.subr.mxu0 0.0
    %5048 = vmatpush1.msra.mxu0 0.0
    %5049 = vmatprep.subr.mxu0 0.0
    %5050 = vmatpush1.msra.mxu0 0.0
    %5051 = vmatprep.subr.mxu0 0.0
    %5052 = vmatpush1.msra.mxu0 0.0
    %5053 = vmatprep.subr.mxu0 0.0
    %5054 = vmatpush1.msra.mxu0 0.0
    %5055 = vmatprep.subr.mxu0 0.0
    %5056 = vmatpush1.msra.mxu0 0.0
    %5057 = vmatprep.subr.mxu0 0.0
    %5058 = vmatpush1.msra.mxu0 0.0
    %5059 = vmatprep.mubr.f32.mxu0 0.0
    %5060 = vmatmul.mubr.f32.gmra.mrb[0].mxu0 %v2984
    %v5061 = vpop.f32.mrb[0].mxu0
    %v5062 = vadd.f32 %v4993, %v5061
    %v5063 = vpop.f32.mrb[0].mxu0
    %5064 = vmatprep.mubr.f32.mxu0 0.0
    %5065 = vmatmul.mubr.f32.gmra.mrb[0].mxu0 %v2987
    %v5066 = vpop.f32.mrb[0].mxu0
    %v5067 = vadd.f32 %v4993, %v5066
    %v5068 = vpop.f32.mrb[0].mxu0
    %5069 = vdwg.mxu0
    %s5070 = scalar_lea.vmem %s19, 96
    %v5071 = vld [vmem:[%s5070] sm:$0xff]
    %v5072 = vld [vmem:[%s5070 + $0x8] sm:$0xff]
    %v5073 = vld [vmem:[%s5070 + $0x10] sm:$0xff]
    %v5074 = vld [vmem:[%s5070 + $0x18] sm:$0xff]
    %s5075 = scalar_lea.vmem %s20, 3
    %v5076 = vld [vmem:[%s5075] sm:$0x1]
    %v5078 = vlaneseq
    %v5079 = vshrl.u32 %v5078, 7
    %v5080 = vsub.s32 0, %v5079
    %v5081 = vrot.slane %v5076, %v5080
    %5083 = vmatprep.subr.mxu0 0.0
    %5084 = vmatpush1.msra.mxu0 %v5071
    %5085 = vmatprep.subr.mxu0 0.0
    %5086 = vmatpush1.msra.mxu0 %v5072
    %5087 = vmatprep.subr.mxu0 0.0
    %5088 = vmatpush1.msra.mxu0 %v5073
    %5089 = vmatprep.subr.mxu0 0.0
    %5090 = vmatpush1.msra.mxu0 %v5074
    %5091 = vmatprep.subr.mxu0 0.0
    %5092 = vmatpush1.msra.mxu0 0.0
    %5093 = vmatprep.subr.mxu0 0.0
    %5094 = vmatpush1.msra.mxu0 0.0
    %5095 = vmatprep.subr.mxu0 0.0
    %5096 = vmatpush1.msra.mxu0 0.0
    %5097 = vmatprep.subr.mxu0 0.0
    %5098 = vmatpush1.msra.mxu0 0.0
    %5099 = vmatprep.subr.mxu0 0.0
    %5100 = vmatpush1.msra.mxu0 0.0
    %5101 = vmatprep.subr.mxu0 0.0
    %5102 = vmatpush1.msra.mxu0 0.0
    %5103 = vmatprep.subr.mxu0 0.0
    %5104 = vmatpush1.msra.mxu0 0.0
    %5105 = vmatprep.subr.mxu0 0.0
    %5106 = vmatpush1.msra.mxu0 0.0
    %5107 = vmatprep.subr.mxu0 0.0
    %5108 = vmatpush1.msra.mxu0 0.0
    %5109 = vmatprep.subr.mxu0 0.0
    %5110 = vmatpush1.msra.mxu0 0.0
    %5111 = vmatprep.subr.mxu0 0.0
    %5112 = vmatpush1.msra.mxu0 0.0
    %5113 = vmatprep.subr.mxu0 0.0
    %5114 = vmatpush1.msra.mxu0 0.0
    %5115 = vmatprep.subr.mxu0 0.0
    %5116 = vmatpush1.msra.mxu0 0.0
    %5117 = vmatprep.subr.mxu0 0.0
    %5118 = vmatpush1.msra.mxu0 0.0
    %5119 = vmatprep.subr.mxu0 0.0
    %5120 = vmatpush1.msra.mxu0 0.0
    %5121 = vmatprep.subr.mxu0 0.0
    %5122 = vmatpush1.msra.mxu0 0.0
    %5123 = vmatprep.subr.mxu0 0.0
    %5124 = vmatpush1.msra.mxu0 0.0
    %5125 = vmatprep.subr.mxu0 0.0
    %5126 = vmatpush1.msra.mxu0 0.0
    %5127 = vmatprep.subr.mxu0 0.0
    %5128 = vmatpush1.msra.mxu0 0.0
    %5129 = vmatprep.subr.mxu0 0.0
    %5130 = vmatpush1.msra.mxu0 0.0
    %5131 = vmatprep.subr.mxu0 0.0
    %5132 = vmatpush1.msra.mxu0 0.0
    %5133 = vmatprep.subr.mxu0 0.0
    %5134 = vmatpush1.msra.mxu0 0.0
    %5135 = vmatprep.subr.mxu0 0.0
    %5136 = vmatpush1.msra.mxu0 0.0
    %5137 = vmatprep.subr.mxu0 0.0
    %5138 = vmatpush1.msra.mxu0 0.0
    %5139 = vmatprep.subr.mxu0 0.0
    %5140 = vmatpush1.msra.mxu0 0.0
    %5141 = vmatprep.subr.mxu0 0.0
    %5142 = vmatpush1.msra.mxu0 0.0
    %5143 = vmatprep.subr.mxu0 0.0
    %5144 = vmatpush1.msra.mxu0 0.0
    %5145 = vmatprep.subr.mxu0 0.0
    %5146 = vmatpush1.msra.mxu0 0.0
    %5147 = vmatprep.mubr.f32.mxu0 0.0
    %5148 = vmatmul.mubr.f32.gmra.mrb[0].mxu0 %v2984
    %v5149 = vpop.f32.mrb[0].mxu0
    %v5150 = vadd.f32 %v5081, %v5149
    %v5151 = vpop.f32.mrb[0].mxu0
    %5152 = vmatprep.mubr.f32.mxu0 0.0
    %5153 = vmatmul.mubr.f32.gmra.mrb[0].mxu0 %v2987
    %v5154 = vpop.f32.mrb[0].mxu0
    %v5155 = vadd.f32 %v5081, %v5154
    %v5156 = vpop.f32.mrb[0].mxu0
    %5157 = vdwg.mxu0
    %v5159 = vsel %vm400, %v4974, 0
    %v5162 = vsel %vm400, %v5062, 0
    %5164 = vmatprep.subr.mxu0 0.0
    %5165 = vmatpush1.xpose.msra.mxu0 %v5162
    %5166 = vmatprep.subr.mxu0 0.0
    %5167 = vmatpush1.xpose.msra.mxu0 0.0
    %5168 = vmatprep.subr.mxu0 0.0
    %5169 = vmatpush1.xpose.msra.mxu0 0.0
    %5170 = vmatprep.subr.mxu0 0.0
    %5171 = vmatpush1.xpose.msra.mxu0 0.0
    %5172 = vmatprep.subr.mxu0 0.0
    %5173 = vmatpush1.xpose.msra.mxu0 0.0
    %5174 = vmatprep.subr.mxu0 0.0
    %5175 = vmatpush1.xpose.msra.mxu0 0.0
    %5176 = vmatprep.subr.mxu0 0.0
    %5177 = vmatpush1.xpose.msra.mxu0 0.0
    %5178 = vmatprep.subr.mxu0 0.0
    %5179 = vmatpush1.xpose.msra.mxu0 0.0
    %5180 = vmatprep.subr.mxu0 0.0
    %5181 = vmatpush1.xpose.msra.mxu0 0.0
    %5182 = vmatprep.subr.mxu0 0.0
    %5183 = vmatpush1.xpose.msra.mxu0 0.0
    %5184 = vmatprep.subr.mxu0 0.0
    %5185 = vmatpush1.xpose.msra.mxu0 0.0
    %5186 = vmatprep.subr.mxu0 0.0
    %5187 = vmatpush1.xpose.msra.mxu0 0.0
    %5188 = vmatprep.subr.mxu0 0.0
    %5189 = vmatpush1.xpose.msra.mxu0 0.0
    %5190 = vmatprep.subr.mxu0 0.0
    %5191 = vmatpush1.xpose.msra.mxu0 0.0
    %5192 = vmatprep.subr.mxu0 0.0
    %5193 = vmatpush1.xpose.msra.mxu0 0.0
    %5194 = vmatprep.subr.mxu0 0.0
    %5195 = vmatpush1.xpose.msra.mxu0 0.0
    %5196 = vmatprep.subr.mxu0 0.0
    %5197 = vmatpush1.xpose.msra.mxu0 0.0
    %5198 = vmatprep.subr.mxu0 0.0
    %5199 = vmatpush1.xpose.msra.mxu0 0.0
    %5200 = vmatprep.subr.mxu0 0.0
    %5201 = vmatpush1.xpose.msra.mxu0 0.0
    %5202 = vmatprep.subr.mxu0 0.0
    %5203 = vmatpush1.xpose.msra.mxu0 0.0
    %5204 = vmatprep.subr.mxu0 0.0
    %5205 = vmatpush1.xpose.msra.mxu0 0.0
    %5206 = vmatprep.subr.mxu0 0.0
    %5207 = vmatpush1.xpose.msra.mxu0 0.0
    %5208 = vmatprep.subr.mxu0 0.0
    %5209 = vmatpush1.xpose.msra.mxu0 0.0
    %5210 = vmatprep.subr.mxu0 0.0
    %5211 = vmatpush1.xpose.msra.mxu0 0.0
    %5212 = vmatprep.subr.mxu0 0.0
    %5213 = vmatpush1.xpose.msra.mxu0 0.0
    %5214 = vmatprep.subr.mxu0 0.0
    %5215 = vmatpush1.xpose.msra.mxu0 0.0
    %5216 = vmatprep.subr.mxu0 0.0
    %5217 = vmatpush1.xpose.msra.mxu0 0.0
    %5218 = vmatprep.subr.mxu0 0.0
    %5219 = vmatpush1.xpose.msra.mxu0 0.0
    %5220 = vmatprep.subr.mxu0 0.0
    %5221 = vmatpush1.xpose.msra.mxu0 0.0
    %5222 = vmatprep.subr.mxu0 0.0
    %5223 = vmatpush1.xpose.msra.mxu0 0.0
    %5224 = vmatprep.subr.mxu0 0.0
    %5225 = vmatpush1.xpose.msra.mxu0 0.0
    %5226 = vmatprep.subr.mxu0 0.0
    %5227 = vmatpush1.xpose.msra.mxu0 0.0
    %5228 = vmatprep.mubr.f32.mxu0 0.0
    %5229 = vmatmul.mubr.f32.gmra.mrb[0].mxu0 %v5159
    %v5230 = vpop.f32.mrb[0].mxu0
    %v5231 = vadd.f32 %v2873, %v5230
    %v5232 = vpop.f32.mrb[0].mxu0
    %5233 = vdwg.mxu0
    %v5235 = vsel %vm400, %v4979, 0
    %v5238 = vsel %vm400, %v5067, 0
    %5240 = vmatprep.subr.mxu0 0.0
    %5241 = vmatpush1.xpose.msra.mxu0 %v5238
    %5242 = vmatprep.subr.mxu0 0.0
    %5243 = vmatpush1.xpose.msra.mxu0 0.0
    %5244 = vmatprep.subr.mxu0 0.0
    %5245 = vmatpush1.xpose.msra.mxu0 0.0
    %5246 = vmatprep.subr.mxu0 0.0
    %5247 = vmatpush1.xpose.msra.mxu0 0.0
    %5248 = vmatprep.subr.mxu0 0.0
    %5249 = vmatpush1.xpose.msra.mxu0 0.0
    %5250 = vmatprep.subr.mxu0 0.0
    %5251 = vmatpush1.xpose.msra.mxu0 0.0
    %5252 = vmatprep.subr.mxu0 0.0
    %5253 = vmatpush1.xpose.msra.mxu0 0.0
    %5254 = vmatprep.subr.mxu0 0.0
    %5255 = vmatpush1.xpose.msra.mxu0 0.0
    %5256 = vmatprep.subr.mxu0 0.0
    %5257 = vmatpush1.xpose.msra.mxu0 0.0
    %5258 = vmatprep.subr.mxu0 0.0
    %5259 = vmatpush1.xpose.msra.mxu0 0.0
    %5260 = vmatprep.subr.mxu0 0.0
    %5261 = vmatpush1.xpose.msra.mxu0 0.0
    %5262 = vmatprep.subr.mxu0 0.0
    %5263 = vmatpush1.xpose.msra.mxu0 0.0
    %5264 = vmatprep.subr.mxu0 0.0
    %5265 = vmatpush1.xpose.msra.mxu0 0.0
    %5266 = vmatprep.subr.mxu0 0.0
    %5267 = vmatpush1.xpose.msra.mxu0 0.0
    %5268 = vmatprep.subr.mxu0 0.0
    %5269 = vmatpush1.xpose.msra.mxu0 0.0
    %5270 = vmatprep.subr.mxu0 0.0
    %5271 = vmatpush1.xpose.msra.mxu0 0.0
    %5272 = vmatprep.subr.mxu0 0.0
    %5273 = vmatpush1.xpose.msra.mxu0 0.0
    %5274 = vmatprep.subr.mxu0 0.0
    %5275 = vmatpush1.xpose.msra.mxu0 0.0
    %5276 = vmatprep.subr.mxu0 0.0
    %5277 = vmatpush1.xpose.msra.mxu0 0.0
    %5278 = vmatprep.subr.mxu0 0.0
    %5279 = vmatpush1.xpose.msra.mxu0 0.0
    %5280 = vmatprep.subr.mxu0 0.0
    %5281 = vmatpush1.xpose.msra.mxu0 0.0
    %5282 = vmatprep.subr.mxu0 0.0
    %5283 = vmatpush1.xpose.msra.mxu0 0.0
    %5284 = vmatprep.subr.mxu0 0.0
    %5285 = vmatpush1.xpose.msra.mxu0 0.0
    %5286 = vmatprep.subr.mxu0 0.0
    %5287 = vmatpush1.xpose.msra.mxu0 0.0
    %5288 = vmatprep.subr.mxu0 0.0
    %5289 = vmatpush1.xpose.msra.mxu0 0.0
    %5290 = vmatprep.subr.mxu0 0.0
    %5291 = vmatpush1.xpose.msra.mxu0 0.0
    %5292 = vmatprep.subr.mxu0 0.0
    %5293 = vmatpush1.xpose.msra.mxu0 0.0
    %5294 = vmatprep.subr.mxu0 0.0
    %5295 = vmatpush1.xpose.msra.mxu0 0.0
    %5296 = vmatprep.subr.mxu0 0.0
    %5297 = vmatpush1.xpose.msra.mxu0 0.0
    %5298 = vmatprep.subr.mxu0 0.0
    %5299 = vmatpush1.xpose.msra.mxu0 0.0
    %5300 = vmatprep.subr.mxu0 0.0
    %5301 = vmatpush1.xpose.msra.mxu0 0.0
    %5302 = vmatprep.subr.mxu0 0.0
    %5303 = vmatpush1.xpose.msra.mxu0 0.0
    %5304 = vmatprep.mubr.f32.mxu0 0.0
    %5305 = vmatmul.mubr.f32.gmra.mrb[0].mxu0 %v5235
    %v5306 = vpop.f32.mrb[0].mxu0
    %v5307 = vadd.f32 %v2877, %v5306
    %v5308 = vpop.f32.mrb[0].mxu0
    %5309 = vdwg.mxu0
    %v5310 = vmul.f32 %v5231, 0.015625
    %v5311 = vmul.f32 %v5307, 0.015625
    %v5312 = vsel %vm400, %v5310, -inf
    %5313 = vmax.xlane.f32.xlu0 %v5312
    %v5314 = vpop.xlane.xlu0 %5313
    %v5315 = vsel %vm400, %v5311, -inf
    %5316 = vmax.xlane.f32.xlu0 %v5315
    %v5317 = vpop.xlane.xlu0 %5316
    %v5318 = vsub.f32 %v5310, %v5314
    %v5319 = vsub.f32 %v5311, %v5317
    %v5320 = vmul.f32 %v5318, 1.442695
    %v5321 = vpow.pop %v5320
    %v5322 = vmul.f32 %v5319, 1.442695
    %v5323 = vpow.pop %v5322
    %v5324 = vsel %vm400, %v5321, 0.0
    %5325 = vadd.xlane.f32.xlu0 %v5324
    %v5326 = vpop.xlane.xlu0 %5325
    %v5327 = vsel %vm400, %v5323, 0.0
    %5328 = vadd.xlane.f32.xlu0 %v5327
    %v5329 = vpop.xlane.xlu0 %5328
    %v5330 = vrcp.pop %v5326
    %v5331 = vrcp.pop %v5329
    %v5332 = vmul.f32 %v5321, %v5330
    %v5333 = vmul.f32 %v5323, %v5331
    %v5335 = vsel %vm400, %v5332, 0
    %5337 = vmatprep.subr.mxu0 0.0
    %5338 = vmatpush1.msra.mxu0 %v5150
    %5339 = vmatprep.subr.mxu0 0.0
    %5340 = vmatpush1.msra.mxu0 0.0
    %5341 = vmatprep.subr.mxu0 0.0
    %5342 = vmatpush1.msra.mxu0 0.0
    %5343 = vmatprep.subr.mxu0 0.0
    %5344 = vmatpush1.msra.mxu0 0.0
    %5345 = vmatprep.subr.mxu0 0.0
    %5346 = vmatpush1.msra.mxu0 0.0
    %5347 = vmatprep.subr.mxu0 0.0
    %5348 = vmatpush1.msra.mxu0 0.0
    %5349 = vmatprep.subr.mxu0 0.0
    %5350 = vmatpush1.msra.mxu0 0.0
    %5351 = vmatprep.subr.mxu0 0.0
    %5352 = vmatpush1.msra.mxu0 0.0
    %5353 = vmatprep.subr.mxu0 0.0
    %5354 = vmatpush1.msra.mxu0 0.0
    %5355 = vmatprep.subr.mxu0 0.0
    %5356 = vmatpush1.msra.mxu0 0.0
    %5357 = vmatprep.subr.mxu0 0.0
    %5358 = vmatpush1.msra.mxu0 0.0
    %5359 = vmatprep.subr.mxu0 0.0
    %5360 = vmatpush1.msra.mxu0 0.0
    %5361 = vmatprep.subr.mxu0 0.0
    %5362 = vmatpush1.msra.mxu0 0.0
    %5363 = vmatprep.subr.mxu0 0.0
    %5364 = vmatpush1.msra.mxu0 0.0
    %5365 = vmatprep.subr.mxu0 0.0
    %5366 = vmatpush1.msra.mxu0 0.0
    %5367 = vmatprep.subr.mxu0 0.0
    %5368 = vmatpush1.msra.mxu0 0.0
    %5369 = vmatprep.subr.mxu0 0.0
    %5370 = vmatpush1.msra.mxu0 0.0
    %5371 = vmatprep.subr.mxu0 0.0
    %5372 = vmatpush1.msra.mxu0 0.0
    %5373 = vmatprep.subr.mxu0 0.0
    %5374 = vmatpush1.msra.mxu0 0.0
    %5375 = vmatprep.subr.mxu0 0.0
    %5376 = vmatpush1.msra.mxu0 0.0
    %5377 = vmatprep.subr.mxu0 0.0
    %5378 = vmatpush1.msra.mxu0 0.0
    %5379 = vmatprep.subr.mxu0 0.0
    %5380 = vmatpush1.msra.mxu0 0.0
    %5381 = vmatprep.subr.mxu0 0.0
    %5382 = vmatpush1.msra.mxu0 0.0
    %5383 = vmatprep.subr.mxu0 0.0
    %5384 = vmatpush1.msra.mxu0 0.0
    %5385 = vmatprep.subr.mxu0 0.0
    %5386 = vmatpush1.msra.mxu0 0.0
    %5387 = vmatprep.subr.mxu0 0.0
    %5388 = vmatpush1.msra.mxu0 0.0
    %5389 = vmatprep.subr.mxu0 0.0
    %5390 = vmatpush1.msra.mxu0 0.0
    %5391 = vmatprep.subr.mxu0 0.0
    %5392 = vmatpush1.msra.mxu0 0.0
    %5393 = vmatprep.subr.mxu0 0.0
    %5394 = vmatpush1.msra.mxu0 0.0
    %5395 = vmatprep.subr.mxu0 0.0
    %5396 = vmatpush1.msra.mxu0 0.0
    %5397 = vmatprep.subr.mxu0 0.0
    %5398 = vmatpush1.msra.mxu0 0.0
    %5399 = vmatprep.subr.mxu0 0.0
    %5400 = vmatpush1.msra.mxu0 0.0
    %5401 = vmatprep.mubr.f32.mxu0 0.0
    %5402 = vmatmul.mubr.f32.gmra.mrb[0].mxu0 %v5335
    %v5403 = vpop.f32.mrb[0].mxu0
    %v5404 = vadd.f32 0.0, %v5403
    %v5405 = vpop.f32.mrb[0].mxu0
    %5406 = vdwg.mxu0
    %v5408 = vsel %vm400, %v5333, 0
    %5410 = vmatprep.subr.mxu0 0.0
    %5411 = vmatpush1.msra.mxu0 %v5155
    %5412 = vmatprep.subr.mxu0 0.0
    %5413 = vmatpush1.msra.mxu0 0.0
    %5414 = vmatprep.subr.mxu0 0.0
    %5415 = vmatpush1.msra.mxu0 0.0
    %5416 = vmatprep.subr.mxu0 0.0
    %5417 = vmatpush1.msra.mxu0 0.0
    %5418 = vmatprep.subr.mxu0 0.0
    %5419 = vmatpush1.msra.mxu0 0.0
    %5420 = vmatprep.subr.mxu0 0.0
    %5421 = vmatpush1.msra.mxu0 0.0
    %5422 = vmatprep.subr.mxu0 0.0
    %5423 = vmatpush1.msra.mxu0 0.0
    %5424 = vmatprep.subr.mxu0 0.0
    %5425 = vmatpush1.msra.mxu0 0.0
    %5426 = vmatprep.subr.mxu0 0.0
    %5427 = vmatpush1.msra.mxu0 0.0
    %5428 = vmatprep.subr.mxu0 0.0
    %5429 = vmatpush1.msra.mxu0 0.0
    %5430 = vmatprep.subr.mxu0 0.0
    %5431 = vmatpush1.msra.mxu0 0.0
    %5432 = vmatprep.subr.mxu0 0.0
    %5433 = vmatpush1.msra.mxu0 0.0
    %5434 = vmatprep.subr.mxu0 0.0
    %5435 = vmatpush1.msra.mxu0 0.0
    %5436 = vmatprep.subr.mxu0 0.0
    %5437 = vmatpush1.msra.mxu0 0.0
    %5438 = vmatprep.subr.mxu0 0.0
    %5439 = vmatpush1.msra.mxu0 0.0
    %5440 = vmatprep.subr.mxu0 0.0
    %5441 = vmatpush1.msra.mxu0 0.0
    %5442 = vmatprep.subr.mxu0 0.0
    %5443 = vmatpush1.msra.mxu0 0.0
    %5444 = vmatprep.subr.mxu0 0.0
    %5445 = vmatpush1.msra.mxu0 0.0
    %5446 = vmatprep.subr.mxu0 0.0
    %5447 = vmatpush1.msra.mxu0 0.0
    %5448 = vmatprep.subr.mxu0 0.0
    %5449 = vmatpush1.msra.mxu0 0.0
    %5450 = vmatprep.subr.mxu0 0.0
    %5451 = vmatpush1.msra.mxu0 0.0
    %5452 = vmatprep.subr.mxu0 0.0
    %5453 = vmatpush1.msra.mxu0 0.0
    %5454 = vmatprep.subr.mxu0 0.0
    %5455 = vmatpush1.msra.mxu0 0.0
    %5456 = vmatprep.subr.mxu0 0.0
    %5457 = vmatpush1.msra.mxu0 0.0
    %5458 = vmatprep.subr.mxu0 0.0
    %5459 = vmatpush1.msra.mxu0 0.0
    %5460 = vmatprep.subr.mxu0 0.0
    %5461 = vmatpush1.msra.mxu0 0.0
    %5462 = vmatprep.subr.mxu0 0.0
    %5463 = vmatpush1.msra.mxu0 0.0
    %5464 = vmatprep.subr.mxu0 0.0
    %5465 = vmatpush1.msra.mxu0 0.0
    %5466 = vmatprep.subr.mxu0 0.0
    %5467 = vmatpush1.msra.mxu0 0.0
    %5468 = vmatprep.subr.mxu0 0.0
    %5469 = vmatpush1.msra.mxu0 0.0
    %5470 = vmatprep.subr.mxu0 0.0
    %5471 = vmatpush1.msra.mxu0 0.0
    %5472 = vmatprep.subr.mxu0 0.0
    %5473 = vmatpush1.msra.mxu0 0.0
    %5474 = vmatprep.mubr.f32.mxu0 0.0
    %5475 = vmatmul.mubr.f32.gmra.mrb[0].mxu0 %v5408
    %v5476 = vpop.f32.mrb[0].mxu0
    %v5477 = vadd.f32 0.0, %v5476
    %v5478 = vpop.f32.mrb[0].mxu0
    %5479 = vdwg.mxu0
    %s5480 = scalar_lea.vmem %s21, 24
    %v5481 = vld [vmem:[%s5480] sm:$0xff]
    %v5483 = vsel %vm400, %v5404, 0
    %v5486 = vsel %vm400, %v5477, 0
    %5488 = vmatprep.subr.mxu0 0.0
    %5489 = vmatpush1.msra.mxu0 %v5481
    %5490 = vmatprep.subr.mxu0 0.0
    %5491 = vmatpush1.msra.mxu0 0.0
    %5492 = vmatprep.subr.mxu0 0.0
    %5493 = vmatpush1.msra.mxu0 0.0
    %5494 = vmatprep.subr.mxu0 0.0
    %5495 = vmatpush1.msra.mxu0 0.0
    %5496 = vmatprep.subr.mxu0 0.0
    %5497 = vmatpush1.msra.mxu0 0.0
    %5498 = vmatprep.subr.mxu0 0.0
    %5499 = vmatpush1.msra.mxu0 0.0
    %5500 = vmatprep.subr.mxu0 0.0
    %5501 = vmatpush1.msra.mxu0 0.0
    %5502 = vmatprep.subr.mxu0 0.0
    %5503 = vmatpush1.msra.mxu0 0.0
    %5504 = vmatprep.subr.mxu0 0.0
    %5505 = vmatpush1.msra.mxu0 0.0
    %5506 = vmatprep.subr.mxu0 0.0
    %5507 = vmatpush1.msra.mxu0 0.0
    %5508 = vmatprep.subr.mxu0 0.0
    %5509 = vmatpush1.msra.mxu0 0.0
    %5510 = vmatprep.subr.mxu0 0.0
    %5511 = vmatpush1.msra.mxu0 0.0
    %5512 = vmatprep.subr.mxu0 0.0
    %5513 = vmatpush1.msra.mxu0 0.0
    %5514 = vmatprep.subr.mxu0 0.0
    %5515 = vmatpush1.msra.mxu0 0.0
    %5516 = vmatprep.subr.mxu0 0.0
    %5517 = vmatpush1.msra.mxu0 0.0
    %5518 = vmatprep.subr.mxu0 0.0
    %5519 = vmatpush1.msra.mxu0 0.0
    %5520 = vmatprep.subr.mxu0 0.0
    %5521 = vmatpush1.msra.mxu0 0.0
    %5522 = vmatprep.subr.mxu0 0.0
    %5523 = vmatpush1.msra.mxu0 0.0
    %5524 = vmatprep.subr.mxu0 0.0
    %5525 = vmatpush1.msra.mxu0 0.0
    %5526 = vmatprep.subr.mxu0 0.0
    %5527 = vmatpush1.msra.mxu0 0.0
    %5528 = vmatprep.subr.mxu0 0.0
    %5529 = vmatpush1.msra.mxu0 0.0
    %5530 = vmatprep.subr.mxu0 0.0
    %5531 = vmatpush1.msra.mxu0 0.0
    %5532 = vmatprep.subr.mxu0 0.0
    %5533 = vmatpush1.msra.mxu0 0.0
    %5534 = vmatprep.subr.mxu0 0.0
    %5535 = vmatpush1.msra.mxu0 0.0
    %5536 = vmatprep.subr.mxu0 0.0
    %5537 = vmatpush1.msra.mxu0 0.0
    %5538 = vmatprep.subr.mxu0 0.0
    %5539 = vmatpush1.msra.mxu0 0.0
    %5540 = vmatprep.subr.mxu0 0.0
    %5541 = vmatpush1.msra.mxu0 0.0
    %5542 = vmatprep.subr.mxu0 0.0
    %5543 = vmatpush1.msra.mxu0 0.0
    %5544 = vmatprep.subr.mxu0 0.0
    %5545 = vmatpush1.msra.mxu0 0.0
    %5546 = vmatprep.subr.mxu0 0.0
    %5547 = vmatpush1.msra.mxu0 0.0
    %5548 = vmatprep.subr.mxu0 0.0
    %5549 = vmatpush1.msra.mxu0 0.0
    %5550 = vmatprep.subr.mxu0 0.0
    %5551 = vmatpush1.msra.mxu0 0.0
    %5552 = vmatprep.mubr.f32.mxu0 0.0
    %5553 = vmatmul.mubr.f32.gmra.mrb[0].mxu0 %v5483
    %v5554 = vpop.f32.mrb[0].mxu0
    %v5555 = vadd.f32 0.0, %v5554
    %v5556 = vpop.f32.mrb[0].mxu0
    %5557 = vmatprep.mubr.f32.mxu0 0.0
    %5558 = vmatmul.mubr.f32.gmra.mrb[0].mxu0 %v5486
    %v5559 = vpop.f32.mrb[0].mxu0
    %v5560 = vadd.f32 0.0, %v5559
    %v5561 = vpop.f32.mrb[0].mxu0
    %5562 = vdwg.mxu0
    %v5563 = vadd.f32 %v4892, %v5555
    %v5564 = vadd.f32 %v4893, %v5560
    %v5565 = vld [vmem:[%s22] sm:$0x1]
    %v5567 = vlaneseq
    %v5568 = vshrl.u32 %v5567, 7
    %v5569 = vsub.s32 0, %v5568
    %v5570 = vrot.slane %v5565, %v5569
    %v5572 = vadd.f32 %v5563, %v5570
    %v5573 = vadd.f32 %v5564, %v5570
    %v5574 = vadd.f32 %v2839, %v5572
    %v5575 = vadd.f32 %v2840, %v5573
    %v5576 = vld [vmem:[%s23] sm:$0x1]
    %v5577 = vmul.f32 %v5574, %v5574
    %v5578 = vmul.f32 %v5575, %v5575
    %v5579 = vsel %vm97, %v5577, 0.0
    %5580 = vadd.xlane.f32.xlu0 %v5579
    %v5581 = vpop.xlane.xlu0 %5580
    %v5582 = vsel %vm97, %v5578, 0.0
    %5583 = vadd.xlane.f32.xlu0 %v5582
    %v5584 = vpop.xlane.xlu0 %5583
    %v5585 = vmul.f32 %v5581, %v104
    %v5586 = vmul.f32 %v5584, %v104
    %v5587 = vadd.f32 %v5585, 1e-06
    %v5588 = vadd.f32 %v5586, 1e-06
    %v5589 = vrsqrt.pop %v5587
    %v5590 = vrsqrt.pop %v5588
    %v5591 = vmul.f32 %v5574, %v5589
    %v5592 = vmul.f32 %v5575, %v5590
    %v5594 = vlaneseq
    %v5595 = vshrl.u32 %v5594, 7
    %v5596 = vsub.s32 0, %v5595
    %v5597 = vrot.slane %v5576, %v5596
    %v5599 = vmul.f32 %v5597, %v5591
    %v5600 = vmul.f32 %v5597, %v5592
    %v5601 = vld [vmem:[%s24] sm:$0xff]
    %v5602 = vld [vmem:[%s24 + $0x8] sm:$0xff]
    %v5603 = vld [vmem:[%s24 + $0x10] sm:$0xff]
    %v5604 = vld [vmem:[%s24 + $0x18] sm:$0xff]
    %v5605 = vld [vmem:[%s25] sm:$0x1]
    %v5607 = vlaneseq
    %v5608 = vshrl.u32 %v5607, 7
    %v5609 = vsub.s32 0, %v5608
    %v5610 = vrot.slane %v5605, %v5609
    %v5613 = vsel %vm97, %v5599, 0
    %v5616 = vsel %vm97, %v5600, 0
    %5618 = vmatprep.subr.mxu0 0.0
    %5619 = vmatpush1.msra.mxu0 %v5601
    %5620 = vmatprep.subr.mxu0 0.0
    %5621 = vmatpush1.msra.mxu0 %v5602
    %5622 = vmatprep.subr.mxu0 0.0
    %5623 = vmatpush1.msra.mxu0 %v5603
    %5624 = vmatprep.subr.mxu0 0.0
    %5625 = vmatpush1.msra.mxu0 %v5604
    %5626 = vmatprep.subr.mxu0 0.0
    %5627 = vmatpush1.msra.mxu0 0.0
    %5628 = vmatprep.subr.mxu0 0.0
    %5629 = vmatpush1.msra.mxu0 0.0
    %5630 = vmatprep.subr.mxu0 0.0
    %5631 = vmatpush1.msra.mxu0 0.0
    %5632 = vmatprep.subr.mxu0 0.0
    %5633 = vmatpush1.msra.mxu0 0.0
    %5634 = vmatprep.subr.mxu0 0.0
    %5635 = vmatpush1.msra.mxu0 0.0
    %5636 = vmatprep.subr.mxu0 0.0
    %5637 = vmatpush1.msra.mxu0 0.0
    %5638 = vmatprep.subr.mxu0 0.0
    %5639 = vmatpush1.msra.mxu0 0.0
    %5640 = vmatprep.subr.mxu0 0.0
    %5641 = vmatpush1.msra.mxu0 0.0
    %5642 = vmatprep.subr.mxu0 0.0
    %5643 = vmatpush1.msra.mxu0 0.0
    %5644 = vmatprep.subr.mxu0 0.0
    %5645 = vmatpush1.msra.mxu0 0.0
    %5646 = vmatprep.subr.mxu0 0.0
    %5647 = vmatpush1.msra.mxu0 0.0
    %5648 = vmatprep.subr.mxu0 0.0
    %5649 = vmatpush1.msra.mxu0 0.0
    %5650 = vmatprep.subr.mxu0 0.0
    %5651 = vmatpush1.msra.mxu0 0.0
    %5652 = vmatprep.subr.mxu0 0.0
    %5653 = vmatpush1.msra.mxu0 0.0
    %5654 = vmatprep.subr.mxu0 0.0
    %5655 = vmatpush1.msra.mxu0 0.0
    %5656 = vmatprep.subr.mxu0 0.0
    %5657 = vmatpush1.msra.mxu0 0.0
    %5658 = vmatprep.subr.mxu0 0.0
    %5659 = vmatpush1.msra.mxu0 0.0
    %5660 = vmatprep.subr.mxu0 0.0
    %5661 = vmatpush1.msra.mxu0 0.0
    %5662 = vmatprep.subr.mxu0 0.0
    %5663 = vmatpush1.msra.mxu0 0.0
    %5664 = vmatprep.subr.mxu0 0.0
    %5665 = vmatpush1.msra.mxu0 0.0
    %5666 = vmatprep.subr.mxu0 0.0
    %5667 = vmatpush1.msra.mxu0 0.0
    %5668 = vmatprep.subr.mxu0 0.0
    %5669 = vmatpush1.msra.mxu0 0.0
    %5670 = vmatprep.subr.mxu0 0.0
    %5671 = vmatpush1.msra.mxu0 0.0
    %5672 = vmatprep.subr.mxu0 0.0
    %5673 = vmatpush1.msra.mxu0 0.0
    %5674 = vmatprep.subr.mxu0 0.0
    %5675 = vmatpush1.msra.mxu0 0.0
    %5676 = vmatprep.subr.mxu0 0.0
    %5677 = vmatpush1.msra.mxu0 0.0
    %5678 = vmatprep.subr.mxu0 0.0
    %5679 = vmatpush1.msra.mxu0 0.0
    %5680 = vmatprep.subr.mxu0 0.0
    %5681 = vmatpush1.msra.mxu0 0.0
    %5682 = vmatprep.mubr.f32.mxu0 0.0
    %5683 = vmatmul.mubr.f32.gmra.mrb[0].mxu0 %v5613
    %v5684 = vpop.f32.mrb[0].mxu0
    %v5685 = vadd.f32 %v5610, %v5684
    %v5686 = vpop.f32.mrb[0].mxu0
    %5687 = vmatprep.mubr.f32.mxu0 0.0
    %5688 = vmatmul.mubr.f32.gmra.mrb[0].mxu0 %v5616
    %v5689 = vpop.f32.mrb[0].mxu0
    %v5690 = vadd.f32 %v5610, %v5689
    %v5691 = vpop.f32.mrb[0].mxu0
    %5692 = vdwg.mxu0
    %v5693 = vmax.f32 %v5685, 0.0
    %v5694 = vmax.f32 %v5690, 0.0
    %v5695 = vld [vmem:[%s26] sm:$0xff]
    %v5696 = vld [vmem:[%s26 + $0x8] sm:$0xff]
    %v5697 = vld [vmem:[%s26 + $0x10] sm:$0xff]
    %v5698 = vld [vmem:[%s26 + $0x18] sm:$0xff]
    %v5699 = vld [vmem:[%s26 + $0x20] sm:$0xff]
    %v5700 = vld [vmem:[%s26 + $0x28] sm:$0xff]
    %v5701 = vld [vmem:[%s26 + $0x30] sm:$0xff]
    %v5702 = vld [vmem:[%s26 + $0x38] sm:$0xff]
    %v5703 = vld [vmem:[%s27] sm:$0x1]
    %v5705 = vlaneseq
    %v5706 = vshrl.u32 %v5705, 7
    %v5707 = vsub.s32 0, %v5706
    %v5708 = vrot.slane %v5703, %v5707
    %vm5710 = vcmask 523264
    %v5712 = vsel %vm5710, %v5693, 0
    %v5715 = vsel %vm5710, %v5694, 0
    %5717 = vmatprep.subr.mxu0 0.0
    %5718 = vmatpush1.msra.mxu0 %v5695
    %5719 = vmatprep.subr.mxu0 0.0
    %5720 = vmatpush1.msra.mxu0 %v5696
    %5721 = vmatprep.subr.mxu0 0.0
    %5722 = vmatpush1.msra.mxu0 %v5697
    %5723 = vmatprep.subr.mxu0 0.0
    %5724 = vmatpush1.msra.mxu0 %v5698
    %5725 = vmatprep.subr.mxu0 0.0
    %5726 = vmatpush1.msra.mxu0 %v5699
    %5727 = vmatprep.subr.mxu0 0.0
    %5728 = vmatpush1.msra.mxu0 %v5700
    %5729 = vmatprep.subr.mxu0 0.0
    %5730 = vmatpush1.msra.mxu0 %v5701
    %5731 = vmatprep.subr.mxu0 0.0
    %5732 = vmatpush1.msra.mxu0 %v5702
    %5733 = vmatprep.subr.mxu0 0.0
    %5734 = vmatpush1.msra.mxu0 0.0
    %5735 = vmatprep.subr.mxu0 0.0
    %5736 = vmatpush1.msra.mxu0 0.0
    %5737 = vmatprep.subr.mxu0 0.0
    %5738 = vmatpush1.msra.mxu0 0.0
    %5739 = vmatprep.subr.mxu0 0.0
    %5740 = vmatpush1.msra.mxu0 0.0
    %5741 = vmatprep.subr.mxu0 0.0
    %5742 = vmatpush1.msra.mxu0 0.0
    %5743 = vmatprep.subr.mxu0 0.0
    %5744 = vmatpush1.msra.mxu0 0.0
    %5745 = vmatprep.subr.mxu0 0.0
    %5746 = vmatpush1.msra.mxu0 0.0
    %5747 = vmatprep.subr.mxu0 0.0
    %5748 = vmatpush1.msra.mxu0 0.0
    %5749 = vmatprep.subr.mxu0 0.0
    %5750 = vmatpush1.msra.mxu0 0.0
    %5751 = vmatprep.subr.mxu0 0.0
    %5752 = vmatpush1.msra.mxu0 0.0
    %5753 = vmatprep.subr.mxu0 0.0
    %5754 = vmatpush1.msra.mxu0 0.0
    %5755 = vmatprep.subr.mxu0 0.0
    %5756 = vmatpush1.msra.mxu0 0.0
    %5757 = vmatprep.subr.mxu0 0.0
    %5758 = vmatpush1.msra.mxu0 0.0
    %5759 = vmatprep.subr.mxu0 0.0
    %5760 = vmatpush1.msra.mxu0 0.0
    %5761 = vmatprep.subr.mxu0 0.0
    %5762 = vmatpush1.msra.mxu0 0.0
    %5763 = vmatprep.subr.mxu0 0.0
    %5764 = vmatpush1.msra.mxu0 0.0
    %5765 = vmatprep.subr.mxu0 0.0
    %5766 = vmatpush1.msra.mxu0 0.0
    %5767 = vmatprep.subr.mxu0 0.0
    %5768 = vmatpush1.msra.mxu0 0.0
    %5769 = vmatprep.subr.mxu0 0.0
    %5770 = vmatpush1.msra.mxu0 0.0
    %5771 = vmatprep.subr.mxu0 0.0
    %5772 = vmatpush1.msra.mxu0 0.0
    %5773 = vmatprep.subr.mxu0 0.0
    %5774 = vmatpush1.msra.mxu0 0.0
    %5775 = vmatprep.subr.mxu0 0.0
    %5776 = vmatpush1.msra.mxu0 0.0
    %5777 = vmatprep.subr.mxu0 0.0
    %5778 = vmatpush1.msra.mxu0 0.0
    %5779 = vmatprep.subr.mxu0 0.0
    %5780 = vmatpush1.msra.mxu0 0.0
    %5781 = vmatprep.mubr.f32.mxu0 0.0
    %5782 = vmatmul.mubr.f32.gmra.mrb[0].mxu0 %v5712
    %v5783 = vpop.f32.mrb[0].mxu0
    %v5784 = vadd.f32 %v5708, %v5783
    %v5785 = vpop.f32.mrb[0].mxu0
    %5786 = vmatprep.mubr.f32.mxu0 0.0
    %5787 = vmatmul.mubr.f32.gmra.mrb[0].mxu0 %v5715
    %v5788 = vpop.f32.mrb[0].mxu0
    %v5789 = vadd.f32 %v5708, %v5788
    %v5790 = vpop.f32.mrb[0].mxu0
    %5791 = vdwg.mxu0
    %v5792 = vadd.f32 %v5574, %v5784
    %v5793 = vadd.f32 %v5575, %v5789
    %5794 = vst.msk [vmem:[#allocation2] sm:$0xff] %vm97, %v5792
    %5795 = vst.msk [vmem:[#allocation2 + $0x8] sm:$0xff] %vm97, %v5793
    // Predicated region
    $region114: #{t5_block_forward.1} parent=1 // pred_check
      _
    $region115: #{t5_block_forward.1} parent=1 // pred_check_branch
      %5797 = sbr.rel (0) target = $region117
    $region116: #{t5_block_forward.1} parent=1 // pred_region
      %s5799 = ssub.s32 256, 256
      %5800 = vsyncadd [#allocation3], %s5799
      %s5801 = sshll.u32 [#allocation2], 4
      %s5802 = int_to_ptr.vmem [resolvable:$true] %s5801
      %5807 = dma.vmem_to_hbm [thread:$0]  %s5802, 256, %s28, [#allocation3], 128, 128, 8
    $region117: #{t5_block_forward.1} parent=1 // pred_fallthru
      _
    // Predicated region
    $region118: #{t5_block_forward.1} parent=1 // pred_check
      _
    $region119: #{t5_block_forward.1} parent=1 // pred_check_branch
      %5809 = sbr.rel (0) target = $region121
    $region120: #{t5_block_forward.1} parent=1 // pred_region
      %5810 = dma.done [#allocation3], 256
    $region121: #{t5_block_forward.1} parent=1 // pred_fallthru
      _
    %5811 = vsyncpa [#allocation3], 1

</llo_original>
